<compile_context>
chip_gen: v7x
topology: tpu7x:2x2x1
jax: 0.10.0
libtpu: 0.0.40
codegen_flags: <defaults>
</compile_context>

<pallas_src>
import jax
import jax.numpy as jnp
from jax.experimental import pallas as pl
from jax.experimental.pallas import tpu as pltpu

VMEM = pl.BlockSpec(memory_space=pltpu.MemorySpace.VMEM)


# --------------------------------------------------------------------------
# Whole-forward fused kernel factory.
# Ref order (inputs):
#   x_emb (B,T,E), mask (B,T,1),
#   [wih_l (in,8H), whh_l (2H,8H), b_l (1,8H)] * num_layers,
#   w_bridge_h (2H,H), b_bridge_h (1,H), w_bridge_c (2H,H), b_bridge_c (1,H),
#   im_feat (B,2048) bf16, w_proj_q (H,H), w_proj_im (2048,H) bf16,
#   w_fc3 (H,A), b_fc3 (1,A)
# Ref order (outputs):
#   enc (B,T,2H), bridge_h (L,B,H), bridge_c (L,B,H), pred (B,A), q_im (B,H)
# --------------------------------------------------------------------------
def make_vqa_kernel(num_layers, hidden_size):
    H = hidden_size
    G = 4 * H

    def cell(gates, h, c, m):
        # gate order: i, f, g, o (matches PyTorch nn.LSTM)
        i_g = jax.nn.sigmoid(gates[:, 0:H])
        f_g = jax.nn.sigmoid(gates[:, H:2 * H])
        g_g = jnp.tanh(gates[:, 2 * H:3 * H])
        o_g = jax.nn.sigmoid(gates[:, 3 * H:4 * H])
        c_new = f_g * c + i_g * g_g
        h_new = o_g * jnp.tanh(c_new)
        h_out = m * h_new                      # padded steps emit zeros
        h_keep = h_out + (1.0 - m) * h         # state frozen on padded steps
        c_keep = m * c_new + (1.0 - m) * c
        return h_keep, c_keep, h_out

    def kernel(*refs):
        n_lstm = 3 * num_layers
        x_ref, mask_ref = refs[0], refs[1]
        lstm_refs = refs[2:2 + n_lstm]
        (wbh_ref, bbh_ref, wbc_ref, bbc_ref, im_ref, wq_ref, wim_ref,
         wfc3_ref, bfc3_ref) = refs[2 + n_lstm:2 + n_lstm + 9]
        enc_ref, bh_ref, bc_ref, pred_ref, qim_ref = refs[2 + n_lstm + 9:]

        B, T, _ = x_ref.shape
        mask = mask_ref[...]                   # (B, T, 1)
        layer_in = x_ref[...]                  # (B, T, E) batch-first
        finals_h, finals_c = [], []

        for layer in range(num_layers):
            wih = lstm_refs[3 * layer][...]          # (in_dim, 8H)
            whh = lstm_refs[3 * layer + 1][...]      # (2H, 8H) block-diag
            b = lstm_refs[3 * layer + 2][...]        # (1, 8H)
            in_dim = layer_in.shape[-1]

            # Hoisted input projection + bias for BOTH directions, one matmul.
            gx = (jnp.dot(layer_in.reshape(B * T, in_dim), wih,
                          preferred_element_type=jnp.float32)
                  + b).reshape(B, T, 2 * G)

            h_f = jnp.zeros((B, H), jnp.float32)
            c_f = jnp.zeros((B, H), jnp.float32)
            h_b = jnp.zeros((B, H), jnp.float32)
            c_b = jnp.zeros((B, H), jnp.float32)
            out_f = [None] * T
            out_b = [None] * T

            for s in range(T):                       # fully unrolled, T static
                tb = T - 1 - s
                h_cat = jnp.concatenate([h_f, h_b], axis=-1)          # (B, 2H)
                rec = jnp.dot(h_cat, whh,
                              preferred_element_type=jnp.float32)     # (B, 8H)
                gates_f = gx[:, s, 0:G] + rec[:, 0:G]
                gates_b = gx[:, tb, G:2 * G] + rec[:, G:2 * G]
                h_f, c_f, o_fs = cell(gates_f, h_f, c_f, mask[:, s, :])
                h_b, c_b, o_bt = cell(gates_b, h_b, c_b, mask[:, tb, :])
                out_f[s] = o_fs
                out_b[tb] = o_bt

            # Batch-first assembly -> (B, T, 2H); stays the next layer's input.
            layer_in = jnp.concatenate(
                [jnp.stack(out_f, axis=1), jnp.stack(out_b, axis=1)], axis=-1)
            finals_h.append(jnp.concatenate([h_f, h_b], axis=-1))     # (B, 2H)
            finals_c.append(jnp.concatenate([c_f, c_b], axis=-1))

        # Single wide store of the full encoder output (no per-step stores).
        enc_ref[...] = layer_in

        L = num_layers
        fh = jnp.stack(finals_h, axis=0).reshape(L * B, 2 * H)
        fc = jnp.stack(finals_c, axis=0).reshape(L * B, 2 * H)
        bh = jnp.tanh(jnp.dot(fh, wbh_ref[...],
                              preferred_element_type=jnp.float32) + bbh_ref[...])
        bc = jnp.tanh(jnp.dot(fc, wbc_ref[...],
                              preferred_element_type=jnp.float32) + bbc_ref[...])
        bh_ref[...] = bh.reshape(L, B, H)
        bc_ref[...] = bc.reshape(L, B, H)

        h0 = bh[0:B]                                 # layer-0 bridged hidden
        q_embed = jnp.maximum(
            jnp.dot(h0, wq_ref[...], preferred_element_type=jnp.float32), 0.0)
        # bf16 operands, f32 accumulation for the only large (K=2048) matmul.
        im_embed = jnp.maximum(
            jnp.dot(im_ref[...], wim_ref[...],
                    preferred_element_type=jnp.float32), 0.0)
        q_im = q_embed * im_embed
        qim_ref[...] = q_im

        logits = jnp.tanh(
            jnp.dot(q_im, wfc3_ref[...], preferred_element_type=jnp.float32)
            + bfc3_ref[...])
        m = jnp.max(logits, axis=-1, keepdims=True)
        lse = m + jnp.log(jnp.sum(jnp.exp(logits - m), axis=-1, keepdims=True))
        pred_ref[...] = logits - lse

    return kernel


# --------------------------------------------------------------------------
# Parameter init (deterministic).  LSTM weights stored pre-packed (see header).
# --------------------------------------------------------------------------
def init_params(key, input_size, emb_size, hidden_size, num_layers, num_answers):
    scale = 0.08
    keys = iter(jax.random.split(key, 64))

    def rnd(shape):
        return scale * jax.random.normal(next(keys), shape, dtype=jnp.float32)

    H = hidden_size
    params = {
        "embedding": rnd((input_size, emb_size)),
        "lstm": [],
        "w_bridge_h": rnd((2 * H, H)),
        "b_bridge_h": rnd((1, H)),
        "w_bridge_c": rnd((2 * H, H)),
        "b_bridge_c": rnd((1, H)),
        "w_proj_q": rnd((H, H)),
        "w_proj_im": rnd((2048, H)),
        "w_fc3": rnd((H, num_answers)),
        "b_fc3": rnd((1, num_answers)),
    }
    for layer in range(num_layers):
        in_dim = emb_size if layer == 0 else 2 * H
        wih_f = rnd((in_dim, 4 * H))
        whh_f = rnd((H, 4 * H))
        b_f = rnd((1, 4 * H))
        wih_b = rnd((in_dim, 4 * H))
        whh_b = rnd((H, 4 * H))
        b_b = rnd((1, 4 * H))
        whh_blk = jnp.zeros((2 * H, 8 * H), jnp.float32)
        whh_blk = whh_blk.at[:H, :4 * H].set(whh_f)
        whh_blk = whh_blk.at[H:, 4 * H:].set(whh_b)
        params["lstm"].append({
            "wih": jnp.concatenate([wih_f, wih_b], axis=1),
            "whh": whh_blk,
            "b": jnp.concatenate([b_f, b_b], axis=1),
        })
    return params


# --------------------------------------------------------------------------
# Forward pass: one pallas_call for everything except the embedding gather.
# --------------------------------------------------------------------------
def vqa_forward(params, question, lengths, image):
    B, T = question.shape
    H = params["w_proj_q"].shape[0]
    L = len(params["lstm"])
    A = params["w_fc3"].shape[1]

    # Length mask (pack_padded_sequence emulation), hoisted out of the kernel.
    t_ids = jnp.arange(T, dtype=jnp.int32).reshape(1, T, 1)
    mask = (t_ids < lengths.astype(jnp.int32).reshape(B, 1, 1)
            ).astype(jnp.float32)                              # (B, T, 1)

    # Embedding lookup (plain-JAX glue), batch-first.
    x_emb = jnp.take(params["embedding"], question, axis=0)    # (B, T, E)

    # Image features (ResNet backbone output assumed), bf16 operands.
    im_feat = image.reshape(B, 2048).astype(jnp.bfloat16)
    w_im_bf16 = params["w_proj_im"].astype(jnp.bfloat16)

    lstm_args = []
    for lp in params["lstm"]:
        lstm_args += [lp["wih"], lp["whh"], lp["b"]]

    n_in = 2 + 3 * L + 9
    kernel = make_vqa_kernel(L, H)
    enc_hidden, bridge_h, bridge_c, pred, q_im_embed = pl.pallas_call(
        kernel,
        out_shape=(jax.ShapeDtypeStruct((B, T, 2 * H), jnp.float32),
                   jax.ShapeDtypeStruct((L, B, H), jnp.float32),
                   jax.ShapeDtypeStruct((L, B, H), jnp.float32),
                   jax.ShapeDtypeStruct((B, A), jnp.float32),
                   jax.ShapeDtypeStruct((B, H), jnp.float32)),
        in_specs=[VMEM] * n_in,
        out_specs=(VMEM,) * 5,
    )(x_emb, mask, *lstm_args,
      params["w_bridge_h"], params["b_bridge_h"],
      params["w_bridge_c"], params["b_bridge_c"],
      im_feat, params["w_proj_q"], w_im_bf16,
      params["w_fc3"], params["b_fc3"])

    # Decoder-init state exactly as the PyTorch forward builds it:
    decoder_bridge = (q_im_embed[None], bridge_h)              # (1,B,H), (L,B,H)
    return pred, enc_hidden, decoder_bridge, bridge_c


if __name__ == "__main__":
    B, T = 2, 8
    input_size, emb_size, hidden_size = 50, 32, 32
    num_layers, num_answers = 2, 16

    key = jax.random.PRNGKey(0)
    k_param, k_q, k_im = jax.random.split(key, 3)

    params = init_params(k_param, input_size, emb_size, hidden_size,
                         num_layers, num_answers)

    question = jax.random.randint(k_q, (B, T), 0, input_size, dtype=jnp.int32)
    lengths = jnp.array([8, 5], dtype=jnp.int32)
    # Stand-in for the external ResNet backbone output (B, 2048, 1, 1), NCHW.
    image = jax.random.normal(k_im, (B, 2048, 1, 1), dtype=jnp.float32)

    forward = jax.jit(vqa_forward)
    pred, enc_hidden, dec_bridge, bridge_c = forward(params, question,
                                                     lengths, image)
    jax.block_until_ready(pred)
    assert pred.shape == (B, num_answers)
    assert enc_hidden.shape == (B, T, 2 * hidden_size)
    assert dec_bridge[0].shape == (1, B, hidden_size)
    assert dec_bridge[1].shape == (num_layers, B, hidden_size)
    assert bridge_c.shape == (num_layers, B, hidden_size)
    assert bool(jnp.all(jnp.isfinite(pred)))
    print("KERNEL_OK")
</pallas_src>

<mosaic_0001>
module attributes {stable_mosaic.version = 11 : i64} {
  func.func @kernel(%arg0: memref<2x8x32xf32, #tpu.memory_space<vmem>>, %arg1: memref<2x8x1xf32, #tpu.memory_space<vmem>>, %arg2: memref<32x256xf32, #tpu.memory_space<vmem>>, %arg3: memref<64x256xf32, #tpu.memory_space<vmem>>, %arg4: memref<1x256xf32, #tpu.memory_space<vmem>>, %arg5: memref<64x256xf32, #tpu.memory_space<vmem>>, %arg6: memref<64x256xf32, #tpu.memory_space<vmem>>, %arg7: memref<1x256xf32, #tpu.memory_space<vmem>>, %arg8: memref<64x32xf32, #tpu.memory_space<vmem>>, %arg9: memref<1x32xf32, #tpu.memory_space<vmem>>, %arg10: memref<64x32xf32, #tpu.memory_space<vmem>>, %arg11: memref<1x32xf32, #tpu.memory_space<vmem>>, %arg12: memref<2x2048xbf16, #tpu.memory_space<vmem>>, %arg13: memref<32x32xf32, #tpu.memory_space<vmem>>, %arg14: memref<2048x32xbf16, #tpu.memory_space<vmem>>, %arg15: memref<32x16xf32, #tpu.memory_space<vmem>>, %arg16: memref<1x16xf32, #tpu.memory_space<vmem>>, %arg17: memref<2x8x64xf32, #tpu.memory_space<vmem>>, %arg18: memref<2x2x32xf32, #tpu.memory_space<vmem>>, %arg19: memref<2x2x32xf32, #tpu.memory_space<vmem>>, %arg20: memref<2x16xf32, #tpu.memory_space<vmem>>, %arg21: memref<2x32xf32, #tpu.memory_space<vmem>>) attributes {dimension_semantics = [], scalar_prefetch = 0 : i64, scratch_operands = 0 : i64, tpu.core_type = #tpu.core_type<tc>} {
    %c0 = arith.constant 0 : index
    %c0_0 = arith.constant 0 : index
    %c0_1 = arith.constant 0 : index
    %0 = vector.load %arg1[%c0, %c0_0, %c0_1] : memref<2x8x1xf32, #tpu.memory_space<vmem>>, vector<2x8x1xf32>
    %c0_2 = arith.constant 0 : index
    %c0_3 = arith.constant 0 : index
    %c0_4 = arith.constant 0 : index
    %1 = vector.load %arg0[%c0_2, %c0_3, %c0_4] : memref<2x8x32xf32, #tpu.memory_space<vmem>>, vector<2x8x32xf32>
    %c0_5 = arith.constant 0 : index
    %c0_6 = arith.constant 0 : index
    %2 = vector.load %arg2[%c0_5, %c0_6] : memref<32x256xf32, #tpu.memory_space<vmem>>, vector<32x256xf32>
    %c0_7 = arith.constant 0 : index
    %c0_8 = arith.constant 0 : index
    %3 = vector.load %arg3[%c0_7, %c0_8] : memref<64x256xf32, #tpu.memory_space<vmem>>, vector<64x256xf32>
    %c0_9 = arith.constant 0 : index
    %c0_10 = arith.constant 0 : index
    %4 = vector.load %arg4[%c0_9, %c0_10] : memref<1x256xf32, #tpu.memory_space<vmem>>, vector<1x256xf32>
    %5 = vector.shape_cast %1 : vector<2x8x32xf32> to vector<16x32xf32>
    %cst = arith.constant dense<0.000000e+00> : vector<16x256xf32>
    %6 = tpu.matmul %5, %2, %cst {dimension_numbers = #tpu.dot_dimension_numbers<[1], [0], [0], [1], [0, 0, 1, 1], [], []>} : vector<16x32xf32>, vector<32x256xf32>, vector<16x256xf32> -> vector<16x256xf32>
    %7 = vector.broadcast %4 : vector<1x256xf32> to vector<16x256xf32>
    %8 = arith.addf %6, %7 : vector<16x256xf32>
    %9 = vector.shape_cast %8 : vector<16x256xf32> to vector<2x8x256xf32>
    %cst_11 = arith.constant 0.000000e+00 : f32
    %10 = vector.broadcast %cst_11 : f32 to vector<2x32xf32>
    %cst_12 = arith.constant 0.000000e+00 : f32
    %11 = vector.broadcast %cst_12 : f32 to vector<2x32xf32>
    %cst_13 = arith.constant 0.000000e+00 : f32
    %12 = vector.broadcast %cst_13 : f32 to vector<2x32xf32>
    %cst_14 = arith.constant 0.000000e+00 : f32
    %13 = vector.broadcast %cst_14 : f32 to vector<2x32xf32>
    %14 = tpu.concatenate %10, %12 in 1 : vector<2x32xf32>, vector<2x32xf32> -> vector<2x64xf32>
    %cst_15 = arith.constant dense<0.000000e+00> : vector<2x256xf32>
    %15 = tpu.matmul %14, %3, %cst_15 {dimension_numbers = #tpu.dot_dimension_numbers<[1], [0], [0], [1], [0, 0, 1, 1], [], []>} : vector<2x64xf32>, vector<64x256xf32>, vector<2x256xf32> -> vector<2x256xf32>
    %16 = vector.extract_strided_slice %9 {offsets = [0, 0, 0], sizes = [2, 1, 128], strides = [1, 1, 1]} : vector<2x8x256xf32> to vector<2x1x128xf32>
    %17 = vector.shape_cast %16 : vector<2x1x128xf32> to vector<2x128xf32>
    %18 = vector.extract_strided_slice %15 {offsets = [0, 0], sizes = [2, 128], strides = [1, 1]} : vector<2x256xf32> to vector<2x128xf32>
    %19 = arith.addf %17, %18 : vector<2x128xf32>
    %20 = vector.extract_strided_slice %9 {offsets = [0, 7, 128], sizes = [2, 1, 128], strides = [1, 1, 1]} : vector<2x8x256xf32> to vector<2x1x128xf32>
    %21 = vector.shape_cast %20 : vector<2x1x128xf32> to vector<2x128xf32>
    %22 = vector.extract_strided_slice %15 {offsets = [0, 128], sizes = [2, 128], strides = [1, 1]} : vector<2x256xf32> to vector<2x128xf32>
    %23 = arith.addf %21, %22 : vector<2x128xf32>
    %24 = vector.extract_strided_slice %0 {offsets = [0, 0, 0], sizes = [2, 1, 1], strides = [1, 1, 1]} : vector<2x8x1xf32> to vector<2x1x1xf32>
    %25 = vector.shape_cast %24 : vector<2x1x1xf32> to vector<2x1xf32>
    %26 = vector.extract_strided_slice %19 {offsets = [0, 0], sizes = [2, 32], strides = [1, 1]} : vector<2x128xf32> to vector<2x32xf32>
    %27 = arith.negf %26 : vector<2x32xf32>
    %28 = math.exp %27 : vector<2x32xf32>
    %cst_16 = arith.constant 1.000000e+00 : f32
    %29 = vector.broadcast %cst_16 : f32 to vector<2x32xf32>
    %30 = arith.addf %29, %28 : vector<2x32xf32>
    %31 = arith.divf %29, %30 : vector<2x32xf32>
    %32 = vector.extract_strided_slice %19 {offsets = [0, 32], sizes = [2, 32], strides = [1, 1]} : vector<2x128xf32> to vector<2x32xf32>
    %33 = arith.negf %32 : vector<2x32xf32>
    %34 = math.exp %33 : vector<2x32xf32>
    %cst_17 = arith.constant 1.000000e+00 : f32
    %35 = vector.broadcast %cst_17 : f32 to vector<2x32xf32>
    %36 = arith.addf %35, %34 : vector<2x32xf32>
    %37 = arith.divf %35, %36 : vector<2x32xf32>
    %38 = vector.extract_strided_slice %19 {offsets = [0, 64], sizes = [2, 32], strides = [1, 1]} : vector<2x128xf32> to vector<2x32xf32>
    %39 = math.tanh %38 : vector<2x32xf32>
    %40 = vector.extract_strided_slice %19 {offsets = [0, 96], sizes = [2, 32], strides = [1, 1]} : vector<2x128xf32> to vector<2x32xf32>
    %41 = arith.negf %40 : vector<2x32xf32>
    %42 = math.exp %41 : vector<2x32xf32>
    %cst_18 = arith.constant 1.000000e+00 : f32
    %43 = vector.broadcast %cst_18 : f32 to vector<2x32xf32>
    %44 = arith.addf %43, %42 : vector<2x32xf32>
    %45 = arith.divf %43, %44 : vector<2x32xf32>
    %46 = arith.mulf %37, %11 : vector<2x32xf32>
    %47 = arith.mulf %31, %39 : vector<2x32xf32>
    %48 = arith.addf %46, %47 : vector<2x32xf32>
    %49 = math.tanh %48 : vector<2x32xf32>
    %50 = arith.mulf %45, %49 : vector<2x32xf32>
    %51 = vector.broadcast %25 : vector<2x1xf32> to vector<2x32xf32>
    %52 = arith.mulf %51, %50 : vector<2x32xf32>
    %cst_19 = arith.constant 1.000000e+00 : f32
    %53 = vector.broadcast %cst_19 : f32 to vector<2x1xf32>
    %54 = arith.subf %53, %25 : vector<2x1xf32>
    %55 = vector.broadcast %54 : vector<2x1xf32> to vector<2x32xf32>
    %56 = arith.mulf %55, %10 : vector<2x32xf32>
    %57 = arith.addf %52, %56 : vector<2x32xf32>
    %58 = vector.broadcast %25 : vector<2x1xf32> to vector<2x32xf32>
    %59 = arith.mulf %58, %48 : vector<2x32xf32>
    %cst_20 = arith.constant 1.000000e+00 : f32
    %60 = vector.broadcast %cst_20 : f32 to vector<2x1xf32>
    %61 = arith.subf %60, %25 : vector<2x1xf32>
    %62 = vector.broadcast %61 : vector<2x1xf32> to vector<2x32xf32>
    %63 = arith.mulf %62, %11 : vector<2x32xf32>
    %64 = arith.addf %59, %63 : vector<2x32xf32>
    %65 = vector.extract_strided_slice %0 {offsets = [0, 7, 0], sizes = [2, 1, 1], strides = [1, 1, 1]} : vector<2x8x1xf32> to vector<2x1x1xf32>
    %66 = vector.shape_cast %65 : vector<2x1x1xf32> to vector<2x1xf32>
    %67 = vector.extract_strided_slice %23 {offsets = [0, 0], sizes = [2, 32], strides = [1, 1]} : vector<2x128xf32> to vector<2x32xf32>
    %68 = arith.negf %67 : vector<2x32xf32>
    %69 = math.exp %68 : vector<2x32xf32>
    %cst_21 = arith.constant 1.000000e+00 : f32
    %70 = vector.broadcast %cst_21 : f32 to vector<2x32xf32>
    %71 = arith.addf %70, %69 : vector<2x32xf32>
    %72 = arith.divf %70, %71 : vector<2x32xf32>
    %73 = vector.extract_strided_slice %23 {offsets = [0, 32], sizes = [2, 32], strides = [1, 1]} : vector<2x128xf32> to vector<2x32xf32>
    %74 = arith.negf %73 : vector<2x32xf32>
    %75 = math.exp %74 : vector<2x32xf32>
    %cst_22 = arith.constant 1.000000e+00 : f32
    %76 = vector.broadcast %cst_22 : f32 to vector<2x32xf32>
    %77 = arith.addf %76, %75 : vector<2x32xf32>
    %78 = arith.divf %76, %77 : vector<2x32xf32>
    %79 = vector.extract_strided_slice %23 {offsets = [0, 64], sizes = [2, 32], strides = [1, 1]} : vector<2x128xf32> to vector<2x32xf32>
    %80 = math.tanh %79 : vector<2x32xf32>
    %81 = vector.extract_strided_slice %23 {offsets = [0, 96], sizes = [2, 32], strides = [1, 1]} : vector<2x128xf32> to vector<2x32xf32>
    %82 = arith.negf %81 : vector<2x32xf32>
    %83 = math.exp %82 : vector<2x32xf32>
    %cst_23 = arith.constant 1.000000e+00 : f32
    %84 = vector.broadcast %cst_23 : f32 to vector<2x32xf32>
    %85 = arith.addf %84, %83 : vector<2x32xf32>
    %86 = arith.divf %84, %85 : vector<2x32xf32>
    %87 = arith.mulf %78, %13 : vector<2x32xf32>
    %88 = arith.mulf %72, %80 : vector<2x32xf32>
    %89 = arith.addf %87, %88 : vector<2x32xf32>
    %90 = math.tanh %89 : vector<2x32xf32>
    %91 = arith.mulf %86, %90 : vector<2x32xf32>
    %92 = vector.broadcast %66 : vector<2x1xf32> to vector<2x32xf32>
    %93 = arith.mulf %92, %91 : vector<2x32xf32>
    %cst_24 = arith.constant 1.000000e+00 : f32
    %94 = vector.broadcast %cst_24 : f32 to vector<2x1xf32>
    %95 = arith.subf %94, %66 : vector<2x1xf32>
    %96 = vector.broadcast %95 : vector<2x1xf32> to vector<2x32xf32>
    %97 = arith.mulf %96, %12 : vector<2x32xf32>
    %98 = arith.addf %93, %97 : vector<2x32xf32>
    %99 = vector.broadcast %66 : vector<2x1xf32> to vector<2x32xf32>
    %100 = arith.mulf %99, %89 : vector<2x32xf32>
    %cst_25 = arith.constant 1.000000e+00 : f32
    %101 = vector.broadcast %cst_25 : f32 to vector<2x1xf32>
    %102 = arith.subf %101, %66 : vector<2x1xf32>
    %103 = vector.broadcast %102 : vector<2x1xf32> to vector<2x32xf32>
    %104 = arith.mulf %103, %13 : vector<2x32xf32>
    %105 = arith.addf %100, %104 : vector<2x32xf32>
    %106 = tpu.concatenate %57, %98 in 1 : vector<2x32xf32>, vector<2x32xf32> -> vector<2x64xf32>
    %cst_26 = arith.constant dense<0.000000e+00> : vector<2x256xf32>
    %107 = tpu.matmul %106, %3, %cst_26 {dimension_numbers = #tpu.dot_dimension_numbers<[1], [0], [0], [1], [0, 0, 1, 1], [], []>} : vector<2x64xf32>, vector<64x256xf32>, vector<2x256xf32> -> vector<2x256xf32>
    %108 = vector.extract_strided_slice %9 {offsets = [0, 1, 0], sizes = [2, 1, 128], strides = [1, 1, 1]} : vector<2x8x256xf32> to vector<2x1x128xf32>
    %109 = vector.shape_cast %108 : vector<2x1x128xf32> to vector<2x128xf32>
    %110 = vector.extract_strided_slice %107 {offsets = [0, 0], sizes = [2, 128], strides = [1, 1]} : vector<2x256xf32> to vector<2x128xf32>
    %111 = arith.addf %109, %110 : vector<2x128xf32>
    %112 = vector.extract_strided_slice %9 {offsets = [0, 6, 128], sizes = [2, 1, 128], strides = [1, 1, 1]} : vector<2x8x256xf32> to vector<2x1x128xf32>
    %113 = vector.shape_cast %112 : vector<2x1x128xf32> to vector<2x128xf32>
    %114 = vector.extract_strided_slice %107 {offsets = [0, 128], sizes = [2, 128], strides = [1, 1]} : vector<2x256xf32> to vector<2x128xf32>
    %115 = arith.addf %113, %114 : vector<2x128xf32>
    %116 = vector.extract_strided_slice %0 {offsets = [0, 1, 0], sizes = [2, 1, 1], strides = [1, 1, 1]} : vector<2x8x1xf32> to vector<2x1x1xf32>
    %117 = vector.shape_cast %116 : vector<2x1x1xf32> to vector<2x1xf32>
    %118 = vector.extract_strided_slice %111 {offsets = [0, 0], sizes = [2, 32], strides = [1, 1]} : vector<2x128xf32> to vector<2x32xf32>
    %119 = arith.negf %118 : vector<2x32xf32>
    %120 = math.exp %119 : vector<2x32xf32>
    %cst_27 = arith.constant 1.000000e+00 : f32
    %121 = vector.broadcast %cst_27 : f32 to vector<2x32xf32>
    %122 = arith.addf %121, %120 : vector<2x32xf32>
    %123 = arith.divf %121, %122 : vector<2x32xf32>
    %124 = vector.extract_strided_slice %111 {offsets = [0, 32], sizes = [2, 32], strides = [1, 1]} : vector<2x128xf32> to vector<2x32xf32>
    %125 = arith.negf %124 : vector<2x32xf32>
    %126 = math.exp %125 : vector<2x32xf32>
    %cst_28 = arith.constant 1.000000e+00 : f32
    %127 = vector.broadcast %cst_28 : f32 to vector<2x32xf32>
    %128 = arith.addf %127, %126 : vector<2x32xf32>
    %129 = arith.divf %127, %128 : vector<2x32xf32>
    %130 = vector.extract_strided_slice %111 {offsets = [0, 64], sizes = [2, 32], strides = [1, 1]} : vector<2x128xf32> to vector<2x32xf32>
    %131 = math.tanh %130 : vector<2x32xf32>
    %132 = vector.extract_strided_slice %111 {offsets = [0, 96], sizes = [2, 32], strides = [1, 1]} : vector<2x128xf32> to vector<2x32xf32>
    %133 = arith.negf %132 : vector<2x32xf32>
    %134 = math.exp %133 : vector<2x32xf32>
    %cst_29 = arith.constant 1.000000e+00 : f32
    %135 = vector.broadcast %cst_29 : f32 to vector<2x32xf32>
    %136 = arith.addf %135, %134 : vector<2x32xf32>
    %137 = arith.divf %135, %136 : vector<2x32xf32>
    %138 = arith.mulf %129, %64 : vector<2x32xf32>
    %139 = arith.mulf %123, %131 : vector<2x32xf32>
    %140 = arith.addf %138, %139 : vector<2x32xf32>
    %141 = math.tanh %140 : vector<2x32xf32>
    %142 = arith.mulf %137, %141 : vector<2x32xf32>
    %143 = vector.broadcast %117 : vector<2x1xf32> to vector<2x32xf32>
    %144 = arith.mulf %143, %142 : vector<2x32xf32>
    %cst_30 = arith.constant 1.000000e+00 : f32
    %145 = vector.broadcast %cst_30 : f32 to vector<2x1xf32>
    %146 = arith.subf %145, %117 : vector<2x1xf32>
    %147 = vector.broadcast %146 : vector<2x1xf32> to vector<2x32xf32>
    %148 = arith.mulf %147, %57 : vector<2x32xf32>
    %149 = arith.addf %144, %148 : vector<2x32xf32>
    %150 = vector.broadcast %117 : vector<2x1xf32> to vector<2x32xf32>
    %151 = arith.mulf %150, %140 : vector<2x32xf32>
    %cst_31 = arith.constant 1.000000e+00 : f32
    %152 = vector.broadcast %cst_31 : f32 to vector<2x1xf32>
    %153 = arith.subf %152, %117 : vector<2x1xf32>
    %154 = vector.broadcast %153 : vector<2x1xf32> to vector<2x32xf32>
    %155 = arith.mulf %154, %64 : vector<2x32xf32>
    %156 = arith.addf %151, %155 : vector<2x32xf32>
    %157 = vector.extract_strided_slice %0 {offsets = [0, 6, 0], sizes = [2, 1, 1], strides = [1, 1, 1]} : vector<2x8x1xf32> to vector<2x1x1xf32>
    %158 = vector.shape_cast %157 : vector<2x1x1xf32> to vector<2x1xf32>
    %159 = vector.extract_strided_slice %115 {offsets = [0, 0], sizes = [2, 32], strides = [1, 1]} : vector<2x128xf32> to vector<2x32xf32>
    %160 = arith.negf %159 : vector<2x32xf32>
    %161 = math.exp %160 : vector<2x32xf32>
    %cst_32 = arith.constant 1.000000e+00 : f32
    %162 = vector.broadcast %cst_32 : f32 to vector<2x32xf32>
    %163 = arith.addf %162, %161 : vector<2x32xf32>
    %164 = arith.divf %162, %163 : vector<2x32xf32>
    %165 = vector.extract_strided_slice %115 {offsets = [0, 32], sizes = [2, 32], strides = [1, 1]} : vector<2x128xf32> to vector<2x32xf32>
    %166 = arith.negf %165 : vector<2x32xf32>
    %167 = math.exp %166 : vector<2x32xf32>
    %cst_33 = arith.constant 1.000000e+00 : f32
    %168 = vector.broadcast %cst_33 : f32 to vector<2x32xf32>
    %169 = arith.addf %168, %167 : vector<2x32xf32>
    %170 = arith.divf %168, %169 : vector<2x32xf32>
    %171 = vector.extract_strided_slice %115 {offsets = [0, 64], sizes = [2, 32], strides = [1, 1]} : vector<2x128xf32> to vector<2x32xf32>
    %172 = math.tanh %171 : vector<2x32xf32>
    %173 = vector.extract_strided_slice %115 {offsets = [0, 96], sizes = [2, 32], strides = [1, 1]} : vector<2x128xf32> to vector<2x32xf32>
    %174 = arith.negf %173 : vector<2x32xf32>
    %175 = math.exp %174 : vector<2x32xf32>
    %cst_34 = arith.constant 1.000000e+00 : f32
    %176 = vector.broadcast %cst_34 : f32 to vector<2x32xf32>
    %177 = arith.addf %176, %175 : vector<2x32xf32>
    %178 = arith.divf %176, %177 : vector<2x32xf32>
    %179 = arith.mulf %170, %105 : vector<2x32xf32>
    %180 = arith.mulf %164, %172 : vector<2x32xf32>
    %181 = arith.addf %179, %180 : vector<2x32xf32>
    %182 = math.tanh %181 : vector<2x32xf32>
    %183 = arith.mulf %178, %182 : vector<2x32xf32>
    %184 = vector.broadcast %158 : vector<2x1xf32> to vector<2x32xf32>
    %185 = arith.mulf %184, %183 : vector<2x32xf32>
    %cst_35 = arith.constant 1.000000e+00 : f32
    %186 = vector.broadcast %cst_35 : f32 to vector<2x1xf32>
    %187 = arith.subf %186, %158 : vector<2x1xf32>
    %188 = vector.broadcast %187 : vector<2x1xf32> to vector<2x32xf32>
    %189 = arith.mulf %188, %98 : vector<2x32xf32>
    %190 = arith.addf %185, %189 : vector<2x32xf32>
    %191 = vector.broadcast %158 : vector<2x1xf32> to vector<2x32xf32>
    %192 = arith.mulf %191, %181 : vector<2x32xf32>
    %cst_36 = arith.constant 1.000000e+00 : f32
    %193 = vector.broadcast %cst_36 : f32 to vector<2x1xf32>
    %194 = arith.subf %193, %158 : vector<2x1xf32>
    %195 = vector.broadcast %194 : vector<2x1xf32> to vector<2x32xf32>
    %196 = arith.mulf %195, %105 : vector<2x32xf32>
    %197 = arith.addf %192, %196 : vector<2x32xf32>
    %198 = tpu.concatenate %149, %190 in 1 : vector<2x32xf32>, vector<2x32xf32> -> vector<2x64xf32>
    %cst_37 = arith.constant dense<0.000000e+00> : vector<2x256xf32>
    %199 = tpu.matmul %198, %3, %cst_37 {dimension_numbers = #tpu.dot_dimension_numbers<[1], [0], [0], [1], [0, 0, 1, 1], [], []>} : vector<2x64xf32>, vector<64x256xf32>, vector<2x256xf32> -> vector<2x256xf32>
    %200 = vector.extract_strided_slice %9 {offsets = [0, 2, 0], sizes = [2, 1, 128], strides = [1, 1, 1]} : vector<2x8x256xf32> to vector<2x1x128xf32>
    %201 = vector.shape_cast %200 : vector<2x1x128xf32> to vector<2x128xf32>
    %202 = vector.extract_strided_slice %199 {offsets = [0, 0], sizes = [2, 128], strides = [1, 1]} : vector<2x256xf32> to vector<2x128xf32>
    %203 = arith.addf %201, %202 : vector<2x128xf32>
    %204 = vector.extract_strided_slice %9 {offsets = [0, 5, 128], sizes = [2, 1, 128], strides = [1, 1, 1]} : vector<2x8x256xf32> to vector<2x1x128xf32>
    %205 = vector.shape_cast %204 : vector<2x1x128xf32> to vector<2x128xf32>
    %206 = vector.extract_strided_slice %199 {offsets = [0, 128], sizes = [2, 128], strides = [1, 1]} : vector<2x256xf32> to vector<2x128xf32>
    %207 = arith.addf %205, %206 : vector<2x128xf32>
    %208 = vector.extract_strided_slice %0 {offsets = [0, 2, 0], sizes = [2, 1, 1], strides = [1, 1, 1]} : vector<2x8x1xf32> to vector<2x1x1xf32>
    %209 = vector.shape_cast %208 : vector<2x1x1xf32> to vector<2x1xf32>
    %210 = vector.extract_strided_slice %203 {offsets = [0, 0], sizes = [2, 32], strides = [1, 1]} : vector<2x128xf32> to vector<2x32xf32>
    %211 = arith.negf %210 : vector<2x32xf32>
    %212 = math.exp %211 : vector<2x32xf32>
    %cst_38 = arith.constant 1.000000e+00 : f32
    %213 = vector.broadcast %cst_38 : f32 to vector<2x32xf32>
    %214 = arith.addf %213, %212 : vector<2x32xf32>
    %215 = arith.divf %213, %214 : vector<2x32xf32>
    %216 = vector.extract_strided_slice %203 {offsets = [0, 32], sizes = [2, 32], strides = [1, 1]} : vector<2x128xf32> to vector<2x32xf32>
    %217 = arith.negf %216 : vector<2x32xf32>
    %218 = math.exp %217 : vector<2x32xf32>
    %cst_39 = arith.constant 1.000000e+00 : f32
    %219 = vector.broadcast %cst_39 : f32 to vector<2x32xf32>
    %220 = arith.addf %219, %218 : vector<2x32xf32>
    %221 = arith.divf %219, %220 : vector<2x32xf32>
    %222 = vector.extract_strided_slice %203 {offsets = [0, 64], sizes = [2, 32], strides = [1, 1]} : vector<2x128xf32> to vector<2x32xf32>
    %223 = math.tanh %222 : vector<2x32xf32>
    %224 = vector.extract_strided_slice %203 {offsets = [0, 96], sizes = [2, 32], strides = [1, 1]} : vector<2x128xf32> to vector<2x32xf32>
    %225 = arith.negf %224 : vector<2x32xf32>
    %226 = math.exp %225 : vector<2x32xf32>
    %cst_40 = arith.constant 1.000000e+00 : f32
    %227 = vector.broadcast %cst_40 : f32 to vector<2x32xf32>
    %228 = arith.addf %227, %226 : vector<2x32xf32>
    %229 = arith.divf %227, %228 : vector<2x32xf32>
    %230 = arith.mulf %221, %156 : vector<2x32xf32>
    %231 = arith.mulf %215, %223 : vector<2x32xf32>
    %232 = arith.addf %230, %231 : vector<2x32xf32>
    %233 = math.tanh %232 : vector<2x32xf32>
    %234 = arith.mulf %229, %233 : vector<2x32xf32>
    %235 = vector.broadcast %209 : vector<2x1xf32> to vector<2x32xf32>
    %236 = arith.mulf %235, %234 : vector<2x32xf32>
    %cst_41 = arith.constant 1.000000e+00 : f32
    %237 = vector.broadcast %cst_41 : f32 to vector<2x1xf32>
    %238 = arith.subf %237, %209 : vector<2x1xf32>
    %239 = vector.broadcast %238 : vector<2x1xf32> to vector<2x32xf32>
    %240 = arith.mulf %239, %149 : vector<2x32xf32>
    %241 = arith.addf %236, %240 : vector<2x32xf32>
    %242 = vector.broadcast %209 : vector<2x1xf32> to vector<2x32xf32>
    %243 = arith.mulf %242, %232 : vector<2x32xf32>
    %cst_42 = arith.constant 1.000000e+00 : f32
    %244 = vector.broadcast %cst_42 : f32 to vector<2x1xf32>
    %245 = arith.subf %244, %209 : vector<2x1xf32>
    %246 = vector.broadcast %245 : vector<2x1xf32> to vector<2x32xf32>
    %247 = arith.mulf %246, %156 : vector<2x32xf32>
    %248 = arith.addf %243, %247 : vector<2x32xf32>
    %249 = vector.extract_strided_slice %0 {offsets = [0, 5, 0], sizes = [2, 1, 1], strides = [1, 1, 1]} : vector<2x8x1xf32> to vector<2x1x1xf32>
    %250 = vector.shape_cast %249 : vector<2x1x1xf32> to vector<2x1xf32>
    %251 = vector.extract_strided_slice %207 {offsets = [0, 0], sizes = [2, 32], strides = [1, 1]} : vector<2x128xf32> to vector<2x32xf32>
    %252 = arith.negf %251 : vector<2x32xf32>
    %253 = math.exp %252 : vector<2x32xf32>
    %cst_43 = arith.constant 1.000000e+00 : f32
    %254 = vector.broadcast %cst_43 : f32 to vector<2x32xf32>
    %255 = arith.addf %254, %253 : vector<2x32xf32>
    %256 = arith.divf %254, %255 : vector<2x32xf32>
    %257 = vector.extract_strided_slice %207 {offsets = [0, 32], sizes = [2, 32], strides = [1, 1]} : vector<2x128xf32> to vector<2x32xf32>
    %258 = arith.negf %257 : vector<2x32xf32>
    %259 = math.exp %258 : vector<2x32xf32>
    %cst_44 = arith.constant 1.000000e+00 : f32
    %260 = vector.broadcast %cst_44 : f32 to vector<2x32xf32>
    %261 = arith.addf %260, %259 : vector<2x32xf32>
    %262 = arith.divf %260, %261 : vector<2x32xf32>
    %263 = vector.extract_strided_slice %207 {offsets = [0, 64], sizes = [2, 32], strides = [1, 1]} : vector<2x128xf32> to vector<2x32xf32>
    %264 = math.tanh %263 : vector<2x32xf32>
    %265 = vector.extract_strided_slice %207 {offsets = [0, 96], sizes = [2, 32], strides = [1, 1]} : vector<2x128xf32> to vector<2x32xf32>
    %266 = arith.negf %265 : vector<2x32xf32>
    %267 = math.exp %266 : vector<2x32xf32>
    %cst_45 = arith.constant 1.000000e+00 : f32
    %268 = vector.broadcast %cst_45 : f32 to vector<2x32xf32>
    %269 = arith.addf %268, %267 : vector<2x32xf32>
    %270 = arith.divf %268, %269 : vector<2x32xf32>
    %271 = arith.mulf %262, %197 : vector<2x32xf32>
    %272 = arith.mulf %256, %264 : vector<2x32xf32>
    %273 = arith.addf %271, %272 : vector<2x32xf32>
    %274 = math.tanh %273 : vector<2x32xf32>
    %275 = arith.mulf %270, %274 : vector<2x32xf32>
    %276 = vector.broadcast %250 : vector<2x1xf32> to vector<2x32xf32>
    %277 = arith.mulf %276, %275 : vector<2x32xf32>
    %cst_46 = arith.constant 1.000000e+00 : f32
    %278 = vector.broadcast %cst_46 : f32 to vector<2x1xf32>
    %279 = arith.subf %278, %250 : vector<2x1xf32>
    %280 = vector.broadcast %279 : vector<2x1xf32> to vector<2x32xf32>
    %281 = arith.mulf %280, %190 : vector<2x32xf32>
    %282 = arith.addf %277, %281 : vector<2x32xf32>
    %283 = vector.broadcast %250 : vector<2x1xf32> to vector<2x32xf32>
    %284 = arith.mulf %283, %273 : vector<2x32xf32>
    %cst_47 = arith.constant 1.000000e+00 : f32
    %285 = vector.broadcast %cst_47 : f32 to vector<2x1xf32>
    %286 = arith.subf %285, %250 : vector<2x1xf32>
    %287 = vector.broadcast %286 : vector<2x1xf32> to vector<2x32xf32>
    %288 = arith.mulf %287, %197 : vector<2x32xf32>
    %289 = arith.addf %284, %288 : vector<2x32xf32>
    %290 = tpu.concatenate %241, %282 in 1 : vector<2x32xf32>, vector<2x32xf32> -> vector<2x64xf32>
    %cst_48 = arith.constant dense<0.000000e+00> : vector<2x256xf32>
    %291 = tpu.matmul %290, %3, %cst_48 {dimension_numbers = #tpu.dot_dimension_numbers<[1], [0], [0], [1], [0, 0, 1, 1], [], []>} : vector<2x64xf32>, vector<64x256xf32>, vector<2x256xf32> -> vector<2x256xf32>
    %292 = vector.extract_strided_slice %9 {offsets = [0, 3, 0], sizes = [2, 1, 128], strides = [1, 1, 1]} : vector<2x8x256xf32> to vector<2x1x128xf32>
    %293 = vector.shape_cast %292 : vector<2x1x128xf32> to vector<2x128xf32>
    %294 = vector.extract_strided_slice %291 {offsets = [0, 0], sizes = [2, 128], strides = [1, 1]} : vector<2x256xf32> to vector<2x128xf32>
    %295 = arith.addf %293, %294 : vector<2x128xf32>
    %296 = vector.extract_strided_slice %9 {offsets = [0, 4, 128], sizes = [2, 1, 128], strides = [1, 1, 1]} : vector<2x8x256xf32> to vector<2x1x128xf32>
    %297 = vector.shape_cast %296 : vector<2x1x128xf32> to vector<2x128xf32>
    %298 = vector.extract_strided_slice %291 {offsets = [0, 128], sizes = [2, 128], strides = [1, 1]} : vector<2x256xf32> to vector<2x128xf32>
    %299 = arith.addf %297, %298 : vector<2x128xf32>
    %300 = vector.extract_strided_slice %0 {offsets = [0, 3, 0], sizes = [2, 1, 1], strides = [1, 1, 1]} : vector<2x8x1xf32> to vector<2x1x1xf32>
    %301 = vector.shape_cast %300 : vector<2x1x1xf32> to vector<2x1xf32>
    %302 = vector.extract_strided_slice %295 {offsets = [0, 0], sizes = [2, 32], strides = [1, 1]} : vector<2x128xf32> to vector<2x32xf32>
    %303 = arith.negf %302 : vector<2x32xf32>
    %304 = math.exp %303 : vector<2x32xf32>
    %cst_49 = arith.constant 1.000000e+00 : f32
    %305 = vector.broadcast %cst_49 : f32 to vector<2x32xf32>
    %306 = arith.addf %305, %304 : vector<2x32xf32>
    %307 = arith.divf %305, %306 : vector<2x32xf32>
    %308 = vector.extract_strided_slice %295 {offsets = [0, 32], sizes = [2, 32], strides = [1, 1]} : vector<2x128xf32> to vector<2x32xf32>
    %309 = arith.negf %308 : vector<2x32xf32>
    %310 = math.exp %309 : vector<2x32xf32>
    %cst_50 = arith.constant 1.000000e+00 : f32
    %311 = vector.broadcast %cst_50 : f32 to vector<2x32xf32>
    %312 = arith.addf %311, %310 : vector<2x32xf32>
    %313 = arith.divf %311, %312 : vector<2x32xf32>
    %314 = vector.extract_strided_slice %295 {offsets = [0, 64], sizes = [2, 32], strides = [1, 1]} : vector<2x128xf32> to vector<2x32xf32>
    %315 = math.tanh %314 : vector<2x32xf32>
    %316 = vector.extract_strided_slice %295 {offsets = [0, 96], sizes = [2, 32], strides = [1, 1]} : vector<2x128xf32> to vector<2x32xf32>
    %317 = arith.negf %316 : vector<2x32xf32>
    %318 = math.exp %317 : vector<2x32xf32>
    %cst_51 = arith.constant 1.000000e+00 : f32
    %319 = vector.broadcast %cst_51 : f32 to vector<2x32xf32>
    %320 = arith.addf %319, %318 : vector<2x32xf32>
    %321 = arith.divf %319, %320 : vector<2x32xf32>
    %322 = arith.mulf %313, %248 : vector<2x32xf32>
    %323 = arith.mulf %307, %315 : vector<2x32xf32>
    %324 = arith.addf %322, %323 : vector<2x32xf32>
    %325 = math.tanh %324 : vector<2x32xf32>
    %326 = arith.mulf %321, %325 : vector<2x32xf32>
    %327 = vector.broadcast %301 : vector<2x1xf32> to vector<2x32xf32>
    %328 = arith.mulf %327, %326 : vector<2x32xf32>
    %cst_52 = arith.constant 1.000000e+00 : f32
    %329 = vector.broadcast %cst_52 : f32 to vector<2x1xf32>
    %330 = arith.subf %329, %301 : vector<2x1xf32>
    %331 = vector.broadcast %330 : vector<2x1xf32> to vector<2x32xf32>
    %332 = arith.mulf %331, %241 : vector<2x32xf32>
    %333 = arith.addf %328, %332 : vector<2x32xf32>
    %334 = vector.broadcast %301 : vector<2x1xf32> to vector<2x32xf32>
    %335 = arith.mulf %334, %324 : vector<2x32xf32>
    %cst_53 = arith.constant 1.000000e+00 : f32
    %336 = vector.broadcast %cst_53 : f32 to vector<2x1xf32>
    %337 = arith.subf %336, %301 : vector<2x1xf32>
    %338 = vector.broadcast %337 : vector<2x1xf32> to vector<2x32xf32>
    %339 = arith.mulf %338, %248 : vector<2x32xf32>
    %340 = arith.addf %335, %339 : vector<2x32xf32>
    %341 = vector.extract_strided_slice %0 {offsets = [0, 4, 0], sizes = [2, 1, 1], strides = [1, 1, 1]} : vector<2x8x1xf32> to vector<2x1x1xf32>
    %342 = vector.shape_cast %341 : vector<2x1x1xf32> to vector<2x1xf32>
    %343 = vector.extract_strided_slice %299 {offsets = [0, 0], sizes = [2, 32], strides = [1, 1]} : vector<2x128xf32> to vector<2x32xf32>
    %344 = arith.negf %343 : vector<2x32xf32>
    %345 = math.exp %344 : vector<2x32xf32>
    %cst_54 = arith.constant 1.000000e+00 : f32
    %346 = vector.broadcast %cst_54 : f32 to vector<2x32xf32>
    %347 = arith.addf %346, %345 : vector<2x32xf32>
    %348 = arith.divf %346, %347 : vector<2x32xf32>
    %349 = vector.extract_strided_slice %299 {offsets = [0, 32], sizes = [2, 32], strides = [1, 1]} : vector<2x128xf32> to vector<2x32xf32>
    %350 = arith.negf %349 : vector<2x32xf32>
    %351 = math.exp %350 : vector<2x32xf32>
    %cst_55 = arith.constant 1.000000e+00 : f32
    %352 = vector.broadcast %cst_55 : f32 to vector<2x32xf32>
    %353 = arith.addf %352, %351 : vector<2x32xf32>
    %354 = arith.divf %352, %353 : vector<2x32xf32>
    %355 = vector.extract_strided_slice %299 {offsets = [0, 64], sizes = [2, 32], strides = [1, 1]} : vector<2x128xf32> to vector<2x32xf32>
    %356 = math.tanh %355 : vector<2x32xf32>
    %357 = vector.extract_strided_slice %299 {offsets = [0, 96], sizes = [2, 32], strides = [1, 1]} : vector<2x128xf32> to vector<2x32xf32>
    %358 = arith.negf %357 : vector<2x32xf32>
    %359 = math.exp %358 : vector<2x32xf32>
    %cst_56 = arith.constant 1.000000e+00 : f32
    %360 = vector.broadcast %cst_56 : f32 to vector<2x32xf32>
    %361 = arith.addf %360, %359 : vector<2x32xf32>
    %362 = arith.divf %360, %361 : vector<2x32xf32>
    %363 = arith.mulf %354, %289 : vector<2x32xf32>
    %364 = arith.mulf %348, %356 : vector<2x32xf32>
    %365 = arith.addf %363, %364 : vector<2x32xf32>
    %366 = math.tanh %365 : vector<2x32xf32>
    %367 = arith.mulf %362, %366 : vector<2x32xf32>
    %368 = vector.broadcast %342 : vector<2x1xf32> to vector<2x32xf32>
    %369 = arith.mulf %368, %367 : vector<2x32xf32>
    %cst_57 = arith.constant 1.000000e+00 : f32
    %370 = vector.broadcast %cst_57 : f32 to vector<2x1xf32>
    %371 = arith.subf %370, %342 : vector<2x1xf32>
    %372 = vector.broadcast %371 : vector<2x1xf32> to vector<2x32xf32>
    %373 = arith.mulf %372, %282 : vector<2x32xf32>
    %374 = arith.addf %369, %373 : vector<2x32xf32>
    %375 = vector.broadcast %342 : vector<2x1xf32> to vector<2x32xf32>
    %376 = arith.mulf %375, %365 : vector<2x32xf32>
    %cst_58 = arith.constant 1.000000e+00 : f32
    %377 = vector.broadcast %cst_58 : f32 to vector<2x1xf32>
    %378 = arith.subf %377, %342 : vector<2x1xf32>
    %379 = vector.broadcast %378 : vector<2x1xf32> to vector<2x32xf32>
    %380 = arith.mulf %379, %289 : vector<2x32xf32>
    %381 = arith.addf %376, %380 : vector<2x32xf32>
    %382 = tpu.concatenate %333, %374 in 1 : vector<2x32xf32>, vector<2x32xf32> -> vector<2x64xf32>
    %cst_59 = arith.constant dense<0.000000e+00> : vector<2x256xf32>
    %383 = tpu.matmul %382, %3, %cst_59 {dimension_numbers = #tpu.dot_dimension_numbers<[1], [0], [0], [1], [0, 0, 1, 1], [], []>} : vector<2x64xf32>, vector<64x256xf32>, vector<2x256xf32> -> vector<2x256xf32>
    %384 = vector.extract_strided_slice %9 {offsets = [0, 4, 0], sizes = [2, 1, 128], strides = [1, 1, 1]} : vector<2x8x256xf32> to vector<2x1x128xf32>
    %385 = vector.shape_cast %384 : vector<2x1x128xf32> to vector<2x128xf32>
    %386 = vector.extract_strided_slice %383 {offsets = [0, 0], sizes = [2, 128], strides = [1, 1]} : vector<2x256xf32> to vector<2x128xf32>
    %387 = arith.addf %385, %386 : vector<2x128xf32>
    %388 = vector.extract_strided_slice %9 {offsets = [0, 3, 128], sizes = [2, 1, 128], strides = [1, 1, 1]} : vector<2x8x256xf32> to vector<2x1x128xf32>
    %389 = vector.shape_cast %388 : vector<2x1x128xf32> to vector<2x128xf32>
    %390 = vector.extract_strided_slice %383 {offsets = [0, 128], sizes = [2, 128], strides = [1, 1]} : vector<2x256xf32> to vector<2x128xf32>
    %391 = arith.addf %389, %390 : vector<2x128xf32>
    %392 = vector.extract_strided_slice %0 {offsets = [0, 4, 0], sizes = [2, 1, 1], strides = [1, 1, 1]} : vector<2x8x1xf32> to vector<2x1x1xf32>
    %393 = vector.shape_cast %392 : vector<2x1x1xf32> to vector<2x1xf32>
    %394 = vector.extract_strided_slice %387 {offsets = [0, 0], sizes = [2, 32], strides = [1, 1]} : vector<2x128xf32> to vector<2x32xf32>
    %395 = arith.negf %394 : vector<2x32xf32>
    %396 = math.exp %395 : vector<2x32xf32>
    %cst_60 = arith.constant 1.000000e+00 : f32
    %397 = vector.broadcast %cst_60 : f32 to vector<2x32xf32>
    %398 = arith.addf %397, %396 : vector<2x32xf32>
    %399 = arith.divf %397, %398 : vector<2x32xf32>
    %400 = vector.extract_strided_slice %387 {offsets = [0, 32], sizes = [2, 32], strides = [1, 1]} : vector<2x128xf32> to vector<2x32xf32>
    %401 = arith.negf %400 : vector<2x32xf32>
    %402 = math.exp %401 : vector<2x32xf32>
    %cst_61 = arith.constant 1.000000e+00 : f32
    %403 = vector.broadcast %cst_61 : f32 to vector<2x32xf32>
    %404 = arith.addf %403, %402 : vector<2x32xf32>
    %405 = arith.divf %403, %404 : vector<2x32xf32>
    %406 = vector.extract_strided_slice %387 {offsets = [0, 64], sizes = [2, 32], strides = [1, 1]} : vector<2x128xf32> to vector<2x32xf32>
    %407 = math.tanh %406 : vector<2x32xf32>
    %408 = vector.extract_strided_slice %387 {offsets = [0, 96], sizes = [2, 32], strides = [1, 1]} : vector<2x128xf32> to vector<2x32xf32>
    %409 = arith.negf %408 : vector<2x32xf32>
    %410 = math.exp %409 : vector<2x32xf32>
    %cst_62 = arith.constant 1.000000e+00 : f32
    %411 = vector.broadcast %cst_62 : f32 to vector<2x32xf32>
    %412 = arith.addf %411, %410 : vector<2x32xf32>
    %413 = arith.divf %411, %412 : vector<2x32xf32>
    %414 = arith.mulf %405, %340 : vector<2x32xf32>
    %415 = arith.mulf %399, %407 : vector<2x32xf32>
    %416 = arith.addf %414, %415 : vector<2x32xf32>
    %417 = math.tanh %416 : vector<2x32xf32>
    %418 = arith.mulf %413, %417 : vector<2x32xf32>
    %419 = vector.broadcast %393 : vector<2x1xf32> to vector<2x32xf32>
    %420 = arith.mulf %419, %418 : vector<2x32xf32>
    %cst_63 = arith.constant 1.000000e+00 : f32
    %421 = vector.broadcast %cst_63 : f32 to vector<2x1xf32>
    %422 = arith.subf %421, %393 : vector<2x1xf32>
    %423 = vector.broadcast %422 : vector<2x1xf32> to vector<2x32xf32>
    %424 = arith.mulf %423, %333 : vector<2x32xf32>
    %425 = arith.addf %420, %424 : vector<2x32xf32>
    %426 = vector.broadcast %393 : vector<2x1xf32> to vector<2x32xf32>
    %427 = arith.mulf %426, %416 : vector<2x32xf32>
    %cst_64 = arith.constant 1.000000e+00 : f32
    %428 = vector.broadcast %cst_64 : f32 to vector<2x1xf32>
    %429 = arith.subf %428, %393 : vector<2x1xf32>
    %430 = vector.broadcast %429 : vector<2x1xf32> to vector<2x32xf32>
    %431 = arith.mulf %430, %340 : vector<2x32xf32>
    %432 = arith.addf %427, %431 : vector<2x32xf32>
    %433 = vector.extract_strided_slice %0 {offsets = [0, 3, 0], sizes = [2, 1, 1], strides = [1, 1, 1]} : vector<2x8x1xf32> to vector<2x1x1xf32>
    %434 = vector.shape_cast %433 : vector<2x1x1xf32> to vector<2x1xf32>
    %435 = vector.extract_strided_slice %391 {offsets = [0, 0], sizes = [2, 32], strides = [1, 1]} : vector<2x128xf32> to vector<2x32xf32>
    %436 = arith.negf %435 : vector<2x32xf32>
    %437 = math.exp %436 : vector<2x32xf32>
    %cst_65 = arith.constant 1.000000e+00 : f32
    %438 = vector.broadcast %cst_65 : f32 to vector<2x32xf32>
    %439 = arith.addf %438, %437 : vector<2x32xf32>
    %440 = arith.divf %438, %439 : vector<2x32xf32>
    %441 = vector.extract_strided_slice %391 {offsets = [0, 32], sizes = [2, 32], strides = [1, 1]} : vector<2x128xf32> to vector<2x32xf32>
    %442 = arith.negf %441 : vector<2x32xf32>
    %443 = math.exp %442 : vector<2x32xf32>
    %cst_66 = arith.constant 1.000000e+00 : f32
    %444 = vector.broadcast %cst_66 : f32 to vector<2x32xf32>
    %445 = arith.addf %444, %443 : vector<2x32xf32>
    %446 = arith.divf %444, %445 : vector<2x32xf32>
    %447 = vector.extract_strided_slice %391 {offsets = [0, 64], sizes = [2, 32], strides = [1, 1]} : vector<2x128xf32> to vector<2x32xf32>
    %448 = math.tanh %447 : vector<2x32xf32>
    %449 = vector.extract_strided_slice %391 {offsets = [0, 96], sizes = [2, 32], strides = [1, 1]} : vector<2x128xf32> to vector<2x32xf32>
    %450 = arith.negf %449 : vector<2x32xf32>
    %451 = math.exp %450 : vector<2x32xf32>
    %cst_67 = arith.constant 1.000000e+00 : f32
    %452 = vector.broadcast %cst_67 : f32 to vector<2x32xf32>
    %453 = arith.addf %452, %451 : vector<2x32xf32>
    %454 = arith.divf %452, %453 : vector<2x32xf32>
    %455 = arith.mulf %446, %381 : vector<2x32xf32>
    %456 = arith.mulf %440, %448 : vector<2x32xf32>
    %457 = arith.addf %455, %456 : vector<2x32xf32>
    %458 = math.tanh %457 : vector<2x32xf32>
    %459 = arith.mulf %454, %458 : vector<2x32xf32>
    %460 = vector.broadcast %434 : vector<2x1xf32> to vector<2x32xf32>
    %461 = arith.mulf %460, %459 : vector<2x32xf32>
    %cst_68 = arith.constant 1.000000e+00 : f32
    %462 = vector.broadcast %cst_68 : f32 to vector<2x1xf32>
    %463 = arith.subf %462, %434 : vector<2x1xf32>
    %464 = vector.broadcast %463 : vector<2x1xf32> to vector<2x32xf32>
    %465 = arith.mulf %464, %374 : vector<2x32xf32>
    %466 = arith.addf %461, %465 : vector<2x32xf32>
    %467 = vector.broadcast %434 : vector<2x1xf32> to vector<2x32xf32>
    %468 = arith.mulf %467, %457 : vector<2x32xf32>
    %cst_69 = arith.constant 1.000000e+00 : f32
    %469 = vector.broadcast %cst_69 : f32 to vector<2x1xf32>
    %470 = arith.subf %469, %434 : vector<2x1xf32>
    %471 = vector.broadcast %470 : vector<2x1xf32> to vector<2x32xf32>
    %472 = arith.mulf %471, %381 : vector<2x32xf32>
    %473 = arith.addf %468, %472 : vector<2x32xf32>
    %474 = tpu.concatenate %425, %466 in 1 : vector<2x32xf32>, vector<2x32xf32> -> vector<2x64xf32>
    %cst_70 = arith.constant dense<0.000000e+00> : vector<2x256xf32>
    %475 = tpu.matmul %474, %3, %cst_70 {dimension_numbers = #tpu.dot_dimension_numbers<[1], [0], [0], [1], [0, 0, 1, 1], [], []>} : vector<2x64xf32>, vector<64x256xf32>, vector<2x256xf32> -> vector<2x256xf32>
    %476 = vector.extract_strided_slice %9 {offsets = [0, 5, 0], sizes = [2, 1, 128], strides = [1, 1, 1]} : vector<2x8x256xf32> to vector<2x1x128xf32>
    %477 = vector.shape_cast %476 : vector<2x1x128xf32> to vector<2x128xf32>
    %478 = vector.extract_strided_slice %475 {offsets = [0, 0], sizes = [2, 128], strides = [1, 1]} : vector<2x256xf32> to vector<2x128xf32>
    %479 = arith.addf %477, %478 : vector<2x128xf32>
    %480 = vector.extract_strided_slice %9 {offsets = [0, 2, 128], sizes = [2, 1, 128], strides = [1, 1, 1]} : vector<2x8x256xf32> to vector<2x1x128xf32>
    %481 = vector.shape_cast %480 : vector<2x1x128xf32> to vector<2x128xf32>
    %482 = vector.extract_strided_slice %475 {offsets = [0, 128], sizes = [2, 128], strides = [1, 1]} : vector<2x256xf32> to vector<2x128xf32>
    %483 = arith.addf %481, %482 : vector<2x128xf32>
    %484 = vector.extract_strided_slice %0 {offsets = [0, 5, 0], sizes = [2, 1, 1], strides = [1, 1, 1]} : vector<2x8x1xf32> to vector<2x1x1xf32>
    %485 = vector.shape_cast %484 : vector<2x1x1xf32> to vector<2x1xf32>
    %486 = vector.extract_strided_slice %479 {offsets = [0, 0], sizes = [2, 32], strides = [1, 1]} : vector<2x128xf32> to vector<2x32xf32>
    %487 = arith.negf %486 : vector<2x32xf32>
    %488 = math.exp %487 : vector<2x32xf32>
    %cst_71 = arith.constant 1.000000e+00 : f32
    %489 = vector.broadcast %cst_71 : f32 to vector<2x32xf32>
    %490 = arith.addf %489, %488 : vector<2x32xf32>
    %491 = arith.divf %489, %490 : vector<2x32xf32>
    %492 = vector.extract_strided_slice %479 {offsets = [0, 32], sizes = [2, 32], strides = [1, 1]} : vector<2x128xf32> to vector<2x32xf32>
    %493 = arith.negf %492 : vector<2x32xf32>
    %494 = math.exp %493 : vector<2x32xf32>
    %cst_72 = arith.constant 1.000000e+00 : f32
    %495 = vector.broadcast %cst_72 : f32 to vector<2x32xf32>
    %496 = arith.addf %495, %494 : vector<2x32xf32>
    %497 = arith.divf %495, %496 : vector<2x32xf32>
    %498 = vector.extract_strided_slice %479 {offsets = [0, 64], sizes = [2, 32], strides = [1, 1]} : vector<2x128xf32> to vector<2x32xf32>
    %499 = math.tanh %498 : vector<2x32xf32>
    %500 = vector.extract_strided_slice %479 {offsets = [0, 96], sizes = [2, 32], strides = [1, 1]} : vector<2x128xf32> to vector<2x32xf32>
    %501 = arith.negf %500 : vector<2x32xf32>
    %502 = math.exp %501 : vector<2x32xf32>
    %cst_73 = arith.constant 1.000000e+00 : f32
    %503 = vector.broadcast %cst_73 : f32 to vector<2x32xf32>
    %504 = arith.addf %503, %502 : vector<2x32xf32>
    %505 = arith.divf %503, %504 : vector<2x32xf32>
    %506 = arith.mulf %497, %432 : vector<2x32xf32>
    %507 = arith.mulf %491, %499 : vector<2x32xf32>
    %508 = arith.addf %506, %507 : vector<2x32xf32>
    %509 = math.tanh %508 : vector<2x32xf32>
    %510 = arith.mulf %505, %509 : vector<2x32xf32>
    %511 = vector.broadcast %485 : vector<2x1xf32> to vector<2x32xf32>
    %512 = arith.mulf %511, %510 : vector<2x32xf32>
    %cst_74 = arith.constant 1.000000e+00 : f32
    %513 = vector.broadcast %cst_74 : f32 to vector<2x1xf32>
    %514 = arith.subf %513, %485 : vector<2x1xf32>
    %515 = vector.broadcast %514 : vector<2x1xf32> to vector<2x32xf32>
    %516 = arith.mulf %515, %425 : vector<2x32xf32>
    %517 = arith.addf %512, %516 : vector<2x32xf32>
    %518 = vector.broadcast %485 : vector<2x1xf32> to vector<2x32xf32>
    %519 = arith.mulf %518, %508 : vector<2x32xf32>
    %cst_75 = arith.constant 1.000000e+00 : f32
    %520 = vector.broadcast %cst_75 : f32 to vector<2x1xf32>
    %521 = arith.subf %520, %485 : vector<2x1xf32>
    %522 = vector.broadcast %521 : vector<2x1xf32> to vector<2x32xf32>
    %523 = arith.mulf %522, %432 : vector<2x32xf32>
    %524 = arith.addf %519, %523 : vector<2x32xf32>
    %525 = vector.extract_strided_slice %0 {offsets = [0, 2, 0], sizes = [2, 1, 1], strides = [1, 1, 1]} : vector<2x8x1xf32> to vector<2x1x1xf32>
    %526 = vector.shape_cast %525 : vector<2x1x1xf32> to vector<2x1xf32>
    %527 = vector.extract_strided_slice %483 {offsets = [0, 0], sizes = [2, 32], strides = [1, 1]} : vector<2x128xf32> to vector<2x32xf32>
    %528 = arith.negf %527 : vector<2x32xf32>
    %529 = math.exp %528 : vector<2x32xf32>
    %cst_76 = arith.constant 1.000000e+00 : f32
    %530 = vector.broadcast %cst_76 : f32 to vector<2x32xf32>
    %531 = arith.addf %530, %529 : vector<2x32xf32>
    %532 = arith.divf %530, %531 : vector<2x32xf32>
    %533 = vector.extract_strided_slice %483 {offsets = [0, 32], sizes = [2, 32], strides = [1, 1]} : vector<2x128xf32> to vector<2x32xf32>
    %534 = arith.negf %533 : vector<2x32xf32>
    %535 = math.exp %534 : vector<2x32xf32>
    %cst_77 = arith.constant 1.000000e+00 : f32
    %536 = vector.broadcast %cst_77 : f32 to vector<2x32xf32>
    %537 = arith.addf %536, %535 : vector<2x32xf32>
    %538 = arith.divf %536, %537 : vector<2x32xf32>
    %539 = vector.extract_strided_slice %483 {offsets = [0, 64], sizes = [2, 32], strides = [1, 1]} : vector<2x128xf32> to vector<2x32xf32>
    %540 = math.tanh %539 : vector<2x32xf32>
    %541 = vector.extract_strided_slice %483 {offsets = [0, 96], sizes = [2, 32], strides = [1, 1]} : vector<2x128xf32> to vector<2x32xf32>
    %542 = arith.negf %541 : vector<2x32xf32>
    %543 = math.exp %542 : vector<2x32xf32>
    %cst_78 = arith.constant 1.000000e+00 : f32
    %544 = vector.broadcast %cst_78 : f32 to vector<2x32xf32>
    %545 = arith.addf %544, %543 : vector<2x32xf32>
    %546 = arith.divf %544, %545 : vector<2x32xf32>
    %547 = arith.mulf %538, %473 : vector<2x32xf32>
    %548 = arith.mulf %532, %540 : vector<2x32xf32>
    %549 = arith.addf %547, %548 : vector<2x32xf32>
    %550 = math.tanh %549 : vector<2x32xf32>
    %551 = arith.mulf %546, %550 : vector<2x32xf32>
    %552 = vector.broadcast %526 : vector<2x1xf32> to vector<2x32xf32>
    %553 = arith.mulf %552, %551 : vector<2x32xf32>
    %cst_79 = arith.constant 1.000000e+00 : f32
    %554 = vector.broadcast %cst_79 : f32 to vector<2x1xf32>
    %555 = arith.subf %554, %526 : vector<2x1xf32>
    %556 = vector.broadcast %555 : vector<2x1xf32> to vector<2x32xf32>
    %557 = arith.mulf %556, %466 : vector<2x32xf32>
    %558 = arith.addf %553, %557 : vector<2x32xf32>
    %559 = vector.broadcast %526 : vector<2x1xf32> to vector<2x32xf32>
    %560 = arith.mulf %559, %549 : vector<2x32xf32>
    %cst_80 = arith.constant 1.000000e+00 : f32
    %561 = vector.broadcast %cst_80 : f32 to vector<2x1xf32>
    %562 = arith.subf %561, %526 : vector<2x1xf32>
    %563 = vector.broadcast %562 : vector<2x1xf32> to vector<2x32xf32>
    %564 = arith.mulf %563, %473 : vector<2x32xf32>
    %565 = arith.addf %560, %564 : vector<2x32xf32>
    %566 = tpu.concatenate %517, %558 in 1 : vector<2x32xf32>, vector<2x32xf32> -> vector<2x64xf32>
    %cst_81 = arith.constant dense<0.000000e+00> : vector<2x256xf32>
    %567 = tpu.matmul %566, %3, %cst_81 {dimension_numbers = #tpu.dot_dimension_numbers<[1], [0], [0], [1], [0, 0, 1, 1], [], []>} : vector<2x64xf32>, vector<64x256xf32>, vector<2x256xf32> -> vector<2x256xf32>
    %568 = vector.extract_strided_slice %9 {offsets = [0, 6, 0], sizes = [2, 1, 128], strides = [1, 1, 1]} : vector<2x8x256xf32> to vector<2x1x128xf32>
    %569 = vector.shape_cast %568 : vector<2x1x128xf32> to vector<2x128xf32>
    %570 = vector.extract_strided_slice %567 {offsets = [0, 0], sizes = [2, 128], strides = [1, 1]} : vector<2x256xf32> to vector<2x128xf32>
    %571 = arith.addf %569, %570 : vector<2x128xf32>
    %572 = vector.extract_strided_slice %9 {offsets = [0, 1, 128], sizes = [2, 1, 128], strides = [1, 1, 1]} : vector<2x8x256xf32> to vector<2x1x128xf32>
    %573 = vector.shape_cast %572 : vector<2x1x128xf32> to vector<2x128xf32>
    %574 = vector.extract_strided_slice %567 {offsets = [0, 128], sizes = [2, 128], strides = [1, 1]} : vector<2x256xf32> to vector<2x128xf32>
    %575 = arith.addf %573, %574 : vector<2x128xf32>
    %576 = vector.extract_strided_slice %0 {offsets = [0, 6, 0], sizes = [2, 1, 1], strides = [1, 1, 1]} : vector<2x8x1xf32> to vector<2x1x1xf32>
    %577 = vector.shape_cast %576 : vector<2x1x1xf32> to vector<2x1xf32>
    %578 = vector.extract_strided_slice %571 {offsets = [0, 0], sizes = [2, 32], strides = [1, 1]} : vector<2x128xf32> to vector<2x32xf32>
    %579 = arith.negf %578 : vector<2x32xf32>
    %580 = math.exp %579 : vector<2x32xf32>
    %cst_82 = arith.constant 1.000000e+00 : f32
    %581 = vector.broadcast %cst_82 : f32 to vector<2x32xf32>
    %582 = arith.addf %581, %580 : vector<2x32xf32>
    %583 = arith.divf %581, %582 : vector<2x32xf32>
    %584 = vector.extract_strided_slice %571 {offsets = [0, 32], sizes = [2, 32], strides = [1, 1]} : vector<2x128xf32> to vector<2x32xf32>
    %585 = arith.negf %584 : vector<2x32xf32>
    %586 = math.exp %585 : vector<2x32xf32>
    %cst_83 = arith.constant 1.000000e+00 : f32
    %587 = vector.broadcast %cst_83 : f32 to vector<2x32xf32>
    %588 = arith.addf %587, %586 : vector<2x32xf32>
    %589 = arith.divf %587, %588 : vector<2x32xf32>
    %590 = vector.extract_strided_slice %571 {offsets = [0, 64], sizes = [2, 32], strides = [1, 1]} : vector<2x128xf32> to vector<2x32xf32>
    %591 = math.tanh %590 : vector<2x32xf32>
    %592 = vector.extract_strided_slice %571 {offsets = [0, 96], sizes = [2, 32], strides = [1, 1]} : vector<2x128xf32> to vector<2x32xf32>
    %593 = arith.negf %592 : vector<2x32xf32>
    %594 = math.exp %593 : vector<2x32xf32>
    %cst_84 = arith.constant 1.000000e+00 : f32
    %595 = vector.broadcast %cst_84 : f32 to vector<2x32xf32>
    %596 = arith.addf %595, %594 : vector<2x32xf32>
    %597 = arith.divf %595, %596 : vector<2x32xf32>
    %598 = arith.mulf %589, %524 : vector<2x32xf32>
    %599 = arith.mulf %583, %591 : vector<2x32xf32>
    %600 = arith.addf %598, %599 : vector<2x32xf32>
    %601 = math.tanh %600 : vector<2x32xf32>
    %602 = arith.mulf %597, %601 : vector<2x32xf32>
    %603 = vector.broadcast %577 : vector<2x1xf32> to vector<2x32xf32>
    %604 = arith.mulf %603, %602 : vector<2x32xf32>
    %cst_85 = arith.constant 1.000000e+00 : f32
    %605 = vector.broadcast %cst_85 : f32 to vector<2x1xf32>
    %606 = arith.subf %605, %577 : vector<2x1xf32>
    %607 = vector.broadcast %606 : vector<2x1xf32> to vector<2x32xf32>
    %608 = arith.mulf %607, %517 : vector<2x32xf32>
    %609 = arith.addf %604, %608 : vector<2x32xf32>
    %610 = vector.broadcast %577 : vector<2x1xf32> to vector<2x32xf32>
    %611 = arith.mulf %610, %600 : vector<2x32xf32>
    %cst_86 = arith.constant 1.000000e+00 : f32
    %612 = vector.broadcast %cst_86 : f32 to vector<2x1xf32>
    %613 = arith.subf %612, %577 : vector<2x1xf32>
    %614 = vector.broadcast %613 : vector<2x1xf32> to vector<2x32xf32>
    %615 = arith.mulf %614, %524 : vector<2x32xf32>
    %616 = arith.addf %611, %615 : vector<2x32xf32>
    %617 = vector.extract_strided_slice %0 {offsets = [0, 1, 0], sizes = [2, 1, 1], strides = [1, 1, 1]} : vector<2x8x1xf32> to vector<2x1x1xf32>
    %618 = vector.shape_cast %617 : vector<2x1x1xf32> to vector<2x1xf32>
    %619 = vector.extract_strided_slice %575 {offsets = [0, 0], sizes = [2, 32], strides = [1, 1]} : vector<2x128xf32> to vector<2x32xf32>
    %620 = arith.negf %619 : vector<2x32xf32>
    %621 = math.exp %620 : vector<2x32xf32>
    %cst_87 = arith.constant 1.000000e+00 : f32
    %622 = vector.broadcast %cst_87 : f32 to vector<2x32xf32>
    %623 = arith.addf %622, %621 : vector<2x32xf32>
    %624 = arith.divf %622, %623 : vector<2x32xf32>
    %625 = vector.extract_strided_slice %575 {offsets = [0, 32], sizes = [2, 32], strides = [1, 1]} : vector<2x128xf32> to vector<2x32xf32>
    %626 = arith.negf %625 : vector<2x32xf32>
    %627 = math.exp %626 : vector<2x32xf32>
    %cst_88 = arith.constant 1.000000e+00 : f32
    %628 = vector.broadcast %cst_88 : f32 to vector<2x32xf32>
    %629 = arith.addf %628, %627 : vector<2x32xf32>
    %630 = arith.divf %628, %629 : vector<2x32xf32>
    %631 = vector.extract_strided_slice %575 {offsets = [0, 64], sizes = [2, 32], strides = [1, 1]} : vector<2x128xf32> to vector<2x32xf32>
    %632 = math.tanh %631 : vector<2x32xf32>
    %633 = vector.extract_strided_slice %575 {offsets = [0, 96], sizes = [2, 32], strides = [1, 1]} : vector<2x128xf32> to vector<2x32xf32>
    %634 = arith.negf %633 : vector<2x32xf32>
    %635 = math.exp %634 : vector<2x32xf32>
    %cst_89 = arith.constant 1.000000e+00 : f32
    %636 = vector.broadcast %cst_89 : f32 to vector<2x32xf32>
    %637 = arith.addf %636, %635 : vector<2x32xf32>
    %638 = arith.divf %636, %637 : vector<2x32xf32>
    %639 = arith.mulf %630, %565 : vector<2x32xf32>
    %640 = arith.mulf %624, %632 : vector<2x32xf32>
    %641 = arith.addf %639, %640 : vector<2x32xf32>
    %642 = math.tanh %641 : vector<2x32xf32>
    %643 = arith.mulf %638, %642 : vector<2x32xf32>
    %644 = vector.broadcast %618 : vector<2x1xf32> to vector<2x32xf32>
    %645 = arith.mulf %644, %643 : vector<2x32xf32>
    %cst_90 = arith.constant 1.000000e+00 : f32
    %646 = vector.broadcast %cst_90 : f32 to vector<2x1xf32>
    %647 = arith.subf %646, %618 : vector<2x1xf32>
    %648 = vector.broadcast %647 : vector<2x1xf32> to vector<2x32xf32>
    %649 = arith.mulf %648, %558 : vector<2x32xf32>
    %650 = arith.addf %645, %649 : vector<2x32xf32>
    %651 = vector.broadcast %618 : vector<2x1xf32> to vector<2x32xf32>
    %652 = arith.mulf %651, %641 : vector<2x32xf32>
    %cst_91 = arith.constant 1.000000e+00 : f32
    %653 = vector.broadcast %cst_91 : f32 to vector<2x1xf32>
    %654 = arith.subf %653, %618 : vector<2x1xf32>
    %655 = vector.broadcast %654 : vector<2x1xf32> to vector<2x32xf32>
    %656 = arith.mulf %655, %565 : vector<2x32xf32>
    %657 = arith.addf %652, %656 : vector<2x32xf32>
    %658 = tpu.concatenate %609, %650 in 1 : vector<2x32xf32>, vector<2x32xf32> -> vector<2x64xf32>
    %cst_92 = arith.constant dense<0.000000e+00> : vector<2x256xf32>
    %659 = tpu.matmul %658, %3, %cst_92 {dimension_numbers = #tpu.dot_dimension_numbers<[1], [0], [0], [1], [0, 0, 1, 1], [], []>} : vector<2x64xf32>, vector<64x256xf32>, vector<2x256xf32> -> vector<2x256xf32>
    %660 = vector.extract_strided_slice %9 {offsets = [0, 7, 0], sizes = [2, 1, 128], strides = [1, 1, 1]} : vector<2x8x256xf32> to vector<2x1x128xf32>
    %661 = vector.shape_cast %660 : vector<2x1x128xf32> to vector<2x128xf32>
    %662 = vector.extract_strided_slice %659 {offsets = [0, 0], sizes = [2, 128], strides = [1, 1]} : vector<2x256xf32> to vector<2x128xf32>
    %663 = arith.addf %661, %662 : vector<2x128xf32>
    %664 = vector.extract_strided_slice %9 {offsets = [0, 0, 128], sizes = [2, 1, 128], strides = [1, 1, 1]} : vector<2x8x256xf32> to vector<2x1x128xf32>
    %665 = vector.shape_cast %664 : vector<2x1x128xf32> to vector<2x128xf32>
    %666 = vector.extract_strided_slice %659 {offsets = [0, 128], sizes = [2, 128], strides = [1, 1]} : vector<2x256xf32> to vector<2x128xf32>
    %667 = arith.addf %665, %666 : vector<2x128xf32>
    %668 = vector.extract_strided_slice %0 {offsets = [0, 7, 0], sizes = [2, 1, 1], strides = [1, 1, 1]} : vector<2x8x1xf32> to vector<2x1x1xf32>
    %669 = vector.shape_cast %668 : vector<2x1x1xf32> to vector<2x1xf32>
    %670 = vector.extract_strided_slice %663 {offsets = [0, 0], sizes = [2, 32], strides = [1, 1]} : vector<2x128xf32> to vector<2x32xf32>
    %671 = arith.negf %670 : vector<2x32xf32>
    %672 = math.exp %671 : vector<2x32xf32>
    %cst_93 = arith.constant 1.000000e+00 : f32
    %673 = vector.broadcast %cst_93 : f32 to vector<2x32xf32>
    %674 = arith.addf %673, %672 : vector<2x32xf32>
    %675 = arith.divf %673, %674 : vector<2x32xf32>
    %676 = vector.extract_strided_slice %663 {offsets = [0, 32], sizes = [2, 32], strides = [1, 1]} : vector<2x128xf32> to vector<2x32xf32>
    %677 = arith.negf %676 : vector<2x32xf32>
    %678 = math.exp %677 : vector<2x32xf32>
    %cst_94 = arith.constant 1.000000e+00 : f32
    %679 = vector.broadcast %cst_94 : f32 to vector<2x32xf32>
    %680 = arith.addf %679, %678 : vector<2x32xf32>
    %681 = arith.divf %679, %680 : vector<2x32xf32>
    %682 = vector.extract_strided_slice %663 {offsets = [0, 64], sizes = [2, 32], strides = [1, 1]} : vector<2x128xf32> to vector<2x32xf32>
    %683 = math.tanh %682 : vector<2x32xf32>
    %684 = vector.extract_strided_slice %663 {offsets = [0, 96], sizes = [2, 32], strides = [1, 1]} : vector<2x128xf32> to vector<2x32xf32>
    %685 = arith.negf %684 : vector<2x32xf32>
    %686 = math.exp %685 : vector<2x32xf32>
    %cst_95 = arith.constant 1.000000e+00 : f32
    %687 = vector.broadcast %cst_95 : f32 to vector<2x32xf32>
    %688 = arith.addf %687, %686 : vector<2x32xf32>
    %689 = arith.divf %687, %688 : vector<2x32xf32>
    %690 = arith.mulf %681, %616 : vector<2x32xf32>
    %691 = arith.mulf %675, %683 : vector<2x32xf32>
    %692 = arith.addf %690, %691 : vector<2x32xf32>
    %693 = math.tanh %692 : vector<2x32xf32>
    %694 = arith.mulf %689, %693 : vector<2x32xf32>
    %695 = vector.broadcast %669 : vector<2x1xf32> to vector<2x32xf32>
    %696 = arith.mulf %695, %694 : vector<2x32xf32>
    %cst_96 = arith.constant 1.000000e+00 : f32
    %697 = vector.broadcast %cst_96 : f32 to vector<2x1xf32>
    %698 = arith.subf %697, %669 : vector<2x1xf32>
    %699 = vector.broadcast %698 : vector<2x1xf32> to vector<2x32xf32>
    %700 = arith.mulf %699, %609 : vector<2x32xf32>
    %701 = arith.addf %696, %700 : vector<2x32xf32>
    %702 = vector.broadcast %669 : vector<2x1xf32> to vector<2x32xf32>
    %703 = arith.mulf %702, %692 : vector<2x32xf32>
    %cst_97 = arith.constant 1.000000e+00 : f32
    %704 = vector.broadcast %cst_97 : f32 to vector<2x1xf32>
    %705 = arith.subf %704, %669 : vector<2x1xf32>
    %706 = vector.broadcast %705 : vector<2x1xf32> to vector<2x32xf32>
    %707 = arith.mulf %706, %616 : vector<2x32xf32>
    %708 = arith.addf %703, %707 : vector<2x32xf32>
    %709 = vector.extract_strided_slice %0 {offsets = [0, 0, 0], sizes = [2, 1, 1], strides = [1, 1, 1]} : vector<2x8x1xf32> to vector<2x1x1xf32>
    %710 = vector.shape_cast %709 : vector<2x1x1xf32> to vector<2x1xf32>
    %711 = vector.extract_strided_slice %667 {offsets = [0, 0], sizes = [2, 32], strides = [1, 1]} : vector<2x128xf32> to vector<2x32xf32>
    %712 = arith.negf %711 : vector<2x32xf32>
    %713 = math.exp %712 : vector<2x32xf32>
    %cst_98 = arith.constant 1.000000e+00 : f32
    %714 = vector.broadcast %cst_98 : f32 to vector<2x32xf32>
    %715 = arith.addf %714, %713 : vector<2x32xf32>
    %716 = arith.divf %714, %715 : vector<2x32xf32>
    %717 = vector.extract_strided_slice %667 {offsets = [0, 32], sizes = [2, 32], strides = [1, 1]} : vector<2x128xf32> to vector<2x32xf32>
    %718 = arith.negf %717 : vector<2x32xf32>
    %719 = math.exp %718 : vector<2x32xf32>
    %cst_99 = arith.constant 1.000000e+00 : f32
    %720 = vector.broadcast %cst_99 : f32 to vector<2x32xf32>
    %721 = arith.addf %720, %719 : vector<2x32xf32>
    %722 = arith.divf %720, %721 : vector<2x32xf32>
    %723 = vector.extract_strided_slice %667 {offsets = [0, 64], sizes = [2, 32], strides = [1, 1]} : vector<2x128xf32> to vector<2x32xf32>
    %724 = math.tanh %723 : vector<2x32xf32>
    %725 = vector.extract_strided_slice %667 {offsets = [0, 96], sizes = [2, 32], strides = [1, 1]} : vector<2x128xf32> to vector<2x32xf32>
    %726 = arith.negf %725 : vector<2x32xf32>
    %727 = math.exp %726 : vector<2x32xf32>
    %cst_100 = arith.constant 1.000000e+00 : f32
    %728 = vector.broadcast %cst_100 : f32 to vector<2x32xf32>
    %729 = arith.addf %728, %727 : vector<2x32xf32>
    %730 = arith.divf %728, %729 : vector<2x32xf32>
    %731 = arith.mulf %722, %657 : vector<2x32xf32>
    %732 = arith.mulf %716, %724 : vector<2x32xf32>
    %733 = arith.addf %731, %732 : vector<2x32xf32>
    %734 = math.tanh %733 : vector<2x32xf32>
    %735 = arith.mulf %730, %734 : vector<2x32xf32>
    %736 = vector.broadcast %710 : vector<2x1xf32> to vector<2x32xf32>
    %737 = arith.mulf %736, %735 : vector<2x32xf32>
    %cst_101 = arith.constant 1.000000e+00 : f32
    %738 = vector.broadcast %cst_101 : f32 to vector<2x1xf32>
    %739 = arith.subf %738, %710 : vector<2x1xf32>
    %740 = vector.broadcast %739 : vector<2x1xf32> to vector<2x32xf32>
    %741 = arith.mulf %740, %650 : vector<2x32xf32>
    %742 = arith.addf %737, %741 : vector<2x32xf32>
    %743 = vector.broadcast %710 : vector<2x1xf32> to vector<2x32xf32>
    %744 = arith.mulf %743, %733 : vector<2x32xf32>
    %cst_102 = arith.constant 1.000000e+00 : f32
    %745 = vector.broadcast %cst_102 : f32 to vector<2x1xf32>
    %746 = arith.subf %745, %710 : vector<2x1xf32>
    %747 = vector.broadcast %746 : vector<2x1xf32> to vector<2x32xf32>
    %748 = arith.mulf %747, %657 : vector<2x32xf32>
    %749 = arith.addf %744, %748 : vector<2x32xf32>
    %750 = vector.shape_cast %52 : vector<2x32xf32> to vector<2x1x32xf32>
    %751 = vector.shape_cast %144 : vector<2x32xf32> to vector<2x1x32xf32>
    %752 = vector.shape_cast %236 : vector<2x32xf32> to vector<2x1x32xf32>
    %753 = vector.shape_cast %328 : vector<2x32xf32> to vector<2x1x32xf32>
    %754 = vector.shape_cast %420 : vector<2x32xf32> to vector<2x1x32xf32>
    %755 = vector.shape_cast %512 : vector<2x32xf32> to vector<2x1x32xf32>
    %756 = vector.shape_cast %604 : vector<2x32xf32> to vector<2x1x32xf32>
    %757 = vector.shape_cast %696 : vector<2x32xf32> to vector<2x1x32xf32>
    %758 = tpu.concatenate %750, %751, %752, %753, %754, %755, %756, %757 in 1 : vector<2x1x32xf32>, vector<2x1x32xf32>, vector<2x1x32xf32>, vector<2x1x32xf32>, vector<2x1x32xf32>, vector<2x1x32xf32>, vector<2x1x32xf32>, vector<2x1x32xf32> -> vector<2x8x32xf32>
    %759 = vector.shape_cast %737 : vector<2x32xf32> to vector<2x1x32xf32>
    %760 = vector.shape_cast %645 : vector<2x32xf32> to vector<2x1x32xf32>
    %761 = vector.shape_cast %553 : vector<2x32xf32> to vector<2x1x32xf32>
    %762 = vector.shape_cast %461 : vector<2x32xf32> to vector<2x1x32xf32>
    %763 = vector.shape_cast %369 : vector<2x32xf32> to vector<2x1x32xf32>
    %764 = vector.shape_cast %277 : vector<2x32xf32> to vector<2x1x32xf32>
    %765 = vector.shape_cast %185 : vector<2x32xf32> to vector<2x1x32xf32>
    %766 = vector.shape_cast %93 : vector<2x32xf32> to vector<2x1x32xf32>
    %767 = tpu.concatenate %759, %760, %761, %762, %763, %764, %765, %766 in 1 : vector<2x1x32xf32>, vector<2x1x32xf32>, vector<2x1x32xf32>, vector<2x1x32xf32>, vector<2x1x32xf32>, vector<2x1x32xf32>, vector<2x1x32xf32>, vector<2x1x32xf32> -> vector<2x8x32xf32>
    %768 = tpu.concatenate %758, %767 in 2 : vector<2x8x32xf32>, vector<2x8x32xf32> -> vector<2x8x64xf32>
    %769 = tpu.concatenate %701, %742 in 1 : vector<2x32xf32>, vector<2x32xf32> -> vector<2x64xf32>
    %770 = tpu.concatenate %708, %749 in 1 : vector<2x32xf32>, vector<2x32xf32> -> vector<2x64xf32>
    %c0_103 = arith.constant 0 : index
    %c0_104 = arith.constant 0 : index
    %771 = vector.load %arg5[%c0_103, %c0_104] : memref<64x256xf32, #tpu.memory_space<vmem>>, vector<64x256xf32>
    %c0_105 = arith.constant 0 : index
    %c0_106 = arith.constant 0 : index
    %772 = vector.load %arg6[%c0_105, %c0_106] : memref<64x256xf32, #tpu.memory_space<vmem>>, vector<64x256xf32>
    %c0_107 = arith.constant 0 : index
    %c0_108 = arith.constant 0 : index
    %773 = vector.load %arg7[%c0_107, %c0_108] : memref<1x256xf32, #tpu.memory_space<vmem>>, vector<1x256xf32>
    %774 = vector.shape_cast %768 : vector<2x8x64xf32> to vector<16x64xf32>
    %cst_109 = arith.constant dense<0.000000e+00> : vector<16x256xf32>
    %775 = tpu.matmul %774, %771, %cst_109 {dimension_numbers = #tpu.dot_dimension_numbers<[1], [0], [0], [1], [0, 0, 1, 1], [], []>} : vector<16x64xf32>, vector<64x256xf32>, vector<16x256xf32> -> vector<16x256xf32>
    %776 = vector.broadcast %773 : vector<1x256xf32> to vector<16x256xf32>
    %777 = arith.addf %775, %776 : vector<16x256xf32>
    %778 = vector.shape_cast %777 : vector<16x256xf32> to vector<2x8x256xf32>
    %cst_110 = arith.constant 0.000000e+00 : f32
    %779 = vector.broadcast %cst_110 : f32 to vector<2x32xf32>
    %cst_111 = arith.constant 0.000000e+00 : f32
    %780 = vector.broadcast %cst_111 : f32 to vector<2x32xf32>
    %cst_112 = arith.constant 0.000000e+00 : f32
    %781 = vector.broadcast %cst_112 : f32 to vector<2x32xf32>
    %cst_113 = arith.constant 0.000000e+00 : f32
    %782 = vector.broadcast %cst_113 : f32 to vector<2x32xf32>
    %783 = tpu.concatenate %779, %781 in 1 : vector<2x32xf32>, vector<2x32xf32> -> vector<2x64xf32>
    %cst_114 = arith.constant dense<0.000000e+00> : vector<2x256xf32>
    %784 = tpu.matmul %783, %772, %cst_114 {dimension_numbers = #tpu.dot_dimension_numbers<[1], [0], [0], [1], [0, 0, 1, 1], [], []>} : vector<2x64xf32>, vector<64x256xf32>, vector<2x256xf32> -> vector<2x256xf32>
    %785 = vector.extract_strided_slice %778 {offsets = [0, 0, 0], sizes = [2, 1, 128], strides = [1, 1, 1]} : vector<2x8x256xf32> to vector<2x1x128xf32>
    %786 = vector.shape_cast %785 : vector<2x1x128xf32> to vector<2x128xf32>
    %787 = vector.extract_strided_slice %784 {offsets = [0, 0], sizes = [2, 128], strides = [1, 1]} : vector<2x256xf32> to vector<2x128xf32>
    %788 = arith.addf %786, %787 : vector<2x128xf32>
    %789 = vector.extract_strided_slice %778 {offsets = [0, 7, 128], sizes = [2, 1, 128], strides = [1, 1, 1]} : vector<2x8x256xf32> to vector<2x1x128xf32>
    %790 = vector.shape_cast %789 : vector<2x1x128xf32> to vector<2x128xf32>
    %791 = vector.extract_strided_slice %784 {offsets = [0, 128], sizes = [2, 128], strides = [1, 1]} : vector<2x256xf32> to vector<2x128xf32>
    %792 = arith.addf %790, %791 : vector<2x128xf32>
    %793 = vector.extract_strided_slice %0 {offsets = [0, 0, 0], sizes = [2, 1, 1], strides = [1, 1, 1]} : vector<2x8x1xf32> to vector<2x1x1xf32>
    %794 = vector.shape_cast %793 : vector<2x1x1xf32> to vector<2x1xf32>
    %795 = vector.extract_strided_slice %788 {offsets = [0, 0], sizes = [2, 32], strides = [1, 1]} : vector<2x128xf32> to vector<2x32xf32>
    %796 = arith.negf %795 : vector<2x32xf32>
    %797 = math.exp %796 : vector<2x32xf32>
    %cst_115 = arith.constant 1.000000e+00 : f32
    %798 = vector.broadcast %cst_115 : f32 to vector<2x32xf32>
    %799 = arith.addf %798, %797 : vector<2x32xf32>
    %800 = arith.divf %798, %799 : vector<2x32xf32>
    %801 = vector.extract_strided_slice %788 {offsets = [0, 32], sizes = [2, 32], strides = [1, 1]} : vector<2x128xf32> to vector<2x32xf32>
    %802 = arith.negf %801 : vector<2x32xf32>
    %803 = math.exp %802 : vector<2x32xf32>
    %cst_116 = arith.constant 1.000000e+00 : f32
    %804 = vector.broadcast %cst_116 : f32 to vector<2x32xf32>
    %805 = arith.addf %804, %803 : vector<2x32xf32>
    %806 = arith.divf %804, %805 : vector<2x32xf32>
    %807 = vector.extract_strided_slice %788 {offsets = [0, 64], sizes = [2, 32], strides = [1, 1]} : vector<2x128xf32> to vector<2x32xf32>
    %808 = math.tanh %807 : vector<2x32xf32>
    %809 = vector.extract_strided_slice %788 {offsets = [0, 96], sizes = [2, 32], strides = [1, 1]} : vector<2x128xf32> to vector<2x32xf32>
    %810 = arith.negf %809 : vector<2x32xf32>
    %811 = math.exp %810 : vector<2x32xf32>
    %cst_117 = arith.constant 1.000000e+00 : f32
    %812 = vector.broadcast %cst_117 : f32 to vector<2x32xf32>
    %813 = arith.addf %812, %811 : vector<2x32xf32>
    %814 = arith.divf %812, %813 : vector<2x32xf32>
    %815 = arith.mulf %806, %780 : vector<2x32xf32>
    %816 = arith.mulf %800, %808 : vector<2x32xf32>
    %817 = arith.addf %815, %816 : vector<2x32xf32>
    %818 = math.tanh %817 : vector<2x32xf32>
    %819 = arith.mulf %814, %818 : vector<2x32xf32>
    %820 = vector.broadcast %794 : vector<2x1xf32> to vector<2x32xf32>
    %821 = arith.mulf %820, %819 : vector<2x32xf32>
    %cst_118 = arith.constant 1.000000e+00 : f32
    %822 = vector.broadcast %cst_118 : f32 to vector<2x1xf32>
    %823 = arith.subf %822, %794 : vector<2x1xf32>
    %824 = vector.broadcast %823 : vector<2x1xf32> to vector<2x32xf32>
    %825 = arith.mulf %824, %779 : vector<2x32xf32>
    %826 = arith.addf %821, %825 : vector<2x32xf32>
    %827 = vector.broadcast %794 : vector<2x1xf32> to vector<2x32xf32>
    %828 = arith.mulf %827, %817 : vector<2x32xf32>
    %cst_119 = arith.constant 1.000000e+00 : f32
    %829 = vector.broadcast %cst_119 : f32 to vector<2x1xf32>
    %830 = arith.subf %829, %794 : vector<2x1xf32>
    %831 = vector.broadcast %830 : vector<2x1xf32> to vector<2x32xf32>
    %832 = arith.mulf %831, %780 : vector<2x32xf32>
    %833 = arith.addf %828, %832 : vector<2x32xf32>
    %834 = vector.extract_strided_slice %0 {offsets = [0, 7, 0], sizes = [2, 1, 1], strides = [1, 1, 1]} : vector<2x8x1xf32> to vector<2x1x1xf32>
    %835 = vector.shape_cast %834 : vector<2x1x1xf32> to vector<2x1xf32>
    %836 = vector.extract_strided_slice %792 {offsets = [0, 0], sizes = [2, 32], strides = [1, 1]} : vector<2x128xf32> to vector<2x32xf32>
    %837 = arith.negf %836 : vector<2x32xf32>
    %838 = math.exp %837 : vector<2x32xf32>
    %cst_120 = arith.constant 1.000000e+00 : f32
    %839 = vector.broadcast %cst_120 : f32 to vector<2x32xf32>
    %840 = arith.addf %839, %838 : vector<2x32xf32>
    %841 = arith.divf %839, %840 : vector<2x32xf32>
    %842 = vector.extract_strided_slice %792 {offsets = [0, 32], sizes = [2, 32], strides = [1, 1]} : vector<2x128xf32> to vector<2x32xf32>
    %843 = arith.negf %842 : vector<2x32xf32>
    %844 = math.exp %843 : vector<2x32xf32>
    %cst_121 = arith.constant 1.000000e+00 : f32
    %845 = vector.broadcast %cst_121 : f32 to vector<2x32xf32>
    %846 = arith.addf %845, %844 : vector<2x32xf32>
    %847 = arith.divf %845, %846 : vector<2x32xf32>
    %848 = vector.extract_strided_slice %792 {offsets = [0, 64], sizes = [2, 32], strides = [1, 1]} : vector<2x128xf32> to vector<2x32xf32>
    %849 = math.tanh %848 : vector<2x32xf32>
    %850 = vector.extract_strided_slice %792 {offsets = [0, 96], sizes = [2, 32], strides = [1, 1]} : vector<2x128xf32> to vector<2x32xf32>
    %851 = arith.negf %850 : vector<2x32xf32>
    %852 = math.exp %851 : vector<2x32xf32>
    %cst_122 = arith.constant 1.000000e+00 : f32
    %853 = vector.broadcast %cst_122 : f32 to vector<2x32xf32>
    %854 = arith.addf %853, %852 : vector<2x32xf32>
    %855 = arith.divf %853, %854 : vector<2x32xf32>
    %856 = arith.mulf %847, %782 : vector<2x32xf32>
    %857 = arith.mulf %841, %849 : vector<2x32xf32>
    %858 = arith.addf %856, %857 : vector<2x32xf32>
    %859 = math.tanh %858 : vector<2x32xf32>
    %860 = arith.mulf %855, %859 : vector<2x32xf32>
    %861 = vector.broadcast %835 : vector<2x1xf32> to vector<2x32xf32>
    %862 = arith.mulf %861, %860 : vector<2x32xf32>
    %cst_123 = arith.constant 1.000000e+00 : f32
    %863 = vector.broadcast %cst_123 : f32 to vector<2x1xf32>
    %864 = arith.subf %863, %835 : vector<2x1xf32>
    %865 = vector.broadcast %864 : vector<2x1xf32> to vector<2x32xf32>
    %866 = arith.mulf %865, %781 : vector<2x32xf32>
    %867 = arith.addf %862, %866 : vector<2x32xf32>
    %868 = vector.broadcast %835 : vector<2x1xf32> to vector<2x32xf32>
    %869 = arith.mulf %868, %858 : vector<2x32xf32>
    %cst_124 = arith.constant 1.000000e+00 : f32
    %870 = vector.broadcast %cst_124 : f32 to vector<2x1xf32>
    %871 = arith.subf %870, %835 : vector<2x1xf32>
    %872 = vector.broadcast %871 : vector<2x1xf32> to vector<2x32xf32>
    %873 = arith.mulf %872, %782 : vector<2x32xf32>
    %874 = arith.addf %869, %873 : vector<2x32xf32>
    %875 = tpu.concatenate %826, %867 in 1 : vector<2x32xf32>, vector<2x32xf32> -> vector<2x64xf32>
    %cst_125 = arith.constant dense<0.000000e+00> : vector<2x256xf32>
    %876 = tpu.matmul %875, %772, %cst_125 {dimension_numbers = #tpu.dot_dimension_numbers<[1], [0], [0], [1], [0, 0, 1, 1], [], []>} : vector<2x64xf32>, vector<64x256xf32>, vector<2x256xf32> -> vector<2x256xf32>
    %877 = vector.extract_strided_slice %778 {offsets = [0, 1, 0], sizes = [2, 1, 128], strides = [1, 1, 1]} : vector<2x8x256xf32> to vector<2x1x128xf32>
    %878 = vector.shape_cast %877 : vector<2x1x128xf32> to vector<2x128xf32>
    %879 = vector.extract_strided_slice %876 {offsets = [0, 0], sizes = [2, 128], strides = [1, 1]} : vector<2x256xf32> to vector<2x128xf32>
    %880 = arith.addf %878, %879 : vector<2x128xf32>
    %881 = vector.extract_strided_slice %778 {offsets = [0, 6, 128], sizes = [2, 1, 128], strides = [1, 1, 1]} : vector<2x8x256xf32> to vector<2x1x128xf32>
    %882 = vector.shape_cast %881 : vector<2x1x128xf32> to vector<2x128xf32>
    %883 = vector.extract_strided_slice %876 {offsets = [0, 128], sizes = [2, 128], strides = [1, 1]} : vector<2x256xf32> to vector<2x128xf32>
    %884 = arith.addf %882, %883 : vector<2x128xf32>
    %885 = vector.extract_strided_slice %0 {offsets = [0, 1, 0], sizes = [2, 1, 1], strides = [1, 1, 1]} : vector<2x8x1xf32> to vector<2x1x1xf32>
    %886 = vector.shape_cast %885 : vector<2x1x1xf32> to vector<2x1xf32>
    %887 = vector.extract_strided_slice %880 {offsets = [0, 0], sizes = [2, 32], strides = [1, 1]} : vector<2x128xf32> to vector<2x32xf32>
    %888 = arith.negf %887 : vector<2x32xf32>
    %889 = math.exp %888 : vector<2x32xf32>
    %cst_126 = arith.constant 1.000000e+00 : f32
    %890 = vector.broadcast %cst_126 : f32 to vector<2x32xf32>
    %891 = arith.addf %890, %889 : vector<2x32xf32>
    %892 = arith.divf %890, %891 : vector<2x32xf32>
    %893 = vector.extract_strided_slice %880 {offsets = [0, 32], sizes = [2, 32], strides = [1, 1]} : vector<2x128xf32> to vector<2x32xf32>
    %894 = arith.negf %893 : vector<2x32xf32>
    %895 = math.exp %894 : vector<2x32xf32>
    %cst_127 = arith.constant 1.000000e+00 : f32
    %896 = vector.broadcast %cst_127 : f32 to vector<2x32xf32>
    %897 = arith.addf %896, %895 : vector<2x32xf32>
    %898 = arith.divf %896, %897 : vector<2x32xf32>
    %899 = vector.extract_strided_slice %880 {offsets = [0, 64], sizes = [2, 32], strides = [1, 1]} : vector<2x128xf32> to vector<2x32xf32>
    %900 = math.tanh %899 : vector<2x32xf32>
    %901 = vector.extract_strided_slice %880 {offsets = [0, 96], sizes = [2, 32], strides = [1, 1]} : vector<2x128xf32> to vector<2x32xf32>
    %902 = arith.negf %901 : vector<2x32xf32>
    %903 = math.exp %902 : vector<2x32xf32>
    %cst_128 = arith.constant 1.000000e+00 : f32
    %904 = vector.broadcast %cst_128 : f32 to vector<2x32xf32>
    %905 = arith.addf %904, %903 : vector<2x32xf32>
    %906 = arith.divf %904, %905 : vector<2x32xf32>
    %907 = arith.mulf %898, %833 : vector<2x32xf32>
    %908 = arith.mulf %892, %900 : vector<2x32xf32>
    %909 = arith.addf %907, %908 : vector<2x32xf32>
    %910 = math.tanh %909 : vector<2x32xf32>
    %911 = arith.mulf %906, %910 : vector<2x32xf32>
    %912 = vector.broadcast %886 : vector<2x1xf32> to vector<2x32xf32>
    %913 = arith.mulf %912, %911 : vector<2x32xf32>
    %cst_129 = arith.constant 1.000000e+00 : f32
    %914 = vector.broadcast %cst_129 : f32 to vector<2x1xf32>
    %915 = arith.subf %914, %886 : vector<2x1xf32>
    %916 = vector.broadcast %915 : vector<2x1xf32> to vector<2x32xf32>
    %917 = arith.mulf %916, %826 : vector<2x32xf32>
    %918 = arith.addf %913, %917 : vector<2x32xf32>
    %919 = vector.broadcast %886 : vector<2x1xf32> to vector<2x32xf32>
    %920 = arith.mulf %919, %909 : vector<2x32xf32>
    %cst_130 = arith.constant 1.000000e+00 : f32
    %921 = vector.broadcast %cst_130 : f32 to vector<2x1xf32>
    %922 = arith.subf %921, %886 : vector<2x1xf32>
    %923 = vector.broadcast %922 : vector<2x1xf32> to vector<2x32xf32>
    %924 = arith.mulf %923, %833 : vector<2x32xf32>
    %925 = arith.addf %920, %924 : vector<2x32xf32>
    %926 = vector.extract_strided_slice %0 {offsets = [0, 6, 0], sizes = [2, 1, 1], strides = [1, 1, 1]} : vector<2x8x1xf32> to vector<2x1x1xf32>
    %927 = vector.shape_cast %926 : vector<2x1x1xf32> to vector<2x1xf32>
    %928 = vector.extract_strided_slice %884 {offsets = [0, 0], sizes = [2, 32], strides = [1, 1]} : vector<2x128xf32> to vector<2x32xf32>
    %929 = arith.negf %928 : vector<2x32xf32>
    %930 = math.exp %929 : vector<2x32xf32>
    %cst_131 = arith.constant 1.000000e+00 : f32
    %931 = vector.broadcast %cst_131 : f32 to vector<2x32xf32>
    %932 = arith.addf %931, %930 : vector<2x32xf32>
    %933 = arith.divf %931, %932 : vector<2x32xf32>
    %934 = vector.extract_strided_slice %884 {offsets = [0, 32], sizes = [2, 32], strides = [1, 1]} : vector<2x128xf32> to vector<2x32xf32>
    %935 = arith.negf %934 : vector<2x32xf32>
    %936 = math.exp %935 : vector<2x32xf32>
    %cst_132 = arith.constant 1.000000e+00 : f32
    %937 = vector.broadcast %cst_132 : f32 to vector<2x32xf32>
    %938 = arith.addf %937, %936 : vector<2x32xf32>
    %939 = arith.divf %937, %938 : vector<2x32xf32>
    %940 = vector.extract_strided_slice %884 {offsets = [0, 64], sizes = [2, 32], strides = [1, 1]} : vector<2x128xf32> to vector<2x32xf32>
    %941 = math.tanh %940 : vector<2x32xf32>
    %942 = vector.extract_strided_slice %884 {offsets = [0, 96], sizes = [2, 32], strides = [1, 1]} : vector<2x128xf32> to vector<2x32xf32>
    %943 = arith.negf %942 : vector<2x32xf32>
    %944 = math.exp %943 : vector<2x32xf32>
    %cst_133 = arith.constant 1.000000e+00 : f32
    %945 = vector.broadcast %cst_133 : f32 to vector<2x32xf32>
    %946 = arith.addf %945, %944 : vector<2x32xf32>
    %947 = arith.divf %945, %946 : vector<2x32xf32>
    %948 = arith.mulf %939, %874 : vector<2x32xf32>
    %949 = arith.mulf %933, %941 : vector<2x32xf32>
    %950 = arith.addf %948, %949 : vector<2x32xf32>
    %951 = math.tanh %950 : vector<2x32xf32>
    %952 = arith.mulf %947, %951 : vector<2x32xf32>
    %953 = vector.broadcast %927 : vector<2x1xf32> to vector<2x32xf32>
    %954 = arith.mulf %953, %952 : vector<2x32xf32>
    %cst_134 = arith.constant 1.000000e+00 : f32
    %955 = vector.broadcast %cst_134 : f32 to vector<2x1xf32>
    %956 = arith.subf %955, %927 : vector<2x1xf32>
    %957 = vector.broadcast %956 : vector<2x1xf32> to vector<2x32xf32>
    %958 = arith.mulf %957, %867 : vector<2x32xf32>
    %959 = arith.addf %954, %958 : vector<2x32xf32>
    %960 = vector.broadcast %927 : vector<2x1xf32> to vector<2x32xf32>
    %961 = arith.mulf %960, %950 : vector<2x32xf32>
    %cst_135 = arith.constant 1.000000e+00 : f32
    %962 = vector.broadcast %cst_135 : f32 to vector<2x1xf32>
    %963 = arith.subf %962, %927 : vector<2x1xf32>
    %964 = vector.broadcast %963 : vector<2x1xf32> to vector<2x32xf32>
    %965 = arith.mulf %964, %874 : vector<2x32xf32>
    %966 = arith.addf %961, %965 : vector<2x32xf32>
    %967 = tpu.concatenate %918, %959 in 1 : vector<2x32xf32>, vector<2x32xf32> -> vector<2x64xf32>
    %cst_136 = arith.constant dense<0.000000e+00> : vector<2x256xf32>
    %968 = tpu.matmul %967, %772, %cst_136 {dimension_numbers = #tpu.dot_dimension_numbers<[1], [0], [0], [1], [0, 0, 1, 1], [], []>} : vector<2x64xf32>, vector<64x256xf32>, vector<2x256xf32> -> vector<2x256xf32>
    %969 = vector.extract_strided_slice %778 {offsets = [0, 2, 0], sizes = [2, 1, 128], strides = [1, 1, 1]} : vector<2x8x256xf32> to vector<2x1x128xf32>
    %970 = vector.shape_cast %969 : vector<2x1x128xf32> to vector<2x128xf32>
    %971 = vector.extract_strided_slice %968 {offsets = [0, 0], sizes = [2, 128], strides = [1, 1]} : vector<2x256xf32> to vector<2x128xf32>
    %972 = arith.addf %970, %971 : vector<2x128xf32>
    %973 = vector.extract_strided_slice %778 {offsets = [0, 5, 128], sizes = [2, 1, 128], strides = [1, 1, 1]} : vector<2x8x256xf32> to vector<2x1x128xf32>
    %974 = vector.shape_cast %973 : vector<2x1x128xf32> to vector<2x128xf32>
    %975 = vector.extract_strided_slice %968 {offsets = [0, 128], sizes = [2, 128], strides = [1, 1]} : vector<2x256xf32> to vector<2x128xf32>
    %976 = arith.addf %974, %975 : vector<2x128xf32>
    %977 = vector.extract_strided_slice %0 {offsets = [0, 2, 0], sizes = [2, 1, 1], strides = [1, 1, 1]} : vector<2x8x1xf32> to vector<2x1x1xf32>
    %978 = vector.shape_cast %977 : vector<2x1x1xf32> to vector<2x1xf32>
    %979 = vector.extract_strided_slice %972 {offsets = [0, 0], sizes = [2, 32], strides = [1, 1]} : vector<2x128xf32> to vector<2x32xf32>
    %980 = arith.negf %979 : vector<2x32xf32>
    %981 = math.exp %980 : vector<2x32xf32>
    %cst_137 = arith.constant 1.000000e+00 : f32
    %982 = vector.broadcast %cst_137 : f32 to vector<2x32xf32>
    %983 = arith.addf %982, %981 : vector<2x32xf32>
    %984 = arith.divf %982, %983 : vector<2x32xf32>
    %985 = vector.extract_strided_slice %972 {offsets = [0, 32], sizes = [2, 32], strides = [1, 1]} : vector<2x128xf32> to vector<2x32xf32>
    %986 = arith.negf %985 : vector<2x32xf32>
    %987 = math.exp %986 : vector<2x32xf32>
    %cst_138 = arith.constant 1.000000e+00 : f32
    %988 = vector.broadcast %cst_138 : f32 to vector<2x32xf32>
    %989 = arith.addf %988, %987 : vector<2x32xf32>
    %990 = arith.divf %988, %989 : vector<2x32xf32>
    %991 = vector.extract_strided_slice %972 {offsets = [0, 64], sizes = [2, 32], strides = [1, 1]} : vector<2x128xf32> to vector<2x32xf32>
    %992 = math.tanh %991 : vector<2x32xf32>
    %993 = vector.extract_strided_slice %972 {offsets = [0, 96], sizes = [2, 32], strides = [1, 1]} : vector<2x128xf32> to vector<2x32xf32>
    %994 = arith.negf %993 : vector<2x32xf32>
    %995 = math.exp %994 : vector<2x32xf32>
    %cst_139 = arith.constant 1.000000e+00 : f32
    %996 = vector.broadcast %cst_139 : f32 to vector<2x32xf32>
    %997 = arith.addf %996, %995 : vector<2x32xf32>
    %998 = arith.divf %996, %997 : vector<2x32xf32>
    %999 = arith.mulf %990, %925 : vector<2x32xf32>
    %1000 = arith.mulf %984, %992 : vector<2x32xf32>
    %1001 = arith.addf %999, %1000 : vector<2x32xf32>
    %1002 = math.tanh %1001 : vector<2x32xf32>
    %1003 = arith.mulf %998, %1002 : vector<2x32xf32>
    %1004 = vector.broadcast %978 : vector<2x1xf32> to vector<2x32xf32>
    %1005 = arith.mulf %1004, %1003 : vector<2x32xf32>
    %cst_140 = arith.constant 1.000000e+00 : f32
    %1006 = vector.broadcast %cst_140 : f32 to vector<2x1xf32>
    %1007 = arith.subf %1006, %978 : vector<2x1xf32>
    %1008 = vector.broadcast %1007 : vector<2x1xf32> to vector<2x32xf32>
    %1009 = arith.mulf %1008, %918 : vector<2x32xf32>
    %1010 = arith.addf %1005, %1009 : vector<2x32xf32>
    %1011 = vector.broadcast %978 : vector<2x1xf32> to vector<2x32xf32>
    %1012 = arith.mulf %1011, %1001 : vector<2x32xf32>
    %cst_141 = arith.constant 1.000000e+00 : f32
    %1013 = vector.broadcast %cst_141 : f32 to vector<2x1xf32>
    %1014 = arith.subf %1013, %978 : vector<2x1xf32>
    %1015 = vector.broadcast %1014 : vector<2x1xf32> to vector<2x32xf32>
    %1016 = arith.mulf %1015, %925 : vector<2x32xf32>
    %1017 = arith.addf %1012, %1016 : vector<2x32xf32>
    %1018 = vector.extract_strided_slice %0 {offsets = [0, 5, 0], sizes = [2, 1, 1], strides = [1, 1, 1]} : vector<2x8x1xf32> to vector<2x1x1xf32>
    %1019 = vector.shape_cast %1018 : vector<2x1x1xf32> to vector<2x1xf32>
    %1020 = vector.extract_strided_slice %976 {offsets = [0, 0], sizes = [2, 32], strides = [1, 1]} : vector<2x128xf32> to vector<2x32xf32>
    %1021 = arith.negf %1020 : vector<2x32xf32>
    %1022 = math.exp %1021 : vector<2x32xf32>
    %cst_142 = arith.constant 1.000000e+00 : f32
    %1023 = vector.broadcast %cst_142 : f32 to vector<2x32xf32>
    %1024 = arith.addf %1023, %1022 : vector<2x32xf32>
    %1025 = arith.divf %1023, %1024 : vector<2x32xf32>
    %1026 = vector.extract_strided_slice %976 {offsets = [0, 32], sizes = [2, 32], strides = [1, 1]} : vector<2x128xf32> to vector<2x32xf32>
    %1027 = arith.negf %1026 : vector<2x32xf32>
    %1028 = math.exp %1027 : vector<2x32xf32>
    %cst_143 = arith.constant 1.000000e+00 : f32
    %1029 = vector.broadcast %cst_143 : f32 to vector<2x32xf32>
    %1030 = arith.addf %1029, %1028 : vector<2x32xf32>
    %1031 = arith.divf %1029, %1030 : vector<2x32xf32>
    %1032 = vector.extract_strided_slice %976 {offsets = [0, 64], sizes = [2, 32], strides = [1, 1]} : vector<2x128xf32> to vector<2x32xf32>
    %1033 = math.tanh %1032 : vector<2x32xf32>
    %1034 = vector.extract_strided_slice %976 {offsets = [0, 96], sizes = [2, 32], strides = [1, 1]} : vector<2x128xf32> to vector<2x32xf32>
    %1035 = arith.negf %1034 : vector<2x32xf32>
    %1036 = math.exp %1035 : vector<2x32xf32>
    %cst_144 = arith.constant 1.000000e+00 : f32
    %1037 = vector.broadcast %cst_144 : f32 to vector<2x32xf32>
    %1038 = arith.addf %1037, %1036 : vector<2x32xf32>
    %1039 = arith.divf %1037, %1038 : vector<2x32xf32>
    %1040 = arith.mulf %1031, %966 : vector<2x32xf32>
    %1041 = arith.mulf %1025, %1033 : vector<2x32xf32>
    %1042 = arith.addf %1040, %1041 : vector<2x32xf32>
    %1043 = math.tanh %1042 : vector<2x32xf32>
    %1044 = arith.mulf %1039, %1043 : vector<2x32xf32>
    %1045 = vector.broadcast %1019 : vector<2x1xf32> to vector<2x32xf32>
    %1046 = arith.mulf %1045, %1044 : vector<2x32xf32>
    %cst_145 = arith.constant 1.000000e+00 : f32
    %1047 = vector.broadcast %cst_145 : f32 to vector<2x1xf32>
    %1048 = arith.subf %1047, %1019 : vector<2x1xf32>
    %1049 = vector.broadcast %1048 : vector<2x1xf32> to vector<2x32xf32>
    %1050 = arith.mulf %1049, %959 : vector<2x32xf32>
    %1051 = arith.addf %1046, %1050 : vector<2x32xf32>
    %1052 = vector.broadcast %1019 : vector<2x1xf32> to vector<2x32xf32>
    %1053 = arith.mulf %1052, %1042 : vector<2x32xf32>
    %cst_146 = arith.constant 1.000000e+00 : f32
    %1054 = vector.broadcast %cst_146 : f32 to vector<2x1xf32>
    %1055 = arith.subf %1054, %1019 : vector<2x1xf32>
    %1056 = vector.broadcast %1055 : vector<2x1xf32> to vector<2x32xf32>
    %1057 = arith.mulf %1056, %966 : vector<2x32xf32>
    %1058 = arith.addf %1053, %1057 : vector<2x32xf32>
    %1059 = tpu.concatenate %1010, %1051 in 1 : vector<2x32xf32>, vector<2x32xf32> -> vector<2x64xf32>
    %cst_147 = arith.constant dense<0.000000e+00> : vector<2x256xf32>
    %1060 = tpu.matmul %1059, %772, %cst_147 {dimension_numbers = #tpu.dot_dimension_numbers<[1], [0], [0], [1], [0, 0, 1, 1], [], []>} : vector<2x64xf32>, vector<64x256xf32>, vector<2x256xf32> -> vector<2x256xf32>
    %1061 = vector.extract_strided_slice %778 {offsets = [0, 3, 0], sizes = [2, 1, 128], strides = [1, 1, 1]} : vector<2x8x256xf32> to vector<2x1x128xf32>
    %1062 = vector.shape_cast %1061 : vector<2x1x128xf32> to vector<2x128xf32>
    %1063 = vector.extract_strided_slice %1060 {offsets = [0, 0], sizes = [2, 128], strides = [1, 1]} : vector<2x256xf32> to vector<2x128xf32>
    %1064 = arith.addf %1062, %1063 : vector<2x128xf32>
    %1065 = vector.extract_strided_slice %778 {offsets = [0, 4, 128], sizes = [2, 1, 128], strides = [1, 1, 1]} : vector<2x8x256xf32> to vector<2x1x128xf32>
    %1066 = vector.shape_cast %1065 : vector<2x1x128xf32> to vector<2x128xf32>
    %1067 = vector.extract_strided_slice %1060 {offsets = [0, 128], sizes = [2, 128], strides = [1, 1]} : vector<2x256xf32> to vector<2x128xf32>
    %1068 = arith.addf %1066, %1067 : vector<2x128xf32>
    %1069 = vector.extract_strided_slice %0 {offsets = [0, 3, 0], sizes = [2, 1, 1], strides = [1, 1, 1]} : vector<2x8x1xf32> to vector<2x1x1xf32>
    %1070 = vector.shape_cast %1069 : vector<2x1x1xf32> to vector<2x1xf32>
    %1071 = vector.extract_strided_slice %1064 {offsets = [0, 0], sizes = [2, 32], strides = [1, 1]} : vector<2x128xf32> to vector<2x32xf32>
    %1072 = arith.negf %1071 : vector<2x32xf32>
    %1073 = math.exp %1072 : vector<2x32xf32>
    %cst_148 = arith.constant 1.000000e+00 : f32
    %1074 = vector.broadcast %cst_148 : f32 to vector<2x32xf32>
    %1075 = arith.addf %1074, %1073 : vector<2x32xf32>
    %1076 = arith.divf %1074, %1075 : vector<2x32xf32>
    %1077 = vector.extract_strided_slice %1064 {offsets = [0, 32], sizes = [2, 32], strides = [1, 1]} : vector<2x128xf32> to vector<2x32xf32>
    %1078 = arith.negf %1077 : vector<2x32xf32>
    %1079 = math.exp %1078 : vector<2x32xf32>
    %cst_149 = arith.constant 1.000000e+00 : f32
    %1080 = vector.broadcast %cst_149 : f32 to vector<2x32xf32>
    %1081 = arith.addf %1080, %1079 : vector<2x32xf32>
    %1082 = arith.divf %1080, %1081 : vector<2x32xf32>
    %1083 = vector.extract_strided_slice %1064 {offsets = [0, 64], sizes = [2, 32], strides = [1, 1]} : vector<2x128xf32> to vector<2x32xf32>
    %1084 = math.tanh %1083 : vector<2x32xf32>
    %1085 = vector.extract_strided_slice %1064 {offsets = [0, 96], sizes = [2, 32], strides = [1, 1]} : vector<2x128xf32> to vector<2x32xf32>
    %1086 = arith.negf %1085 : vector<2x32xf32>
    %1087 = math.exp %1086 : vector<2x32xf32>
    %cst_150 = arith.constant 1.000000e+00 : f32
    %1088 = vector.broadcast %cst_150 : f32 to vector<2x32xf32>
    %1089 = arith.addf %1088, %1087 : vector<2x32xf32>
    %1090 = arith.divf %1088, %1089 : vector<2x32xf32>
    %1091 = arith.mulf %1082, %1017 : vector<2x32xf32>
    %1092 = arith.mulf %1076, %1084 : vector<2x32xf32>
    %1093 = arith.addf %1091, %1092 : vector<2x32xf32>
    %1094 = math.tanh %1093 : vector<2x32xf32>
    %1095 = arith.mulf %1090, %1094 : vector<2x32xf32>
    %1096 = vector.broadcast %1070 : vector<2x1xf32> to vector<2x32xf32>
    %1097 = arith.mulf %1096, %1095 : vector<2x32xf32>
    %cst_151 = arith.constant 1.000000e+00 : f32
    %1098 = vector.broadcast %cst_151 : f32 to vector<2x1xf32>
    %1099 = arith.subf %1098, %1070 : vector<2x1xf32>
    %1100 = vector.broadcast %1099 : vector<2x1xf32> to vector<2x32xf32>
    %1101 = arith.mulf %1100, %1010 : vector<2x32xf32>
    %1102 = arith.addf %1097, %1101 : vector<2x32xf32>
    %1103 = vector.broadcast %1070 : vector<2x1xf32> to vector<2x32xf32>
    %1104 = arith.mulf %1103, %1093 : vector<2x32xf32>
    %cst_152 = arith.constant 1.000000e+00 : f32
    %1105 = vector.broadcast %cst_152 : f32 to vector<2x1xf32>
    %1106 = arith.subf %1105, %1070 : vector<2x1xf32>
    %1107 = vector.broadcast %1106 : vector<2x1xf32> to vector<2x32xf32>
    %1108 = arith.mulf %1107, %1017 : vector<2x32xf32>
    %1109 = arith.addf %1104, %1108 : vector<2x32xf32>
    %1110 = vector.extract_strided_slice %0 {offsets = [0, 4, 0], sizes = [2, 1, 1], strides = [1, 1, 1]} : vector<2x8x1xf32> to vector<2x1x1xf32>
    %1111 = vector.shape_cast %1110 : vector<2x1x1xf32> to vector<2x1xf32>
    %1112 = vector.extract_strided_slice %1068 {offsets = [0, 0], sizes = [2, 32], strides = [1, 1]} : vector<2x128xf32> to vector<2x32xf32>
    %1113 = arith.negf %1112 : vector<2x32xf32>
    %1114 = math.exp %1113 : vector<2x32xf32>
    %cst_153 = arith.constant 1.000000e+00 : f32
    %1115 = vector.broadcast %cst_153 : f32 to vector<2x32xf32>
    %1116 = arith.addf %1115, %1114 : vector<2x32xf32>
    %1117 = arith.divf %1115, %1116 : vector<2x32xf32>
    %1118 = vector.extract_strided_slice %1068 {offsets = [0, 32], sizes = [2, 32], strides = [1, 1]} : vector<2x128xf32> to vector<2x32xf32>
    %1119 = arith.negf %1118 : vector<2x32xf32>
    %1120 = math.exp %1119 : vector<2x32xf32>
    %cst_154 = arith.constant 1.000000e+00 : f32
    %1121 = vector.broadcast %cst_154 : f32 to vector<2x32xf32>
    %1122 = arith.addf %1121, %1120 : vector<2x32xf32>
    %1123 = arith.divf %1121, %1122 : vector<2x32xf32>
    %1124 = vector.extract_strided_slice %1068 {offsets = [0, 64], sizes = [2, 32], strides = [1, 1]} : vector<2x128xf32> to vector<2x32xf32>
    %1125 = math.tanh %1124 : vector<2x32xf32>
    %1126 = vector.extract_strided_slice %1068 {offsets = [0, 96], sizes = [2, 32], strides = [1, 1]} : vector<2x128xf32> to vector<2x32xf32>
    %1127 = arith.negf %1126 : vector<2x32xf32>
    %1128 = math.exp %1127 : vector<2x32xf32>
    %cst_155 = arith.constant 1.000000e+00 : f32
    %1129 = vector.broadcast %cst_155 : f32 to vector<2x32xf32>
    %1130 = arith.addf %1129, %1128 : vector<2x32xf32>
    %1131 = arith.divf %1129, %1130 : vector<2x32xf32>
    %1132 = arith.mulf %1123, %1058 : vector<2x32xf32>
    %1133 = arith.mulf %1117, %1125 : vector<2x32xf32>
    %1134 = arith.addf %1132, %1133 : vector<2x32xf32>
    %1135 = math.tanh %1134 : vector<2x32xf32>
    %1136 = arith.mulf %1131, %1135 : vector<2x32xf32>
    %1137 = vector.broadcast %1111 : vector<2x1xf32> to vector<2x32xf32>
    %1138 = arith.mulf %1137, %1136 : vector<2x32xf32>
    %cst_156 = arith.constant 1.000000e+00 : f32
    %1139 = vector.broadcast %cst_156 : f32 to vector<2x1xf32>
    %1140 = arith.subf %1139, %1111 : vector<2x1xf32>
    %1141 = vector.broadcast %1140 : vector<2x1xf32> to vector<2x32xf32>
    %1142 = arith.mulf %1141, %1051 : vector<2x32xf32>
    %1143 = arith.addf %1138, %1142 : vector<2x32xf32>
    %1144 = vector.broadcast %1111 : vector<2x1xf32> to vector<2x32xf32>
    %1145 = arith.mulf %1144, %1134 : vector<2x32xf32>
    %cst_157 = arith.constant 1.000000e+00 : f32
    %1146 = vector.broadcast %cst_157 : f32 to vector<2x1xf32>
    %1147 = arith.subf %1146, %1111 : vector<2x1xf32>
    %1148 = vector.broadcast %1147 : vector<2x1xf32> to vector<2x32xf32>
    %1149 = arith.mulf %1148, %1058 : vector<2x32xf32>
    %1150 = arith.addf %1145, %1149 : vector<2x32xf32>
    %1151 = tpu.concatenate %1102, %1143 in 1 : vector<2x32xf32>, vector<2x32xf32> -> vector<2x64xf32>
    %cst_158 = arith.constant dense<0.000000e+00> : vector<2x256xf32>
    %1152 = tpu.matmul %1151, %772, %cst_158 {dimension_numbers = #tpu.dot_dimension_numbers<[1], [0], [0], [1], [0, 0, 1, 1], [], []>} : vector<2x64xf32>, vector<64x256xf32>, vector<2x256xf32> -> vector<2x256xf32>
    %1153 = vector.extract_strided_slice %778 {offsets = [0, 4, 0], sizes = [2, 1, 128], strides = [1, 1, 1]} : vector<2x8x256xf32> to vector<2x1x128xf32>
    %1154 = vector.shape_cast %1153 : vector<2x1x128xf32> to vector<2x128xf32>
    %1155 = vector.extract_strided_slice %1152 {offsets = [0, 0], sizes = [2, 128], strides = [1, 1]} : vector<2x256xf32> to vector<2x128xf32>
    %1156 = arith.addf %1154, %1155 : vector<2x128xf32>
    %1157 = vector.extract_strided_slice %778 {offsets = [0, 3, 128], sizes = [2, 1, 128], strides = [1, 1, 1]} : vector<2x8x256xf32> to vector<2x1x128xf32>
    %1158 = vector.shape_cast %1157 : vector<2x1x128xf32> to vector<2x128xf32>
    %1159 = vector.extract_strided_slice %1152 {offsets = [0, 128], sizes = [2, 128], strides = [1, 1]} : vector<2x256xf32> to vector<2x128xf32>
    %1160 = arith.addf %1158, %1159 : vector<2x128xf32>
    %1161 = vector.extract_strided_slice %0 {offsets = [0, 4, 0], sizes = [2, 1, 1], strides = [1, 1, 1]} : vector<2x8x1xf32> to vector<2x1x1xf32>
    %1162 = vector.shape_cast %1161 : vector<2x1x1xf32> to vector<2x1xf32>
    %1163 = vector.extract_strided_slice %1156 {offsets = [0, 0], sizes = [2, 32], strides = [1, 1]} : vector<2x128xf32> to vector<2x32xf32>
    %1164 = arith.negf %1163 : vector<2x32xf32>
    %1165 = math.exp %1164 : vector<2x32xf32>
    %cst_159 = arith.constant 1.000000e+00 : f32
    %1166 = vector.broadcast %cst_159 : f32 to vector<2x32xf32>
    %1167 = arith.addf %1166, %1165 : vector<2x32xf32>
    %1168 = arith.divf %1166, %1167 : vector<2x32xf32>
    %1169 = vector.extract_strided_slice %1156 {offsets = [0, 32], sizes = [2, 32], strides = [1, 1]} : vector<2x128xf32> to vector<2x32xf32>
    %1170 = arith.negf %1169 : vector<2x32xf32>
    %1171 = math.exp %1170 : vector<2x32xf32>
    %cst_160 = arith.constant 1.000000e+00 : f32
    %1172 = vector.broadcast %cst_160 : f32 to vector<2x32xf32>
    %1173 = arith.addf %1172, %1171 : vector<2x32xf32>
    %1174 = arith.divf %1172, %1173 : vector<2x32xf32>
    %1175 = vector.extract_strided_slice %1156 {offsets = [0, 64], sizes = [2, 32], strides = [1, 1]} : vector<2x128xf32> to vector<2x32xf32>
    %1176 = math.tanh %1175 : vector<2x32xf32>
    %1177 = vector.extract_strided_slice %1156 {offsets = [0, 96], sizes = [2, 32], strides = [1, 1]} : vector<2x128xf32> to vector<2x32xf32>
    %1178 = arith.negf %1177 : vector<2x32xf32>
    %1179 = math.exp %1178 : vector<2x32xf32>
    %cst_161 = arith.constant 1.000000e+00 : f32
    %1180 = vector.broadcast %cst_161 : f32 to vector<2x32xf32>
    %1181 = arith.addf %1180, %1179 : vector<2x32xf32>
    %1182 = arith.divf %1180, %1181 : vector<2x32xf32>
    %1183 = arith.mulf %1174, %1109 : vector<2x32xf32>
    %1184 = arith.mulf %1168, %1176 : vector<2x32xf32>
    %1185 = arith.addf %1183, %1184 : vector<2x32xf32>
    %1186 = math.tanh %1185 : vector<2x32xf32>
    %1187 = arith.mulf %1182, %1186 : vector<2x32xf32>
    %1188 = vector.broadcast %1162 : vector<2x1xf32> to vector<2x32xf32>
    %1189 = arith.mulf %1188, %1187 : vector<2x32xf32>
    %cst_162 = arith.constant 1.000000e+00 : f32
    %1190 = vector.broadcast %cst_162 : f32 to vector<2x1xf32>
    %1191 = arith.subf %1190, %1162 : vector<2x1xf32>
    %1192 = vector.broadcast %1191 : vector<2x1xf32> to vector<2x32xf32>
    %1193 = arith.mulf %1192, %1102 : vector<2x32xf32>
    %1194 = arith.addf %1189, %1193 : vector<2x32xf32>
    %1195 = vector.broadcast %1162 : vector<2x1xf32> to vector<2x32xf32>
    %1196 = arith.mulf %1195, %1185 : vector<2x32xf32>
    %cst_163 = arith.constant 1.000000e+00 : f32
    %1197 = vector.broadcast %cst_163 : f32 to vector<2x1xf32>
    %1198 = arith.subf %1197, %1162 : vector<2x1xf32>
    %1199 = vector.broadcast %1198 : vector<2x1xf32> to vector<2x32xf32>
    %1200 = arith.mulf %1199, %1109 : vector<2x32xf32>
    %1201 = arith.addf %1196, %1200 : vector<2x32xf32>
    %1202 = vector.extract_strided_slice %0 {offsets = [0, 3, 0], sizes = [2, 1, 1], strides = [1, 1, 1]} : vector<2x8x1xf32> to vector<2x1x1xf32>
    %1203 = vector.shape_cast %1202 : vector<2x1x1xf32> to vector<2x1xf32>
    %1204 = vector.extract_strided_slice %1160 {offsets = [0, 0], sizes = [2, 32], strides = [1, 1]} : vector<2x128xf32> to vector<2x32xf32>
    %1205 = arith.negf %1204 : vector<2x32xf32>
    %1206 = math.exp %1205 : vector<2x32xf32>
    %cst_164 = arith.constant 1.000000e+00 : f32
    %1207 = vector.broadcast %cst_164 : f32 to vector<2x32xf32>
    %1208 = arith.addf %1207, %1206 : vector<2x32xf32>
    %1209 = arith.divf %1207, %1208 : vector<2x32xf32>
    %1210 = vector.extract_strided_slice %1160 {offsets = [0, 32], sizes = [2, 32], strides = [1, 1]} : vector<2x128xf32> to vector<2x32xf32>
    %1211 = arith.negf %1210 : vector<2x32xf32>
    %1212 = math.exp %1211 : vector<2x32xf32>
    %cst_165 = arith.constant 1.000000e+00 : f32
    %1213 = vector.broadcast %cst_165 : f32 to vector<2x32xf32>
    %1214 = arith.addf %1213, %1212 : vector<2x32xf32>
    %1215 = arith.divf %1213, %1214 : vector<2x32xf32>
    %1216 = vector.extract_strided_slice %1160 {offsets = [0, 64], sizes = [2, 32], strides = [1, 1]} : vector<2x128xf32> to vector<2x32xf32>
    %1217 = math.tanh %1216 : vector<2x32xf32>
    %1218 = vector.extract_strided_slice %1160 {offsets = [0, 96], sizes = [2, 32], strides = [1, 1]} : vector<2x128xf32> to vector<2x32xf32>
    %1219 = arith.negf %1218 : vector<2x32xf32>
    %1220 = math.exp %1219 : vector<2x32xf32>
    %cst_166 = arith.constant 1.000000e+00 : f32
    %1221 = vector.broadcast %cst_166 : f32 to vector<2x32xf32>
    %1222 = arith.addf %1221, %1220 : vector<2x32xf32>
    %1223 = arith.divf %1221, %1222 : vector<2x32xf32>
    %1224 = arith.mulf %1215, %1150 : vector<2x32xf32>
    %1225 = arith.mulf %1209, %1217 : vector<2x32xf32>
    %1226 = arith.addf %1224, %1225 : vector<2x32xf32>
    %1227 = math.tanh %1226 : vector<2x32xf32>
    %1228 = arith.mulf %1223, %1227 : vector<2x32xf32>
    %1229 = vector.broadcast %1203 : vector<2x1xf32> to vector<2x32xf32>
    %1230 = arith.mulf %1229, %1228 : vector<2x32xf32>
    %cst_167 = arith.constant 1.000000e+00 : f32
    %1231 = vector.broadcast %cst_167 : f32 to vector<2x1xf32>
    %1232 = arith.subf %1231, %1203 : vector<2x1xf32>
    %1233 = vector.broadcast %1232 : vector<2x1xf32> to vector<2x32xf32>
    %1234 = arith.mulf %1233, %1143 : vector<2x32xf32>
    %1235 = arith.addf %1230, %1234 : vector<2x32xf32>
    %1236 = vector.broadcast %1203 : vector<2x1xf32> to vector<2x32xf32>
    %1237 = arith.mulf %1236, %1226 : vector<2x32xf32>
    %cst_168 = arith.constant 1.000000e+00 : f32
    %1238 = vector.broadcast %cst_168 : f32 to vector<2x1xf32>
    %1239 = arith.subf %1238, %1203 : vector<2x1xf32>
    %1240 = vector.broadcast %1239 : vector<2x1xf32> to vector<2x32xf32>
    %1241 = arith.mulf %1240, %1150 : vector<2x32xf32>
    %1242 = arith.addf %1237, %1241 : vector<2x32xf32>
    %1243 = tpu.concatenate %1194, %1235 in 1 : vector<2x32xf32>, vector<2x32xf32> -> vector<2x64xf32>
    %cst_169 = arith.constant dense<0.000000e+00> : vector<2x256xf32>
    %1244 = tpu.matmul %1243, %772, %cst_169 {dimension_numbers = #tpu.dot_dimension_numbers<[1], [0], [0], [1], [0, 0, 1, 1], [], []>} : vector<2x64xf32>, vector<64x256xf32>, vector<2x256xf32> -> vector<2x256xf32>
    %1245 = vector.extract_strided_slice %778 {offsets = [0, 5, 0], sizes = [2, 1, 128], strides = [1, 1, 1]} : vector<2x8x256xf32> to vector<2x1x128xf32>
    %1246 = vector.shape_cast %1245 : vector<2x1x128xf32> to vector<2x128xf32>
    %1247 = vector.extract_strided_slice %1244 {offsets = [0, 0], sizes = [2, 128], strides = [1, 1]} : vector<2x256xf32> to vector<2x128xf32>
    %1248 = arith.addf %1246, %1247 : vector<2x128xf32>
    %1249 = vector.extract_strided_slice %778 {offsets = [0, 2, 128], sizes = [2, 1, 128], strides = [1, 1, 1]} : vector<2x8x256xf32> to vector<2x1x128xf32>
    %1250 = vector.shape_cast %1249 : vector<2x1x128xf32> to vector<2x128xf32>
    %1251 = vector.extract_strided_slice %1244 {offsets = [0, 128], sizes = [2, 128], strides = [1, 1]} : vector<2x256xf32> to vector<2x128xf32>
    %1252 = arith.addf %1250, %1251 : vector<2x128xf32>
    %1253 = vector.extract_strided_slice %0 {offsets = [0, 5, 0], sizes = [2, 1, 1], strides = [1, 1, 1]} : vector<2x8x1xf32> to vector<2x1x1xf32>
    %1254 = vector.shape_cast %1253 : vector<2x1x1xf32> to vector<2x1xf32>
    %1255 = vector.extract_strided_slice %1248 {offsets = [0, 0], sizes = [2, 32], strides = [1, 1]} : vector<2x128xf32> to vector<2x32xf32>
    %1256 = arith.negf %1255 : vector<2x32xf32>
    %1257 = math.exp %1256 : vector<2x32xf32>
    %cst_170 = arith.constant 1.000000e+00 : f32
    %1258 = vector.broadcast %cst_170 : f32 to vector<2x32xf32>
    %1259 = arith.addf %1258, %1257 : vector<2x32xf32>
    %1260 = arith.divf %1258, %1259 : vector<2x32xf32>
    %1261 = vector.extract_strided_slice %1248 {offsets = [0, 32], sizes = [2, 32], strides = [1, 1]} : vector<2x128xf32> to vector<2x32xf32>
    %1262 = arith.negf %1261 : vector<2x32xf32>
    %1263 = math.exp %1262 : vector<2x32xf32>
    %cst_171 = arith.constant 1.000000e+00 : f32
    %1264 = vector.broadcast %cst_171 : f32 to vector<2x32xf32>
    %1265 = arith.addf %1264, %1263 : vector<2x32xf32>
    %1266 = arith.divf %1264, %1265 : vector<2x32xf32>
    %1267 = vector.extract_strided_slice %1248 {offsets = [0, 64], sizes = [2, 32], strides = [1, 1]} : vector<2x128xf32> to vector<2x32xf32>
    %1268 = math.tanh %1267 : vector<2x32xf32>
    %1269 = vector.extract_strided_slice %1248 {offsets = [0, 96], sizes = [2, 32], strides = [1, 1]} : vector<2x128xf32> to vector<2x32xf32>
    %1270 = arith.negf %1269 : vector<2x32xf32>
    %1271 = math.exp %1270 : vector<2x32xf32>
    %cst_172 = arith.constant 1.000000e+00 : f32
    %1272 = vector.broadcast %cst_172 : f32 to vector<2x32xf32>
    %1273 = arith.addf %1272, %1271 : vector<2x32xf32>
    %1274 = arith.divf %1272, %1273 : vector<2x32xf32>
    %1275 = arith.mulf %1266, %1201 : vector<2x32xf32>
    %1276 = arith.mulf %1260, %1268 : vector<2x32xf32>
    %1277 = arith.addf %1275, %1276 : vector<2x32xf32>
    %1278 = math.tanh %1277 : vector<2x32xf32>
    %1279 = arith.mulf %1274, %1278 : vector<2x32xf32>
    %1280 = vector.broadcast %1254 : vector<2x1xf32> to vector<2x32xf32>
    %1281 = arith.mulf %1280, %1279 : vector<2x32xf32>
    %cst_173 = arith.constant 1.000000e+00 : f32
    %1282 = vector.broadcast %cst_173 : f32 to vector<2x1xf32>
    %1283 = arith.subf %1282, %1254 : vector<2x1xf32>
    %1284 = vector.broadcast %1283 : vector<2x1xf32> to vector<2x32xf32>
    %1285 = arith.mulf %1284, %1194 : vector<2x32xf32>
    %1286 = arith.addf %1281, %1285 : vector<2x32xf32>
    %1287 = vector.broadcast %1254 : vector<2x1xf32> to vector<2x32xf32>
    %1288 = arith.mulf %1287, %1277 : vector<2x32xf32>
    %cst_174 = arith.constant 1.000000e+00 : f32
    %1289 = vector.broadcast %cst_174 : f32 to vector<2x1xf32>
    %1290 = arith.subf %1289, %1254 : vector<2x1xf32>
    %1291 = vector.broadcast %1290 : vector<2x1xf32> to vector<2x32xf32>
    %1292 = arith.mulf %1291, %1201 : vector<2x32xf32>
    %1293 = arith.addf %1288, %1292 : vector<2x32xf32>
    %1294 = vector.extract_strided_slice %0 {offsets = [0, 2, 0], sizes = [2, 1, 1], strides = [1, 1, 1]} : vector<2x8x1xf32> to vector<2x1x1xf32>
    %1295 = vector.shape_cast %1294 : vector<2x1x1xf32> to vector<2x1xf32>
    %1296 = vector.extract_strided_slice %1252 {offsets = [0, 0], sizes = [2, 32], strides = [1, 1]} : vector<2x128xf32> to vector<2x32xf32>
    %1297 = arith.negf %1296 : vector<2x32xf32>
    %1298 = math.exp %1297 : vector<2x32xf32>
    %cst_175 = arith.constant 1.000000e+00 : f32
    %1299 = vector.broadcast %cst_175 : f32 to vector<2x32xf32>
    %1300 = arith.addf %1299, %1298 : vector<2x32xf32>
    %1301 = arith.divf %1299, %1300 : vector<2x32xf32>
    %1302 = vector.extract_strided_slice %1252 {offsets = [0, 32], sizes = [2, 32], strides = [1, 1]} : vector<2x128xf32> to vector<2x32xf32>
    %1303 = arith.negf %1302 : vector<2x32xf32>
    %1304 = math.exp %1303 : vector<2x32xf32>
    %cst_176 = arith.constant 1.000000e+00 : f32
    %1305 = vector.broadcast %cst_176 : f32 to vector<2x32xf32>
    %1306 = arith.addf %1305, %1304 : vector<2x32xf32>
    %1307 = arith.divf %1305, %1306 : vector<2x32xf32>
    %1308 = vector.extract_strided_slice %1252 {offsets = [0, 64], sizes = [2, 32], strides = [1, 1]} : vector<2x128xf32> to vector<2x32xf32>
    %1309 = math.tanh %1308 : vector<2x32xf32>
    %1310 = vector.extract_strided_slice %1252 {offsets = [0, 96], sizes = [2, 32], strides = [1, 1]} : vector<2x128xf32> to vector<2x32xf32>
    %1311 = arith.negf %1310 : vector<2x32xf32>
    %1312 = math.exp %1311 : vector<2x32xf32>
    %cst_177 = arith.constant 1.000000e+00 : f32
    %1313 = vector.broadcast %cst_177 : f32 to vector<2x32xf32>
    %1314 = arith.addf %1313, %1312 : vector<2x32xf32>
    %1315 = arith.divf %1313, %1314 : vector<2x32xf32>
    %1316 = arith.mulf %1307, %1242 : vector<2x32xf32>
    %1317 = arith.mulf %1301, %1309 : vector<2x32xf32>
    %1318 = arith.addf %1316, %1317 : vector<2x32xf32>
    %1319 = math.tanh %1318 : vector<2x32xf32>
    %1320 = arith.mulf %1315, %1319 : vector<2x32xf32>
    %1321 = vector.broadcast %1295 : vector<2x1xf32> to vector<2x32xf32>
    %1322 = arith.mulf %1321, %1320 : vector<2x32xf32>
    %cst_178 = arith.constant 1.000000e+00 : f32
    %1323 = vector.broadcast %cst_178 : f32 to vector<2x1xf32>
    %1324 = arith.subf %1323, %1295 : vector<2x1xf32>
    %1325 = vector.broadcast %1324 : vector<2x1xf32> to vector<2x32xf32>
    %1326 = arith.mulf %1325, %1235 : vector<2x32xf32>
    %1327 = arith.addf %1322, %1326 : vector<2x32xf32>
    %1328 = vector.broadcast %1295 : vector<2x1xf32> to vector<2x32xf32>
    %1329 = arith.mulf %1328, %1318 : vector<2x32xf32>
    %cst_179 = arith.constant 1.000000e+00 : f32
    %1330 = vector.broadcast %cst_179 : f32 to vector<2x1xf32>
    %1331 = arith.subf %1330, %1295 : vector<2x1xf32>
    %1332 = vector.broadcast %1331 : vector<2x1xf32> to vector<2x32xf32>
    %1333 = arith.mulf %1332, %1242 : vector<2x32xf32>
    %1334 = arith.addf %1329, %1333 : vector<2x32xf32>
    %1335 = tpu.concatenate %1286, %1327 in 1 : vector<2x32xf32>, vector<2x32xf32> -> vector<2x64xf32>
    %cst_180 = arith.constant dense<0.000000e+00> : vector<2x256xf32>
    %1336 = tpu.matmul %1335, %772, %cst_180 {dimension_numbers = #tpu.dot_dimension_numbers<[1], [0], [0], [1], [0, 0, 1, 1], [], []>} : vector<2x64xf32>, vector<64x256xf32>, vector<2x256xf32> -> vector<2x256xf32>
    %1337 = vector.extract_strided_slice %778 {offsets = [0, 6, 0], sizes = [2, 1, 128], strides = [1, 1, 1]} : vector<2x8x256xf32> to vector<2x1x128xf32>
    %1338 = vector.shape_cast %1337 : vector<2x1x128xf32> to vector<2x128xf32>
    %1339 = vector.extract_strided_slice %1336 {offsets = [0, 0], sizes = [2, 128], strides = [1, 1]} : vector<2x256xf32> to vector<2x128xf32>
    %1340 = arith.addf %1338, %1339 : vector<2x128xf32>
    %1341 = vector.extract_strided_slice %778 {offsets = [0, 1, 128], sizes = [2, 1, 128], strides = [1, 1, 1]} : vector<2x8x256xf32> to vector<2x1x128xf32>
    %1342 = vector.shape_cast %1341 : vector<2x1x128xf32> to vector<2x128xf32>
    %1343 = vector.extract_strided_slice %1336 {offsets = [0, 128], sizes = [2, 128], strides = [1, 1]} : vector<2x256xf32> to vector<2x128xf32>
    %1344 = arith.addf %1342, %1343 : vector<2x128xf32>
    %1345 = vector.extract_strided_slice %0 {offsets = [0, 6, 0], sizes = [2, 1, 1], strides = [1, 1, 1]} : vector<2x8x1xf32> to vector<2x1x1xf32>
    %1346 = vector.shape_cast %1345 : vector<2x1x1xf32> to vector<2x1xf32>
    %1347 = vector.extract_strided_slice %1340 {offsets = [0, 0], sizes = [2, 32], strides = [1, 1]} : vector<2x128xf32> to vector<2x32xf32>
    %1348 = arith.negf %1347 : vector<2x32xf32>
    %1349 = math.exp %1348 : vector<2x32xf32>
    %cst_181 = arith.constant 1.000000e+00 : f32
    %1350 = vector.broadcast %cst_181 : f32 to vector<2x32xf32>
    %1351 = arith.addf %1350, %1349 : vector<2x32xf32>
    %1352 = arith.divf %1350, %1351 : vector<2x32xf32>
    %1353 = vector.extract_strided_slice %1340 {offsets = [0, 32], sizes = [2, 32], strides = [1, 1]} : vector<2x128xf32> to vector<2x32xf32>
    %1354 = arith.negf %1353 : vector<2x32xf32>
    %1355 = math.exp %1354 : vector<2x32xf32>
    %cst_182 = arith.constant 1.000000e+00 : f32
    %1356 = vector.broadcast %cst_182 : f32 to vector<2x32xf32>
    %1357 = arith.addf %1356, %1355 : vector<2x32xf32>
    %1358 = arith.divf %1356, %1357 : vector<2x32xf32>
    %1359 = vector.extract_strided_slice %1340 {offsets = [0, 64], sizes = [2, 32], strides = [1, 1]} : vector<2x128xf32> to vector<2x32xf32>
    %1360 = math.tanh %1359 : vector<2x32xf32>
    %1361 = vector.extract_strided_slice %1340 {offsets = [0, 96], sizes = [2, 32], strides = [1, 1]} : vector<2x128xf32> to vector<2x32xf32>
    %1362 = arith.negf %1361 : vector<2x32xf32>
    %1363 = math.exp %1362 : vector<2x32xf32>
    %cst_183 = arith.constant 1.000000e+00 : f32
    %1364 = vector.broadcast %cst_183 : f32 to vector<2x32xf32>
    %1365 = arith.addf %1364, %1363 : vector<2x32xf32>
    %1366 = arith.divf %1364, %1365 : vector<2x32xf32>
    %1367 = arith.mulf %1358, %1293 : vector<2x32xf32>
    %1368 = arith.mulf %1352, %1360 : vector<2x32xf32>
    %1369 = arith.addf %1367, %1368 : vector<2x32xf32>
    %1370 = math.tanh %1369 : vector<2x32xf32>
    %1371 = arith.mulf %1366, %1370 : vector<2x32xf32>
    %1372 = vector.broadcast %1346 : vector<2x1xf32> to vector<2x32xf32>
    %1373 = arith.mulf %1372, %1371 : vector<2x32xf32>
    %cst_184 = arith.constant 1.000000e+00 : f32
    %1374 = vector.broadcast %cst_184 : f32 to vector<2x1xf32>
    %1375 = arith.subf %1374, %1346 : vector<2x1xf32>
    %1376 = vector.broadcast %1375 : vector<2x1xf32> to vector<2x32xf32>
    %1377 = arith.mulf %1376, %1286 : vector<2x32xf32>
    %1378 = arith.addf %1373, %1377 : vector<2x32xf32>
    %1379 = vector.broadcast %1346 : vector<2x1xf32> to vector<2x32xf32>
    %1380 = arith.mulf %1379, %1369 : vector<2x32xf32>
    %cst_185 = arith.constant 1.000000e+00 : f32
    %1381 = vector.broadcast %cst_185 : f32 to vector<2x1xf32>
    %1382 = arith.subf %1381, %1346 : vector<2x1xf32>
    %1383 = vector.broadcast %1382 : vector<2x1xf32> to vector<2x32xf32>
    %1384 = arith.mulf %1383, %1293 : vector<2x32xf32>
    %1385 = arith.addf %1380, %1384 : vector<2x32xf32>
    %1386 = vector.extract_strided_slice %0 {offsets = [0, 1, 0], sizes = [2, 1, 1], strides = [1, 1, 1]} : vector<2x8x1xf32> to vector<2x1x1xf32>
    %1387 = vector.shape_cast %1386 : vector<2x1x1xf32> to vector<2x1xf32>
    %1388 = vector.extract_strided_slice %1344 {offsets = [0, 0], sizes = [2, 32], strides = [1, 1]} : vector<2x128xf32> to vector<2x32xf32>
    %1389 = arith.negf %1388 : vector<2x32xf32>
    %1390 = math.exp %1389 : vector<2x32xf32>
    %cst_186 = arith.constant 1.000000e+00 : f32
    %1391 = vector.broadcast %cst_186 : f32 to vector<2x32xf32>
    %1392 = arith.addf %1391, %1390 : vector<2x32xf32>
    %1393 = arith.divf %1391, %1392 : vector<2x32xf32>
    %1394 = vector.extract_strided_slice %1344 {offsets = [0, 32], sizes = [2, 32], strides = [1, 1]} : vector<2x128xf32> to vector<2x32xf32>
    %1395 = arith.negf %1394 : vector<2x32xf32>
    %1396 = math.exp %1395 : vector<2x32xf32>
    %cst_187 = arith.constant 1.000000e+00 : f32
    %1397 = vector.broadcast %cst_187 : f32 to vector<2x32xf32>
    %1398 = arith.addf %1397, %1396 : vector<2x32xf32>
    %1399 = arith.divf %1397, %1398 : vector<2x32xf32>
    %1400 = vector.extract_strided_slice %1344 {offsets = [0, 64], sizes = [2, 32], strides = [1, 1]} : vector<2x128xf32> to vector<2x32xf32>
    %1401 = math.tanh %1400 : vector<2x32xf32>
    %1402 = vector.extract_strided_slice %1344 {offsets = [0, 96], sizes = [2, 32], strides = [1, 1]} : vector<2x128xf32> to vector<2x32xf32>
    %1403 = arith.negf %1402 : vector<2x32xf32>
    %1404 = math.exp %1403 : vector<2x32xf32>
    %cst_188 = arith.constant 1.000000e+00 : f32
    %1405 = vector.broadcast %cst_188 : f32 to vector<2x32xf32>
    %1406 = arith.addf %1405, %1404 : vector<2x32xf32>
    %1407 = arith.divf %1405, %1406 : vector<2x32xf32>
    %1408 = arith.mulf %1399, %1334 : vector<2x32xf32>
    %1409 = arith.mulf %1393, %1401 : vector<2x32xf32>
    %1410 = arith.addf %1408, %1409 : vector<2x32xf32>
    %1411 = math.tanh %1410 : vector<2x32xf32>
    %1412 = arith.mulf %1407, %1411 : vector<2x32xf32>
    %1413 = vector.broadcast %1387 : vector<2x1xf32> to vector<2x32xf32>
    %1414 = arith.mulf %1413, %1412 : vector<2x32xf32>
    %cst_189 = arith.constant 1.000000e+00 : f32
    %1415 = vector.broadcast %cst_189 : f32 to vector<2x1xf32>
    %1416 = arith.subf %1415, %1387 : vector<2x1xf32>
    %1417 = vector.broadcast %1416 : vector<2x1xf32> to vector<2x32xf32>
    %1418 = arith.mulf %1417, %1327 : vector<2x32xf32>
    %1419 = arith.addf %1414, %1418 : vector<2x32xf32>
    %1420 = vector.broadcast %1387 : vector<2x1xf32> to vector<2x32xf32>
    %1421 = arith.mulf %1420, %1410 : vector<2x32xf32>
    %cst_190 = arith.constant 1.000000e+00 : f32
    %1422 = vector.broadcast %cst_190 : f32 to vector<2x1xf32>
    %1423 = arith.subf %1422, %1387 : vector<2x1xf32>
    %1424 = vector.broadcast %1423 : vector<2x1xf32> to vector<2x32xf32>
    %1425 = arith.mulf %1424, %1334 : vector<2x32xf32>
    %1426 = arith.addf %1421, %1425 : vector<2x32xf32>
    %1427 = tpu.concatenate %1378, %1419 in 1 : vector<2x32xf32>, vector<2x32xf32> -> vector<2x64xf32>
    %cst_191 = arith.constant dense<0.000000e+00> : vector<2x256xf32>
    %1428 = tpu.matmul %1427, %772, %cst_191 {dimension_numbers = #tpu.dot_dimension_numbers<[1], [0], [0], [1], [0, 0, 1, 1], [], []>} : vector<2x64xf32>, vector<64x256xf32>, vector<2x256xf32> -> vector<2x256xf32>
    %1429 = vector.extract_strided_slice %778 {offsets = [0, 7, 0], sizes = [2, 1, 128], strides = [1, 1, 1]} : vector<2x8x256xf32> to vector<2x1x128xf32>
    %1430 = vector.shape_cast %1429 : vector<2x1x128xf32> to vector<2x128xf32>
    %1431 = vector.extract_strided_slice %1428 {offsets = [0, 0], sizes = [2, 128], strides = [1, 1]} : vector<2x256xf32> to vector<2x128xf32>
    %1432 = arith.addf %1430, %1431 : vector<2x128xf32>
    %1433 = vector.extract_strided_slice %778 {offsets = [0, 0, 128], sizes = [2, 1, 128], strides = [1, 1, 1]} : vector<2x8x256xf32> to vector<2x1x128xf32>
    %1434 = vector.shape_cast %1433 : vector<2x1x128xf32> to vector<2x128xf32>
    %1435 = vector.extract_strided_slice %1428 {offsets = [0, 128], sizes = [2, 128], strides = [1, 1]} : vector<2x256xf32> to vector<2x128xf32>
    %1436 = arith.addf %1434, %1435 : vector<2x128xf32>
    %1437 = vector.extract_strided_slice %0 {offsets = [0, 7, 0], sizes = [2, 1, 1], strides = [1, 1, 1]} : vector<2x8x1xf32> to vector<2x1x1xf32>
    %1438 = vector.shape_cast %1437 : vector<2x1x1xf32> to vector<2x1xf32>
    %1439 = vector.extract_strided_slice %1432 {offsets = [0, 0], sizes = [2, 32], strides = [1, 1]} : vector<2x128xf32> to vector<2x32xf32>
    %1440 = arith.negf %1439 : vector<2x32xf32>
    %1441 = math.exp %1440 : vector<2x32xf32>
    %cst_192 = arith.constant 1.000000e+00 : f32
    %1442 = vector.broadcast %cst_192 : f32 to vector<2x32xf32>
    %1443 = arith.addf %1442, %1441 : vector<2x32xf32>
    %1444 = arith.divf %1442, %1443 : vector<2x32xf32>
    %1445 = vector.extract_strided_slice %1432 {offsets = [0, 32], sizes = [2, 32], strides = [1, 1]} : vector<2x128xf32> to vector<2x32xf32>
    %1446 = arith.negf %1445 : vector<2x32xf32>
    %1447 = math.exp %1446 : vector<2x32xf32>
    %cst_193 = arith.constant 1.000000e+00 : f32
    %1448 = vector.broadcast %cst_193 : f32 to vector<2x32xf32>
    %1449 = arith.addf %1448, %1447 : vector<2x32xf32>
    %1450 = arith.divf %1448, %1449 : vector<2x32xf32>
    %1451 = vector.extract_strided_slice %1432 {offsets = [0, 64], sizes = [2, 32], strides = [1, 1]} : vector<2x128xf32> to vector<2x32xf32>
    %1452 = math.tanh %1451 : vector<2x32xf32>
    %1453 = vector.extract_strided_slice %1432 {offsets = [0, 96], sizes = [2, 32], strides = [1, 1]} : vector<2x128xf32> to vector<2x32xf32>
    %1454 = arith.negf %1453 : vector<2x32xf32>
    %1455 = math.exp %1454 : vector<2x32xf32>
    %cst_194 = arith.constant 1.000000e+00 : f32
    %1456 = vector.broadcast %cst_194 : f32 to vector<2x32xf32>
    %1457 = arith.addf %1456, %1455 : vector<2x32xf32>
    %1458 = arith.divf %1456, %1457 : vector<2x32xf32>
    %1459 = arith.mulf %1450, %1385 : vector<2x32xf32>
    %1460 = arith.mulf %1444, %1452 : vector<2x32xf32>
    %1461 = arith.addf %1459, %1460 : vector<2x32xf32>
    %1462 = math.tanh %1461 : vector<2x32xf32>
    %1463 = arith.mulf %1458, %1462 : vector<2x32xf32>
    %1464 = vector.broadcast %1438 : vector<2x1xf32> to vector<2x32xf32>
    %1465 = arith.mulf %1464, %1463 : vector<2x32xf32>
    %cst_195 = arith.constant 1.000000e+00 : f32
    %1466 = vector.broadcast %cst_195 : f32 to vector<2x1xf32>
    %1467 = arith.subf %1466, %1438 : vector<2x1xf32>
    %1468 = vector.broadcast %1467 : vector<2x1xf32> to vector<2x32xf32>
    %1469 = arith.mulf %1468, %1378 : vector<2x32xf32>
    %1470 = arith.addf %1465, %1469 : vector<2x32xf32>
    %1471 = vector.broadcast %1438 : vector<2x1xf32> to vector<2x32xf32>
    %1472 = arith.mulf %1471, %1461 : vector<2x32xf32>
    %cst_196 = arith.constant 1.000000e+00 : f32
    %1473 = vector.broadcast %cst_196 : f32 to vector<2x1xf32>
    %1474 = arith.subf %1473, %1438 : vector<2x1xf32>
    %1475 = vector.broadcast %1474 : vector<2x1xf32> to vector<2x32xf32>
    %1476 = arith.mulf %1475, %1385 : vector<2x32xf32>
    %1477 = arith.addf %1472, %1476 : vector<2x32xf32>
    %1478 = vector.extract_strided_slice %0 {offsets = [0, 0, 0], sizes = [2, 1, 1], strides = [1, 1, 1]} : vector<2x8x1xf32> to vector<2x1x1xf32>
    %1479 = vector.shape_cast %1478 : vector<2x1x1xf32> to vector<2x1xf32>
    %1480 = vector.extract_strided_slice %1436 {offsets = [0, 0], sizes = [2, 32], strides = [1, 1]} : vector<2x128xf32> to vector<2x32xf32>
    %1481 = arith.negf %1480 : vector<2x32xf32>
    %1482 = math.exp %1481 : vector<2x32xf32>
    %cst_197 = arith.constant 1.000000e+00 : f32
    %1483 = vector.broadcast %cst_197 : f32 to vector<2x32xf32>
    %1484 = arith.addf %1483, %1482 : vector<2x32xf32>
    %1485 = arith.divf %1483, %1484 : vector<2x32xf32>
    %1486 = vector.extract_strided_slice %1436 {offsets = [0, 32], sizes = [2, 32], strides = [1, 1]} : vector<2x128xf32> to vector<2x32xf32>
    %1487 = arith.negf %1486 : vector<2x32xf32>
    %1488 = math.exp %1487 : vector<2x32xf32>
    %cst_198 = arith.constant 1.000000e+00 : f32
    %1489 = vector.broadcast %cst_198 : f32 to vector<2x32xf32>
    %1490 = arith.addf %1489, %1488 : vector<2x32xf32>
    %1491 = arith.divf %1489, %1490 : vector<2x32xf32>
    %1492 = vector.extract_strided_slice %1436 {offsets = [0, 64], sizes = [2, 32], strides = [1, 1]} : vector<2x128xf32> to vector<2x32xf32>
    %1493 = math.tanh %1492 : vector<2x32xf32>
    %1494 = vector.extract_strided_slice %1436 {offsets = [0, 96], sizes = [2, 32], strides = [1, 1]} : vector<2x128xf32> to vector<2x32xf32>
    %1495 = arith.negf %1494 : vector<2x32xf32>
    %1496 = math.exp %1495 : vector<2x32xf32>
    %cst_199 = arith.constant 1.000000e+00 : f32
    %1497 = vector.broadcast %cst_199 : f32 to vector<2x32xf32>
    %1498 = arith.addf %1497, %1496 : vector<2x32xf32>
    %1499 = arith.divf %1497, %1498 : vector<2x32xf32>
    %1500 = arith.mulf %1491, %1426 : vector<2x32xf32>
    %1501 = arith.mulf %1485, %1493 : vector<2x32xf32>
    %1502 = arith.addf %1500, %1501 : vector<2x32xf32>
    %1503 = math.tanh %1502 : vector<2x32xf32>
    %1504 = arith.mulf %1499, %1503 : vector<2x32xf32>
    %1505 = vector.broadcast %1479 : vector<2x1xf32> to vector<2x32xf32>
    %1506 = arith.mulf %1505, %1504 : vector<2x32xf32>
    %cst_200 = arith.constant 1.000000e+00 : f32
    %1507 = vector.broadcast %cst_200 : f32 to vector<2x1xf32>
    %1508 = arith.subf %1507, %1479 : vector<2x1xf32>
    %1509 = vector.broadcast %1508 : vector<2x1xf32> to vector<2x32xf32>
    %1510 = arith.mulf %1509, %1419 : vector<2x32xf32>
    %1511 = arith.addf %1506, %1510 : vector<2x32xf32>
    %1512 = vector.broadcast %1479 : vector<2x1xf32> to vector<2x32xf32>
    %1513 = arith.mulf %1512, %1502 : vector<2x32xf32>
    %cst_201 = arith.constant 1.000000e+00 : f32
    %1514 = vector.broadcast %cst_201 : f32 to vector<2x1xf32>
    %1515 = arith.subf %1514, %1479 : vector<2x1xf32>
    %1516 = vector.broadcast %1515 : vector<2x1xf32> to vector<2x32xf32>
    %1517 = arith.mulf %1516, %1426 : vector<2x32xf32>
    %1518 = arith.addf %1513, %1517 : vector<2x32xf32>
    %1519 = vector.shape_cast %821 : vector<2x32xf32> to vector<2x1x32xf32>
    %1520 = vector.shape_cast %913 : vector<2x32xf32> to vector<2x1x32xf32>
    %1521 = vector.shape_cast %1005 : vector<2x32xf32> to vector<2x1x32xf32>
    %1522 = vector.shape_cast %1097 : vector<2x32xf32> to vector<2x1x32xf32>
    %1523 = vector.shape_cast %1189 : vector<2x32xf32> to vector<2x1x32xf32>
    %1524 = vector.shape_cast %1281 : vector<2x32xf32> to vector<2x1x32xf32>
    %1525 = vector.shape_cast %1373 : vector<2x32xf32> to vector<2x1x32xf32>
    %1526 = vector.shape_cast %1465 : vector<2x32xf32> to vector<2x1x32xf32>
    %1527 = tpu.concatenate %1519, %1520, %1521, %1522, %1523, %1524, %1525, %1526 in 1 : vector<2x1x32xf32>, vector<2x1x32xf32>, vector<2x1x32xf32>, vector<2x1x32xf32>, vector<2x1x32xf32>, vector<2x1x32xf32>, vector<2x1x32xf32>, vector<2x1x32xf32> -> vector<2x8x32xf32>
    %1528 = vector.shape_cast %1506 : vector<2x32xf32> to vector<2x1x32xf32>
    %1529 = vector.shape_cast %1414 : vector<2x32xf32> to vector<2x1x32xf32>
    %1530 = vector.shape_cast %1322 : vector<2x32xf32> to vector<2x1x32xf32>
    %1531 = vector.shape_cast %1230 : vector<2x32xf32> to vector<2x1x32xf32>
    %1532 = vector.shape_cast %1138 : vector<2x32xf32> to vector<2x1x32xf32>
    %1533 = vector.shape_cast %1046 : vector<2x32xf32> to vector<2x1x32xf32>
    %1534 = vector.shape_cast %954 : vector<2x32xf32> to vector<2x1x32xf32>
    %1535 = vector.shape_cast %862 : vector<2x32xf32> to vector<2x1x32xf32>
    %1536 = tpu.concatenate %1528, %1529, %1530, %1531, %1532, %1533, %1534, %1535 in 1 : vector<2x1x32xf32>, vector<2x1x32xf32>, vector<2x1x32xf32>, vector<2x1x32xf32>, vector<2x1x32xf32>, vector<2x1x32xf32>, vector<2x1x32xf32>, vector<2x1x32xf32> -> vector<2x8x32xf32>
    %1537 = tpu.concatenate %1527, %1536 in 2 : vector<2x8x32xf32>, vector<2x8x32xf32> -> vector<2x8x64xf32>
    %1538 = tpu.concatenate %1470, %1511 in 1 : vector<2x32xf32>, vector<2x32xf32> -> vector<2x64xf32>
    %1539 = tpu.concatenate %1477, %1518 in 1 : vector<2x32xf32>, vector<2x32xf32> -> vector<2x64xf32>
    %c0_202 = arith.constant 0 : index
    %c0_203 = arith.constant 0 : index
    %c0_204 = arith.constant 0 : index
    %1540 = vector.load %arg17[%c0_202, %c0_203, %c0_204] : memref<2x8x64xf32, #tpu.memory_space<vmem>>, vector<2x8x64xf32>
    tpu.vector_store %arg17[%c0_202, %c0_203, %c0_204], %1537 {strides = array<i32>} : memref<2x8x64xf32, #tpu.memory_space<vmem>>, vector<2x8x64xf32>,
    %1541 = vector.shape_cast %769 : vector<2x64xf32> to vector<1x2x64xf32>
    %1542 = vector.shape_cast %1538 : vector<2x64xf32> to vector<1x2x64xf32>
    %1543 = tpu.concatenate %1541, %1542 in 0 : vector<1x2x64xf32>, vector<1x2x64xf32> -> vector<2x2x64xf32>
    %1544 = vector.shape_cast %1543 : vector<2x2x64xf32> to vector<4x64xf32>
    %1545 = vector.shape_cast %770 : vector<2x64xf32> to vector<1x2x64xf32>
    %1546 = vector.shape_cast %1539 : vector<2x64xf32> to vector<1x2x64xf32>
    %1547 = tpu.concatenate %1545, %1546 in 0 : vector<1x2x64xf32>, vector<1x2x64xf32> -> vector<2x2x64xf32>
    %1548 = vector.shape_cast %1547 : vector<2x2x64xf32> to vector<4x64xf32>
    %c0_205 = arith.constant 0 : index
    %c0_206 = arith.constant 0 : index
    %1549 = vector.load %arg8[%c0_205, %c0_206] : memref<64x32xf32, #tpu.memory_space<vmem>>, vector<64x32xf32>
    %cst_207 = arith.constant dense<0.000000e+00> : vector<4x32xf32>
    %1550 = tpu.matmul %1544, %1549, %cst_207 {dimension_numbers = #tpu.dot_dimension_numbers<[1], [0], [0], [1], [0, 0, 1, 1], [], []>} : vector<4x64xf32>, vector<64x32xf32>, vector<4x32xf32> -> vector<4x32xf32>
    %c0_208 = arith.constant 0 : index
    %c0_209 = arith.constant 0 : index
    %1551 = vector.load %arg9[%c0_208, %c0_209] : memref<1x32xf32, #tpu.memory_space<vmem>>, vector<1x32xf32>
    %1552 = vector.broadcast %1551 : vector<1x32xf32> to vector<4x32xf32>
    %1553 = arith.addf %1550, %1552 : vector<4x32xf32>
    %1554 = math.tanh %1553 : vector<4x32xf32>
    %c0_210 = arith.constant 0 : index
    %c0_211 = arith.constant 0 : index
    %1555 = vector.load %arg10[%c0_210, %c0_211] : memref<64x32xf32, #tpu.memory_space<vmem>>, vector<64x32xf32>
    %cst_212 = arith.constant dense<0.000000e+00> : vector<4x32xf32>
    %1556 = tpu.matmul %1548, %1555, %cst_212 {dimension_numbers = #tpu.dot_dimension_numbers<[1], [0], [0], [1], [0, 0, 1, 1], [], []>} : vector<4x64xf32>, vector<64x32xf32>, vector<4x32xf32> -> vector<4x32xf32>
    %c0_213 = arith.constant 0 : index
    %c0_214 = arith.constant 0 : index
    %1557 = vector.load %arg11[%c0_213, %c0_214] : memref<1x32xf32, #tpu.memory_space<vmem>>, vector<1x32xf32>
    %1558 = vector.broadcast %1557 : vector<1x32xf32> to vector<4x32xf32>
    %1559 = arith.addf %1556, %1558 : vector<4x32xf32>
    %1560 = math.tanh %1559 : vector<4x32xf32>
    %1561 = vector.shape_cast %1554 : vector<4x32xf32> to vector<2x2x32xf32>
    %c0_215 = arith.constant 0 : index
    %c0_216 = arith.constant 0 : index
    %c0_217 = arith.constant 0 : index
    %1562 = vector.load %arg18[%c0_215, %c0_216, %c0_217] : memref<2x2x32xf32, #tpu.memory_space<vmem>>, vector<2x2x32xf32>
    tpu.vector_store %arg18[%c0_215, %c0_216, %c0_217], %1561 {strides = array<i32>} : memref<2x2x32xf32, #tpu.memory_space<vmem>>, vector<2x2x32xf32>,
    %1563 = vector.shape_cast %1560 : vector<4x32xf32> to vector<2x2x32xf32>
    %c0_218 = arith.constant 0 : index
    %c0_219 = arith.constant 0 : index
    %c0_220 = arith.constant 0 : index
    %1564 = vector.load %arg19[%c0_218, %c0_219, %c0_220] : memref<2x2x32xf32, #tpu.memory_space<vmem>>, vector<2x2x32xf32>
    tpu.vector_store %arg19[%c0_218, %c0_219, %c0_220], %1563 {strides = array<i32>} : memref<2x2x32xf32, #tpu.memory_space<vmem>>, vector<2x2x32xf32>,
    %1565 = vector.extract_strided_slice %1554 {offsets = [0, 0], sizes = [2, 32], strides = [1, 1]} : vector<4x32xf32> to vector<2x32xf32>
    %c0_221 = arith.constant 0 : index
    %c0_222 = arith.constant 0 : index
    %1566 = vector.load %arg13[%c0_221, %c0_222] : memref<32x32xf32, #tpu.memory_space<vmem>>, vector<32x32xf32>
    %cst_223 = arith.constant dense<0.000000e+00> : vector<2x32xf32>
    %1567 = tpu.matmul %1565, %1566, %cst_223 {dimension_numbers = #tpu.dot_dimension_numbers<[1], [0], [0], [1], [0, 0, 1, 1], [], []>} : vector<2x32xf32>, vector<32x32xf32>, vector<2x32xf32> -> vector<2x32xf32>
    %cst_224 = arith.constant 0.000000e+00 : f32
    %1568 = vector.broadcast %cst_224 : f32 to vector<2x32xf32>
    %1569 = arith.maximumf %1567, %1568 : vector<2x32xf32>
    %c0_225 = arith.constant 0 : index
    %c0_226 = arith.constant 0 : index
    %1570 = vector.load %arg12[%c0_225, %c0_226] : memref<2x2048xbf16, #tpu.memory_space<vmem>>, vector<2x2048xbf16>
    %c0_227 = arith.constant 0 : index
    %c0_228 = arith.constant 0 : index
    %1571 = vector.load %arg14[%c0_227, %c0_228] : memref<2048x32xbf16, #tpu.memory_space<vmem>>, vector<2048x32xbf16>
    %cst_229 = arith.constant dense<0.000000e+00> : vector<2x32xf32>
    %1572 = tpu.matmul %1570, %1571, %cst_229 {dimension_numbers = #tpu.dot_dimension_numbers<[1], [0], [0], [1], [0, 0, 1, 1], [], []>} : vector<2x2048xbf16>, vector<2048x32xbf16>, vector<2x32xf32> -> vector<2x32xf32>
    %cst_230 = arith.constant 0.000000e+00 : f32
    %1573 = vector.broadcast %cst_230 : f32 to vector<2x32xf32>
    %1574 = arith.maximumf %1572, %1573 : vector<2x32xf32>
    %1575 = arith.mulf %1569, %1574 : vector<2x32xf32>
    %c0_231 = arith.constant 0 : index
    %c0_232 = arith.constant 0 : index
    %1576 = vector.load %arg21[%c0_231, %c0_232] : memref<2x32xf32, #tpu.memory_space<vmem>>, vector<2x32xf32>
    tpu.vector_store %arg21[%c0_231, %c0_232], %1575 {strides = array<i32>} : memref<2x32xf32, #tpu.memory_space<vmem>>, vector<2x32xf32>,
    %c0_233 = arith.constant 0 : index
    %c0_234 = arith.constant 0 : index
    %1577 = vector.load %arg15[%c0_233, %c0_234] : memref<32x16xf32, #tpu.memory_space<vmem>>, vector<32x16xf32>
    %cst_235 = arith.constant dense<0.000000e+00> : vector<2x16xf32>
    %1578 = tpu.matmul %1575, %1577, %cst_235 {dimension_numbers = #tpu.dot_dimension_numbers<[1], [0], [0], [1], [0, 0, 1, 1], [], []>} : vector<2x32xf32>, vector<32x16xf32>, vector<2x16xf32> -> vector<2x16xf32>
    %c0_236 = arith.constant 0 : index
    %c0_237 = arith.constant 0 : index
    %1579 = vector.load %arg16[%c0_236, %c0_237] : memref<1x16xf32, #tpu.memory_space<vmem>>, vector<1x16xf32>
    %1580 = vector.broadcast %1579 : vector<1x16xf32> to vector<2x16xf32>
    %1581 = arith.addf %1578, %1580 : vector<2x16xf32>
    %1582 = math.tanh %1581 : vector<2x16xf32>
    %cst_238 = arith.constant dense<0xFF800000> : vector<2xf32>
    %1583 = vector.multi_reduction <maximumf>, %1582, %cst_238 [1] : vector<2x16xf32> to vector<2xf32>
    %1584 = vector.shape_cast %1583 : vector<2xf32> to vector<2x1xf32>
    %1585 = vector.broadcast %1584 : vector<2x1xf32> to vector<2x16xf32>
    %1586 = arith.subf %1582, %1585 : vector<2x16xf32>
    %1587 = math.exp %1586 : vector<2x16xf32>
    %cst_239 = arith.constant dense<0.000000e+00> : vector<2xf32>
    %1588 = vector.multi_reduction <add>, %1587, %cst_239 [1] : vector<2x16xf32> to vector<2xf32>
    %1589 = vector.shape_cast %1588 : vector<2xf32> to vector<2x1xf32>
    %1590 = math.log %1589 : vector<2x1xf32>
    %1591 = arith.addf %1584, %1590 : vector<2x1xf32>
    %1592 = vector.broadcast %1591 : vector<2x1xf32> to vector<2x16xf32>
    %1593 = arith.subf %1582, %1592 : vector<2x16xf32>
    %c0_240 = arith.constant 0 : index
    %c0_241 = arith.constant 0 : index
    %1594 = vector.load %arg20[%c0_240, %c0_241] : memref<2x16xf32, #tpu.memory_space<vmem>>, vector<2x16xf32>
    tpu.vector_store %arg20[%c0_240, %c0_241], %1593 {strides = array<i32>} : memref<2x16xf32, #tpu.memory_space<vmem>>, vector<2x16xf32>,
    return
  }
}

</mosaic_0001>

<llo_original>
// kernel: vqa_forward.1
$region0: #{vqa_forward.1}
  #allocation0 [shape = 'u32[]', space=smem, size = 0x4, offset = 0x4, fixed_abs, tag = 'smem constant byte address 0x4 - core index']
  #allocation1 [shape = 'u32[144,128]{1,0:T(1,128)}', space=vmem, size = 0x12000, scoped, tag = 'internal scratch']
  %s0 = inlined_call_operand.vmem [shape: f32[2,8,32], index: 0, kind: input, shape index: {}]
  %s1 = inlined_call_operand.vmem [shape: f32[2,8,1], index: 1, kind: input, shape index: {}]
  %s2 = inlined_call_operand.vmem [shape: f32[32,256], index: 2, kind: input, shape index: {}]
  %s3 = inlined_call_operand.vmem [shape: f32[64,256], index: 3, kind: input, shape index: {}]
  %s4 = inlined_call_operand.vmem [shape: f32[1,256], index: 4, kind: input, shape index: {}]
  %s5 = inlined_call_operand.vmem [shape: f32[64,256], index: 5, kind: input, shape index: {}]
  %s6 = inlined_call_operand.vmem [shape: f32[64,256], index: 6, kind: input, shape index: {}]
  %s7 = inlined_call_operand.vmem [shape: f32[1,256], index: 7, kind: input, shape index: {}]
  %s8 = inlined_call_operand.vmem [shape: f32[64,32], index: 8, kind: input, shape index: {}]
  %s9 = inlined_call_operand.vmem [shape: f32[1,32], index: 9, kind: input, shape index: {}]
  %s10 = inlined_call_operand.vmem [shape: f32[64,32], index: 10, kind: input, shape index: {}]
  %s11 = inlined_call_operand.vmem [shape: f32[1,32], index: 11, kind: input, shape index: {}]
  %s12 = inlined_call_operand.vmem [shape: bf16[2,2048], index: 12, kind: input, shape index: {}]
  %s13 = inlined_call_operand.vmem [shape: f32[32,32], index: 13, kind: input, shape index: {}]
  %s14 = inlined_call_operand.vmem [shape: bf16[2048,32], index: 14, kind: input, shape index: {}]
  %s15 = inlined_call_operand.vmem [shape: f32[32,16], index: 15, kind: input, shape index: {}]
  %s16 = inlined_call_operand.vmem [shape: f32[1,16], index: 16, kind: input, shape index: {}]
  %s17 = inlined_call_operand.hbm [shape: f32[2,8,64], index: 17, kind: output, shape index: {0}]
  %s18 = inlined_call_operand.hbm [shape: f32[2,2,32], index: 18, kind: output, shape index: {1}]
  %s19 = inlined_call_operand.hbm [shape: f32[2,2,32], index: 19, kind: output, shape index: {2}]
  %s20 = inlined_call_operand.hbm [shape: f32[2,16], index: 20, kind: output, shape index: {3}]
  %s21 = inlined_call_operand.hbm [shape: f32[2,32], index: 21, kind: output, shape index: {4}]
  %22 = xla_tuple %s17, %s18, %s19, %s20, %s21
  %s23 = sld [smem:[#allocation0]]
  $region110: #{vqa_forward.1} parent=0
    _
  %s25 = ssub.s32 1, %s23
  %s26 = scalar_select 0, %s25, %s23
  $region1: #{vqa_forward.1} parent=0
    #allocation2 [shape = 'u8[8192]{0}', space=vmem, size = 0x2000, scoped, tag = 'output window, operand 0, single buffered']
    #allocation3 [shape = 's32[1]{0}', space=sflag, size = 0x4, scoped, tag = 'scoped memory for vqa_forward.1']
    #allocation4 [shape = 'u8[2048]{0}', space=vmem, size = 0x800, scoped, tag = 'output window, operand 1, single buffered']
    #allocation5 [shape = 's32[1]{0}', space=sflag, size = 0x4, scoped, tag = 'scoped memory for vqa_forward.1']
    #allocation6 [shape = 'u8[2048]{0}', space=vmem, size = 0x800, scoped, tag = 'output window, operand 2, single buffered']
    #allocation7 [shape = 'u8[1024]{0}', space=vmem, size = 0x400, scoped, tag = 'output window, operand 3, single buffered']
    #allocation8 [shape = 's32[1]{0}', space=sflag, size = 0x4, scoped, tag = 'scoped memory for vqa_forward.1']
    #allocation9 [shape = 'u8[1024]{0}', space=vmem, size = 0x400, scoped, tag = 'output window, operand 4, single buffered']
    %27 = vsyncpa [#allocation3], 0
    %28 = vsyncpa [#allocation5], 0
    %29 = vsyncpa [#allocation8], 0
    // Predicated region
    $region2: #{vqa_forward.1} parent=1 // pred_check
      _
    $region3: #{vqa_forward.1} parent=1 // pred_check_branch
      %31 = sbr.rel (0) target = $region5
    $region4: #{vqa_forward.1} parent=1 // pred_region
      _
    $region5: #{vqa_forward.1} parent=1 // pred_fallthru
      _
    // Predicated region
    $region6: #{vqa_forward.1} parent=1 // pred_check
      _
    $region7: #{vqa_forward.1} parent=1 // pred_check_branch
      %33 = sbr.rel (0) target = $region9
    $region8: #{vqa_forward.1} parent=1 // pred_region
      _
    $region9: #{vqa_forward.1} parent=1 // pred_fallthru
      _
    // Predicated region
    $region10: #{vqa_forward.1} parent=1 // pred_check
      _
    $region11: #{vqa_forward.1} parent=1 // pred_check_branch
      %35 = sbr.rel (0) target = $region13
    $region12: #{vqa_forward.1} parent=1 // pred_region
      _
    $region13: #{vqa_forward.1} parent=1 // pred_fallthru
      _
    // Predicated region
    $region14: #{vqa_forward.1} parent=1 // pred_check
      _
    $region15: #{vqa_forward.1} parent=1 // pred_check_branch
      %37 = sbr.rel (0) target = $region17
    $region16: #{vqa_forward.1} parent=1 // pred_region
      _
    $region17: #{vqa_forward.1} parent=1 // pred_fallthru
      _
    // Predicated region
    $region18: #{vqa_forward.1} parent=1 // pred_check
      _
    $region19: #{vqa_forward.1} parent=1 // pred_check_branch
      %39 = sbr.rel (0) target = $region21
    $region20: #{vqa_forward.1} parent=1 // pred_region
      _
    $region21: #{vqa_forward.1} parent=1 // pred_fallthru
      _
    // Predicated region
    $region22: #{vqa_forward.1} parent=1 // pred_check
      _
    $region23: #{vqa_forward.1} parent=1 // pred_check_branch
      %41 = sbr.rel (0) target = $region25
    $region24: #{vqa_forward.1} parent=1 // pred_region
      _
    $region25: #{vqa_forward.1} parent=1 // pred_fallthru
      _
    // Predicated region
    $region26: #{vqa_forward.1} parent=1 // pred_check
      _
    $region27: #{vqa_forward.1} parent=1 // pred_check_branch
      %43 = sbr.rel (0) target = $region29
    $region28: #{vqa_forward.1} parent=1 // pred_region
      _
    $region29: #{vqa_forward.1} parent=1 // pred_fallthru
      _
    // Predicated region
    $region30: #{vqa_forward.1} parent=1 // pred_check
      _
    $region31: #{vqa_forward.1} parent=1 // pred_check_branch
      %45 = sbr.rel (0) target = $region33
    $region32: #{vqa_forward.1} parent=1 // pred_region
      _
    $region33: #{vqa_forward.1} parent=1 // pred_fallthru
      _
    // Predicated region
    $region34: #{vqa_forward.1} parent=1 // pred_check
      _
    $region35: #{vqa_forward.1} parent=1 // pred_check_branch
      %47 = sbr.rel (0) target = $region37
    $region36: #{vqa_forward.1} parent=1 // pred_region
      _
    $region37: #{vqa_forward.1} parent=1 // pred_fallthru
      _
    // Predicated region
    $region38: #{vqa_forward.1} parent=1 // pred_check
      _
    $region39: #{vqa_forward.1} parent=1 // pred_check_branch
      %49 = sbr.rel (0) target = $region41
    $region40: #{vqa_forward.1} parent=1 // pred_region
      _
    $region41: #{vqa_forward.1} parent=1 // pred_fallthru
      _
    // Predicated region
    $region42: #{vqa_forward.1} parent=1 // pred_check
      _
    $region43: #{vqa_forward.1} parent=1 // pred_check_branch
      %51 = sbr.rel (0) target = $region45
    $region44: #{vqa_forward.1} parent=1 // pred_region
      _
    $region45: #{vqa_forward.1} parent=1 // pred_fallthru
      _
    // Predicated region
    $region46: #{vqa_forward.1} parent=1 // pred_check
      _
    $region47: #{vqa_forward.1} parent=1 // pred_check_branch
      %53 = sbr.rel (0) target = $region49
    $region48: #{vqa_forward.1} parent=1 // pred_region
      _
    $region49: #{vqa_forward.1} parent=1 // pred_fallthru
      _
    // Predicated region
    $region50: #{vqa_forward.1} parent=1 // pred_check
      _
    $region51: #{vqa_forward.1} parent=1 // pred_check_branch
      %55 = sbr.rel (0) target = $region53
    $region52: #{vqa_forward.1} parent=1 // pred_region
      _
    $region53: #{vqa_forward.1} parent=1 // pred_fallthru
      _
    // Predicated region
    $region54: #{vqa_forward.1} parent=1 // pred_check
      _
    $region55: #{vqa_forward.1} parent=1 // pred_check_branch
      %57 = sbr.rel (0) target = $region57
    $region56: #{vqa_forward.1} parent=1 // pred_region
      _
    $region57: #{vqa_forward.1} parent=1 // pred_fallthru
      _
    // Predicated region
    $region58: #{vqa_forward.1} parent=1 // pred_check
      _
    $region59: #{vqa_forward.1} parent=1 // pred_check_branch
      %59 = sbr.rel (0) target = $region61
    $region60: #{vqa_forward.1} parent=1 // pred_region
      _
    $region61: #{vqa_forward.1} parent=1 // pred_fallthru
      _
    // Predicated region
    $region62: #{vqa_forward.1} parent=1 // pred_check
      _
    $region63: #{vqa_forward.1} parent=1 // pred_check_branch
      %61 = sbr.rel (0) target = $region65
    $region64: #{vqa_forward.1} parent=1 // pred_region
      _
    $region65: #{vqa_forward.1} parent=1 // pred_fallthru
      _
    // Predicated region
    $region66: #{vqa_forward.1} parent=1 // pred_check
      _
    $region67: #{vqa_forward.1} parent=1 // pred_check_branch
      %63 = sbr.rel (0) target = $region69
    $region68: #{vqa_forward.1} parent=1 // pred_region
      _
    $region69: #{vqa_forward.1} parent=1 // pred_fallthru
      _
    %v65 = vld [vmem:[%s1] sm:$0xff]
    %v66 = vld [vmem:[%s1 + $0x8] sm:$0xff]
    %v67 = vld [vmem:[%s0] sm:$0xff]
    %v68 = vld [vmem:[%s0 + $0x8] sm:$0xff]
    %v69 = vld [vmem:[%s2] sm:$0xff]
    %v70 = vld [vmem:[%s2 + $0x8] sm:$0xff]
    %v71 = vld [vmem:[%s2 + $0x10] sm:$0xff]
    %v72 = vld [vmem:[%s2 + $0x18] sm:$0xff]
    %v73 = vld [vmem:[%s2 + $0x20] sm:$0xff]
    %v74 = vld [vmem:[%s2 + $0x28] sm:$0xff]
    %v75 = vld [vmem:[%s2 + $0x30] sm:$0xff]
    %v76 = vld [vmem:[%s2 + $0x38] sm:$0xff]
    %v77 = vld [vmem:[%s3] sm:$0xff]
    %v78 = vld [vmem:[%s3 + $0x8] sm:$0xff]
    %v79 = vld [vmem:[%s3 + $0x10] sm:$0xff]
    %v80 = vld [vmem:[%s3 + $0x18] sm:$0xff]
    %v81 = vld [vmem:[%s3 + $0x20] sm:$0xff]
    %v82 = vld [vmem:[%s3 + $0x28] sm:$0xff]
    %v83 = vld [vmem:[%s3 + $0x30] sm:$0xff]
    %v84 = vld [vmem:[%s3 + $0x38] sm:$0xff]
    %v85 = vld [vmem:[%s3 + $0x40] sm:$0xff]
    %v86 = vld [vmem:[%s3 + $0x48] sm:$0xff]
    %v87 = vld [vmem:[%s3 + $0x50] sm:$0xff]
    %v88 = vld [vmem:[%s3 + $0x58] sm:$0xff]
    %v89 = vld [vmem:[%s3 + $0x60] sm:$0xff]
    %v90 = vld [vmem:[%s3 + $0x68] sm:$0xff]
    %v91 = vld [vmem:[%s3 + $0x70] sm:$0xff]
    %v92 = vld [vmem:[%s3 + $0x78] sm:$0xff]
    %v93 = vld [vmem:[%s4] sm:$0x3]
    %v95 = vlaneseq
    %v96 = vshrl.u32 %v95, 7
    %v97 = vsub.s32 0, %v96
    %v98 = vrot.slane %v93, %v97
    %v99 = vlaneseq
    %v100 = vshrl.u32 %v99, 7
    %v101 = vsub.s32 1, %v100
    %v102 = vrot.slane %v93, %v101
    %vm105 = vcmask 261120
    %v107 = vsel %vm105, %v67, 0
    %v110 = vsel %vm105, %v68, 0
    %112 = vmatprep.subr.mxu0 %v70
    %113 = vmatpush1.msra.mxu0 %v69
    %114 = vmatprep.subr.mxu0 %v72
    %115 = vmatpush1.msra.mxu0 %v71
    %116 = vmatprep.subr.mxu0 %v74
    %117 = vmatpush1.msra.mxu0 %v73
    %118 = vmatprep.subr.mxu0 %v76
    %119 = vmatpush1.msra.mxu0 %v75
    %120 = vmatprep.subr.mxu0 0.0
    %121 = vmatpush1.msra.mxu0 0.0
    %122 = vmatprep.subr.mxu0 0.0
    %123 = vmatpush1.msra.mxu0 0.0
    %124 = vmatprep.subr.mxu0 0.0
    %125 = vmatpush1.msra.mxu0 0.0
    %126 = vmatprep.subr.mxu0 0.0
    %127 = vmatpush1.msra.mxu0 0.0
    %128 = vmatprep.subr.mxu0 0.0
    %129 = vmatpush1.msra.mxu0 0.0
    %130 = vmatprep.subr.mxu0 0.0
    %131 = vmatpush1.msra.mxu0 0.0
    %132 = vmatprep.subr.mxu0 0.0
    %133 = vmatpush1.msra.mxu0 0.0
    %134 = vmatprep.subr.mxu0 0.0
    %135 = vmatpush1.msra.mxu0 0.0
    %136 = vmatprep.subr.mxu0 0.0
    %137 = vmatpush1.msra.mxu0 0.0
    %138 = vmatprep.subr.mxu0 0.0
    %139 = vmatpush1.msra.mxu0 0.0
    %140 = vmatprep.subr.mxu0 0.0
    %141 = vmatpush1.msra.mxu0 0.0
    %142 = vmatprep.subr.mxu0 0.0
    %143 = vmatpush1.msra.mxu0 0.0
    %144 = vmatprep.subr.mxu0 0.0
    %145 = vmatpush1.msra.mxu0 0.0
    %146 = vmatprep.subr.mxu0 0.0
    %147 = vmatpush1.msra.mxu0 0.0
    %148 = vmatprep.subr.mxu0 0.0
    %149 = vmatpush1.msra.mxu0 0.0
    %150 = vmatprep.subr.mxu0 0.0
    %151 = vmatpush1.msra.mxu0 0.0
    %152 = vmatprep.subr.mxu0 0.0
    %153 = vmatpush1.msra.mxu0 0.0
    %154 = vmatprep.subr.mxu0 0.0
    %155 = vmatpush1.msra.mxu0 0.0
    %156 = vmatprep.subr.mxu0 0.0
    %157 = vmatpush1.msra.mxu0 0.0
    %158 = vmatprep.subr.mxu0 0.0
    %159 = vmatpush1.msra.mxu0 0.0
    %160 = vmatprep.subr.mxu0 0.0
    %161 = vmatpush1.msra.mxu0 0.0
    %162 = vmatprep.subr.mxu0 0.0
    %163 = vmatpush1.msra.mxu0 0.0
    %164 = vmatprep.subr.mxu0 0.0
    %165 = vmatpush1.msra.mxu0 0.0
    %166 = vmatprep.subr.mxu0 0.0
    %167 = vmatpush1.msra.mxu0 0.0
    %168 = vmatprep.subr.mxu0 0.0
    %169 = vmatpush1.msra.mxu0 0.0
    %170 = vmatprep.subr.mxu0 0.0
    %171 = vmatpush1.msra.mxu0 0.0
    %172 = vmatprep.subr.mxu0 0.0
    %173 = vmatpush1.msra.mxu0 0.0
    %174 = vmatprep.subr.mxu0 0.0
    %175 = vmatpush1.msra.mxu0 0.0
    %176 = vmatprep.mubr.f32.mxu0 0.0
    %177 = vmatmul.mubr.f32.gmra.mrb[0].mxu0 %v107
    %v178 = vpop.f32.mrb[0].mxu0
    %v179 = vadd.f32 %v98, %v178
    %v180 = vpop.f32.mrb[0].mxu0
    %v181 = vadd.f32 %v102, %v180
    %182 = vmatprep.mubr.f32.mxu0 0.0
    %183 = vmatmul.mubr.f32.gmra.mrb[0].mxu0 %v110
    %v184 = vpop.f32.mrb[0].mxu0
    %v185 = vadd.f32 %v98, %v184
    %v186 = vpop.f32.mrb[0].mxu0
    %v187 = vadd.f32 %v102, %v186
    %188 = vdwg.mxu0
    %vm189 = vcmask 523264
    %v191 = vsel %vm189, 0.0, 0
    %193 = vmatprep.subr.mxu0 %v78
    %194 = vmatpush1.msra.mxu0 %v77
    %195 = vmatprep.subr.mxu0 %v80
    %196 = vmatpush1.msra.mxu0 %v79
    %197 = vmatprep.subr.mxu0 %v82
    %198 = vmatpush1.msra.mxu0 %v81
    %199 = vmatprep.subr.mxu0 %v84
    %200 = vmatpush1.msra.mxu0 %v83
    %201 = vmatprep.subr.mxu0 %v86
    %202 = vmatpush1.msra.mxu0 %v85
    %203 = vmatprep.subr.mxu0 %v88
    %204 = vmatpush1.msra.mxu0 %v87
    %205 = vmatprep.subr.mxu0 %v90
    %206 = vmatpush1.msra.mxu0 %v89
    %207 = vmatprep.subr.mxu0 %v92
    %208 = vmatpush1.msra.mxu0 %v91
    %209 = vmatprep.subr.mxu0 0.0
    %210 = vmatpush1.msra.mxu0 0.0
    %211 = vmatprep.subr.mxu0 0.0
    %212 = vmatpush1.msra.mxu0 0.0
    %213 = vmatprep.subr.mxu0 0.0
    %214 = vmatpush1.msra.mxu0 0.0
    %215 = vmatprep.subr.mxu0 0.0
    %216 = vmatpush1.msra.mxu0 0.0
    %217 = vmatprep.subr.mxu0 0.0
    %218 = vmatpush1.msra.mxu0 0.0
    %219 = vmatprep.subr.mxu0 0.0
    %220 = vmatpush1.msra.mxu0 0.0
    %221 = vmatprep.subr.mxu0 0.0
    %222 = vmatpush1.msra.mxu0 0.0
    %223 = vmatprep.subr.mxu0 0.0
    %224 = vmatpush1.msra.mxu0 0.0
    %225 = vmatprep.subr.mxu0 0.0
    %226 = vmatpush1.msra.mxu0 0.0
    %227 = vmatprep.subr.mxu0 0.0
    %228 = vmatpush1.msra.mxu0 0.0
    %229 = vmatprep.subr.mxu0 0.0
    %230 = vmatpush1.msra.mxu0 0.0
    %231 = vmatprep.subr.mxu0 0.0
    %232 = vmatpush1.msra.mxu0 0.0
    %233 = vmatprep.subr.mxu0 0.0
    %234 = vmatpush1.msra.mxu0 0.0
    %235 = vmatprep.subr.mxu0 0.0
    %236 = vmatpush1.msra.mxu0 0.0
    %237 = vmatprep.subr.mxu0 0.0
    %238 = vmatpush1.msra.mxu0 0.0
    %239 = vmatprep.subr.mxu0 0.0
    %240 = vmatpush1.msra.mxu0 0.0
    %241 = vmatprep.subr.mxu0 0.0
    %242 = vmatpush1.msra.mxu0 0.0
    %243 = vmatprep.subr.mxu0 0.0
    %244 = vmatpush1.msra.mxu0 0.0
    %245 = vmatprep.subr.mxu0 0.0
    %246 = vmatpush1.msra.mxu0 0.0
    %247 = vmatprep.subr.mxu0 0.0
    %248 = vmatpush1.msra.mxu0 0.0
    %249 = vmatprep.subr.mxu0 0.0
    %250 = vmatpush1.msra.mxu0 0.0
    %251 = vmatprep.subr.mxu0 0.0
    %252 = vmatpush1.msra.mxu0 0.0
    %253 = vmatprep.subr.mxu0 0.0
    %254 = vmatpush1.msra.mxu0 0.0
    %255 = vmatprep.subr.mxu0 0.0
    %256 = vmatpush1.msra.mxu0 0.0
    %257 = vmatprep.mubr.f32.mxu0 0.0
    %258 = vmatmul.mubr.f32.gmra.mrb[0].mxu0 %v191
    %v259 = vpop.f32.mrb[0].mxu0
    %v260 = vadd.f32 0.0, %v259
    %v261 = vpop.f32.mrb[0].mxu0
    %v262 = vadd.f32 0.0, %v261
    %263 = vdwg.mxu0
    %v265 = vrot.slane %v260, 1
    %v268 = vadd.f32 %v179, %v260
    %v269 = vadd.f32 %v185, %v265
    %v271 = vrot.slane %v262, 1
    %v272 = vrot.slane %v262, 2
    %v275 = vadd.f32 %v181, %v271
    %v276 = vadd.f32 %v187, %v272
    %v277 = vxor.u32 %v268, 2147483648
    %v278 = vxor.u32 %v269, 2147483648
    %v279 = vmul.f32 %v277, 1.442695
    %v280 = vpow.pop %v279
    %v281 = vmul.f32 %v278, 1.442695
    %v282 = vpow.pop %v281
    %v283 = vadd.f32 %v280, 1.0
    %v284 = vadd.f32 %v282, 1.0
    %v285 = vrcp.pop %v283
    %v286 = vmul.f32 1.0, %v285
    %v287 = vrcp.pop %v284
    %v288 = vmul.f32 1.0, %v287
    %v289 = vtanh.pop %v268
    %v290 = vtanh.pop %v269
    %v291 = vmul.f32 %v286, 0.0
    %v292 = vmul.f32 %v288, 0.0
    %295 = vrot.lane.b32.xlu0 %v289, 64
    %v296 = vpop.permute.xlu0 %295
    %297 = vrot.lane.b32.xlu0 %v290, 64
    %v298 = vpop.permute.xlu0 %297
    %v301 = vmul.f32 %v286, %v296
    %v302 = vmul.f32 %v288, %v298
    %305 = vrot.lane.b32.xlu0 %v301, 32
    %v306 = vpop.permute.xlu0 %305
    %307 = vrot.lane.b32.xlu0 %v302, 32
    %v308 = vpop.permute.xlu0 %307
    %v311 = vadd.f32 %v291, %v306
    %v312 = vadd.f32 %v292, %v308
    %v313 = vtanh.pop %v311
    %v314 = vtanh.pop %v312
    %317 = vrot.lane.b32.xlu0 %v313, 64
    %v318 = vpop.permute.xlu0 %317
    %319 = vrot.lane.b32.xlu0 %v314, 64
    %v320 = vpop.permute.xlu0 %319
    %v323 = vmul.f32 %v286, %v318
    %v324 = vmul.f32 %v288, %v320
    %326 = vset.pattern.permute.xlu0 0
    %327 = vperm.xlu0 %326, %v65
    %v328 = vpop.permute.xlu0 %327
    %331 = vset.pattern.permute.xlu0 0
    %332 = vperm.xlu0 %331, %v66
    %v333 = vpop.permute.xlu0 %332
    %v335 = vmul.f32 %v328, %v323
    %v336 = vmul.f32 %v333, %v324
    %v337 = vsub.f32 1.0, %v65
    %v338 = vsub.f32 1.0, %v66
    %340 = vset.pattern.permute.xlu0 0
    %341 = vperm.xlu0 %340, %v337
    %v342 = vpop.permute.xlu0 %341
    %345 = vset.pattern.permute.xlu0 0
    %346 = vperm.xlu0 %345, %v338
    %v347 = vpop.permute.xlu0 %346
    %v349 = vmul.f32 %v342, 0.0
    %v350 = vmul.f32 %v347, 0.0
    %v351 = vadd.f32 %v335, %v349
    %v352 = vadd.f32 %v336, %v350
    %v353 = vmul.f32 %v328, %v311
    %v354 = vmul.f32 %v333, %v312
    %v355 = vadd.f32 %v353, %v349
    %v356 = vadd.f32 %v354, %v350
    %v357 = vxor.u32 %v275, 2147483648
    %v358 = vxor.u32 %v276, 2147483648
    %v359 = vmul.f32 %v357, 1.442695
    %v360 = vpow.pop %v359
    %v361 = vmul.f32 %v358, 1.442695
    %v362 = vpow.pop %v361
    %v363 = vadd.f32 %v360, 1.0
    %v364 = vadd.f32 %v362, 1.0
    %v365 = vrcp.pop %v363
    %v366 = vmul.f32 1.0, %v365
    %v367 = vrcp.pop %v364
    %v368 = vmul.f32 1.0, %v367
    %v369 = vtanh.pop %v275
    %v370 = vtanh.pop %v276
    %v371 = vmul.f32 %v366, 0.0
    %v372 = vmul.f32 %v368, 0.0
    %375 = vrot.lane.b32.xlu0 %v369, 64
    %v376 = vpop.permute.xlu0 %375
    %377 = vrot.lane.b32.xlu0 %v370, 64
    %v378 = vpop.permute.xlu0 %377
    %v381 = vmul.f32 %v366, %v376
    %v382 = vmul.f32 %v368, %v378
    %385 = vrot.lane.b32.xlu0 %v381, 32
    %v386 = vpop.permute.xlu0 %385
    %387 = vrot.lane.b32.xlu0 %v382, 32
    %v388 = vpop.permute.xlu0 %387
    %v391 = vadd.f32 %v371, %v386
    %v392 = vadd.f32 %v372, %v388
    %v393 = vtanh.pop %v391
    %v394 = vtanh.pop %v392
    %397 = vrot.lane.b32.xlu0 %v393, 64
    %v398 = vpop.permute.xlu0 %397
    %399 = vrot.lane.b32.xlu0 %v394, 64
    %v400 = vpop.permute.xlu0 %399
    %v403 = vmul.f32 %v366, %v398
    %v404 = vmul.f32 %v368, %v400
    %v405 = vmul.f32 %v328, %v403
    %v406 = vmul.f32 %v333, %v404
    %v407 = vadd.f32 %v405, %v349
    %v408 = vadd.f32 %v406, %v350
    %v409 = vmul.f32 %v328, %v391
    %v410 = vmul.f32 %v333, %v392
    %v411 = vadd.f32 %v409, %v349
    %v412 = vadd.f32 %v410, %v350
    %v415 = vrot.slane %v352, 7
    %vm416 = vcmask 1041409
    %v417 = vsel %vm416, %v415, %v351
    %418 = vrot.lane.b32.xlu0 %v417, 32
    %v419 = vpop.permute.xlu0 %418
    %v423 = vrot.slane %v407, 7
    %v424 = vrot.slane %v408, 6
    %v425 = vsel %vm416, %v424, %v423
    %426 = vrot.lane.b32.xlu0 %v425, 64
    %v427 = vpop.permute.xlu0 %426
    %v429 = vsel %vm105, %v419, %v427
    %v431 = vsel %vm189, %v429, 0
    %433 = vmatprep.subr.mxu0 %v78
    %434 = vmatpush1.msra.mxu0 %v77
    %435 = vmatprep.subr.mxu0 %v80
    %436 = vmatpush1.msra.mxu0 %v79
    %437 = vmatprep.subr.mxu0 %v82
    %438 = vmatpush1.msra.mxu0 %v81
    %439 = vmatprep.subr.mxu0 %v84
    %440 = vmatpush1.msra.mxu0 %v83
    %441 = vmatprep.subr.mxu0 %v86
    %442 = vmatpush1.msra.mxu0 %v85
    %443 = vmatprep.subr.mxu0 %v88
    %444 = vmatpush1.msra.mxu0 %v87
    %445 = vmatprep.subr.mxu0 %v90
    %446 = vmatpush1.msra.mxu0 %v89
    %447 = vmatprep.subr.mxu0 %v92
    %448 = vmatpush1.msra.mxu0 %v91
    %449 = vmatprep.subr.mxu0 0.0
    %450 = vmatpush1.msra.mxu0 0.0
    %451 = vmatprep.subr.mxu0 0.0
    %452 = vmatpush1.msra.mxu0 0.0
    %453 = vmatprep.subr.mxu0 0.0
    %454 = vmatpush1.msra.mxu0 0.0
    %455 = vmatprep.subr.mxu0 0.0
    %456 = vmatpush1.msra.mxu0 0.0
    %457 = vmatprep.subr.mxu0 0.0
    %458 = vmatpush1.msra.mxu0 0.0
    %459 = vmatprep.subr.mxu0 0.0
    %460 = vmatpush1.msra.mxu0 0.0
    %461 = vmatprep.subr.mxu0 0.0
    %462 = vmatpush1.msra.mxu0 0.0
    %463 = vmatprep.subr.mxu0 0.0
    %464 = vmatpush1.msra.mxu0 0.0
    %465 = vmatprep.subr.mxu0 0.0
    %466 = vmatpush1.msra.mxu0 0.0
    %467 = vmatprep.subr.mxu0 0.0
    %468 = vmatpush1.msra.mxu0 0.0
    %469 = vmatprep.subr.mxu0 0.0
    %470 = vmatpush1.msra.mxu0 0.0
    %471 = vmatprep.subr.mxu0 0.0
    %472 = vmatpush1.msra.mxu0 0.0
    %473 = vmatprep.subr.mxu0 0.0
    %474 = vmatpush1.msra.mxu0 0.0
    %475 = vmatprep.subr.mxu0 0.0
    %476 = vmatpush1.msra.mxu0 0.0
    %477 = vmatprep.subr.mxu0 0.0
    %478 = vmatpush1.msra.mxu0 0.0
    %479 = vmatprep.subr.mxu0 0.0
    %480 = vmatpush1.msra.mxu0 0.0
    %481 = vmatprep.subr.mxu0 0.0
    %482 = vmatpush1.msra.mxu0 0.0
    %483 = vmatprep.subr.mxu0 0.0
    %484 = vmatpush1.msra.mxu0 0.0
    %485 = vmatprep.subr.mxu0 0.0
    %486 = vmatpush1.msra.mxu0 0.0
    %487 = vmatprep.subr.mxu0 0.0
    %488 = vmatpush1.msra.mxu0 0.0
    %489 = vmatprep.subr.mxu0 0.0
    %490 = vmatpush1.msra.mxu0 0.0
    %491 = vmatprep.subr.mxu0 0.0
    %492 = vmatpush1.msra.mxu0 0.0
    %493 = vmatprep.subr.mxu0 0.0
    %494 = vmatpush1.msra.mxu0 0.0
    %495 = vmatprep.subr.mxu0 0.0
    %496 = vmatpush1.msra.mxu0 0.0
    %497 = vmatprep.mubr.f32.mxu0 0.0
    %498 = vmatmul.mubr.f32.gmra.mrb[0].mxu0 %v431
    %v499 = vpop.f32.mrb[0].mxu0
    %v500 = vadd.f32 0.0, %v499
    %v501 = vpop.f32.mrb[0].mxu0
    %v502 = vadd.f32 0.0, %v501
    %503 = vdwg.mxu0
    %v505 = vrot.slane %v500, 7
    %v508 = vadd.f32 %v179, %v505
    %v509 = vadd.f32 %v185, %v500
    %v511 = vrot.slane %v502, 2
    %v512 = vrot.slane %v502, 3
    %v515 = vadd.f32 %v181, %v511
    %v516 = vadd.f32 %v187, %v512
    %v517 = vxor.u32 %v508, 2147483648
    %v518 = vxor.u32 %v509, 2147483648
    %v519 = vmul.f32 %v517, 1.442695
    %v520 = vpow.pop %v519
    %v521 = vmul.f32 %v518, 1.442695
    %v522 = vpow.pop %v521
    %v523 = vadd.f32 %v520, 1.0
    %v524 = vadd.f32 %v522, 1.0
    %v525 = vrcp.pop %v523
    %v526 = vmul.f32 1.0, %v525
    %v527 = vrcp.pop %v524
    %v528 = vmul.f32 1.0, %v527
    %v529 = vtanh.pop %v508
    %v530 = vtanh.pop %v509
    %v533 = vrot.slane %v355, 7
    %v534 = vrot.slane %v356, 7
    %v537 = vmul.f32 %v526, %v533
    %v538 = vmul.f32 %v528, %v534
    %541 = vrot.lane.b32.xlu0 %v529, 64
    %v542 = vpop.permute.xlu0 %541
    %543 = vrot.lane.b32.xlu0 %v530, 64
    %v544 = vpop.permute.xlu0 %543
    %v547 = vmul.f32 %v526, %v542
    %v548 = vmul.f32 %v528, %v544
    %551 = vrot.lane.b32.xlu0 %v547, 32
    %v552 = vpop.permute.xlu0 %551
    %553 = vrot.lane.b32.xlu0 %v548, 32
    %v554 = vpop.permute.xlu0 %553
    %v557 = vadd.f32 %v537, %v552
    %v558 = vadd.f32 %v538, %v554
    %v559 = vtanh.pop %v557
    %v560 = vtanh.pop %v558
    %563 = vrot.lane.b32.xlu0 %v559, 64
    %v564 = vpop.permute.xlu0 %563
    %565 = vrot.lane.b32.xlu0 %v560, 64
    %v566 = vpop.permute.xlu0 %565
    %v569 = vmul.f32 %v526, %v564
    %v570 = vmul.f32 %v528, %v566
    %v571 = vmul.f32 %v328, %v569
    %v572 = vmul.f32 %v333, %v570
    %v573 = vrot.slane %v351, 7
    %574 = vrot.lane.b32.xlu0 %v573, 32
    %v575 = vpop.permute.xlu0 %574
    %576 = vrot.lane.b32.xlu0 %v415, 32
    %v577 = vpop.permute.xlu0 %576
    %v580 = vmul.f32 %v342, %v575
    %v581 = vmul.f32 %v347, %v577
    %584 = vrot.lane.b32.xlu0 %v580, 96
    %v585 = vpop.permute.xlu0 %584
    %586 = vrot.lane.b32.xlu0 %v581, 96
    %v587 = vpop.permute.xlu0 %586
    %v590 = vadd.f32 %v571, %v585
    %v591 = vadd.f32 %v572, %v587
    %v592 = vmul.f32 %v328, %v557
    %v593 = vmul.f32 %v333, %v558
    %594 = vrot.lane.b32.xlu0 %v533, 96
    %v595 = vpop.permute.xlu0 %594
    %596 = vrot.lane.b32.xlu0 %v534, 96
    %v597 = vpop.permute.xlu0 %596
    %v600 = vmul.f32 %v342, %v595
    %v601 = vmul.f32 %v347, %v597
    %604 = vrot.lane.b32.xlu0 %v600, 32
    %v605 = vpop.permute.xlu0 %604
    %606 = vrot.lane.b32.xlu0 %v601, 32
    %v607 = vpop.permute.xlu0 %606
    %v610 = vadd.f32 %v592, %v605
    %v611 = vadd.f32 %v593, %v607
    %v612 = vxor.u32 %v515, 2147483648
    %v613 = vxor.u32 %v516, 2147483648
    %v614 = vmul.f32 %v612, 1.442695
    %v615 = vpow.pop %v614
    %v616 = vmul.f32 %v613, 1.442695
    %v617 = vpow.pop %v616
    %v618 = vadd.f32 %v615, 1.0
    %v619 = vadd.f32 %v617, 1.0
    %v620 = vrcp.pop %v618
    %v621 = vmul.f32 1.0, %v620
    %v622 = vrcp.pop %v619
    %v623 = vmul.f32 1.0, %v622
    %v624 = vtanh.pop %v515
    %v625 = vtanh.pop %v516
    %v628 = vrot.slane %v411, 1
    %v629 = vrot.slane %v412, 1
    %v632 = vmul.f32 %v621, %v628
    %v633 = vmul.f32 %v623, %v629
    %636 = vrot.lane.b32.xlu0 %v624, 64
    %v637 = vpop.permute.xlu0 %636
    %638 = vrot.lane.b32.xlu0 %v625, 64
    %v639 = vpop.permute.xlu0 %638
    %v642 = vmul.f32 %v621, %v637
    %v643 = vmul.f32 %v623, %v639
    %646 = vrot.lane.b32.xlu0 %v642, 32
    %v647 = vpop.permute.xlu0 %646
    %648 = vrot.lane.b32.xlu0 %v643, 32
    %v649 = vpop.permute.xlu0 %648
    %v652 = vadd.f32 %v632, %v647
    %v653 = vadd.f32 %v633, %v649
    %v654 = vtanh.pop %v652
    %v655 = vtanh.pop %v653
    %658 = vrot.lane.b32.xlu0 %v654, 64
    %v659 = vpop.permute.xlu0 %658
    %660 = vrot.lane.b32.xlu0 %v655, 64
    %v661 = vpop.permute.xlu0 %660
    %v664 = vmul.f32 %v621, %v659
    %v665 = vmul.f32 %v623, %v661
    %v666 = vmul.f32 %v328, %v664
    %v667 = vmul.f32 %v333, %v665
    %v668 = vrot.slane %v407, 1
    %v669 = vrot.slane %v408, 1
    %670 = vrot.lane.b32.xlu0 %v668, 32
    %v671 = vpop.permute.xlu0 %670
    %672 = vrot.lane.b32.xlu0 %v669, 32
    %v673 = vpop.permute.xlu0 %672
    %v676 = vmul.f32 %v342, %v671
    %v677 = vmul.f32 %v347, %v673
    %680 = vrot.lane.b32.xlu0 %v676, 96
    %v681 = vpop.permute.xlu0 %680
    %682 = vrot.lane.b32.xlu0 %v677, 96
    %v683 = vpop.permute.xlu0 %682
    %v686 = vadd.f32 %v666, %v681
    %v687 = vadd.f32 %v667, %v683
    %v688 = vmul.f32 %v328, %v652
    %v689 = vmul.f32 %v333, %v653
    %690 = vrot.lane.b32.xlu0 %v628, 96
    %v691 = vpop.permute.xlu0 %690
    %692 = vrot.lane.b32.xlu0 %v629, 96
    %v693 = vpop.permute.xlu0 %692
    %v696 = vmul.f32 %v342, %v691
    %v697 = vmul.f32 %v347, %v693
    %700 = vrot.lane.b32.xlu0 %v696, 32
    %v701 = vpop.permute.xlu0 %700
    %702 = vrot.lane.b32.xlu0 %v697, 32
    %v703 = vpop.permute.xlu0 %702
    %v706 = vadd.f32 %v688, %v701
    %v707 = vadd.f32 %v689, %v703
    %v710 = vrot.slane %v591, 7
    %vm711 = vcmask 1042434
    %v712 = vsel %vm711, %v710, %v590
    %713 = vrot.lane.b32.xlu0 %v712, 32
    %v714 = vpop.permute.xlu0 %713
    %v718 = vrot.slane %v686, 5
    %v719 = vrot.slane %v687, 4
    %v720 = vsel %vm711, %v719, %v718
    %721 = vrot.lane.b32.xlu0 %v720, 64
    %v722 = vpop.permute.xlu0 %721
    %v724 = vsel %vm105, %v714, %v722
    %v726 = vrot.slane %v724, 1
    %v727 = vsel %vm189, %v726, 0
    %729 = vmatprep.subr.mxu0 %v78
    %730 = vmatpush1.msra.mxu0 %v77
    %731 = vmatprep.subr.mxu0 %v80
    %732 = vmatpush1.msra.mxu0 %v79
    %733 = vmatprep.subr.mxu0 %v82
    %734 = vmatpush1.msra.mxu0 %v81
    %735 = vmatprep.subr.mxu0 %v84
    %736 = vmatpush1.msra.mxu0 %v83
    %737 = vmatprep.subr.mxu0 %v86
    %738 = vmatpush1.msra.mxu0 %v85
    %739 = vmatprep.subr.mxu0 %v88
    %740 = vmatpush1.msra.mxu0 %v87
    %741 = vmatprep.subr.mxu0 %v90
    %742 = vmatpush1.msra.mxu0 %v89
    %743 = vmatprep.subr.mxu0 %v92
    %744 = vmatpush1.msra.mxu0 %v91
    %745 = vmatprep.subr.mxu0 0.0
    %746 = vmatpush1.msra.mxu0 0.0
    %747 = vmatprep.subr.mxu0 0.0
    %748 = vmatpush1.msra.mxu0 0.0
    %749 = vmatprep.subr.mxu0 0.0
    %750 = vmatpush1.msra.mxu0 0.0
    %751 = vmatprep.subr.mxu0 0.0
    %752 = vmatpush1.msra.mxu0 0.0
    %753 = vmatprep.subr.mxu0 0.0
    %754 = vmatpush1.msra.mxu0 0.0
    %755 = vmatprep.subr.mxu0 0.0
    %756 = vmatpush1.msra.mxu0 0.0
    %757 = vmatprep.subr.mxu0 0.0
    %758 = vmatpush1.msra.mxu0 0.0
    %759 = vmatprep.subr.mxu0 0.0
    %760 = vmatpush1.msra.mxu0 0.0
    %761 = vmatprep.subr.mxu0 0.0
    %762 = vmatpush1.msra.mxu0 0.0
    %763 = vmatprep.subr.mxu0 0.0
    %764 = vmatpush1.msra.mxu0 0.0
    %765 = vmatprep.subr.mxu0 0.0
    %766 = vmatpush1.msra.mxu0 0.0
    %767 = vmatprep.subr.mxu0 0.0
    %768 = vmatpush1.msra.mxu0 0.0
    %769 = vmatprep.subr.mxu0 0.0
    %770 = vmatpush1.msra.mxu0 0.0
    %771 = vmatprep.subr.mxu0 0.0
    %772 = vmatpush1.msra.mxu0 0.0
    %773 = vmatprep.subr.mxu0 0.0
    %774 = vmatpush1.msra.mxu0 0.0
    %775 = vmatprep.subr.mxu0 0.0
    %776 = vmatpush1.msra.mxu0 0.0
    %777 = vmatprep.subr.mxu0 0.0
    %778 = vmatpush1.msra.mxu0 0.0
    %779 = vmatprep.subr.mxu0 0.0
    %780 = vmatpush1.msra.mxu0 0.0
    %781 = vmatprep.subr.mxu0 0.0
    %782 = vmatpush1.msra.mxu0 0.0
    %783 = vmatprep.subr.mxu0 0.0
    %784 = vmatpush1.msra.mxu0 0.0
    %785 = vmatprep.subr.mxu0 0.0
    %786 = vmatpush1.msra.mxu0 0.0
    %787 = vmatprep.subr.mxu0 0.0
    %788 = vmatpush1.msra.mxu0 0.0
    %789 = vmatprep.subr.mxu0 0.0
    %790 = vmatpush1.msra.mxu0 0.0
    %791 = vmatprep.subr.mxu0 0.0
    %792 = vmatpush1.msra.mxu0 0.0
    %793 = vmatprep.mubr.f32.mxu0 0.0
    %794 = vmatmul.mubr.f32.gmra.mrb[0].mxu0 %v727
    %v795 = vpop.f32.mrb[0].mxu0
    %v796 = vadd.f32 0.0, %v795
    %v797 = vpop.f32.mrb[0].mxu0
    %v798 = vadd.f32 0.0, %v797
    %799 = vdwg.mxu0
    %v801 = vrot.slane %v796, 6
    %v802 = vrot.slane %v796, 7
    %v805 = vadd.f32 %v179, %v801
    %v806 = vadd.f32 %v185, %v802
    %v808 = vrot.slane %v798, 3
    %v809 = vrot.slane %v798, 4
    %v812 = vadd.f32 %v181, %v808
    %v813 = vadd.f32 %v187, %v809
    %v814 = vxor.u32 %v805, 2147483648
    %v815 = vxor.u32 %v806, 2147483648
    %v816 = vmul.f32 %v814, 1.442695
    %v817 = vpow.pop %v816
    %v818 = vmul.f32 %v815, 1.442695
    %v819 = vpow.pop %v818
    %v820 = vadd.f32 %v817, 1.0
    %v821 = vadd.f32 %v819, 1.0
    %v822 = vrcp.pop %v820
    %v823 = vmul.f32 1.0, %v822
    %v824 = vrcp.pop %v821
    %v825 = vmul.f32 1.0, %v824
    %v826 = vtanh.pop %v805
    %v827 = vtanh.pop %v806
    %v830 = vrot.slane %v610, 7
    %v831 = vrot.slane %v611, 7
    %v834 = vmul.f32 %v823, %v830
    %v835 = vmul.f32 %v825, %v831
    %838 = vrot.lane.b32.xlu0 %v826, 64
    %v839 = vpop.permute.xlu0 %838
    %840 = vrot.lane.b32.xlu0 %v827, 64
    %v841 = vpop.permute.xlu0 %840
    %v844 = vmul.f32 %v823, %v839
    %v845 = vmul.f32 %v825, %v841
    %848 = vrot.lane.b32.xlu0 %v844, 32
    %v849 = vpop.permute.xlu0 %848
    %850 = vrot.lane.b32.xlu0 %v845, 32
    %v851 = vpop.permute.xlu0 %850
    %v854 = vadd.f32 %v834, %v849
    %v855 = vadd.f32 %v835, %v851
    %v856 = vtanh.pop %v854
    %v857 = vtanh.pop %v855
    %860 = vrot.lane.b32.xlu0 %v856, 64
    %v861 = vpop.permute.xlu0 %860
    %862 = vrot.lane.b32.xlu0 %v857, 64
    %v863 = vpop.permute.xlu0 %862
    %v866 = vmul.f32 %v823, %v861
    %v867 = vmul.f32 %v825, %v863
    %v868 = vmul.f32 %v328, %v866
    %v869 = vmul.f32 %v333, %v867
    %v870 = vrot.slane %v590, 7
    %871 = vrot.lane.b32.xlu0 %v870, 32
    %v872 = vpop.permute.xlu0 %871
    %873 = vrot.lane.b32.xlu0 %v710, 32
    %v874 = vpop.permute.xlu0 %873
    %v877 = vmul.f32 %v342, %v872
    %v878 = vmul.f32 %v347, %v874
    %881 = vrot.lane.b32.xlu0 %v877, 96
    %v882 = vpop.permute.xlu0 %881
    %883 = vrot.lane.b32.xlu0 %v878, 96
    %v884 = vpop.permute.xlu0 %883
    %v887 = vadd.f32 %v868, %v882
    %v888 = vadd.f32 %v869, %v884
    %v889 = vmul.f32 %v328, %v854
    %v890 = vmul.f32 %v333, %v855
    %891 = vrot.lane.b32.xlu0 %v830, 96
    %v892 = vpop.permute.xlu0 %891
    %893 = vrot.lane.b32.xlu0 %v831, 96
    %v894 = vpop.permute.xlu0 %893
    %v897 = vmul.f32 %v342, %v892
    %v898 = vmul.f32 %v347, %v894
    %901 = vrot.lane.b32.xlu0 %v897, 32
    %v902 = vpop.permute.xlu0 %901
    %903 = vrot.lane.b32.xlu0 %v898, 32
    %v904 = vpop.permute.xlu0 %903
    %v907 = vadd.f32 %v889, %v902
    %v908 = vadd.f32 %v890, %v904
    %v909 = vxor.u32 %v812, 2147483648
    %v910 = vxor.u32 %v813, 2147483648
    %v911 = vmul.f32 %v909, 1.442695
    %v912 = vpow.pop %v911
    %v913 = vmul.f32 %v910, 1.442695
    %v914 = vpow.pop %v913
    %v915 = vadd.f32 %v912, 1.0
    %v916 = vadd.f32 %v914, 1.0
    %v917 = vrcp.pop %v915
    %v918 = vmul.f32 1.0, %v917
    %v919 = vrcp.pop %v916
    %v920 = vmul.f32 1.0, %v919
    %v921 = vtanh.pop %v812
    %v922 = vtanh.pop %v813
    %v925 = vrot.slane %v706, 1
    %v926 = vrot.slane %v707, 1
    %v929 = vmul.f32 %v918, %v925
    %v930 = vmul.f32 %v920, %v926
    %933 = vrot.lane.b32.xlu0 %v921, 64
    %v934 = vpop.permute.xlu0 %933
    %935 = vrot.lane.b32.xlu0 %v922, 64
    %v936 = vpop.permute.xlu0 %935
    %v939 = vmul.f32 %v918, %v934
    %v940 = vmul.f32 %v920, %v936
    %943 = vrot.lane.b32.xlu0 %v939, 32
    %v944 = vpop.permute.xlu0 %943
    %945 = vrot.lane.b32.xlu0 %v940, 32
    %v946 = vpop.permute.xlu0 %945
    %v949 = vadd.f32 %v929, %v944
    %v950 = vadd.f32 %v930, %v946
    %v951 = vtanh.pop %v949
    %v952 = vtanh.pop %v950
    %955 = vrot.lane.b32.xlu0 %v951, 64
    %v956 = vpop.permute.xlu0 %955
    %957 = vrot.lane.b32.xlu0 %v952, 64
    %v958 = vpop.permute.xlu0 %957
    %v961 = vmul.f32 %v918, %v956
    %v962 = vmul.f32 %v920, %v958
    %v963 = vmul.f32 %v328, %v961
    %v964 = vmul.f32 %v333, %v962
    %v965 = vrot.slane %v686, 1
    %v966 = vrot.slane %v687, 1
    %967 = vrot.lane.b32.xlu0 %v965, 32
    %v968 = vpop.permute.xlu0 %967
    %969 = vrot.lane.b32.xlu0 %v966, 32
    %v970 = vpop.permute.xlu0 %969
    %v973 = vmul.f32 %v342, %v968
    %v974 = vmul.f32 %v347, %v970
    %977 = vrot.lane.b32.xlu0 %v973, 96
    %v978 = vpop.permute.xlu0 %977
    %979 = vrot.lane.b32.xlu0 %v974, 96
    %v980 = vpop.permute.xlu0 %979
    %v983 = vadd.f32 %v963, %v978
    %v984 = vadd.f32 %v964, %v980
    %v985 = vmul.f32 %v328, %v949
    %v986 = vmul.f32 %v333, %v950
    %987 = vrot.lane.b32.xlu0 %v925, 96
    %v988 = vpop.permute.xlu0 %987
    %989 = vrot.lane.b32.xlu0 %v926, 96
    %v990 = vpop.permute.xlu0 %989
    %v993 = vmul.f32 %v342, %v988
    %v994 = vmul.f32 %v347, %v990
    %997 = vrot.lane.b32.xlu0 %v993, 32
    %v998 = vpop.permute.xlu0 %997
    %999 = vrot.lane.b32.xlu0 %v994, 32
    %v1000 = vpop.permute.xlu0 %999
    %v1003 = vadd.f32 %v985, %v998
    %v1004 = vadd.f32 %v986, %v1000
    %v1007 = vrot.slane %v888, 7
    %vm1008 = vcmask 1043459
    %v1009 = vsel %vm1008, %v1007, %v887
    %1010 = vrot.lane.b32.xlu0 %v1009, 32
    %v1011 = vpop.permute.xlu0 %1010
    %v1015 = vrot.slane %v983, 3
    %v1016 = vrot.slane %v984, 2
    %v1017 = vsel %vm1008, %v1016, %v1015
    %1018 = vrot.lane.b32.xlu0 %v1017, 64
    %v1019 = vpop.permute.xlu0 %1018
    %v1021 = vsel %vm105, %v1011, %v1019
    %v1023 = vrot.slane %v1021, 2
    %v1024 = vsel %vm189, %v1023, 0
    %1026 = vmatprep.subr.mxu0 %v78
    %1027 = vmatpush1.msra.mxu0 %v77
    %1028 = vmatprep.subr.mxu0 %v80
    %1029 = vmatpush1.msra.mxu0 %v79
    %1030 = vmatprep.subr.mxu0 %v82
    %1031 = vmatpush1.msra.mxu0 %v81
    %1032 = vmatprep.subr.mxu0 %v84
    %1033 = vmatpush1.msra.mxu0 %v83
    %1034 = vmatprep.subr.mxu0 %v86
    %1035 = vmatpush1.msra.mxu0 %v85
    %1036 = vmatprep.subr.mxu0 %v88
    %1037 = vmatpush1.msra.mxu0 %v87
    %1038 = vmatprep.subr.mxu0 %v90
    %1039 = vmatpush1.msra.mxu0 %v89
    %1040 = vmatprep.subr.mxu0 %v92
    %1041 = vmatpush1.msra.mxu0 %v91
    %1042 = vmatprep.subr.mxu0 0.0
    %1043 = vmatpush1.msra.mxu0 0.0
    %1044 = vmatprep.subr.mxu0 0.0
    %1045 = vmatpush1.msra.mxu0 0.0
    %1046 = vmatprep.subr.mxu0 0.0
    %1047 = vmatpush1.msra.mxu0 0.0
    %1048 = vmatprep.subr.mxu0 0.0
    %1049 = vmatpush1.msra.mxu0 0.0
    %1050 = vmatprep.subr.mxu0 0.0
    %1051 = vmatpush1.msra.mxu0 0.0
    %1052 = vmatprep.subr.mxu0 0.0
    %1053 = vmatpush1.msra.mxu0 0.0
    %1054 = vmatprep.subr.mxu0 0.0
    %1055 = vmatpush1.msra.mxu0 0.0
    %1056 = vmatprep.subr.mxu0 0.0
    %1057 = vmatpush1.msra.mxu0 0.0
    %1058 = vmatprep.subr.mxu0 0.0
    %1059 = vmatpush1.msra.mxu0 0.0
    %1060 = vmatprep.subr.mxu0 0.0
    %1061 = vmatpush1.msra.mxu0 0.0
    %1062 = vmatprep.subr.mxu0 0.0
    %1063 = vmatpush1.msra.mxu0 0.0
    %1064 = vmatprep.subr.mxu0 0.0
    %1065 = vmatpush1.msra.mxu0 0.0
    %1066 = vmatprep.subr.mxu0 0.0
    %1067 = vmatpush1.msra.mxu0 0.0
    %1068 = vmatprep.subr.mxu0 0.0
    %1069 = vmatpush1.msra.mxu0 0.0
    %1070 = vmatprep.subr.mxu0 0.0
    %1071 = vmatpush1.msra.mxu0 0.0
    %1072 = vmatprep.subr.mxu0 0.0
    %1073 = vmatpush1.msra.mxu0 0.0
    %1074 = vmatprep.subr.mxu0 0.0
    %1075 = vmatpush1.msra.mxu0 0.0
    %1076 = vmatprep.subr.mxu0 0.0
    %1077 = vmatpush1.msra.mxu0 0.0
    %1078 = vmatprep.subr.mxu0 0.0
    %1079 = vmatpush1.msra.mxu0 0.0
    %1080 = vmatprep.subr.mxu0 0.0
    %1081 = vmatpush1.msra.mxu0 0.0
    %1082 = vmatprep.subr.mxu0 0.0
    %1083 = vmatpush1.msra.mxu0 0.0
    %1084 = vmatprep.subr.mxu0 0.0
    %1085 = vmatpush1.msra.mxu0 0.0
    %1086 = vmatprep.subr.mxu0 0.0
    %1087 = vmatpush1.msra.mxu0 0.0
    %1088 = vmatprep.subr.mxu0 0.0
    %1089 = vmatpush1.msra.mxu0 0.0
    %1090 = vmatprep.mubr.f32.mxu0 0.0
    %1091 = vmatmul.mubr.f32.gmra.mrb[0].mxu0 %v1024
    %v1092 = vpop.f32.mrb[0].mxu0
    %v1093 = vadd.f32 0.0, %v1092
    %v1094 = vpop.f32.mrb[0].mxu0
    %v1095 = vadd.f32 0.0, %v1094
    %1096 = vdwg.mxu0
    %v1098 = vrot.slane %v1093, 5
    %v1099 = vrot.slane %v1093, 6
    %v1102 = vadd.f32 %v179, %v1098
    %v1103 = vadd.f32 %v185, %v1099
    %v1105 = vrot.slane %v1095, 4
    %v1106 = vrot.slane %v1095, 5
    %v1109 = vadd.f32 %v181, %v1105
    %v1110 = vadd.f32 %v187, %v1106
    %v1111 = vxor.u32 %v1102, 2147483648
    %v1112 = vxor.u32 %v1103, 2147483648
    %v1113 = vmul.f32 %v1111, 1.442695
    %v1114 = vpow.pop %v1113
    %v1115 = vmul.f32 %v1112, 1.442695
    %v1116 = vpow.pop %v1115
    %v1117 = vadd.f32 %v1114, 1.0
    %v1118 = vadd.f32 %v1116, 1.0
    %v1119 = vrcp.pop %v1117
    %v1120 = vmul.f32 1.0, %v1119
    %v1121 = vrcp.pop %v1118
    %v1122 = vmul.f32 1.0, %v1121
    %v1123 = vtanh.pop %v1102
    %v1124 = vtanh.pop %v1103
    %v1127 = vrot.slane %v907, 7
    %v1128 = vrot.slane %v908, 7
    %v1131 = vmul.f32 %v1120, %v1127
    %v1132 = vmul.f32 %v1122, %v1128
    %1135 = vrot.lane.b32.xlu0 %v1123, 64
    %v1136 = vpop.permute.xlu0 %1135
    %1137 = vrot.lane.b32.xlu0 %v1124, 64
    %v1138 = vpop.permute.xlu0 %1137
    %v1141 = vmul.f32 %v1120, %v1136
    %v1142 = vmul.f32 %v1122, %v1138
    %1145 = vrot.lane.b32.xlu0 %v1141, 32
    %v1146 = vpop.permute.xlu0 %1145
    %1147 = vrot.lane.b32.xlu0 %v1142, 32
    %v1148 = vpop.permute.xlu0 %1147
    %v1151 = vadd.f32 %v1131, %v1146
    %v1152 = vadd.f32 %v1132, %v1148
    %v1153 = vtanh.pop %v1151
    %v1154 = vtanh.pop %v1152
    %1157 = vrot.lane.b32.xlu0 %v1153, 64
    %v1158 = vpop.permute.xlu0 %1157
    %1159 = vrot.lane.b32.xlu0 %v1154, 64
    %v1160 = vpop.permute.xlu0 %1159
    %v1163 = vmul.f32 %v1120, %v1158
    %v1164 = vmul.f32 %v1122, %v1160
    %v1165 = vmul.f32 %v328, %v1163
    %v1166 = vmul.f32 %v333, %v1164
    %v1167 = vrot.slane %v887, 7
    %1168 = vrot.lane.b32.xlu0 %v1167, 32
    %v1169 = vpop.permute.xlu0 %1168
    %1170 = vrot.lane.b32.xlu0 %v1007, 32
    %v1171 = vpop.permute.xlu0 %1170
    %v1174 = vmul.f32 %v342, %v1169
    %v1175 = vmul.f32 %v347, %v1171
    %1178 = vrot.lane.b32.xlu0 %v1174, 96
    %v1179 = vpop.permute.xlu0 %1178
    %1180 = vrot.lane.b32.xlu0 %v1175, 96
    %v1181 = vpop.permute.xlu0 %1180
    %v1184 = vadd.f32 %v1165, %v1179
    %v1185 = vadd.f32 %v1166, %v1181
    %v1186 = vmul.f32 %v328, %v1151
    %v1187 = vmul.f32 %v333, %v1152
    %1188 = vrot.lane.b32.xlu0 %v1127, 96
    %v1189 = vpop.permute.xlu0 %1188
    %1190 = vrot.lane.b32.xlu0 %v1128, 96
    %v1191 = vpop.permute.xlu0 %1190
    %v1194 = vmul.f32 %v342, %v1189
    %v1195 = vmul.f32 %v347, %v1191
    %1198 = vrot.lane.b32.xlu0 %v1194, 32
    %v1199 = vpop.permute.xlu0 %1198
    %1200 = vrot.lane.b32.xlu0 %v1195, 32
    %v1201 = vpop.permute.xlu0 %1200
    %v1204 = vadd.f32 %v1186, %v1199
    %v1205 = vadd.f32 %v1187, %v1201
    %v1206 = vxor.u32 %v1109, 2147483648
    %v1207 = vxor.u32 %v1110, 2147483648
    %v1208 = vmul.f32 %v1206, 1.442695
    %v1209 = vpow.pop %v1208
    %v1210 = vmul.f32 %v1207, 1.442695
    %v1211 = vpow.pop %v1210
    %v1212 = vadd.f32 %v1209, 1.0
    %v1213 = vadd.f32 %v1211, 1.0
    %v1214 = vrcp.pop %v1212
    %v1215 = vmul.f32 1.0, %v1214
    %v1216 = vrcp.pop %v1213
    %v1217 = vmul.f32 1.0, %v1216
    %v1218 = vtanh.pop %v1109
    %v1219 = vtanh.pop %v1110
    %v1222 = vrot.slane %v1003, 1
    %v1223 = vrot.slane %v1004, 1
    %v1226 = vmul.f32 %v1215, %v1222
    %v1227 = vmul.f32 %v1217, %v1223
    %1230 = vrot.lane.b32.xlu0 %v1218, 64
    %v1231 = vpop.permute.xlu0 %1230
    %1232 = vrot.lane.b32.xlu0 %v1219, 64
    %v1233 = vpop.permute.xlu0 %1232
    %v1236 = vmul.f32 %v1215, %v1231
    %v1237 = vmul.f32 %v1217, %v1233
    %1240 = vrot.lane.b32.xlu0 %v1236, 32
    %v1241 = vpop.permute.xlu0 %1240
    %1242 = vrot.lane.b32.xlu0 %v1237, 32
    %v1243 = vpop.permute.xlu0 %1242
    %v1246 = vadd.f32 %v1226, %v1241
    %v1247 = vadd.f32 %v1227, %v1243
    %v1248 = vtanh.pop %v1246
    %v1249 = vtanh.pop %v1247
    %1252 = vrot.lane.b32.xlu0 %v1248, 64
    %v1253 = vpop.permute.xlu0 %1252
    %1254 = vrot.lane.b32.xlu0 %v1249, 64
    %v1255 = vpop.permute.xlu0 %1254
    %v1258 = vmul.f32 %v1215, %v1253
    %v1259 = vmul.f32 %v1217, %v1255
    %v1260 = vmul.f32 %v328, %v1258
    %v1261 = vmul.f32 %v333, %v1259
    %v1262 = vrot.slane %v983, 1
    %v1263 = vrot.slane %v984, 1
    %1264 = vrot.lane.b32.xlu0 %v1262, 32
    %v1265 = vpop.permute.xlu0 %1264
    %1266 = vrot.lane.b32.xlu0 %v1263, 32
    %v1267 = vpop.permute.xlu0 %1266
    %v1270 = vmul.f32 %v342, %v1265
    %v1271 = vmul.f32 %v347, %v1267
    %1274 = vrot.lane.b32.xlu0 %v1270, 96
    %v1275 = vpop.permute.xlu0 %1274
    %1276 = vrot.lane.b32.xlu0 %v1271, 96
    %v1277 = vpop.permute.xlu0 %1276
    %v1280 = vadd.f32 %v1260, %v1275
    %v1281 = vadd.f32 %v1261, %v1277
    %v1282 = vmul.f32 %v328, %v1246
    %v1283 = vmul.f32 %v333, %v1247
    %1284 = vrot.lane.b32.xlu0 %v1222, 96
    %v1285 = vpop.permute.xlu0 %1284
    %1286 = vrot.lane.b32.xlu0 %v1223, 96
    %v1287 = vpop.permute.xlu0 %1286
    %v1290 = vmul.f32 %v342, %v1285
    %v1291 = vmul.f32 %v347, %v1287
    %1294 = vrot.lane.b32.xlu0 %v1290, 32
    %v1295 = vpop.permute.xlu0 %1294
    %1296 = vrot.lane.b32.xlu0 %v1291, 32
    %v1297 = vpop.permute.xlu0 %1296
    %v1300 = vadd.f32 %v1282, %v1295
    %v1301 = vadd.f32 %v1283, %v1297
    %v1304 = vrot.slane %v1185, 7
    %vm1305 = vcmask 1044484
    %v1306 = vsel %vm1305, %v1304, %v1184
    %1307 = vrot.lane.b32.xlu0 %v1306, 32
    %v1308 = vpop.permute.xlu0 %1307
    %v1312 = vrot.slane %v1280, 1
    %v1313 = vsel %vm1305, %v1281, %v1312
    %1314 = vrot.lane.b32.xlu0 %v1313, 64
    %v1315 = vpop.permute.xlu0 %1314
    %v1317 = vsel %vm105, %v1308, %v1315
    %v1319 = vrot.slane %v1317, 3
    %v1320 = vsel %vm189, %v1319, 0
    %1322 = vmatprep.subr.mxu0 %v78
    %1323 = vmatpush1.msra.mxu0 %v77
    %1324 = vmatprep.subr.mxu0 %v80
    %1325 = vmatpush1.msra.mxu0 %v79
    %1326 = vmatprep.subr.mxu0 %v82
    %1327 = vmatpush1.msra.mxu0 %v81
    %1328 = vmatprep.subr.mxu0 %v84
    %1329 = vmatpush1.msra.mxu0 %v83
    %1330 = vmatprep.subr.mxu0 %v86
    %1331 = vmatpush1.msra.mxu0 %v85
    %1332 = vmatprep.subr.mxu0 %v88
    %1333 = vmatpush1.msra.mxu0 %v87
    %1334 = vmatprep.subr.mxu0 %v90
    %1335 = vmatpush1.msra.mxu0 %v89
    %1336 = vmatprep.subr.mxu0 %v92
    %1337 = vmatpush1.msra.mxu0 %v91
    %1338 = vmatprep.subr.mxu0 0.0
    %1339 = vmatpush1.msra.mxu0 0.0
    %1340 = vmatprep.subr.mxu0 0.0
    %1341 = vmatpush1.msra.mxu0 0.0
    %1342 = vmatprep.subr.mxu0 0.0
    %1343 = vmatpush1.msra.mxu0 0.0
    %1344 = vmatprep.subr.mxu0 0.0
    %1345 = vmatpush1.msra.mxu0 0.0
    %1346 = vmatprep.subr.mxu0 0.0
    %1347 = vmatpush1.msra.mxu0 0.0
    %1348 = vmatprep.subr.mxu0 0.0
    %1349 = vmatpush1.msra.mxu0 0.0
    %1350 = vmatprep.subr.mxu0 0.0
    %1351 = vmatpush1.msra.mxu0 0.0
    %1352 = vmatprep.subr.mxu0 0.0
    %1353 = vmatpush1.msra.mxu0 0.0
    %1354 = vmatprep.subr.mxu0 0.0
    %1355 = vmatpush1.msra.mxu0 0.0
    %1356 = vmatprep.subr.mxu0 0.0
    %1357 = vmatpush1.msra.mxu0 0.0
    %1358 = vmatprep.subr.mxu0 0.0
    %1359 = vmatpush1.msra.mxu0 0.0
    %1360 = vmatprep.subr.mxu0 0.0
    %1361 = vmatpush1.msra.mxu0 0.0
    %1362 = vmatprep.subr.mxu0 0.0
    %1363 = vmatpush1.msra.mxu0 0.0
    %1364 = vmatprep.subr.mxu0 0.0
    %1365 = vmatpush1.msra.mxu0 0.0
    %1366 = vmatprep.subr.mxu0 0.0
    %1367 = vmatpush1.msra.mxu0 0.0
    %1368 = vmatprep.subr.mxu0 0.0
    %1369 = vmatpush1.msra.mxu0 0.0
    %1370 = vmatprep.subr.mxu0 0.0
    %1371 = vmatpush1.msra.mxu0 0.0
    %1372 = vmatprep.subr.mxu0 0.0
    %1373 = vmatpush1.msra.mxu0 0.0
    %1374 = vmatprep.subr.mxu0 0.0
    %1375 = vmatpush1.msra.mxu0 0.0
    %1376 = vmatprep.subr.mxu0 0.0
    %1377 = vmatpush1.msra.mxu0 0.0
    %1378 = vmatprep.subr.mxu0 0.0
    %1379 = vmatpush1.msra.mxu0 0.0
    %1380 = vmatprep.subr.mxu0 0.0
    %1381 = vmatpush1.msra.mxu0 0.0
    %1382 = vmatprep.subr.mxu0 0.0
    %1383 = vmatpush1.msra.mxu0 0.0
    %1384 = vmatprep.subr.mxu0 0.0
    %1385 = vmatpush1.msra.mxu0 0.0
    %1386 = vmatprep.mubr.f32.mxu0 0.0
    %1387 = vmatmul.mubr.f32.gmra.mrb[0].mxu0 %v1320
    %v1388 = vpop.f32.mrb[0].mxu0
    %v1389 = vadd.f32 0.0, %v1388
    %v1390 = vpop.f32.mrb[0].mxu0
    %v1391 = vadd.f32 0.0, %v1390
    %1392 = vdwg.mxu0
    %v1394 = vrot.slane %v1389, 4
    %v1395 = vrot.slane %v1389, 5
    %v1398 = vadd.f32 %v179, %v1394
    %v1399 = vadd.f32 %v185, %v1395
    %v1401 = vrot.slane %v1391, 5
    %v1402 = vrot.slane %v1391, 6
    %v1405 = vadd.f32 %v181, %v1401
    %v1406 = vadd.f32 %v187, %v1402
    %v1407 = vxor.u32 %v1398, 2147483648
    %v1408 = vxor.u32 %v1399, 2147483648
    %v1409 = vmul.f32 %v1407, 1.442695
    %v1410 = vpow.pop %v1409
    %v1411 = vmul.f32 %v1408, 1.442695
    %v1412 = vpow.pop %v1411
    %v1413 = vadd.f32 %v1410, 1.0
    %v1414 = vadd.f32 %v1412, 1.0
    %v1415 = vrcp.pop %v1413
    %v1416 = vmul.f32 1.0, %v1415
    %v1417 = vrcp.pop %v1414
    %v1418 = vmul.f32 1.0, %v1417
    %v1419 = vtanh.pop %v1398
    %v1420 = vtanh.pop %v1399
    %v1423 = vrot.slane %v1204, 7
    %v1424 = vrot.slane %v1205, 7
    %v1427 = vmul.f32 %v1416, %v1423
    %v1428 = vmul.f32 %v1418, %v1424
    %1431 = vrot.lane.b32.xlu0 %v1419, 64
    %v1432 = vpop.permute.xlu0 %1431
    %1433 = vrot.lane.b32.xlu0 %v1420, 64
    %v1434 = vpop.permute.xlu0 %1433
    %v1437 = vmul.f32 %v1416, %v1432
    %v1438 = vmul.f32 %v1418, %v1434
    %1441 = vrot.lane.b32.xlu0 %v1437, 32
    %v1442 = vpop.permute.xlu0 %1441
    %1443 = vrot.lane.b32.xlu0 %v1438, 32
    %v1444 = vpop.permute.xlu0 %1443
    %v1447 = vadd.f32 %v1427, %v1442
    %v1448 = vadd.f32 %v1428, %v1444
    %v1449 = vtanh.pop %v1447
    %v1450 = vtanh.pop %v1448
    %1453 = vrot.lane.b32.xlu0 %v1449, 64
    %v1454 = vpop.permute.xlu0 %1453
    %1455 = vrot.lane.b32.xlu0 %v1450, 64
    %v1456 = vpop.permute.xlu0 %1455
    %v1459 = vmul.f32 %v1416, %v1454
    %v1460 = vmul.f32 %v1418, %v1456
    %v1461 = vmul.f32 %v328, %v1459
    %v1462 = vmul.f32 %v333, %v1460
    %v1463 = vrot.slane %v1184, 7
    %1464 = vrot.lane.b32.xlu0 %v1463, 32
    %v1465 = vpop.permute.xlu0 %1464
    %1466 = vrot.lane.b32.xlu0 %v1304, 32
    %v1467 = vpop.permute.xlu0 %1466
    %v1470 = vmul.f32 %v342, %v1465
    %v1471 = vmul.f32 %v347, %v1467
    %1474 = vrot.lane.b32.xlu0 %v1470, 96
    %v1475 = vpop.permute.xlu0 %1474
    %1476 = vrot.lane.b32.xlu0 %v1471, 96
    %v1477 = vpop.permute.xlu0 %1476
    %v1480 = vadd.f32 %v1461, %v1475
    %v1481 = vadd.f32 %v1462, %v1477
    %v1482 = vmul.f32 %v328, %v1447
    %v1483 = vmul.f32 %v333, %v1448
    %1484 = vrot.lane.b32.xlu0 %v1423, 96
    %v1485 = vpop.permute.xlu0 %1484
    %1486 = vrot.lane.b32.xlu0 %v1424, 96
    %v1487 = vpop.permute.xlu0 %1486
    %v1490 = vmul.f32 %v342, %v1485
    %v1491 = vmul.f32 %v347, %v1487
    %1494 = vrot.lane.b32.xlu0 %v1490, 32
    %v1495 = vpop.permute.xlu0 %1494
    %1496 = vrot.lane.b32.xlu0 %v1491, 32
    %v1497 = vpop.permute.xlu0 %1496
    %v1500 = vadd.f32 %v1482, %v1495
    %v1501 = vadd.f32 %v1483, %v1497
    %v1502 = vxor.u32 %v1405, 2147483648
    %v1503 = vxor.u32 %v1406, 2147483648
    %v1504 = vmul.f32 %v1502, 1.442695
    %v1505 = vpow.pop %v1504
    %v1506 = vmul.f32 %v1503, 1.442695
    %v1507 = vpow.pop %v1506
    %v1508 = vadd.f32 %v1505, 1.0
    %v1509 = vadd.f32 %v1507, 1.0
    %v1510 = vrcp.pop %v1508
    %v1511 = vmul.f32 1.0, %v1510
    %v1512 = vrcp.pop %v1509
    %v1513 = vmul.f32 1.0, %v1512
    %v1514 = vtanh.pop %v1405
    %v1515 = vtanh.pop %v1406
    %v1518 = vrot.slane %v1300, 1
    %v1519 = vrot.slane %v1301, 1
    %v1522 = vmul.f32 %v1511, %v1518
    %v1523 = vmul.f32 %v1513, %v1519
    %1526 = vrot.lane.b32.xlu0 %v1514, 64
    %v1527 = vpop.permute.xlu0 %1526
    %1528 = vrot.lane.b32.xlu0 %v1515, 64
    %v1529 = vpop.permute.xlu0 %1528
    %v1532 = vmul.f32 %v1511, %v1527
    %v1533 = vmul.f32 %v1513, %v1529
    %1536 = vrot.lane.b32.xlu0 %v1532, 32
    %v1537 = vpop.permute.xlu0 %1536
    %1538 = vrot.lane.b32.xlu0 %v1533, 32
    %v1539 = vpop.permute.xlu0 %1538
    %v1542 = vadd.f32 %v1522, %v1537
    %v1543 = vadd.f32 %v1523, %v1539
    %v1544 = vtanh.pop %v1542
    %v1545 = vtanh.pop %v1543
    %1548 = vrot.lane.b32.xlu0 %v1544, 64
    %v1549 = vpop.permute.xlu0 %1548
    %1550 = vrot.lane.b32.xlu0 %v1545, 64
    %v1551 = vpop.permute.xlu0 %1550
    %v1554 = vmul.f32 %v1511, %v1549
    %v1555 = vmul.f32 %v1513, %v1551
    %v1556 = vmul.f32 %v328, %v1554
    %v1557 = vmul.f32 %v333, %v1555
    %v1558 = vrot.slane %v1281, 1
    %1559 = vrot.lane.b32.xlu0 %v1312, 32
    %v1560 = vpop.permute.xlu0 %1559
    %1561 = vrot.lane.b32.xlu0 %v1558, 32
    %v1562 = vpop.permute.xlu0 %1561
    %v1565 = vmul.f32 %v342, %v1560
    %v1566 = vmul.f32 %v347, %v1562
    %1569 = vrot.lane.b32.xlu0 %v1565, 96
    %v1570 = vpop.permute.xlu0 %1569
    %1571 = vrot.lane.b32.xlu0 %v1566, 96
    %v1572 = vpop.permute.xlu0 %1571
    %v1575 = vadd.f32 %v1556, %v1570
    %v1576 = vadd.f32 %v1557, %v1572
    %v1577 = vmul.f32 %v328, %v1542
    %v1578 = vmul.f32 %v333, %v1543
    %1579 = vrot.lane.b32.xlu0 %v1518, 96
    %v1580 = vpop.permute.xlu0 %1579
    %1581 = vrot.lane.b32.xlu0 %v1519, 96
    %v1582 = vpop.permute.xlu0 %1581
    %v1585 = vmul.f32 %v342, %v1580
    %v1586 = vmul.f32 %v347, %v1582
    %1589 = vrot.lane.b32.xlu0 %v1585, 32
    %v1590 = vpop.permute.xlu0 %1589
    %1591 = vrot.lane.b32.xlu0 %v1586, 32
    %v1592 = vpop.permute.xlu0 %1591
    %v1595 = vadd.f32 %v1577, %v1590
    %v1596 = vadd.f32 %v1578, %v1592
    %v1599 = vrot.slane %v1481, 7
    %vm1600 = vcmask 1045509
    %v1601 = vsel %vm1600, %v1599, %v1480
    %1602 = vrot.lane.b32.xlu0 %v1601, 32
    %v1603 = vpop.permute.xlu0 %1602
    %v1607 = vrot.slane %v1575, 7
    %v1608 = vrot.slane %v1576, 6
    %v1609 = vsel %vm1600, %v1608, %v1607
    %1610 = vrot.lane.b32.xlu0 %v1609, 64
    %v1611 = vpop.permute.xlu0 %1610
    %v1613 = vsel %vm105, %v1603, %v1611
    %v1615 = vrot.slane %v1613, 4
    %v1616 = vsel %vm189, %v1615, 0
    %1618 = vmatprep.subr.mxu0 %v78
    %1619 = vmatpush1.msra.mxu0 %v77
    %1620 = vmatprep.subr.mxu0 %v80
    %1621 = vmatpush1.msra.mxu0 %v79
    %1622 = vmatprep.subr.mxu0 %v82
    %1623 = vmatpush1.msra.mxu0 %v81
    %1624 = vmatprep.subr.mxu0 %v84
    %1625 = vmatpush1.msra.mxu0 %v83
    %1626 = vmatprep.subr.mxu0 %v86
    %1627 = vmatpush1.msra.mxu0 %v85
    %1628 = vmatprep.subr.mxu0 %v88
    %1629 = vmatpush1.msra.mxu0 %v87
    %1630 = vmatprep.subr.mxu0 %v90
    %1631 = vmatpush1.msra.mxu0 %v89
    %1632 = vmatprep.subr.mxu0 %v92
    %1633 = vmatpush1.msra.mxu0 %v91
    %1634 = vmatprep.subr.mxu0 0.0
    %1635 = vmatpush1.msra.mxu0 0.0
    %1636 = vmatprep.subr.mxu0 0.0
    %1637 = vmatpush1.msra.mxu0 0.0
    %1638 = vmatprep.subr.mxu0 0.0
    %1639 = vmatpush1.msra.mxu0 0.0
    %1640 = vmatprep.subr.mxu0 0.0
    %1641 = vmatpush1.msra.mxu0 0.0
    %1642 = vmatprep.subr.mxu0 0.0
    %1643 = vmatpush1.msra.mxu0 0.0
    %1644 = vmatprep.subr.mxu0 0.0
    %1645 = vmatpush1.msra.mxu0 0.0
    %1646 = vmatprep.subr.mxu0 0.0
    %1647 = vmatpush1.msra.mxu0 0.0
    %1648 = vmatprep.subr.mxu0 0.0
    %1649 = vmatpush1.msra.mxu0 0.0
    %1650 = vmatprep.subr.mxu0 0.0
    %1651 = vmatpush1.msra.mxu0 0.0
    %1652 = vmatprep.subr.mxu0 0.0
    %1653 = vmatpush1.msra.mxu0 0.0
    %1654 = vmatprep.subr.mxu0 0.0
    %1655 = vmatpush1.msra.mxu0 0.0
    %1656 = vmatprep.subr.mxu0 0.0
    %1657 = vmatpush1.msra.mxu0 0.0
    %1658 = vmatprep.subr.mxu0 0.0
    %1659 = vmatpush1.msra.mxu0 0.0
    %1660 = vmatprep.subr.mxu0 0.0
    %1661 = vmatpush1.msra.mxu0 0.0
    %1662 = vmatprep.subr.mxu0 0.0
    %1663 = vmatpush1.msra.mxu0 0.0
    %1664 = vmatprep.subr.mxu0 0.0
    %1665 = vmatpush1.msra.mxu0 0.0
    %1666 = vmatprep.subr.mxu0 0.0
    %1667 = vmatpush1.msra.mxu0 0.0
    %1668 = vmatprep.subr.mxu0 0.0
    %1669 = vmatpush1.msra.mxu0 0.0
    %1670 = vmatprep.subr.mxu0 0.0
    %1671 = vmatpush1.msra.mxu0 0.0
    %1672 = vmatprep.subr.mxu0 0.0
    %1673 = vmatpush1.msra.mxu0 0.0
    %1674 = vmatprep.subr.mxu0 0.0
    %1675 = vmatpush1.msra.mxu0 0.0
    %1676 = vmatprep.subr.mxu0 0.0
    %1677 = vmatpush1.msra.mxu0 0.0
    %1678 = vmatprep.subr.mxu0 0.0
    %1679 = vmatpush1.msra.mxu0 0.0
    %1680 = vmatprep.subr.mxu0 0.0
    %1681 = vmatpush1.msra.mxu0 0.0
    %1682 = vmatprep.mubr.f32.mxu0 0.0
    %1683 = vmatmul.mubr.f32.gmra.mrb[0].mxu0 %v1616
    %v1684 = vpop.f32.mrb[0].mxu0
    %v1685 = vadd.f32 0.0, %v1684
    %v1686 = vpop.f32.mrb[0].mxu0
    %v1687 = vadd.f32 0.0, %v1686
    %1688 = vdwg.mxu0
    %v1690 = vrot.slane %v1685, 3
    %v1691 = vrot.slane %v1685, 4
    %v1694 = vadd.f32 %v179, %v1690
    %v1695 = vadd.f32 %v185, %v1691
    %v1697 = vrot.slane %v1687, 6
    %v1698 = vrot.slane %v1687, 7
    %v1701 = vadd.f32 %v181, %v1697
    %v1702 = vadd.f32 %v187, %v1698
    %v1703 = vxor.u32 %v1694, 2147483648
    %v1704 = vxor.u32 %v1695, 2147483648
    %v1705 = vmul.f32 %v1703, 1.442695
    %v1706 = vpow.pop %v1705
    %v1707 = vmul.f32 %v1704, 1.442695
    %v1708 = vpow.pop %v1707
    %v1709 = vadd.f32 %v1706, 1.0
    %v1710 = vadd.f32 %v1708, 1.0
    %v1711 = vrcp.pop %v1709
    %v1712 = vmul.f32 1.0, %v1711
    %v1713 = vrcp.pop %v1710
    %v1714 = vmul.f32 1.0, %v1713
    %v1715 = vtanh.pop %v1694
    %v1716 = vtanh.pop %v1695
    %v1719 = vrot.slane %v1500, 7
    %v1720 = vrot.slane %v1501, 7
    %v1723 = vmul.f32 %v1712, %v1719
    %v1724 = vmul.f32 %v1714, %v1720
    %1727 = vrot.lane.b32.xlu0 %v1715, 64
    %v1728 = vpop.permute.xlu0 %1727
    %1729 = vrot.lane.b32.xlu0 %v1716, 64
    %v1730 = vpop.permute.xlu0 %1729
    %v1733 = vmul.f32 %v1712, %v1728
    %v1734 = vmul.f32 %v1714, %v1730
    %1737 = vrot.lane.b32.xlu0 %v1733, 32
    %v1738 = vpop.permute.xlu0 %1737
    %1739 = vrot.lane.b32.xlu0 %v1734, 32
    %v1740 = vpop.permute.xlu0 %1739
    %v1743 = vadd.f32 %v1723, %v1738
    %v1744 = vadd.f32 %v1724, %v1740
    %v1745 = vtanh.pop %v1743
    %v1746 = vtanh.pop %v1744
    %1749 = vrot.lane.b32.xlu0 %v1745, 64
    %v1750 = vpop.permute.xlu0 %1749
    %1751 = vrot.lane.b32.xlu0 %v1746, 64
    %v1752 = vpop.permute.xlu0 %1751
    %v1755 = vmul.f32 %v1712, %v1750
    %v1756 = vmul.f32 %v1714, %v1752
    %v1757 = vmul.f32 %v328, %v1755
    %v1758 = vmul.f32 %v333, %v1756
    %v1759 = vrot.slane %v1480, 7
    %1760 = vrot.lane.b32.xlu0 %v1759, 32
    %v1761 = vpop.permute.xlu0 %1760
    %1762 = vrot.lane.b32.xlu0 %v1599, 32
    %v1763 = vpop.permute.xlu0 %1762
    %v1766 = vmul.f32 %v342, %v1761
    %v1767 = vmul.f32 %v347, %v1763
    %1770 = vrot.lane.b32.xlu0 %v1766, 96
    %v1771 = vpop.permute.xlu0 %1770
    %1772 = vrot.lane.b32.xlu0 %v1767, 96
    %v1773 = vpop.permute.xlu0 %1772
    %v1776 = vadd.f32 %v1757, %v1771
    %v1777 = vadd.f32 %v1758, %v1773
    %v1778 = vmul.f32 %v328, %v1743
    %v1779 = vmul.f32 %v333, %v1744
    %1780 = vrot.lane.b32.xlu0 %v1719, 96
    %v1781 = vpop.permute.xlu0 %1780
    %1782 = vrot.lane.b32.xlu0 %v1720, 96
    %v1783 = vpop.permute.xlu0 %1782
    %v1786 = vmul.f32 %v342, %v1781
    %v1787 = vmul.f32 %v347, %v1783
    %1790 = vrot.lane.b32.xlu0 %v1786, 32
    %v1791 = vpop.permute.xlu0 %1790
    %1792 = vrot.lane.b32.xlu0 %v1787, 32
    %v1793 = vpop.permute.xlu0 %1792
    %v1796 = vadd.f32 %v1778, %v1791
    %v1797 = vadd.f32 %v1779, %v1793
    %v1798 = vxor.u32 %v1701, 2147483648
    %v1799 = vxor.u32 %v1702, 2147483648
    %v1800 = vmul.f32 %v1798, 1.442695
    %v1801 = vpow.pop %v1800
    %v1802 = vmul.f32 %v1799, 1.442695
    %v1803 = vpow.pop %v1802
    %v1804 = vadd.f32 %v1801, 1.0
    %v1805 = vadd.f32 %v1803, 1.0
    %v1806 = vrcp.pop %v1804
    %v1807 = vmul.f32 1.0, %v1806
    %v1808 = vrcp.pop %v1805
    %v1809 = vmul.f32 1.0, %v1808
    %v1810 = vtanh.pop %v1701
    %v1811 = vtanh.pop %v1702
    %v1814 = vrot.slane %v1595, 1
    %v1815 = vrot.slane %v1596, 1
    %v1818 = vmul.f32 %v1807, %v1814
    %v1819 = vmul.f32 %v1809, %v1815
    %1822 = vrot.lane.b32.xlu0 %v1810, 64
    %v1823 = vpop.permute.xlu0 %1822
    %1824 = vrot.lane.b32.xlu0 %v1811, 64
    %v1825 = vpop.permute.xlu0 %1824
    %v1828 = vmul.f32 %v1807, %v1823
    %v1829 = vmul.f32 %v1809, %v1825
    %1832 = vrot.lane.b32.xlu0 %v1828, 32
    %v1833 = vpop.permute.xlu0 %1832
    %1834 = vrot.lane.b32.xlu0 %v1829, 32
    %v1835 = vpop.permute.xlu0 %1834
    %v1838 = vadd.f32 %v1818, %v1833
    %v1839 = vadd.f32 %v1819, %v1835
    %v1840 = vtanh.pop %v1838
    %v1841 = vtanh.pop %v1839
    %1844 = vrot.lane.b32.xlu0 %v1840, 64
    %v1845 = vpop.permute.xlu0 %1844
    %1846 = vrot.lane.b32.xlu0 %v1841, 64
    %v1847 = vpop.permute.xlu0 %1846
    %v1850 = vmul.f32 %v1807, %v1845
    %v1851 = vmul.f32 %v1809, %v1847
    %v1852 = vmul.f32 %v328, %v1850
    %v1853 = vmul.f32 %v333, %v1851
    %v1854 = vrot.slane %v1575, 1
    %v1855 = vrot.slane %v1576, 1
    %1856 = vrot.lane.b32.xlu0 %v1854, 32
    %v1857 = vpop.permute.xlu0 %1856
    %1858 = vrot.lane.b32.xlu0 %v1855, 32
    %v1859 = vpop.permute.xlu0 %1858
    %v1862 = vmul.f32 %v342, %v1857
    %v1863 = vmul.f32 %v347, %v1859
    %1866 = vrot.lane.b32.xlu0 %v1862, 96
    %v1867 = vpop.permute.xlu0 %1866
    %1868 = vrot.lane.b32.xlu0 %v1863, 96
    %v1869 = vpop.permute.xlu0 %1868
    %v1872 = vadd.f32 %v1852, %v1867
    %v1873 = vadd.f32 %v1853, %v1869
    %v1874 = vmul.f32 %v328, %v1838
    %v1875 = vmul.f32 %v333, %v1839
    %1876 = vrot.lane.b32.xlu0 %v1814, 96
    %v1877 = vpop.permute.xlu0 %1876
    %1878 = vrot.lane.b32.xlu0 %v1815, 96
    %v1879 = vpop.permute.xlu0 %1878
    %v1882 = vmul.f32 %v342, %v1877
    %v1883 = vmul.f32 %v347, %v1879
    %1886 = vrot.lane.b32.xlu0 %v1882, 32
    %v1887 = vpop.permute.xlu0 %1886
    %1888 = vrot.lane.b32.xlu0 %v1883, 32
    %v1889 = vpop.permute.xlu0 %1888
    %v1892 = vadd.f32 %v1874, %v1887
    %v1893 = vadd.f32 %v1875, %v1889
    %v1896 = vrot.slane %v1777, 7
    %vm1897 = vcmask 1046534
    %v1898 = vsel %vm1897, %v1896, %v1776
    %1899 = vrot.lane.b32.xlu0 %v1898, 32
    %v1900 = vpop.permute.xlu0 %1899
    %v1904 = vrot.slane %v1872, 5
    %v1905 = vrot.slane %v1873, 4
    %v1906 = vsel %vm1897, %v1905, %v1904
    %1907 = vrot.lane.b32.xlu0 %v1906, 64
    %v1908 = vpop.permute.xlu0 %1907
    %v1910 = vsel %vm105, %v1900, %v1908
    %v1912 = vrot.slane %v1910, 5
    %v1913 = vsel %vm189, %v1912, 0
    %1915 = vmatprep.subr.mxu0 %v78
    %1916 = vmatpush1.msra.mxu0 %v77
    %1917 = vmatprep.subr.mxu0 %v80
    %1918 = vmatpush1.msra.mxu0 %v79
    %1919 = vmatprep.subr.mxu0 %v82
    %1920 = vmatpush1.msra.mxu0 %v81
    %1921 = vmatprep.subr.mxu0 %v84
    %1922 = vmatpush1.msra.mxu0 %v83
    %1923 = vmatprep.subr.mxu0 %v86
    %1924 = vmatpush1.msra.mxu0 %v85
    %1925 = vmatprep.subr.mxu0 %v88
    %1926 = vmatpush1.msra.mxu0 %v87
    %1927 = vmatprep.subr.mxu0 %v90
    %1928 = vmatpush1.msra.mxu0 %v89
    %1929 = vmatprep.subr.mxu0 %v92
    %1930 = vmatpush1.msra.mxu0 %v91
    %1931 = vmatprep.subr.mxu0 0.0
    %1932 = vmatpush1.msra.mxu0 0.0
    %1933 = vmatprep.subr.mxu0 0.0
    %1934 = vmatpush1.msra.mxu0 0.0
    %1935 = vmatprep.subr.mxu0 0.0
    %1936 = vmatpush1.msra.mxu0 0.0
    %1937 = vmatprep.subr.mxu0 0.0
    %1938 = vmatpush1.msra.mxu0 0.0
    %1939 = vmatprep.subr.mxu0 0.0
    %1940 = vmatpush1.msra.mxu0 0.0
    %1941 = vmatprep.subr.mxu0 0.0
    %1942 = vmatpush1.msra.mxu0 0.0
    %1943 = vmatprep.subr.mxu0 0.0
    %1944 = vmatpush1.msra.mxu0 0.0
    %1945 = vmatprep.subr.mxu0 0.0
    %1946 = vmatpush1.msra.mxu0 0.0
    %1947 = vmatprep.subr.mxu0 0.0
    %1948 = vmatpush1.msra.mxu0 0.0
    %1949 = vmatprep.subr.mxu0 0.0
    %1950 = vmatpush1.msra.mxu0 0.0
    %1951 = vmatprep.subr.mxu0 0.0
    %1952 = vmatpush1.msra.mxu0 0.0
    %1953 = vmatprep.subr.mxu0 0.0
    %1954 = vmatpush1.msra.mxu0 0.0
    %1955 = vmatprep.subr.mxu0 0.0
    %1956 = vmatpush1.msra.mxu0 0.0
    %1957 = vmatprep.subr.mxu0 0.0
    %1958 = vmatpush1.msra.mxu0 0.0
    %1959 = vmatprep.subr.mxu0 0.0
    %1960 = vmatpush1.msra.mxu0 0.0
    %1961 = vmatprep.subr.mxu0 0.0
    %1962 = vmatpush1.msra.mxu0 0.0
    %1963 = vmatprep.subr.mxu0 0.0
    %1964 = vmatpush1.msra.mxu0 0.0
    %1965 = vmatprep.subr.mxu0 0.0
    %1966 = vmatpush1.msra.mxu0 0.0
    %1967 = vmatprep.subr.mxu0 0.0
    %1968 = vmatpush1.msra.mxu0 0.0
    %1969 = vmatprep.subr.mxu0 0.0
    %1970 = vmatpush1.msra.mxu0 0.0
    %1971 = vmatprep.subr.mxu0 0.0
    %1972 = vmatpush1.msra.mxu0 0.0
    %1973 = vmatprep.subr.mxu0 0.0
    %1974 = vmatpush1.msra.mxu0 0.0
    %1975 = vmatprep.subr.mxu0 0.0
    %1976 = vmatpush1.msra.mxu0 0.0
    %1977 = vmatprep.subr.mxu0 0.0
    %1978 = vmatpush1.msra.mxu0 0.0
    %1979 = vmatprep.mubr.f32.mxu0 0.0
    %1980 = vmatmul.mubr.f32.gmra.mrb[0].mxu0 %v1913
    %v1981 = vpop.f32.mrb[0].mxu0
    %v1982 = vadd.f32 0.0, %v1981
    %v1983 = vpop.f32.mrb[0].mxu0
    %v1984 = vadd.f32 0.0, %v1983
    %1985 = vdwg.mxu0
    %v1987 = vrot.slane %v1982, 2
    %v1988 = vrot.slane %v1982, 3
    %v1991 = vadd.f32 %v179, %v1987
    %v1992 = vadd.f32 %v185, %v1988
    %v1994 = vrot.slane %v1984, 7
    %v1997 = vadd.f32 %v181, %v1994
    %v1998 = vadd.f32 %v187, %v1984
    %v1999 = vxor.u32 %v1991, 2147483648
    %v2000 = vxor.u32 %v1992, 2147483648
    %v2001 = vmul.f32 %v1999, 1.442695
    %v2002 = vpow.pop %v2001
    %v2003 = vmul.f32 %v2000, 1.442695
    %v2004 = vpow.pop %v2003
    %v2005 = vadd.f32 %v2002, 1.0
    %v2006 = vadd.f32 %v2004, 1.0
    %v2007 = vrcp.pop %v2005
    %v2008 = vmul.f32 1.0, %v2007
    %v2009 = vrcp.pop %v2006
    %v2010 = vmul.f32 1.0, %v2009
    %v2011 = vtanh.pop %v1991
    %v2012 = vtanh.pop %v1992
    %v2015 = vrot.slane %v1796, 7
    %v2016 = vrot.slane %v1797, 7
    %v2019 = vmul.f32 %v2008, %v2015
    %v2020 = vmul.f32 %v2010, %v2016
    %2023 = vrot.lane.b32.xlu0 %v2011, 64
    %v2024 = vpop.permute.xlu0 %2023
    %2025 = vrot.lane.b32.xlu0 %v2012, 64
    %v2026 = vpop.permute.xlu0 %2025
    %v2029 = vmul.f32 %v2008, %v2024
    %v2030 = vmul.f32 %v2010, %v2026
    %2033 = vrot.lane.b32.xlu0 %v2029, 32
    %v2034 = vpop.permute.xlu0 %2033
    %2035 = vrot.lane.b32.xlu0 %v2030, 32
    %v2036 = vpop.permute.xlu0 %2035
    %v2039 = vadd.f32 %v2019, %v2034
    %v2040 = vadd.f32 %v2020, %v2036
    %v2041 = vtanh.pop %v2039
    %v2042 = vtanh.pop %v2040
    %2045 = vrot.lane.b32.xlu0 %v2041, 64
    %v2046 = vpop.permute.xlu0 %2045
    %2047 = vrot.lane.b32.xlu0 %v2042, 64
    %v2048 = vpop.permute.xlu0 %2047
    %v2051 = vmul.f32 %v2008, %v2046
    %v2052 = vmul.f32 %v2010, %v2048
    %v2053 = vmul.f32 %v328, %v2051
    %v2054 = vmul.f32 %v333, %v2052
    %v2055 = vrot.slane %v1776, 7
    %2056 = vrot.lane.b32.xlu0 %v2055, 32
    %v2057 = vpop.permute.xlu0 %2056
    %2058 = vrot.lane.b32.xlu0 %v1896, 32
    %v2059 = vpop.permute.xlu0 %2058
    %v2062 = vmul.f32 %v342, %v2057
    %v2063 = vmul.f32 %v347, %v2059
    %2066 = vrot.lane.b32.xlu0 %v2062, 96
    %v2067 = vpop.permute.xlu0 %2066
    %2068 = vrot.lane.b32.xlu0 %v2063, 96
    %v2069 = vpop.permute.xlu0 %2068
    %v2072 = vadd.f32 %v2053, %v2067
    %v2073 = vadd.f32 %v2054, %v2069
    %v2074 = vmul.f32 %v328, %v2039
    %v2075 = vmul.f32 %v333, %v2040
    %2076 = vrot.lane.b32.xlu0 %v2015, 96
    %v2077 = vpop.permute.xlu0 %2076
    %2078 = vrot.lane.b32.xlu0 %v2016, 96
    %v2079 = vpop.permute.xlu0 %2078
    %v2082 = vmul.f32 %v342, %v2077
    %v2083 = vmul.f32 %v347, %v2079
    %2086 = vrot.lane.b32.xlu0 %v2082, 32
    %v2087 = vpop.permute.xlu0 %2086
    %2088 = vrot.lane.b32.xlu0 %v2083, 32
    %v2089 = vpop.permute.xlu0 %2088
    %v2092 = vadd.f32 %v2074, %v2087
    %v2093 = vadd.f32 %v2075, %v2089
    %v2094 = vxor.u32 %v1997, 2147483648
    %v2095 = vxor.u32 %v1998, 2147483648
    %v2096 = vmul.f32 %v2094, 1.442695
    %v2097 = vpow.pop %v2096
    %v2098 = vmul.f32 %v2095, 1.442695
    %v2099 = vpow.pop %v2098
    %v2100 = vadd.f32 %v2097, 1.0
    %v2101 = vadd.f32 %v2099, 1.0
    %v2102 = vrcp.pop %v2100
    %v2103 = vmul.f32 1.0, %v2102
    %v2104 = vrcp.pop %v2101
    %v2105 = vmul.f32 1.0, %v2104
    %v2106 = vtanh.pop %v1997
    %v2107 = vtanh.pop %v1998
    %v2110 = vrot.slane %v1892, 1
    %v2111 = vrot.slane %v1893, 1
    %v2114 = vmul.f32 %v2103, %v2110
    %v2115 = vmul.f32 %v2105, %v2111
    %2118 = vrot.lane.b32.xlu0 %v2106, 64
    %v2119 = vpop.permute.xlu0 %2118
    %2120 = vrot.lane.b32.xlu0 %v2107, 64
    %v2121 = vpop.permute.xlu0 %2120
    %v2124 = vmul.f32 %v2103, %v2119
    %v2125 = vmul.f32 %v2105, %v2121
    %2128 = vrot.lane.b32.xlu0 %v2124, 32
    %v2129 = vpop.permute.xlu0 %2128
    %2130 = vrot.lane.b32.xlu0 %v2125, 32
    %v2131 = vpop.permute.xlu0 %2130
    %v2134 = vadd.f32 %v2114, %v2129
    %v2135 = vadd.f32 %v2115, %v2131
    %v2136 = vtanh.pop %v2134
    %v2137 = vtanh.pop %v2135
    %2140 = vrot.lane.b32.xlu0 %v2136, 64
    %v2141 = vpop.permute.xlu0 %2140
    %2142 = vrot.lane.b32.xlu0 %v2137, 64
    %v2143 = vpop.permute.xlu0 %2142
    %v2146 = vmul.f32 %v2103, %v2141
    %v2147 = vmul.f32 %v2105, %v2143
    %v2148 = vmul.f32 %v328, %v2146
    %v2149 = vmul.f32 %v333, %v2147
    %v2150 = vrot.slane %v1872, 1
    %v2151 = vrot.slane %v1873, 1
    %2152 = vrot.lane.b32.xlu0 %v2150, 32
    %v2153 = vpop.permute.xlu0 %2152
    %2154 = vrot.lane.b32.xlu0 %v2151, 32
    %v2155 = vpop.permute.xlu0 %2154
    %v2158 = vmul.f32 %v342, %v2153
    %v2159 = vmul.f32 %v347, %v2155
    %2162 = vrot.lane.b32.xlu0 %v2158, 96
    %v2163 = vpop.permute.xlu0 %2162
    %2164 = vrot.lane.b32.xlu0 %v2159, 96
    %v2165 = vpop.permute.xlu0 %2164
    %v2168 = vadd.f32 %v2148, %v2163
    %v2169 = vadd.f32 %v2149, %v2165
    %v2170 = vmul.f32 %v328, %v2134
    %v2171 = vmul.f32 %v333, %v2135
    %2172 = vrot.lane.b32.xlu0 %v2110, 96
    %v2173 = vpop.permute.xlu0 %2172
    %2174 = vrot.lane.b32.xlu0 %v2111, 96
    %v2175 = vpop.permute.xlu0 %2174
    %v2178 = vmul.f32 %v342, %v2173
    %v2179 = vmul.f32 %v347, %v2175
    %2182 = vrot.lane.b32.xlu0 %v2178, 32
    %v2183 = vpop.permute.xlu0 %2182
    %2184 = vrot.lane.b32.xlu0 %v2179, 32
    %v2185 = vpop.permute.xlu0 %2184
    %v2188 = vadd.f32 %v2170, %v2183
    %v2189 = vadd.f32 %v2171, %v2185
    %v2192 = vrot.slane %v2073, 7
    %vm2193 = vcmask 1047559
    %v2194 = vsel %vm2193, %v2192, %v2072
    %2195 = vrot.lane.b32.xlu0 %v2194, 32
    %v2196 = vpop.permute.xlu0 %2195
    %v2200 = vrot.slane %v2168, 3
    %v2201 = vrot.slane %v2169, 2
    %v2202 = vsel %vm2193, %v2201, %v2200
    %2203 = vrot.lane.b32.xlu0 %v2202, 64
    %v2204 = vpop.permute.xlu0 %2203
    %v2206 = vsel %vm105, %v2196, %v2204
    %v2208 = vrot.slane %v2206, 6
    %v2209 = vsel %vm189, %v2208, 0
    %2211 = vmatprep.subr.mxu0 %v78
    %2212 = vmatpush1.msra.mxu0 %v77
    %2213 = vmatprep.subr.mxu0 %v80
    %2214 = vmatpush1.msra.mxu0 %v79
    %2215 = vmatprep.subr.mxu0 %v82
    %2216 = vmatpush1.msra.mxu0 %v81
    %2217 = vmatprep.subr.mxu0 %v84
    %2218 = vmatpush1.msra.mxu0 %v83
    %2219 = vmatprep.subr.mxu0 %v86
    %2220 = vmatpush1.msra.mxu0 %v85
    %2221 = vmatprep.subr.mxu0 %v88
    %2222 = vmatpush1.msra.mxu0 %v87
    %2223 = vmatprep.subr.mxu0 %v90
    %2224 = vmatpush1.msra.mxu0 %v89
    %2225 = vmatprep.subr.mxu0 %v92
    %2226 = vmatpush1.msra.mxu0 %v91
    %2227 = vmatprep.subr.mxu0 0.0
    %2228 = vmatpush1.msra.mxu0 0.0
    %2229 = vmatprep.subr.mxu0 0.0
    %2230 = vmatpush1.msra.mxu0 0.0
    %2231 = vmatprep.subr.mxu0 0.0
    %2232 = vmatpush1.msra.mxu0 0.0
    %2233 = vmatprep.subr.mxu0 0.0
    %2234 = vmatpush1.msra.mxu0 0.0
    %2235 = vmatprep.subr.mxu0 0.0
    %2236 = vmatpush1.msra.mxu0 0.0
    %2237 = vmatprep.subr.mxu0 0.0
    %2238 = vmatpush1.msra.mxu0 0.0
    %2239 = vmatprep.subr.mxu0 0.0
    %2240 = vmatpush1.msra.mxu0 0.0
    %2241 = vmatprep.subr.mxu0 0.0
    %2242 = vmatpush1.msra.mxu0 0.0
    %2243 = vmatprep.subr.mxu0 0.0
    %2244 = vmatpush1.msra.mxu0 0.0
    %2245 = vmatprep.subr.mxu0 0.0
    %2246 = vmatpush1.msra.mxu0 0.0
    %2247 = vmatprep.subr.mxu0 0.0
    %2248 = vmatpush1.msra.mxu0 0.0
    %2249 = vmatprep.subr.mxu0 0.0
    %2250 = vmatpush1.msra.mxu0 0.0
    %2251 = vmatprep.subr.mxu0 0.0
    %2252 = vmatpush1.msra.mxu0 0.0
    %2253 = vmatprep.subr.mxu0 0.0
    %2254 = vmatpush1.msra.mxu0 0.0
    %2255 = vmatprep.subr.mxu0 0.0
    %2256 = vmatpush1.msra.mxu0 0.0
    %2257 = vmatprep.subr.mxu0 0.0
    %2258 = vmatpush1.msra.mxu0 0.0
    %2259 = vmatprep.subr.mxu0 0.0
    %2260 = vmatpush1.msra.mxu0 0.0
    %2261 = vmatprep.subr.mxu0 0.0
    %2262 = vmatpush1.msra.mxu0 0.0
    %2263 = vmatprep.subr.mxu0 0.0
    %2264 = vmatpush1.msra.mxu0 0.0
    %2265 = vmatprep.subr.mxu0 0.0
    %2266 = vmatpush1.msra.mxu0 0.0
    %2267 = vmatprep.subr.mxu0 0.0
    %2268 = vmatpush1.msra.mxu0 0.0
    %2269 = vmatprep.subr.mxu0 0.0
    %2270 = vmatpush1.msra.mxu0 0.0
    %2271 = vmatprep.subr.mxu0 0.0
    %2272 = vmatpush1.msra.mxu0 0.0
    %2273 = vmatprep.subr.mxu0 0.0
    %2274 = vmatpush1.msra.mxu0 0.0
    %2275 = vmatprep.mubr.f32.mxu0 0.0
    %2276 = vmatmul.mubr.f32.gmra.mrb[0].mxu0 %v2209
    %v2277 = vpop.f32.mrb[0].mxu0
    %v2278 = vadd.f32 0.0, %v2277
    %v2279 = vpop.f32.mrb[0].mxu0
    %v2280 = vadd.f32 0.0, %v2279
    %2281 = vdwg.mxu0
    %v2283 = vrot.slane %v2278, 1
    %v2284 = vrot.slane %v2278, 2
    %v2287 = vadd.f32 %v179, %v2283
    %v2288 = vadd.f32 %v185, %v2284
    %v2290 = vrot.slane %v2280, 1
    %v2293 = vadd.f32 %v181, %v2280
    %v2294 = vadd.f32 %v187, %v2290
    %v2295 = vxor.u32 %v2287, 2147483648
    %v2296 = vxor.u32 %v2288, 2147483648
    %v2297 = vmul.f32 %v2295, 1.442695
    %v2298 = vpow.pop %v2297
    %v2299 = vmul.f32 %v2296, 1.442695
    %v2300 = vpow.pop %v2299
    %v2301 = vadd.f32 %v2298, 1.0
    %v2302 = vadd.f32 %v2300, 1.0
    %v2303 = vrcp.pop %v2301
    %v2304 = vmul.f32 1.0, %v2303
    %v2305 = vrcp.pop %v2302
    %v2306 = vmul.f32 1.0, %v2305
    %v2307 = vtanh.pop %v2287
    %v2308 = vtanh.pop %v2288
    %v2311 = vrot.slane %v2092, 7
    %v2312 = vrot.slane %v2093, 7
    %v2315 = vmul.f32 %v2304, %v2311
    %v2316 = vmul.f32 %v2306, %v2312
    %2319 = vrot.lane.b32.xlu0 %v2307, 64
    %v2320 = vpop.permute.xlu0 %2319
    %2321 = vrot.lane.b32.xlu0 %v2308, 64
    %v2322 = vpop.permute.xlu0 %2321
    %v2325 = vmul.f32 %v2304, %v2320
    %v2326 = vmul.f32 %v2306, %v2322
    %2329 = vrot.lane.b32.xlu0 %v2325, 32
    %v2330 = vpop.permute.xlu0 %2329
    %2331 = vrot.lane.b32.xlu0 %v2326, 32
    %v2332 = vpop.permute.xlu0 %2331
    %v2335 = vadd.f32 %v2315, %v2330
    %v2336 = vadd.f32 %v2316, %v2332
    %v2337 = vtanh.pop %v2335
    %v2338 = vtanh.pop %v2336
    %2341 = vrot.lane.b32.xlu0 %v2337, 64
    %v2342 = vpop.permute.xlu0 %2341
    %2343 = vrot.lane.b32.xlu0 %v2338, 64
    %v2344 = vpop.permute.xlu0 %2343
    %v2347 = vmul.f32 %v2304, %v2342
    %v2348 = vmul.f32 %v2306, %v2344
    %v2349 = vmul.f32 %v328, %v2347
    %v2350 = vmul.f32 %v333, %v2348
    %v2351 = vrot.slane %v2072, 7
    %2352 = vrot.lane.b32.xlu0 %v2351, 32
    %v2353 = vpop.permute.xlu0 %2352
    %2354 = vrot.lane.b32.xlu0 %v2192, 32
    %v2355 = vpop.permute.xlu0 %2354
    %v2358 = vmul.f32 %v342, %v2353
    %v2359 = vmul.f32 %v347, %v2355
    %2362 = vrot.lane.b32.xlu0 %v2358, 96
    %v2363 = vpop.permute.xlu0 %2362
    %2364 = vrot.lane.b32.xlu0 %v2359, 96
    %v2365 = vpop.permute.xlu0 %2364
    %v2368 = vadd.f32 %v2349, %v2363
    %v2369 = vadd.f32 %v2350, %v2365
    %v2370 = vmul.f32 %v328, %v2335
    %v2371 = vmul.f32 %v333, %v2336
    %2372 = vrot.lane.b32.xlu0 %v2311, 96
    %v2373 = vpop.permute.xlu0 %2372
    %2374 = vrot.lane.b32.xlu0 %v2312, 96
    %v2375 = vpop.permute.xlu0 %2374
    %v2378 = vmul.f32 %v342, %v2373
    %v2379 = vmul.f32 %v347, %v2375
    %2382 = vrot.lane.b32.xlu0 %v2378, 32
    %v2383 = vpop.permute.xlu0 %2382
    %2384 = vrot.lane.b32.xlu0 %v2379, 32
    %v2385 = vpop.permute.xlu0 %2384
    %v2388 = vadd.f32 %v2370, %v2383
    %v2389 = vadd.f32 %v2371, %v2385
    %v2390 = vxor.u32 %v2293, 2147483648
    %v2391 = vxor.u32 %v2294, 2147483648
    %v2392 = vmul.f32 %v2390, 1.442695
    %v2393 = vpow.pop %v2392
    %v2394 = vmul.f32 %v2391, 1.442695
    %v2395 = vpow.pop %v2394
    %v2396 = vadd.f32 %v2393, 1.0
    %v2397 = vadd.f32 %v2395, 1.0
    %v2398 = vrcp.pop %v2396
    %v2399 = vmul.f32 1.0, %v2398
    %v2400 = vrcp.pop %v2397
    %v2401 = vmul.f32 1.0, %v2400
    %v2402 = vtanh.pop %v2293
    %v2403 = vtanh.pop %v2294
    %v2406 = vrot.slane %v2188, 1
    %v2407 = vrot.slane %v2189, 1
    %v2410 = vmul.f32 %v2399, %v2406
    %v2411 = vmul.f32 %v2401, %v2407
    %2414 = vrot.lane.b32.xlu0 %v2402, 64
    %v2415 = vpop.permute.xlu0 %2414
    %2416 = vrot.lane.b32.xlu0 %v2403, 64
    %v2417 = vpop.permute.xlu0 %2416
    %v2420 = vmul.f32 %v2399, %v2415
    %v2421 = vmul.f32 %v2401, %v2417
    %2424 = vrot.lane.b32.xlu0 %v2420, 32
    %v2425 = vpop.permute.xlu0 %2424
    %2426 = vrot.lane.b32.xlu0 %v2421, 32
    %v2427 = vpop.permute.xlu0 %2426
    %v2430 = vadd.f32 %v2410, %v2425
    %v2431 = vadd.f32 %v2411, %v2427
    %v2432 = vtanh.pop %v2430
    %v2433 = vtanh.pop %v2431
    %2436 = vrot.lane.b32.xlu0 %v2432, 64
    %v2437 = vpop.permute.xlu0 %2436
    %2438 = vrot.lane.b32.xlu0 %v2433, 64
    %v2439 = vpop.permute.xlu0 %2438
    %v2442 = vmul.f32 %v2399, %v2437
    %v2443 = vmul.f32 %v2401, %v2439
    %v2444 = vmul.f32 %v328, %v2442
    %v2445 = vmul.f32 %v333, %v2443
    %v2446 = vrot.slane %v2168, 1
    %v2447 = vrot.slane %v2169, 1
    %2448 = vrot.lane.b32.xlu0 %v2446, 32
    %v2449 = vpop.permute.xlu0 %2448
    %2450 = vrot.lane.b32.xlu0 %v2447, 32
    %v2451 = vpop.permute.xlu0 %2450
    %v2454 = vmul.f32 %v342, %v2449
    %v2455 = vmul.f32 %v347, %v2451
    %2458 = vrot.lane.b32.xlu0 %v2454, 96
    %v2459 = vpop.permute.xlu0 %2458
    %2460 = vrot.lane.b32.xlu0 %v2455, 96
    %v2461 = vpop.permute.xlu0 %2460
    %v2464 = vadd.f32 %v2444, %v2459
    %v2465 = vadd.f32 %v2445, %v2461
    %v2466 = vmul.f32 %v328, %v2430
    %v2467 = vmul.f32 %v333, %v2431
    %2468 = vrot.lane.b32.xlu0 %v2406, 96
    %v2469 = vpop.permute.xlu0 %2468
    %2470 = vrot.lane.b32.xlu0 %v2407, 96
    %v2471 = vpop.permute.xlu0 %2470
    %v2474 = vmul.f32 %v342, %v2469
    %v2475 = vmul.f32 %v347, %v2471
    %2478 = vrot.lane.b32.xlu0 %v2474, 32
    %v2479 = vpop.permute.xlu0 %2478
    %2480 = vrot.lane.b32.xlu0 %v2475, 32
    %v2481 = vpop.permute.xlu0 %2480
    %v2484 = vadd.f32 %v2466, %v2479
    %v2485 = vadd.f32 %v2467, %v2481
    %vm2486 = vcmask 1040384
    %v2487 = vsel %vm2486, %v335, %v571
    %v2488 = vsel %vm2486, %v336, %v572
    %vm2489 = vcmask 1041408
    %v2490 = vsel %vm2489, %v2487, %v868
    %v2491 = vsel %vm2489, %v2488, %v869
    %vm2492 = vcmask 1042432
    %v2493 = vsel %vm2492, %v2490, %v1165
    %v2494 = vsel %vm2492, %v2491, %v1166
    %vm2495 = vcmask 1043456
    %v2496 = vsel %vm2495, %v2493, %v1461
    %v2497 = vsel %vm2495, %v2494, %v1462
    %vm2498 = vcmask 1044480
    %v2499 = vsel %vm2498, %v2496, %v1757
    %v2500 = vsel %vm2498, %v2497, %v1758
    %vm2501 = vcmask 1045504
    %v2502 = vsel %vm2501, %v2499, %v2053
    %v2503 = vsel %vm2501, %v2500, %v2054
    %vm2504 = vcmask 1046528
    %v2505 = vsel %vm2504, %v2502, %v2349
    %v2506 = vsel %vm2504, %v2503, %v2350
    %v2507 = vsel %vm2486, %v2444, %v2148
    %v2508 = vsel %vm2486, %v2445, %v2149
    %v2509 = vsel %vm2489, %v2507, %v1852
    %v2510 = vsel %vm2489, %v2508, %v1853
    %v2511 = vsel %vm2492, %v2509, %v1556
    %v2512 = vsel %vm2492, %v2510, %v1557
    %v2513 = vsel %vm2495, %v2511, %v1260
    %v2514 = vsel %vm2495, %v2512, %v1261
    %v2515 = vsel %vm2498, %v2513, %v963
    %v2516 = vsel %vm2498, %v2514, %v964
    %v2517 = vsel %vm2501, %v2515, %v666
    %v2518 = vsel %vm2501, %v2516, %v667
    %v2519 = vsel %vm2504, %v2517, %v405
    %v2520 = vsel %vm2504, %v2518, %v406
    %2523 = vrot.lane.b32.xlu0 %v2505, 32
    %v2524 = vpop.permute.xlu0 %2523
    %2525 = vrot.lane.b32.xlu0 %v2506, 32
    %v2526 = vpop.permute.xlu0 %2525
    %2531 = vrot.lane.b32.xlu0 %v2519, 64
    %v2532 = vpop.permute.xlu0 %2531
    %2533 = vrot.lane.b32.xlu0 %v2520, 64
    %v2534 = vpop.permute.xlu0 %2533
    %v2537 = vsel %vm105, %v2524, %v2532
    %v2538 = vsel %vm105, %v2526, %v2534
    %v2541 = vrot.slane %v2369, 7
    %2542 = vrot.lane.b32.xlu0 %v2368, 32
    %v2543 = vpop.permute.xlu0 %2542
    %2544 = vrot.lane.b32.xlu0 %v2541, 32
    %v2545 = vpop.permute.xlu0 %2544
    %v2550 = vrot.slane %v2464, 1
    %2551 = vrot.lane.b32.xlu0 %v2550, 64
    %v2552 = vpop.permute.xlu0 %2551
    %2553 = vrot.lane.b32.xlu0 %v2465, 64
    %v2554 = vpop.permute.xlu0 %2553
    %v2557 = vsel %vm105, %v2543, %v2552
    %v2558 = vsel %vm105, %v2545, %v2554
    %v2561 = vrot.slane %v2389, 7
    %2562 = vrot.lane.b32.xlu0 %v2388, 96
    %v2563 = vpop.permute.xlu0 %2562
    %2564 = vrot.lane.b32.xlu0 %v2561, 96
    %v2565 = vpop.permute.xlu0 %2564
    %v2570 = vrot.slane %v2484, 1
    %v2573 = vsel %vm105, %v2563, %v2570
    %v2574 = vsel %vm105, %v2565, %v2485
    %v2575 = vld [vmem:[%s5] sm:$0xff]
    %v2576 = vld [vmem:[%s5 + $0x8] sm:$0xff]
    %v2577 = vld [vmem:[%s5 + $0x10] sm:$0xff]
    %v2578 = vld [vmem:[%s5 + $0x18] sm:$0xff]
    %v2579 = vld [vmem:[%s5 + $0x20] sm:$0xff]
    %v2580 = vld [vmem:[%s5 + $0x28] sm:$0xff]
    %v2581 = vld [vmem:[%s5 + $0x30] sm:$0xff]
    %v2582 = vld [vmem:[%s5 + $0x38] sm:$0xff]
    %v2583 = vld [vmem:[%s5 + $0x40] sm:$0xff]
    %v2584 = vld [vmem:[%s5 + $0x48] sm:$0xff]
    %v2585 = vld [vmem:[%s5 + $0x50] sm:$0xff]
    %v2586 = vld [vmem:[%s5 + $0x58] sm:$0xff]
    %v2587 = vld [vmem:[%s5 + $0x60] sm:$0xff]
    %v2588 = vld [vmem:[%s5 + $0x68] sm:$0xff]
    %v2589 = vld [vmem:[%s5 + $0x70] sm:$0xff]
    %v2590 = vld [vmem:[%s5 + $0x78] sm:$0xff]
    %v2591 = vld [vmem:[%s6] sm:$0xff]
    %v2592 = vld [vmem:[%s6 + $0x8] sm:$0xff]
    %v2593 = vld [vmem:[%s6 + $0x10] sm:$0xff]
    %v2594 = vld [vmem:[%s6 + $0x18] sm:$0xff]
    %v2595 = vld [vmem:[%s6 + $0x20] sm:$0xff]
    %v2596 = vld [vmem:[%s6 + $0x28] sm:$0xff]
    %v2597 = vld [vmem:[%s6 + $0x30] sm:$0xff]
    %v2598 = vld [vmem:[%s6 + $0x38] sm:$0xff]
    %v2599 = vld [vmem:[%s6 + $0x40] sm:$0xff]
    %v2600 = vld [vmem:[%s6 + $0x48] sm:$0xff]
    %v2601 = vld [vmem:[%s6 + $0x50] sm:$0xff]
    %v2602 = vld [vmem:[%s6 + $0x58] sm:$0xff]
    %v2603 = vld [vmem:[%s6 + $0x60] sm:$0xff]
    %v2604 = vld [vmem:[%s6 + $0x68] sm:$0xff]
    %v2605 = vld [vmem:[%s6 + $0x70] sm:$0xff]
    %v2606 = vld [vmem:[%s6 + $0x78] sm:$0xff]
    %v2607 = vld [vmem:[%s7] sm:$0x3]
    %v2609 = vlaneseq
    %v2610 = vshrl.u32 %v2609, 7
    %v2611 = vsub.s32 0, %v2610
    %v2612 = vrot.slane %v2607, %v2611
    %v2613 = vlaneseq
    %v2614 = vshrl.u32 %v2613, 7
    %v2615 = vsub.s32 1, %v2614
    %v2616 = vrot.slane %v2607, %v2615
    %v2620 = vsel %vm189, %v2537, 0
    %v2623 = vsel %vm189, %v2538, 0
    %2625 = vmatprep.subr.mxu0 %v2576
    %2626 = vmatpush1.msra.mxu0 %v2575
    %2627 = vmatprep.subr.mxu0 %v2578
    %2628 = vmatpush1.msra.mxu0 %v2577
    %2629 = vmatprep.subr.mxu0 %v2580
    %2630 = vmatpush1.msra.mxu0 %v2579
    %2631 = vmatprep.subr.mxu0 %v2582
    %2632 = vmatpush1.msra.mxu0 %v2581
    %2633 = vmatprep.subr.mxu0 %v2584
    %2634 = vmatpush1.msra.mxu0 %v2583
    %2635 = vmatprep.subr.mxu0 %v2586
    %2636 = vmatpush1.msra.mxu0 %v2585
    %2637 = vmatprep.subr.mxu0 %v2588
    %2638 = vmatpush1.msra.mxu0 %v2587
    %2639 = vmatprep.subr.mxu0 %v2590
    %2640 = vmatpush1.msra.mxu0 %v2589
    %2641 = vmatprep.subr.mxu0 0.0
    %2642 = vmatpush1.msra.mxu0 0.0
    %2643 = vmatprep.subr.mxu0 0.0
    %2644 = vmatpush1.msra.mxu0 0.0
    %2645 = vmatprep.subr.mxu0 0.0
    %2646 = vmatpush1.msra.mxu0 0.0
    %2647 = vmatprep.subr.mxu0 0.0
    %2648 = vmatpush1.msra.mxu0 0.0
    %2649 = vmatprep.subr.mxu0 0.0
    %2650 = vmatpush1.msra.mxu0 0.0
    %2651 = vmatprep.subr.mxu0 0.0
    %2652 = vmatpush1.msra.mxu0 0.0
    %2653 = vmatprep.subr.mxu0 0.0
    %2654 = vmatpush1.msra.mxu0 0.0
    %2655 = vmatprep.subr.mxu0 0.0
    %2656 = vmatpush1.msra.mxu0 0.0
    %2657 = vmatprep.subr.mxu0 0.0
    %2658 = vmatpush1.msra.mxu0 0.0
    %2659 = vmatprep.subr.mxu0 0.0
    %2660 = vmatpush1.msra.mxu0 0.0
    %2661 = vmatprep.subr.mxu0 0.0
    %2662 = vmatpush1.msra.mxu0 0.0
    %2663 = vmatprep.subr.mxu0 0.0
    %2664 = vmatpush1.msra.mxu0 0.0
    %2665 = vmatprep.subr.mxu0 0.0
    %2666 = vmatpush1.msra.mxu0 0.0
    %2667 = vmatprep.subr.mxu0 0.0
    %2668 = vmatpush1.msra.mxu0 0.0
    %2669 = vmatprep.subr.mxu0 0.0
    %2670 = vmatpush1.msra.mxu0 0.0
    %2671 = vmatprep.subr.mxu0 0.0
    %2672 = vmatpush1.msra.mxu0 0.0
    %2673 = vmatprep.subr.mxu0 0.0
    %2674 = vmatpush1.msra.mxu0 0.0
    %2675 = vmatprep.subr.mxu0 0.0
    %2676 = vmatpush1.msra.mxu0 0.0
    %2677 = vmatprep.subr.mxu0 0.0
    %2678 = vmatpush1.msra.mxu0 0.0
    %2679 = vmatprep.subr.mxu0 0.0
    %2680 = vmatpush1.msra.mxu0 0.0
    %2681 = vmatprep.subr.mxu0 0.0
    %2682 = vmatpush1.msra.mxu0 0.0
    %2683 = vmatprep.subr.mxu0 0.0
    %2684 = vmatpush1.msra.mxu0 0.0
    %2685 = vmatprep.subr.mxu0 0.0
    %2686 = vmatpush1.msra.mxu0 0.0
    %2687 = vmatprep.subr.mxu0 0.0
    %2688 = vmatpush1.msra.mxu0 0.0
    %2689 = vmatprep.mubr.f32.mxu0 0.0
    %2690 = vmatmul.mubr.f32.gmra.mrb[0].mxu0 %v2620
    %v2691 = vpop.f32.mrb[0].mxu0
    %v2692 = vadd.f32 %v2612, %v2691
    %v2693 = vpop.f32.mrb[0].mxu0
    %v2694 = vadd.f32 %v2616, %v2693
    %2695 = vmatprep.mubr.f32.mxu0 0.0
    %2696 = vmatmul.mubr.f32.gmra.mrb[0].mxu0 %v2623
    %v2697 = vpop.f32.mrb[0].mxu0
    %v2698 = vadd.f32 %v2612, %v2697
    %v2699 = vpop.f32.mrb[0].mxu0
    %v2700 = vadd.f32 %v2616, %v2699
    %2701 = vdwg.mxu0
    %2702 = vmatprep.subr.mxu0 %v2592
    %2703 = vmatpush1.msra.mxu0 %v2591
    %2704 = vmatprep.subr.mxu0 %v2594
    %2705 = vmatpush1.msra.mxu0 %v2593
    %2706 = vmatprep.subr.mxu0 %v2596
    %2707 = vmatpush1.msra.mxu0 %v2595
    %2708 = vmatprep.subr.mxu0 %v2598
    %2709 = vmatpush1.msra.mxu0 %v2597
    %2710 = vmatprep.subr.mxu0 %v2600
    %2711 = vmatpush1.msra.mxu0 %v2599
    %2712 = vmatprep.subr.mxu0 %v2602
    %2713 = vmatpush1.msra.mxu0 %v2601
    %2714 = vmatprep.subr.mxu0 %v2604
    %2715 = vmatpush1.msra.mxu0 %v2603
    %2716 = vmatprep.subr.mxu0 %v2606
    %2717 = vmatpush1.msra.mxu0 %v2605
    %2718 = vmatprep.subr.mxu0 0.0
    %2719 = vmatpush1.msra.mxu0 0.0
    %2720 = vmatprep.subr.mxu0 0.0
    %2721 = vmatpush1.msra.mxu0 0.0
    %2722 = vmatprep.subr.mxu0 0.0
    %2723 = vmatpush1.msra.mxu0 0.0
    %2724 = vmatprep.subr.mxu0 0.0
    %2725 = vmatpush1.msra.mxu0 0.0
    %2726 = vmatprep.subr.mxu0 0.0
    %2727 = vmatpush1.msra.mxu0 0.0
    %2728 = vmatprep.subr.mxu0 0.0
    %2729 = vmatpush1.msra.mxu0 0.0
    %2730 = vmatprep.subr.mxu0 0.0
    %2731 = vmatpush1.msra.mxu0 0.0
    %2732 = vmatprep.subr.mxu0 0.0
    %2733 = vmatpush1.msra.mxu0 0.0
    %2734 = vmatprep.subr.mxu0 0.0
    %2735 = vmatpush1.msra.mxu0 0.0
    %2736 = vmatprep.subr.mxu0 0.0
    %2737 = vmatpush1.msra.mxu0 0.0
    %2738 = vmatprep.subr.mxu0 0.0
    %2739 = vmatpush1.msra.mxu0 0.0
    %2740 = vmatprep.subr.mxu0 0.0
    %2741 = vmatpush1.msra.mxu0 0.0
    %2742 = vmatprep.subr.mxu0 0.0
    %2743 = vmatpush1.msra.mxu0 0.0
    %2744 = vmatprep.subr.mxu0 0.0
    %2745 = vmatpush1.msra.mxu0 0.0
    %2746 = vmatprep.subr.mxu0 0.0
    %2747 = vmatpush1.msra.mxu0 0.0
    %2748 = vmatprep.subr.mxu0 0.0
    %2749 = vmatpush1.msra.mxu0 0.0
    %2750 = vmatprep.subr.mxu0 0.0
    %2751 = vmatpush1.msra.mxu0 0.0
    %2752 = vmatprep.subr.mxu0 0.0
    %2753 = vmatpush1.msra.mxu0 0.0
    %2754 = vmatprep.subr.mxu0 0.0
    %2755 = vmatpush1.msra.mxu0 0.0
    %2756 = vmatprep.subr.mxu0 0.0
    %2757 = vmatpush1.msra.mxu0 0.0
    %2758 = vmatprep.subr.mxu0 0.0
    %2759 = vmatpush1.msra.mxu0 0.0
    %2760 = vmatprep.subr.mxu0 0.0
    %2761 = vmatpush1.msra.mxu0 0.0
    %2762 = vmatprep.subr.mxu0 0.0
    %2763 = vmatpush1.msra.mxu0 0.0
    %2764 = vmatprep.subr.mxu0 0.0
    %2765 = vmatpush1.msra.mxu0 0.0
    %2766 = vmatprep.mubr.f32.mxu0 0.0
    %2767 = vmatmul.mubr.f32.gmra.mrb[0].mxu0 %v191
    %v2768 = vpop.f32.mrb[0].mxu0
    %v2769 = vadd.f32 0.0, %v2768
    %v2770 = vpop.f32.mrb[0].mxu0
    %v2771 = vadd.f32 0.0, %v2770
    %2772 = vdwg.mxu0
    %v2774 = vrot.slane %v2769, 1
    %v2777 = vadd.f32 %v2692, %v2769
    %v2778 = vadd.f32 %v2698, %v2774
    %v2780 = vrot.slane %v2771, 1
    %v2781 = vrot.slane %v2771, 2
    %v2784 = vadd.f32 %v2694, %v2780
    %v2785 = vadd.f32 %v2700, %v2781
    %v2786 = vxor.u32 %v2777, 2147483648
    %v2787 = vxor.u32 %v2778, 2147483648
    %v2788 = vmul.f32 %v2786, 1.442695
    %v2789 = vpow.pop %v2788
    %v2790 = vmul.f32 %v2787, 1.442695
    %v2791 = vpow.pop %v2790
    %v2792 = vadd.f32 %v2789, 1.0
    %v2793 = vadd.f32 %v2791, 1.0
    %v2794 = vrcp.pop %v2792
    %v2795 = vmul.f32 1.0, %v2794
    %v2796 = vrcp.pop %v2793
    %v2797 = vmul.f32 1.0, %v2796
    %v2798 = vtanh.pop %v2777
    %v2799 = vtanh.pop %v2778
    %v2800 = vmul.f32 %v2795, 0.0
    %v2801 = vmul.f32 %v2797, 0.0
    %2804 = vrot.lane.b32.xlu0 %v2798, 64
    %v2805 = vpop.permute.xlu0 %2804
    %2806 = vrot.lane.b32.xlu0 %v2799, 64
    %v2807 = vpop.permute.xlu0 %2806
    %v2810 = vmul.f32 %v2795, %v2805
    %v2811 = vmul.f32 %v2797, %v2807
    %2814 = vrot.lane.b32.xlu0 %v2810, 32
    %v2815 = vpop.permute.xlu0 %2814
    %2816 = vrot.lane.b32.xlu0 %v2811, 32
    %v2817 = vpop.permute.xlu0 %2816
    %v2820 = vadd.f32 %v2800, %v2815
    %v2821 = vadd.f32 %v2801, %v2817
    %v2822 = vtanh.pop %v2820
    %v2823 = vtanh.pop %v2821
    %2826 = vrot.lane.b32.xlu0 %v2822, 64
    %v2827 = vpop.permute.xlu0 %2826
    %2828 = vrot.lane.b32.xlu0 %v2823, 64
    %v2829 = vpop.permute.xlu0 %2828
    %v2832 = vmul.f32 %v2795, %v2827
    %v2833 = vmul.f32 %v2797, %v2829
    %v2834 = vmul.f32 %v328, %v2832
    %v2835 = vmul.f32 %v333, %v2833
    %v2836 = vadd.f32 %v2834, %v349
    %v2837 = vadd.f32 %v2835, %v350
    %v2838 = vmul.f32 %v328, %v2820
    %v2839 = vmul.f32 %v333, %v2821
    %v2840 = vadd.f32 %v2838, %v349
    %v2841 = vadd.f32 %v2839, %v350
    %v2842 = vxor.u32 %v2784, 2147483648
    %v2843 = vxor.u32 %v2785, 2147483648
    %v2844 = vmul.f32 %v2842, 1.442695
    %v2845 = vpow.pop %v2844
    %v2846 = vmul.f32 %v2843, 1.442695
    %v2847 = vpow.pop %v2846
    %v2848 = vadd.f32 %v2845, 1.0
    %v2849 = vadd.f32 %v2847, 1.0
    %v2850 = vrcp.pop %v2848
    %v2851 = vmul.f32 1.0, %v2850
    %v2852 = vrcp.pop %v2849
    %v2853 = vmul.f32 1.0, %v2852
    %v2854 = vtanh.pop %v2784
    %v2855 = vtanh.pop %v2785
    %v2856 = vmul.f32 %v2851, 0.0
    %v2857 = vmul.f32 %v2853, 0.0
    %2860 = vrot.lane.b32.xlu0 %v2854, 64
    %v2861 = vpop.permute.xlu0 %2860
    %2862 = vrot.lane.b32.xlu0 %v2855, 64
    %v2863 = vpop.permute.xlu0 %2862
    %v2866 = vmul.f32 %v2851, %v2861
    %v2867 = vmul.f32 %v2853, %v2863
    %2870 = vrot.lane.b32.xlu0 %v2866, 32
    %v2871 = vpop.permute.xlu0 %2870
    %2872 = vrot.lane.b32.xlu0 %v2867, 32
    %v2873 = vpop.permute.xlu0 %2872
    %v2876 = vadd.f32 %v2856, %v2871
    %v2877 = vadd.f32 %v2857, %v2873
    %v2878 = vtanh.pop %v2876
    %v2879 = vtanh.pop %v2877
    %2882 = vrot.lane.b32.xlu0 %v2878, 64
    %v2883 = vpop.permute.xlu0 %2882
    %2884 = vrot.lane.b32.xlu0 %v2879, 64
    %v2885 = vpop.permute.xlu0 %2884
    %v2888 = vmul.f32 %v2851, %v2883
    %v2889 = vmul.f32 %v2853, %v2885
    %v2890 = vmul.f32 %v328, %v2888
    %v2891 = vmul.f32 %v333, %v2889
    %v2892 = vadd.f32 %v2890, %v349
    %v2893 = vadd.f32 %v2891, %v350
    %v2894 = vmul.f32 %v328, %v2876
    %v2895 = vmul.f32 %v333, %v2877
    %v2896 = vadd.f32 %v2894, %v349
    %v2897 = vadd.f32 %v2895, %v350
    %v2900 = vrot.slane %v2837, 7
    %v2901 = vsel %vm416, %v2900, %v2836
    %2902 = vrot.lane.b32.xlu0 %v2901, 32
    %v2903 = vpop.permute.xlu0 %2902
    %v2907 = vrot.slane %v2892, 7
    %v2908 = vrot.slane %v2893, 6
    %v2909 = vsel %vm416, %v2908, %v2907
    %2910 = vrot.lane.b32.xlu0 %v2909, 64
    %v2911 = vpop.permute.xlu0 %2910
    %v2913 = vsel %vm105, %v2903, %v2911
    %v2915 = vsel %vm189, %v2913, 0
    %2917 = vmatprep.subr.mxu0 %v2592
    %2918 = vmatpush1.msra.mxu0 %v2591
    %2919 = vmatprep.subr.mxu0 %v2594
    %2920 = vmatpush1.msra.mxu0 %v2593
    %2921 = vmatprep.subr.mxu0 %v2596
    %2922 = vmatpush1.msra.mxu0 %v2595
    %2923 = vmatprep.subr.mxu0 %v2598
    %2924 = vmatpush1.msra.mxu0 %v2597
    %2925 = vmatprep.subr.mxu0 %v2600
    %2926 = vmatpush1.msra.mxu0 %v2599
    %2927 = vmatprep.subr.mxu0 %v2602
    %2928 = vmatpush1.msra.mxu0 %v2601
    %2929 = vmatprep.subr.mxu0 %v2604
    %2930 = vmatpush1.msra.mxu0 %v2603
    %2931 = vmatprep.subr.mxu0 %v2606
    %2932 = vmatpush1.msra.mxu0 %v2605
    %2933 = vmatprep.subr.mxu0 0.0
    %2934 = vmatpush1.msra.mxu0 0.0
    %2935 = vmatprep.subr.mxu0 0.0
    %2936 = vmatpush1.msra.mxu0 0.0
    %2937 = vmatprep.subr.mxu0 0.0
    %2938 = vmatpush1.msra.mxu0 0.0
    %2939 = vmatprep.subr.mxu0 0.0
    %2940 = vmatpush1.msra.mxu0 0.0
    %2941 = vmatprep.subr.mxu0 0.0
    %2942 = vmatpush1.msra.mxu0 0.0
    %2943 = vmatprep.subr.mxu0 0.0
    %2944 = vmatpush1.msra.mxu0 0.0
    %2945 = vmatprep.subr.mxu0 0.0
    %2946 = vmatpush1.msra.mxu0 0.0
    %2947 = vmatprep.subr.mxu0 0.0
    %2948 = vmatpush1.msra.mxu0 0.0
    %2949 = vmatprep.subr.mxu0 0.0
    %2950 = vmatpush1.msra.mxu0 0.0
    %2951 = vmatprep.subr.mxu0 0.0
    %2952 = vmatpush1.msra.mxu0 0.0
    %2953 = vmatprep.subr.mxu0 0.0
    %2954 = vmatpush1.msra.mxu0 0.0
    %2955 = vmatprep.subr.mxu0 0.0
    %2956 = vmatpush1.msra.mxu0 0.0
    %2957 = vmatprep.subr.mxu0 0.0
    %2958 = vmatpush1.msra.mxu0 0.0
    %2959 = vmatprep.subr.mxu0 0.0
    %2960 = vmatpush1.msra.mxu0 0.0
    %2961 = vmatprep.subr.mxu0 0.0
    %2962 = vmatpush1.msra.mxu0 0.0
    %2963 = vmatprep.subr.mxu0 0.0
    %2964 = vmatpush1.msra.mxu0 0.0
    %2965 = vmatprep.subr.mxu0 0.0
    %2966 = vmatpush1.msra.mxu0 0.0
    %2967 = vmatprep.subr.mxu0 0.0
    %2968 = vmatpush1.msra.mxu0 0.0
    %2969 = vmatprep.subr.mxu0 0.0
    %2970 = vmatpush1.msra.mxu0 0.0
    %2971 = vmatprep.subr.mxu0 0.0
    %2972 = vmatpush1.msra.mxu0 0.0
    %2973 = vmatprep.subr.mxu0 0.0
    %2974 = vmatpush1.msra.mxu0 0.0
    %2975 = vmatprep.subr.mxu0 0.0
    %2976 = vmatpush1.msra.mxu0 0.0
    %2977 = vmatprep.subr.mxu0 0.0
    %2978 = vmatpush1.msra.mxu0 0.0
    %2979 = vmatprep.subr.mxu0 0.0
    %2980 = vmatpush1.msra.mxu0 0.0
    %2981 = vmatprep.mubr.f32.mxu0 0.0
    %2982 = vmatmul.mubr.f32.gmra.mrb[0].mxu0 %v2915
    %v2983 = vpop.f32.mrb[0].mxu0
    %v2984 = vadd.f32 0.0, %v2983
    %v2985 = vpop.f32.mrb[0].mxu0
    %v2986 = vadd.f32 0.0, %v2985
    %2987 = vdwg.mxu0
    %v2989 = vrot.slane %v2984, 7
    %v2992 = vadd.f32 %v2692, %v2989
    %v2993 = vadd.f32 %v2698, %v2984
    %v2995 = vrot.slane %v2986, 2
    %v2996 = vrot.slane %v2986, 3
    %v2999 = vadd.f32 %v2694, %v2995
    %v3000 = vadd.f32 %v2700, %v2996
    %v3001 = vxor.u32 %v2992, 2147483648
    %v3002 = vxor.u32 %v2993, 2147483648
    %v3003 = vmul.f32 %v3001, 1.442695
    %v3004 = vpow.pop %v3003
    %v3005 = vmul.f32 %v3002, 1.442695
    %v3006 = vpow.pop %v3005
    %v3007 = vadd.f32 %v3004, 1.0
    %v3008 = vadd.f32 %v3006, 1.0
    %v3009 = vrcp.pop %v3007
    %v3010 = vmul.f32 1.0, %v3009
    %v3011 = vrcp.pop %v3008
    %v3012 = vmul.f32 1.0, %v3011
    %v3013 = vtanh.pop %v2992
    %v3014 = vtanh.pop %v2993
    %v3017 = vrot.slane %v2840, 7
    %v3018 = vrot.slane %v2841, 7
    %v3021 = vmul.f32 %v3010, %v3017
    %v3022 = vmul.f32 %v3012, %v3018
    %3025 = vrot.lane.b32.xlu0 %v3013, 64
    %v3026 = vpop.permute.xlu0 %3025
    %3027 = vrot.lane.b32.xlu0 %v3014, 64
    %v3028 = vpop.permute.xlu0 %3027
    %v3031 = vmul.f32 %v3010, %v3026
    %v3032 = vmul.f32 %v3012, %v3028
    %3035 = vrot.lane.b32.xlu0 %v3031, 32
    %v3036 = vpop.permute.xlu0 %3035
    %3037 = vrot.lane.b32.xlu0 %v3032, 32
    %v3038 = vpop.permute.xlu0 %3037
    %v3041 = vadd.f32 %v3021, %v3036
    %v3042 = vadd.f32 %v3022, %v3038
    %v3043 = vtanh.pop %v3041
    %v3044 = vtanh.pop %v3042
    %3047 = vrot.lane.b32.xlu0 %v3043, 64
    %v3048 = vpop.permute.xlu0 %3047
    %3049 = vrot.lane.b32.xlu0 %v3044, 64
    %v3050 = vpop.permute.xlu0 %3049
    %v3053 = vmul.f32 %v3010, %v3048
    %v3054 = vmul.f32 %v3012, %v3050
    %v3055 = vmul.f32 %v328, %v3053
    %v3056 = vmul.f32 %v333, %v3054
    %v3057 = vrot.slane %v2836, 7
    %3058 = vrot.lane.b32.xlu0 %v3057, 32
    %v3059 = vpop.permute.xlu0 %3058
    %3060 = vrot.lane.b32.xlu0 %v2900, 32
    %v3061 = vpop.permute.xlu0 %3060
    %v3064 = vmul.f32 %v342, %v3059
    %v3065 = vmul.f32 %v347, %v3061
    %3068 = vrot.lane.b32.xlu0 %v3064, 96
    %v3069 = vpop.permute.xlu0 %3068
    %3070 = vrot.lane.b32.xlu0 %v3065, 96
    %v3071 = vpop.permute.xlu0 %3070
    %v3074 = vadd.f32 %v3055, %v3069
    %v3075 = vadd.f32 %v3056, %v3071
    %v3076 = vmul.f32 %v328, %v3041
    %v3077 = vmul.f32 %v333, %v3042
    %3078 = vrot.lane.b32.xlu0 %v3017, 96
    %v3079 = vpop.permute.xlu0 %3078
    %3080 = vrot.lane.b32.xlu0 %v3018, 96
    %v3081 = vpop.permute.xlu0 %3080
    %v3084 = vmul.f32 %v342, %v3079
    %v3085 = vmul.f32 %v347, %v3081
    %3088 = vrot.lane.b32.xlu0 %v3084, 32
    %v3089 = vpop.permute.xlu0 %3088
    %3090 = vrot.lane.b32.xlu0 %v3085, 32
    %v3091 = vpop.permute.xlu0 %3090
    %v3094 = vadd.f32 %v3076, %v3089
    %v3095 = vadd.f32 %v3077, %v3091
    %v3096 = vxor.u32 %v2999, 2147483648
    %v3097 = vxor.u32 %v3000, 2147483648
    %v3098 = vmul.f32 %v3096, 1.442695
    %v3099 = vpow.pop %v3098
    %v3100 = vmul.f32 %v3097, 1.442695
    %v3101 = vpow.pop %v3100
    %v3102 = vadd.f32 %v3099, 1.0
    %v3103 = vadd.f32 %v3101, 1.0
    %v3104 = vrcp.pop %v3102
    %v3105 = vmul.f32 1.0, %v3104
    %v3106 = vrcp.pop %v3103
    %v3107 = vmul.f32 1.0, %v3106
    %v3108 = vtanh.pop %v2999
    %v3109 = vtanh.pop %v3000
    %v3112 = vrot.slane %v2896, 1
    %v3113 = vrot.slane %v2897, 1
    %v3116 = vmul.f32 %v3105, %v3112
    %v3117 = vmul.f32 %v3107, %v3113
    %3120 = vrot.lane.b32.xlu0 %v3108, 64
    %v3121 = vpop.permute.xlu0 %3120
    %3122 = vrot.lane.b32.xlu0 %v3109, 64
    %v3123 = vpop.permute.xlu0 %3122
    %v3126 = vmul.f32 %v3105, %v3121
    %v3127 = vmul.f32 %v3107, %v3123
    %3130 = vrot.lane.b32.xlu0 %v3126, 32
    %v3131 = vpop.permute.xlu0 %3130
    %3132 = vrot.lane.b32.xlu0 %v3127, 32
    %v3133 = vpop.permute.xlu0 %3132
    %v3136 = vadd.f32 %v3116, %v3131
    %v3137 = vadd.f32 %v3117, %v3133
    %v3138 = vtanh.pop %v3136
    %v3139 = vtanh.pop %v3137
    %3142 = vrot.lane.b32.xlu0 %v3138, 64
    %v3143 = vpop.permute.xlu0 %3142
    %3144 = vrot.lane.b32.xlu0 %v3139, 64
    %v3145 = vpop.permute.xlu0 %3144
    %v3148 = vmul.f32 %v3105, %v3143
    %v3149 = vmul.f32 %v3107, %v3145
    %v3150 = vmul.f32 %v328, %v3148
    %v3151 = vmul.f32 %v333, %v3149
    %v3152 = vrot.slane %v2892, 1
    %v3153 = vrot.slane %v2893, 1
    %3154 = vrot.lane.b32.xlu0 %v3152, 32
    %v3155 = vpop.permute.xlu0 %3154
    %3156 = vrot.lane.b32.xlu0 %v3153, 32
    %v3157 = vpop.permute.xlu0 %3156
    %v3160 = vmul.f32 %v342, %v3155
    %v3161 = vmul.f32 %v347, %v3157
    %3164 = vrot.lane.b32.xlu0 %v3160, 96
    %v3165 = vpop.permute.xlu0 %3164
    %3166 = vrot.lane.b32.xlu0 %v3161, 96
    %v3167 = vpop.permute.xlu0 %3166
    %v3170 = vadd.f32 %v3150, %v3165
    %v3171 = vadd.f32 %v3151, %v3167
    %v3172 = vmul.f32 %v328, %v3136
    %v3173 = vmul.f32 %v333, %v3137
    %3174 = vrot.lane.b32.xlu0 %v3112, 96
    %v3175 = vpop.permute.xlu0 %3174
    %3176 = vrot.lane.b32.xlu0 %v3113, 96
    %v3177 = vpop.permute.xlu0 %3176
    %v3180 = vmul.f32 %v342, %v3175
    %v3181 = vmul.f32 %v347, %v3177
    %3184 = vrot.lane.b32.xlu0 %v3180, 32
    %v3185 = vpop.permute.xlu0 %3184
    %3186 = vrot.lane.b32.xlu0 %v3181, 32
    %v3187 = vpop.permute.xlu0 %3186
    %v3190 = vadd.f32 %v3172, %v3185
    %v3191 = vadd.f32 %v3173, %v3187
    %v3194 = vrot.slane %v3075, 7
    %v3195 = vsel %vm711, %v3194, %v3074
    %3196 = vrot.lane.b32.xlu0 %v3195, 32
    %v3197 = vpop.permute.xlu0 %3196
    %v3201 = vrot.slane %v3170, 5
    %v3202 = vrot.slane %v3171, 4
    %v3203 = vsel %vm711, %v3202, %v3201
    %3204 = vrot.lane.b32.xlu0 %v3203, 64
    %v3205 = vpop.permute.xlu0 %3204
    %v3207 = vsel %vm105, %v3197, %v3205
    %v3209 = vrot.slane %v3207, 1
    %v3210 = vsel %vm189, %v3209, 0
    %3212 = vmatprep.subr.mxu0 %v2592
    %3213 = vmatpush1.msra.mxu0 %v2591
    %3214 = vmatprep.subr.mxu0 %v2594
    %3215 = vmatpush1.msra.mxu0 %v2593
    %3216 = vmatprep.subr.mxu0 %v2596
    %3217 = vmatpush1.msra.mxu0 %v2595
    %3218 = vmatprep.subr.mxu0 %v2598
    %3219 = vmatpush1.msra.mxu0 %v2597
    %3220 = vmatprep.subr.mxu0 %v2600
    %3221 = vmatpush1.msra.mxu0 %v2599
    %3222 = vmatprep.subr.mxu0 %v2602
    %3223 = vmatpush1.msra.mxu0 %v2601
    %3224 = vmatprep.subr.mxu0 %v2604
    %3225 = vmatpush1.msra.mxu0 %v2603
    %3226 = vmatprep.subr.mxu0 %v2606
    %3227 = vmatpush1.msra.mxu0 %v2605
    %3228 = vmatprep.subr.mxu0 0.0
    %3229 = vmatpush1.msra.mxu0 0.0
    %3230 = vmatprep.subr.mxu0 0.0
    %3231 = vmatpush1.msra.mxu0 0.0
    %3232 = vmatprep.subr.mxu0 0.0
    %3233 = vmatpush1.msra.mxu0 0.0
    %3234 = vmatprep.subr.mxu0 0.0
    %3235 = vmatpush1.msra.mxu0 0.0
    %3236 = vmatprep.subr.mxu0 0.0
    %3237 = vmatpush1.msra.mxu0 0.0
    %3238 = vmatprep.subr.mxu0 0.0
    %3239 = vmatpush1.msra.mxu0 0.0
    %3240 = vmatprep.subr.mxu0 0.0
    %3241 = vmatpush1.msra.mxu0 0.0
    %3242 = vmatprep.subr.mxu0 0.0
    %3243 = vmatpush1.msra.mxu0 0.0
    %3244 = vmatprep.subr.mxu0 0.0
    %3245 = vmatpush1.msra.mxu0 0.0
    %3246 = vmatprep.subr.mxu0 0.0
    %3247 = vmatpush1.msra.mxu0 0.0
    %3248 = vmatprep.subr.mxu0 0.0
    %3249 = vmatpush1.msra.mxu0 0.0
    %3250 = vmatprep.subr.mxu0 0.0
    %3251 = vmatpush1.msra.mxu0 0.0
    %3252 = vmatprep.subr.mxu0 0.0
    %3253 = vmatpush1.msra.mxu0 0.0
    %3254 = vmatprep.subr.mxu0 0.0
    %3255 = vmatpush1.msra.mxu0 0.0
    %3256 = vmatprep.subr.mxu0 0.0
    %3257 = vmatpush1.msra.mxu0 0.0
    %3258 = vmatprep.subr.mxu0 0.0
    %3259 = vmatpush1.msra.mxu0 0.0
    %3260 = vmatprep.subr.mxu0 0.0
    %3261 = vmatpush1.msra.mxu0 0.0
    %3262 = vmatprep.subr.mxu0 0.0
    %3263 = vmatpush1.msra.mxu0 0.0
    %3264 = vmatprep.subr.mxu0 0.0
    %3265 = vmatpush1.msra.mxu0 0.0
    %3266 = vmatprep.subr.mxu0 0.0
    %3267 = vmatpush1.msra.mxu0 0.0
    %3268 = vmatprep.subr.mxu0 0.0
    %3269 = vmatpush1.msra.mxu0 0.0
    %3270 = vmatprep.subr.mxu0 0.0
    %3271 = vmatpush1.msra.mxu0 0.0
    %3272 = vmatprep.subr.mxu0 0.0
    %3273 = vmatpush1.msra.mxu0 0.0
    %3274 = vmatprep.subr.mxu0 0.0
    %3275 = vmatpush1.msra.mxu0 0.0
    %3276 = vmatprep.mubr.f32.mxu0 0.0
    %3277 = vmatmul.mubr.f32.gmra.mrb[0].mxu0 %v3210
    %v3278 = vpop.f32.mrb[0].mxu0
    %v3279 = vadd.f32 0.0, %v3278
    %v3280 = vpop.f32.mrb[0].mxu0
    %v3281 = vadd.f32 0.0, %v3280
    %3282 = vdwg.mxu0
    %v3284 = vrot.slane %v3279, 6
    %v3285 = vrot.slane %v3279, 7
    %v3288 = vadd.f32 %v2692, %v3284
    %v3289 = vadd.f32 %v2698, %v3285
    %v3291 = vrot.slane %v3281, 3
    %v3292 = vrot.slane %v3281, 4
    %v3295 = vadd.f32 %v2694, %v3291
    %v3296 = vadd.f32 %v2700, %v3292
    %v3297 = vxor.u32 %v3288, 2147483648
    %v3298 = vxor.u32 %v3289, 2147483648
    %v3299 = vmul.f32 %v3297, 1.442695
    %v3300 = vpow.pop %v3299
    %v3301 = vmul.f32 %v3298, 1.442695
    %v3302 = vpow.pop %v3301
    %v3303 = vadd.f32 %v3300, 1.0
    %v3304 = vadd.f32 %v3302, 1.0
    %v3305 = vrcp.pop %v3303
    %v3306 = vmul.f32 1.0, %v3305
    %v3307 = vrcp.pop %v3304
    %v3308 = vmul.f32 1.0, %v3307
    %v3309 = vtanh.pop %v3288
    %v3310 = vtanh.pop %v3289
    %v3313 = vrot.slane %v3094, 7
    %v3314 = vrot.slane %v3095, 7
    %v3317 = vmul.f32 %v3306, %v3313
    %v3318 = vmul.f32 %v3308, %v3314
    %3321 = vrot.lane.b32.xlu0 %v3309, 64
    %v3322 = vpop.permute.xlu0 %3321
    %3323 = vrot.lane.b32.xlu0 %v3310, 64
    %v3324 = vpop.permute.xlu0 %3323
    %v3327 = vmul.f32 %v3306, %v3322
    %v3328 = vmul.f32 %v3308, %v3324
    %3331 = vrot.lane.b32.xlu0 %v3327, 32
    %v3332 = vpop.permute.xlu0 %3331
    %3333 = vrot.lane.b32.xlu0 %v3328, 32
    %v3334 = vpop.permute.xlu0 %3333
    %v3337 = vadd.f32 %v3317, %v3332
    %v3338 = vadd.f32 %v3318, %v3334
    %v3339 = vtanh.pop %v3337
    %v3340 = vtanh.pop %v3338
    %3343 = vrot.lane.b32.xlu0 %v3339, 64
    %v3344 = vpop.permute.xlu0 %3343
    %3345 = vrot.lane.b32.xlu0 %v3340, 64
    %v3346 = vpop.permute.xlu0 %3345
    %v3349 = vmul.f32 %v3306, %v3344
    %v3350 = vmul.f32 %v3308, %v3346
    %v3351 = vmul.f32 %v328, %v3349
    %v3352 = vmul.f32 %v333, %v3350
    %v3353 = vrot.slane %v3074, 7
    %3354 = vrot.lane.b32.xlu0 %v3353, 32
    %v3355 = vpop.permute.xlu0 %3354
    %3356 = vrot.lane.b32.xlu0 %v3194, 32
    %v3357 = vpop.permute.xlu0 %3356
    %v3360 = vmul.f32 %v342, %v3355
    %v3361 = vmul.f32 %v347, %v3357
    %3364 = vrot.lane.b32.xlu0 %v3360, 96
    %v3365 = vpop.permute.xlu0 %3364
    %3366 = vrot.lane.b32.xlu0 %v3361, 96
    %v3367 = vpop.permute.xlu0 %3366
    %v3370 = vadd.f32 %v3351, %v3365
    %v3371 = vadd.f32 %v3352, %v3367
    %v3372 = vmul.f32 %v328, %v3337
    %v3373 = vmul.f32 %v333, %v3338
    %3374 = vrot.lane.b32.xlu0 %v3313, 96
    %v3375 = vpop.permute.xlu0 %3374
    %3376 = vrot.lane.b32.xlu0 %v3314, 96
    %v3377 = vpop.permute.xlu0 %3376
    %v3380 = vmul.f32 %v342, %v3375
    %v3381 = vmul.f32 %v347, %v3377
    %3384 = vrot.lane.b32.xlu0 %v3380, 32
    %v3385 = vpop.permute.xlu0 %3384
    %3386 = vrot.lane.b32.xlu0 %v3381, 32
    %v3387 = vpop.permute.xlu0 %3386
    %v3390 = vadd.f32 %v3372, %v3385
    %v3391 = vadd.f32 %v3373, %v3387
    %v3392 = vxor.u32 %v3295, 2147483648
    %v3393 = vxor.u32 %v3296, 2147483648
    %v3394 = vmul.f32 %v3392, 1.442695
    %v3395 = vpow.pop %v3394
    %v3396 = vmul.f32 %v3393, 1.442695
    %v3397 = vpow.pop %v3396
    %v3398 = vadd.f32 %v3395, 1.0
    %v3399 = vadd.f32 %v3397, 1.0
    %v3400 = vrcp.pop %v3398
    %v3401 = vmul.f32 1.0, %v3400
    %v3402 = vrcp.pop %v3399
    %v3403 = vmul.f32 1.0, %v3402
    %v3404 = vtanh.pop %v3295
    %v3405 = vtanh.pop %v3296
    %v3408 = vrot.slane %v3190, 1
    %v3409 = vrot.slane %v3191, 1
    %v3412 = vmul.f32 %v3401, %v3408
    %v3413 = vmul.f32 %v3403, %v3409
    %3416 = vrot.lane.b32.xlu0 %v3404, 64
    %v3417 = vpop.permute.xlu0 %3416
    %3418 = vrot.lane.b32.xlu0 %v3405, 64
    %v3419 = vpop.permute.xlu0 %3418
    %v3422 = vmul.f32 %v3401, %v3417
    %v3423 = vmul.f32 %v3403, %v3419
    %3426 = vrot.lane.b32.xlu0 %v3422, 32
    %v3427 = vpop.permute.xlu0 %3426
    %3428 = vrot.lane.b32.xlu0 %v3423, 32
    %v3429 = vpop.permute.xlu0 %3428
    %v3432 = vadd.f32 %v3412, %v3427
    %v3433 = vadd.f32 %v3413, %v3429
    %v3434 = vtanh.pop %v3432
    %v3435 = vtanh.pop %v3433
    %3438 = vrot.lane.b32.xlu0 %v3434, 64
    %v3439 = vpop.permute.xlu0 %3438
    %3440 = vrot.lane.b32.xlu0 %v3435, 64
    %v3441 = vpop.permute.xlu0 %3440
    %v3444 = vmul.f32 %v3401, %v3439
    %v3445 = vmul.f32 %v3403, %v3441
    %v3446 = vmul.f32 %v328, %v3444
    %v3447 = vmul.f32 %v333, %v3445
    %v3448 = vrot.slane %v3170, 1
    %v3449 = vrot.slane %v3171, 1
    %3450 = vrot.lane.b32.xlu0 %v3448, 32
    %v3451 = vpop.permute.xlu0 %3450
    %3452 = vrot.lane.b32.xlu0 %v3449, 32
    %v3453 = vpop.permute.xlu0 %3452
    %v3456 = vmul.f32 %v342, %v3451
    %v3457 = vmul.f32 %v347, %v3453
    %3460 = vrot.lane.b32.xlu0 %v3456, 96
    %v3461 = vpop.permute.xlu0 %3460
    %3462 = vrot.lane.b32.xlu0 %v3457, 96
    %v3463 = vpop.permute.xlu0 %3462
    %v3466 = vadd.f32 %v3446, %v3461
    %v3467 = vadd.f32 %v3447, %v3463
    %v3468 = vmul.f32 %v328, %v3432
    %v3469 = vmul.f32 %v333, %v3433
    %3470 = vrot.lane.b32.xlu0 %v3408, 96
    %v3471 = vpop.permute.xlu0 %3470
    %3472 = vrot.lane.b32.xlu0 %v3409, 96
    %v3473 = vpop.permute.xlu0 %3472
    %v3476 = vmul.f32 %v342, %v3471
    %v3477 = vmul.f32 %v347, %v3473
    %3480 = vrot.lane.b32.xlu0 %v3476, 32
    %v3481 = vpop.permute.xlu0 %3480
    %3482 = vrot.lane.b32.xlu0 %v3477, 32
    %v3483 = vpop.permute.xlu0 %3482
    %v3486 = vadd.f32 %v3468, %v3481
    %v3487 = vadd.f32 %v3469, %v3483
    %v3490 = vrot.slane %v3371, 7
    %v3491 = vsel %vm1008, %v3490, %v3370
    %3492 = vrot.lane.b32.xlu0 %v3491, 32
    %v3493 = vpop.permute.xlu0 %3492
    %v3497 = vrot.slane %v3466, 3
    %v3498 = vrot.slane %v3467, 2
    %v3499 = vsel %vm1008, %v3498, %v3497
    %3500 = vrot.lane.b32.xlu0 %v3499, 64
    %v3501 = vpop.permute.xlu0 %3500
    %v3503 = vsel %vm105, %v3493, %v3501
    %v3505 = vrot.slane %v3503, 2
    %v3506 = vsel %vm189, %v3505, 0
    %3508 = vmatprep.subr.mxu0 %v2592
    %3509 = vmatpush1.msra.mxu0 %v2591
    %3510 = vmatprep.subr.mxu0 %v2594
    %3511 = vmatpush1.msra.mxu0 %v2593
    %3512 = vmatprep.subr.mxu0 %v2596
    %3513 = vmatpush1.msra.mxu0 %v2595
    %3514 = vmatprep.subr.mxu0 %v2598
    %3515 = vmatpush1.msra.mxu0 %v2597
    %3516 = vmatprep.subr.mxu0 %v2600
    %3517 = vmatpush1.msra.mxu0 %v2599
    %3518 = vmatprep.subr.mxu0 %v2602
    %3519 = vmatpush1.msra.mxu0 %v2601
    %3520 = vmatprep.subr.mxu0 %v2604
    %3521 = vmatpush1.msra.mxu0 %v2603
    %3522 = vmatprep.subr.mxu0 %v2606
    %3523 = vmatpush1.msra.mxu0 %v2605
    %3524 = vmatprep.subr.mxu0 0.0
    %3525 = vmatpush1.msra.mxu0 0.0
    %3526 = vmatprep.subr.mxu0 0.0
    %3527 = vmatpush1.msra.mxu0 0.0
    %3528 = vmatprep.subr.mxu0 0.0
    %3529 = vmatpush1.msra.mxu0 0.0
    %3530 = vmatprep.subr.mxu0 0.0
    %3531 = vmatpush1.msra.mxu0 0.0
    %3532 = vmatprep.subr.mxu0 0.0
    %3533 = vmatpush1.msra.mxu0 0.0
    %3534 = vmatprep.subr.mxu0 0.0
    %3535 = vmatpush1.msra.mxu0 0.0
    %3536 = vmatprep.subr.mxu0 0.0
    %3537 = vmatpush1.msra.mxu0 0.0
    %3538 = vmatprep.subr.mxu0 0.0
    %3539 = vmatpush1.msra.mxu0 0.0
    %3540 = vmatprep.subr.mxu0 0.0
    %3541 = vmatpush1.msra.mxu0 0.0
    %3542 = vmatprep.subr.mxu0 0.0
    %3543 = vmatpush1.msra.mxu0 0.0
    %3544 = vmatprep.subr.mxu0 0.0
    %3545 = vmatpush1.msra.mxu0 0.0
    %3546 = vmatprep.subr.mxu0 0.0
    %3547 = vmatpush1.msra.mxu0 0.0
    %3548 = vmatprep.subr.mxu0 0.0
    %3549 = vmatpush1.msra.mxu0 0.0
    %3550 = vmatprep.subr.mxu0 0.0
    %3551 = vmatpush1.msra.mxu0 0.0
    %3552 = vmatprep.subr.mxu0 0.0
    %3553 = vmatpush1.msra.mxu0 0.0
    %3554 = vmatprep.subr.mxu0 0.0
    %3555 = vmatpush1.msra.mxu0 0.0
    %3556 = vmatprep.subr.mxu0 0.0
    %3557 = vmatpush1.msra.mxu0 0.0
    %3558 = vmatprep.subr.mxu0 0.0
    %3559 = vmatpush1.msra.mxu0 0.0
    %3560 = vmatprep.subr.mxu0 0.0
    %3561 = vmatpush1.msra.mxu0 0.0
    %3562 = vmatprep.subr.mxu0 0.0
    %3563 = vmatpush1.msra.mxu0 0.0
    %3564 = vmatprep.subr.mxu0 0.0
    %3565 = vmatpush1.msra.mxu0 0.0
    %3566 = vmatprep.subr.mxu0 0.0
    %3567 = vmatpush1.msra.mxu0 0.0
    %3568 = vmatprep.subr.mxu0 0.0
    %3569 = vmatpush1.msra.mxu0 0.0
    %3570 = vmatprep.subr.mxu0 0.0
    %3571 = vmatpush1.msra.mxu0 0.0
    %3572 = vmatprep.mubr.f32.mxu0 0.0
    %3573 = vmatmul.mubr.f32.gmra.mrb[0].mxu0 %v3506
    %v3574 = vpop.f32.mrb[0].mxu0
    %v3575 = vadd.f32 0.0, %v3574
    %v3576 = vpop.f32.mrb[0].mxu0
    %v3577 = vadd.f32 0.0, %v3576
    %3578 = vdwg.mxu0
    %v3580 = vrot.slane %v3575, 5
    %v3581 = vrot.slane %v3575, 6
    %v3584 = vadd.f32 %v2692, %v3580
    %v3585 = vadd.f32 %v2698, %v3581
    %v3587 = vrot.slane %v3577, 4
    %v3588 = vrot.slane %v3577, 5
    %v3591 = vadd.f32 %v2694, %v3587
    %v3592 = vadd.f32 %v2700, %v3588
    %v3593 = vxor.u32 %v3584, 2147483648
    %v3594 = vxor.u32 %v3585, 2147483648
    %v3595 = vmul.f32 %v3593, 1.442695
    %v3596 = vpow.pop %v3595
    %v3597 = vmul.f32 %v3594, 1.442695
    %v3598 = vpow.pop %v3597
    %v3599 = vadd.f32 %v3596, 1.0
    %v3600 = vadd.f32 %v3598, 1.0
    %v3601 = vrcp.pop %v3599
    %v3602 = vmul.f32 1.0, %v3601
    %v3603 = vrcp.pop %v3600
    %v3604 = vmul.f32 1.0, %v3603
    %v3605 = vtanh.pop %v3584
    %v3606 = vtanh.pop %v3585
    %v3609 = vrot.slane %v3390, 7
    %v3610 = vrot.slane %v3391, 7
    %v3613 = vmul.f32 %v3602, %v3609
    %v3614 = vmul.f32 %v3604, %v3610
    %3617 = vrot.lane.b32.xlu0 %v3605, 64
    %v3618 = vpop.permute.xlu0 %3617
    %3619 = vrot.lane.b32.xlu0 %v3606, 64
    %v3620 = vpop.permute.xlu0 %3619
    %v3623 = vmul.f32 %v3602, %v3618
    %v3624 = vmul.f32 %v3604, %v3620
    %3627 = vrot.lane.b32.xlu0 %v3623, 32
    %v3628 = vpop.permute.xlu0 %3627
    %3629 = vrot.lane.b32.xlu0 %v3624, 32
    %v3630 = vpop.permute.xlu0 %3629
    %v3633 = vadd.f32 %v3613, %v3628
    %v3634 = vadd.f32 %v3614, %v3630
    %v3635 = vtanh.pop %v3633
    %v3636 = vtanh.pop %v3634
    %3639 = vrot.lane.b32.xlu0 %v3635, 64
    %v3640 = vpop.permute.xlu0 %3639
    %3641 = vrot.lane.b32.xlu0 %v3636, 64
    %v3642 = vpop.permute.xlu0 %3641
    %v3645 = vmul.f32 %v3602, %v3640
    %v3646 = vmul.f32 %v3604, %v3642
    %v3647 = vmul.f32 %v328, %v3645
    %v3648 = vmul.f32 %v333, %v3646
    %v3649 = vrot.slane %v3370, 7
    %3650 = vrot.lane.b32.xlu0 %v3649, 32
    %v3651 = vpop.permute.xlu0 %3650
    %3652 = vrot.lane.b32.xlu0 %v3490, 32
    %v3653 = vpop.permute.xlu0 %3652
    %v3656 = vmul.f32 %v342, %v3651
    %v3657 = vmul.f32 %v347, %v3653
    %3660 = vrot.lane.b32.xlu0 %v3656, 96
    %v3661 = vpop.permute.xlu0 %3660
    %3662 = vrot.lane.b32.xlu0 %v3657, 96
    %v3663 = vpop.permute.xlu0 %3662
    %v3666 = vadd.f32 %v3647, %v3661
    %v3667 = vadd.f32 %v3648, %v3663
    %v3668 = vmul.f32 %v328, %v3633
    %v3669 = vmul.f32 %v333, %v3634
    %3670 = vrot.lane.b32.xlu0 %v3609, 96
    %v3671 = vpop.permute.xlu0 %3670
    %3672 = vrot.lane.b32.xlu0 %v3610, 96
    %v3673 = vpop.permute.xlu0 %3672
    %v3676 = vmul.f32 %v342, %v3671
    %v3677 = vmul.f32 %v347, %v3673
    %3680 = vrot.lane.b32.xlu0 %v3676, 32
    %v3681 = vpop.permute.xlu0 %3680
    %3682 = vrot.lane.b32.xlu0 %v3677, 32
    %v3683 = vpop.permute.xlu0 %3682
    %v3686 = vadd.f32 %v3668, %v3681
    %v3687 = vadd.f32 %v3669, %v3683
    %v3688 = vxor.u32 %v3591, 2147483648
    %v3689 = vxor.u32 %v3592, 2147483648
    %v3690 = vmul.f32 %v3688, 1.442695
    %v3691 = vpow.pop %v3690
    %v3692 = vmul.f32 %v3689, 1.442695
    %v3693 = vpow.pop %v3692
    %v3694 = vadd.f32 %v3691, 1.0
    %v3695 = vadd.f32 %v3693, 1.0
    %v3696 = vrcp.pop %v3694
    %v3697 = vmul.f32 1.0, %v3696
    %v3698 = vrcp.pop %v3695
    %v3699 = vmul.f32 1.0, %v3698
    %v3700 = vtanh.pop %v3591
    %v3701 = vtanh.pop %v3592
    %v3704 = vrot.slane %v3486, 1
    %v3705 = vrot.slane %v3487, 1
    %v3708 = vmul.f32 %v3697, %v3704
    %v3709 = vmul.f32 %v3699, %v3705
    %3712 = vrot.lane.b32.xlu0 %v3700, 64
    %v3713 = vpop.permute.xlu0 %3712
    %3714 = vrot.lane.b32.xlu0 %v3701, 64
    %v3715 = vpop.permute.xlu0 %3714
    %v3718 = vmul.f32 %v3697, %v3713
    %v3719 = vmul.f32 %v3699, %v3715
    %3722 = vrot.lane.b32.xlu0 %v3718, 32
    %v3723 = vpop.permute.xlu0 %3722
    %3724 = vrot.lane.b32.xlu0 %v3719, 32
    %v3725 = vpop.permute.xlu0 %3724
    %v3728 = vadd.f32 %v3708, %v3723
    %v3729 = vadd.f32 %v3709, %v3725
    %v3730 = vtanh.pop %v3728
    %v3731 = vtanh.pop %v3729
    %3734 = vrot.lane.b32.xlu0 %v3730, 64
    %v3735 = vpop.permute.xlu0 %3734
    %3736 = vrot.lane.b32.xlu0 %v3731, 64
    %v3737 = vpop.permute.xlu0 %3736
    %v3740 = vmul.f32 %v3697, %v3735
    %v3741 = vmul.f32 %v3699, %v3737
    %v3742 = vmul.f32 %v328, %v3740
    %v3743 = vmul.f32 %v333, %v3741
    %v3744 = vrot.slane %v3466, 1
    %v3745 = vrot.slane %v3467, 1
    %3746 = vrot.lane.b32.xlu0 %v3744, 32
    %v3747 = vpop.permute.xlu0 %3746
    %3748 = vrot.lane.b32.xlu0 %v3745, 32
    %v3749 = vpop.permute.xlu0 %3748
    %v3752 = vmul.f32 %v342, %v3747
    %v3753 = vmul.f32 %v347, %v3749
    %3756 = vrot.lane.b32.xlu0 %v3752, 96
    %v3757 = vpop.permute.xlu0 %3756
    %3758 = vrot.lane.b32.xlu0 %v3753, 96
    %v3759 = vpop.permute.xlu0 %3758
    %v3762 = vadd.f32 %v3742, %v3757
    %v3763 = vadd.f32 %v3743, %v3759
    %v3764 = vmul.f32 %v328, %v3728
    %v3765 = vmul.f32 %v333, %v3729
    %3766 = vrot.lane.b32.xlu0 %v3704, 96
    %v3767 = vpop.permute.xlu0 %3766
    %3768 = vrot.lane.b32.xlu0 %v3705, 96
    %v3769 = vpop.permute.xlu0 %3768
    %v3772 = vmul.f32 %v342, %v3767
    %v3773 = vmul.f32 %v347, %v3769
    %3776 = vrot.lane.b32.xlu0 %v3772, 32
    %v3777 = vpop.permute.xlu0 %3776
    %3778 = vrot.lane.b32.xlu0 %v3773, 32
    %v3779 = vpop.permute.xlu0 %3778
    %v3782 = vadd.f32 %v3764, %v3777
    %v3783 = vadd.f32 %v3765, %v3779
    %v3786 = vrot.slane %v3667, 7
    %v3787 = vsel %vm1305, %v3786, %v3666
    %3788 = vrot.lane.b32.xlu0 %v3787, 32
    %v3789 = vpop.permute.xlu0 %3788
    %v3793 = vrot.slane %v3762, 1
    %v3794 = vsel %vm1305, %v3763, %v3793
    %3795 = vrot.lane.b32.xlu0 %v3794, 64
    %v3796 = vpop.permute.xlu0 %3795
    %v3798 = vsel %vm105, %v3789, %v3796
    %v3800 = vrot.slane %v3798, 3
    %v3801 = vsel %vm189, %v3800, 0
    %3803 = vmatprep.subr.mxu0 %v2592
    %3804 = vmatpush1.msra.mxu0 %v2591
    %3805 = vmatprep.subr.mxu0 %v2594
    %3806 = vmatpush1.msra.mxu0 %v2593
    %3807 = vmatprep.subr.mxu0 %v2596
    %3808 = vmatpush1.msra.mxu0 %v2595
    %3809 = vmatprep.subr.mxu0 %v2598
    %3810 = vmatpush1.msra.mxu0 %v2597
    %3811 = vmatprep.subr.mxu0 %v2600
    %3812 = vmatpush1.msra.mxu0 %v2599
    %3813 = vmatprep.subr.mxu0 %v2602
    %3814 = vmatpush1.msra.mxu0 %v2601
    %3815 = vmatprep.subr.mxu0 %v2604
    %3816 = vmatpush1.msra.mxu0 %v2603
    %3817 = vmatprep.subr.mxu0 %v2606
    %3818 = vmatpush1.msra.mxu0 %v2605
    %3819 = vmatprep.subr.mxu0 0.0
    %3820 = vmatpush1.msra.mxu0 0.0
    %3821 = vmatprep.subr.mxu0 0.0
    %3822 = vmatpush1.msra.mxu0 0.0
    %3823 = vmatprep.subr.mxu0 0.0
    %3824 = vmatpush1.msra.mxu0 0.0
    %3825 = vmatprep.subr.mxu0 0.0
    %3826 = vmatpush1.msra.mxu0 0.0
    %3827 = vmatprep.subr.mxu0 0.0
    %3828 = vmatpush1.msra.mxu0 0.0
    %3829 = vmatprep.subr.mxu0 0.0
    %3830 = vmatpush1.msra.mxu0 0.0
    %3831 = vmatprep.subr.mxu0 0.0
    %3832 = vmatpush1.msra.mxu0 0.0
    %3833 = vmatprep.subr.mxu0 0.0
    %3834 = vmatpush1.msra.mxu0 0.0
    %3835 = vmatprep.subr.mxu0 0.0
    %3836 = vmatpush1.msra.mxu0 0.0
    %3837 = vmatprep.subr.mxu0 0.0
    %3838 = vmatpush1.msra.mxu0 0.0
    %3839 = vmatprep.subr.mxu0 0.0
    %3840 = vmatpush1.msra.mxu0 0.0
    %3841 = vmatprep.subr.mxu0 0.0
    %3842 = vmatpush1.msra.mxu0 0.0
    %3843 = vmatprep.subr.mxu0 0.0
    %3844 = vmatpush1.msra.mxu0 0.0
    %3845 = vmatprep.subr.mxu0 0.0
    %3846 = vmatpush1.msra.mxu0 0.0
    %3847 = vmatprep.subr.mxu0 0.0
    %3848 = vmatpush1.msra.mxu0 0.0
    %3849 = vmatprep.subr.mxu0 0.0
    %3850 = vmatpush1.msra.mxu0 0.0
    %3851 = vmatprep.subr.mxu0 0.0
    %3852 = vmatpush1.msra.mxu0 0.0
    %3853 = vmatprep.subr.mxu0 0.0
    %3854 = vmatpush1.msra.mxu0 0.0
    %3855 = vmatprep.subr.mxu0 0.0
    %3856 = vmatpush1.msra.mxu0 0.0
    %3857 = vmatprep.subr.mxu0 0.0
    %3858 = vmatpush1.msra.mxu0 0.0
    %3859 = vmatprep.subr.mxu0 0.0
    %3860 = vmatpush1.msra.mxu0 0.0
    %3861 = vmatprep.subr.mxu0 0.0
    %3862 = vmatpush1.msra.mxu0 0.0
    %3863 = vmatprep.subr.mxu0 0.0
    %3864 = vmatpush1.msra.mxu0 0.0
    %3865 = vmatprep.subr.mxu0 0.0
    %3866 = vmatpush1.msra.mxu0 0.0
    %3867 = vmatprep.mubr.f32.mxu0 0.0
    %3868 = vmatmul.mubr.f32.gmra.mrb[0].mxu0 %v3801
    %v3869 = vpop.f32.mrb[0].mxu0
    %v3870 = vadd.f32 0.0, %v3869
    %v3871 = vpop.f32.mrb[0].mxu0
    %v3872 = vadd.f32 0.0, %v3871
    %3873 = vdwg.mxu0
    %v3875 = vrot.slane %v3870, 4
    %v3876 = vrot.slane %v3870, 5
    %v3879 = vadd.f32 %v2692, %v3875
    %v3880 = vadd.f32 %v2698, %v3876
    %v3882 = vrot.slane %v3872, 5
    %v3883 = vrot.slane %v3872, 6
    %v3886 = vadd.f32 %v2694, %v3882
    %v3887 = vadd.f32 %v2700, %v3883
    %v3888 = vxor.u32 %v3879, 2147483648
    %v3889 = vxor.u32 %v3880, 2147483648
    %v3890 = vmul.f32 %v3888, 1.442695
    %v3891 = vpow.pop %v3890
    %v3892 = vmul.f32 %v3889, 1.442695
    %v3893 = vpow.pop %v3892
    %v3894 = vadd.f32 %v3891, 1.0
    %v3895 = vadd.f32 %v3893, 1.0
    %v3896 = vrcp.pop %v3894
    %v3897 = vmul.f32 1.0, %v3896
    %v3898 = vrcp.pop %v3895
    %v3899 = vmul.f32 1.0, %v3898
    %v3900 = vtanh.pop %v3879
    %v3901 = vtanh.pop %v3880
    %v3904 = vrot.slane %v3686, 7
    %v3905 = vrot.slane %v3687, 7
    %v3908 = vmul.f32 %v3897, %v3904
    %v3909 = vmul.f32 %v3899, %v3905
    %3912 = vrot.lane.b32.xlu0 %v3900, 64
    %v3913 = vpop.permute.xlu0 %3912
    %3914 = vrot.lane.b32.xlu0 %v3901, 64
    %v3915 = vpop.permute.xlu0 %3914
    %v3918 = vmul.f32 %v3897, %v3913
    %v3919 = vmul.f32 %v3899, %v3915
    %3922 = vrot.lane.b32.xlu0 %v3918, 32
    %v3923 = vpop.permute.xlu0 %3922
    %3924 = vrot.lane.b32.xlu0 %v3919, 32
    %v3925 = vpop.permute.xlu0 %3924
    %v3928 = vadd.f32 %v3908, %v3923
    %v3929 = vadd.f32 %v3909, %v3925
    %v3930 = vtanh.pop %v3928
    %v3931 = vtanh.pop %v3929
    %3934 = vrot.lane.b32.xlu0 %v3930, 64
    %v3935 = vpop.permute.xlu0 %3934
    %3936 = vrot.lane.b32.xlu0 %v3931, 64
    %v3937 = vpop.permute.xlu0 %3936
    %v3940 = vmul.f32 %v3897, %v3935
    %v3941 = vmul.f32 %v3899, %v3937
    %v3942 = vmul.f32 %v328, %v3940
    %v3943 = vmul.f32 %v333, %v3941
    %v3944 = vrot.slane %v3666, 7
    %3945 = vrot.lane.b32.xlu0 %v3944, 32
    %v3946 = vpop.permute.xlu0 %3945
    %3947 = vrot.lane.b32.xlu0 %v3786, 32
    %v3948 = vpop.permute.xlu0 %3947
    %v3951 = vmul.f32 %v342, %v3946
    %v3952 = vmul.f32 %v347, %v3948
    %3955 = vrot.lane.b32.xlu0 %v3951, 96
    %v3956 = vpop.permute.xlu0 %3955
    %3957 = vrot.lane.b32.xlu0 %v3952, 96
    %v3958 = vpop.permute.xlu0 %3957
    %v3961 = vadd.f32 %v3942, %v3956
    %v3962 = vadd.f32 %v3943, %v3958
    %v3963 = vmul.f32 %v328, %v3928
    %v3964 = vmul.f32 %v333, %v3929
    %3965 = vrot.lane.b32.xlu0 %v3904, 96
    %v3966 = vpop.permute.xlu0 %3965
    %3967 = vrot.lane.b32.xlu0 %v3905, 96
    %v3968 = vpop.permute.xlu0 %3967
    %v3971 = vmul.f32 %v342, %v3966
    %v3972 = vmul.f32 %v347, %v3968
    %3975 = vrot.lane.b32.xlu0 %v3971, 32
    %v3976 = vpop.permute.xlu0 %3975
    %3977 = vrot.lane.b32.xlu0 %v3972, 32
    %v3978 = vpop.permute.xlu0 %3977
    %v3981 = vadd.f32 %v3963, %v3976
    %v3982 = vadd.f32 %v3964, %v3978
    %v3983 = vxor.u32 %v3886, 2147483648
    %v3984 = vxor.u32 %v3887, 2147483648
    %v3985 = vmul.f32 %v3983, 1.442695
    %v3986 = vpow.pop %v3985
    %v3987 = vmul.f32 %v3984, 1.442695
    %v3988 = vpow.pop %v3987
    %v3989 = vadd.f32 %v3986, 1.0
    %v3990 = vadd.f32 %v3988, 1.0
    %v3991 = vrcp.pop %v3989
    %v3992 = vmul.f32 1.0, %v3991
    %v3993 = vrcp.pop %v3990
    %v3994 = vmul.f32 1.0, %v3993
    %v3995 = vtanh.pop %v3886
    %v3996 = vtanh.pop %v3887
    %v3999 = vrot.slane %v3782, 1
    %v4000 = vrot.slane %v3783, 1
    %v4003 = vmul.f32 %v3992, %v3999
    %v4004 = vmul.f32 %v3994, %v4000
    %4007 = vrot.lane.b32.xlu0 %v3995, 64
    %v4008 = vpop.permute.xlu0 %4007
    %4009 = vrot.lane.b32.xlu0 %v3996, 64
    %v4010 = vpop.permute.xlu0 %4009
    %v4013 = vmul.f32 %v3992, %v4008
    %v4014 = vmul.f32 %v3994, %v4010
    %4017 = vrot.lane.b32.xlu0 %v4013, 32
    %v4018 = vpop.permute.xlu0 %4017
    %4019 = vrot.lane.b32.xlu0 %v4014, 32
    %v4020 = vpop.permute.xlu0 %4019
    %v4023 = vadd.f32 %v4003, %v4018
    %v4024 = vadd.f32 %v4004, %v4020
    %v4025 = vtanh.pop %v4023
    %v4026 = vtanh.pop %v4024
    %4029 = vrot.lane.b32.xlu0 %v4025, 64
    %v4030 = vpop.permute.xlu0 %4029
    %4031 = vrot.lane.b32.xlu0 %v4026, 64
    %v4032 = vpop.permute.xlu0 %4031
    %v4035 = vmul.f32 %v3992, %v4030
    %v4036 = vmul.f32 %v3994, %v4032
    %v4037 = vmul.f32 %v328, %v4035
    %v4038 = vmul.f32 %v333, %v4036
    %v4039 = vrot.slane %v3763, 1
    %4040 = vrot.lane.b32.xlu0 %v3793, 32
    %v4041 = vpop.permute.xlu0 %4040
    %4042 = vrot.lane.b32.xlu0 %v4039, 32
    %v4043 = vpop.permute.xlu0 %4042
    %v4046 = vmul.f32 %v342, %v4041
    %v4047 = vmul.f32 %v347, %v4043
    %4050 = vrot.lane.b32.xlu0 %v4046, 96
    %v4051 = vpop.permute.xlu0 %4050
    %4052 = vrot.lane.b32.xlu0 %v4047, 96
    %v4053 = vpop.permute.xlu0 %4052
    %v4056 = vadd.f32 %v4037, %v4051
    %v4057 = vadd.f32 %v4038, %v4053
    %v4058 = vmul.f32 %v328, %v4023
    %v4059 = vmul.f32 %v333, %v4024
    %4060 = vrot.lane.b32.xlu0 %v3999, 96
    %v4061 = vpop.permute.xlu0 %4060
    %4062 = vrot.lane.b32.xlu0 %v4000, 96
    %v4063 = vpop.permute.xlu0 %4062
    %v4066 = vmul.f32 %v342, %v4061
    %v4067 = vmul.f32 %v347, %v4063
    %4070 = vrot.lane.b32.xlu0 %v4066, 32
    %v4071 = vpop.permute.xlu0 %4070
    %4072 = vrot.lane.b32.xlu0 %v4067, 32
    %v4073 = vpop.permute.xlu0 %4072
    %v4076 = vadd.f32 %v4058, %v4071
    %v4077 = vadd.f32 %v4059, %v4073
    %v4080 = vrot.slane %v3962, 7
    %v4081 = vsel %vm1600, %v4080, %v3961
    %4082 = vrot.lane.b32.xlu0 %v4081, 32
    %v4083 = vpop.permute.xlu0 %4082
    %v4087 = vrot.slane %v4056, 7
    %v4088 = vrot.slane %v4057, 6
    %v4089 = vsel %vm1600, %v4088, %v4087
    %4090 = vrot.lane.b32.xlu0 %v4089, 64
    %v4091 = vpop.permute.xlu0 %4090
    %v4093 = vsel %vm105, %v4083, %v4091
    %v4095 = vrot.slane %v4093, 4
    %v4096 = vsel %vm189, %v4095, 0
    %4098 = vmatprep.subr.mxu0 %v2592
    %4099 = vmatpush1.msra.mxu0 %v2591
    %4100 = vmatprep.subr.mxu0 %v2594
    %4101 = vmatpush1.msra.mxu0 %v2593
    %4102 = vmatprep.subr.mxu0 %v2596
    %4103 = vmatpush1.msra.mxu0 %v2595
    %4104 = vmatprep.subr.mxu0 %v2598
    %4105 = vmatpush1.msra.mxu0 %v2597
    %4106 = vmatprep.subr.mxu0 %v2600
    %4107 = vmatpush1.msra.mxu0 %v2599
    %4108 = vmatprep.subr.mxu0 %v2602
    %4109 = vmatpush1.msra.mxu0 %v2601
    %4110 = vmatprep.subr.mxu0 %v2604
    %4111 = vmatpush1.msra.mxu0 %v2603
    %4112 = vmatprep.subr.mxu0 %v2606
    %4113 = vmatpush1.msra.mxu0 %v2605
    %4114 = vmatprep.subr.mxu0 0.0
    %4115 = vmatpush1.msra.mxu0 0.0
    %4116 = vmatprep.subr.mxu0 0.0
    %4117 = vmatpush1.msra.mxu0 0.0
    %4118 = vmatprep.subr.mxu0 0.0
    %4119 = vmatpush1.msra.mxu0 0.0
    %4120 = vmatprep.subr.mxu0 0.0
    %4121 = vmatpush1.msra.mxu0 0.0
    %4122 = vmatprep.subr.mxu0 0.0
    %4123 = vmatpush1.msra.mxu0 0.0
    %4124 = vmatprep.subr.mxu0 0.0
    %4125 = vmatpush1.msra.mxu0 0.0
    %4126 = vmatprep.subr.mxu0 0.0
    %4127 = vmatpush1.msra.mxu0 0.0
    %4128 = vmatprep.subr.mxu0 0.0
    %4129 = vmatpush1.msra.mxu0 0.0
    %4130 = vmatprep.subr.mxu0 0.0
    %4131 = vmatpush1.msra.mxu0 0.0
    %4132 = vmatprep.subr.mxu0 0.0
    %4133 = vmatpush1.msra.mxu0 0.0
    %4134 = vmatprep.subr.mxu0 0.0
    %4135 = vmatpush1.msra.mxu0 0.0
    %4136 = vmatprep.subr.mxu0 0.0
    %4137 = vmatpush1.msra.mxu0 0.0
    %4138 = vmatprep.subr.mxu0 0.0
    %4139 = vmatpush1.msra.mxu0 0.0
    %4140 = vmatprep.subr.mxu0 0.0
    %4141 = vmatpush1.msra.mxu0 0.0
    %4142 = vmatprep.subr.mxu0 0.0
    %4143 = vmatpush1.msra.mxu0 0.0
    %4144 = vmatprep.subr.mxu0 0.0
    %4145 = vmatpush1.msra.mxu0 0.0
    %4146 = vmatprep.subr.mxu0 0.0
    %4147 = vmatpush1.msra.mxu0 0.0
    %4148 = vmatprep.subr.mxu0 0.0
    %4149 = vmatpush1.msra.mxu0 0.0
    %4150 = vmatprep.subr.mxu0 0.0
    %4151 = vmatpush1.msra.mxu0 0.0
    %4152 = vmatprep.subr.mxu0 0.0
    %4153 = vmatpush1.msra.mxu0 0.0
    %4154 = vmatprep.subr.mxu0 0.0
    %4155 = vmatpush1.msra.mxu0 0.0
    %4156 = vmatprep.subr.mxu0 0.0
    %4157 = vmatpush1.msra.mxu0 0.0
    %4158 = vmatprep.subr.mxu0 0.0
    %4159 = vmatpush1.msra.mxu0 0.0
    %4160 = vmatprep.subr.mxu0 0.0
    %4161 = vmatpush1.msra.mxu0 0.0
    %4162 = vmatprep.mubr.f32.mxu0 0.0
    %4163 = vmatmul.mubr.f32.gmra.mrb[0].mxu0 %v4096
    %v4164 = vpop.f32.mrb[0].mxu0
    %v4165 = vadd.f32 0.0, %v4164
    %v4166 = vpop.f32.mrb[0].mxu0
    %v4167 = vadd.f32 0.0, %v4166
    %4168 = vdwg.mxu0
    %v4170 = vrot.slane %v4165, 3
    %v4171 = vrot.slane %v4165, 4
    %v4174 = vadd.f32 %v2692, %v4170
    %v4175 = vadd.f32 %v2698, %v4171
    %v4177 = vrot.slane %v4167, 6
    %v4178 = vrot.slane %v4167, 7
    %v4181 = vadd.f32 %v2694, %v4177
    %v4182 = vadd.f32 %v2700, %v4178
    %v4183 = vxor.u32 %v4174, 2147483648
    %v4184 = vxor.u32 %v4175, 2147483648
    %v4185 = vmul.f32 %v4183, 1.442695
    %v4186 = vpow.pop %v4185
    %v4187 = vmul.f32 %v4184, 1.442695
    %v4188 = vpow.pop %v4187
    %v4189 = vadd.f32 %v4186, 1.0
    %v4190 = vadd.f32 %v4188, 1.0
    %v4191 = vrcp.pop %v4189
    %v4192 = vmul.f32 1.0, %v4191
    %v4193 = vrcp.pop %v4190
    %v4194 = vmul.f32 1.0, %v4193
    %v4195 = vtanh.pop %v4174
    %v4196 = vtanh.pop %v4175
    %v4199 = vrot.slane %v3981, 7
    %v4200 = vrot.slane %v3982, 7
    %v4203 = vmul.f32 %v4192, %v4199
    %v4204 = vmul.f32 %v4194, %v4200
    %4207 = vrot.lane.b32.xlu0 %v4195, 64
    %v4208 = vpop.permute.xlu0 %4207
    %4209 = vrot.lane.b32.xlu0 %v4196, 64
    %v4210 = vpop.permute.xlu0 %4209
    %v4213 = vmul.f32 %v4192, %v4208
    %v4214 = vmul.f32 %v4194, %v4210
    %4217 = vrot.lane.b32.xlu0 %v4213, 32
    %v4218 = vpop.permute.xlu0 %4217
    %4219 = vrot.lane.b32.xlu0 %v4214, 32
    %v4220 = vpop.permute.xlu0 %4219
    %v4223 = vadd.f32 %v4203, %v4218
    %v4224 = vadd.f32 %v4204, %v4220
    %v4225 = vtanh.pop %v4223
    %v4226 = vtanh.pop %v4224
    %4229 = vrot.lane.b32.xlu0 %v4225, 64
    %v4230 = vpop.permute.xlu0 %4229
    %4231 = vrot.lane.b32.xlu0 %v4226, 64
    %v4232 = vpop.permute.xlu0 %4231
    %v4235 = vmul.f32 %v4192, %v4230
    %v4236 = vmul.f32 %v4194, %v4232
    %v4237 = vmul.f32 %v328, %v4235
    %v4238 = vmul.f32 %v333, %v4236
    %v4239 = vrot.slane %v3961, 7
    %4240 = vrot.lane.b32.xlu0 %v4239, 32
    %v4241 = vpop.permute.xlu0 %4240
    %4242 = vrot.lane.b32.xlu0 %v4080, 32
    %v4243 = vpop.permute.xlu0 %4242
    %v4246 = vmul.f32 %v342, %v4241
    %v4247 = vmul.f32 %v347, %v4243
    %4250 = vrot.lane.b32.xlu0 %v4246, 96
    %v4251 = vpop.permute.xlu0 %4250
    %4252 = vrot.lane.b32.xlu0 %v4247, 96
    %v4253 = vpop.permute.xlu0 %4252
    %v4256 = vadd.f32 %v4237, %v4251
    %v4257 = vadd.f32 %v4238, %v4253
    %v4258 = vmul.f32 %v328, %v4223
    %v4259 = vmul.f32 %v333, %v4224
    %4260 = vrot.lane.b32.xlu0 %v4199, 96
    %v4261 = vpop.permute.xlu0 %4260
    %4262 = vrot.lane.b32.xlu0 %v4200, 96
    %v4263 = vpop.permute.xlu0 %4262
    %v4266 = vmul.f32 %v342, %v4261
    %v4267 = vmul.f32 %v347, %v4263
    %4270 = vrot.lane.b32.xlu0 %v4266, 32
    %v4271 = vpop.permute.xlu0 %4270
    %4272 = vrot.lane.b32.xlu0 %v4267, 32
    %v4273 = vpop.permute.xlu0 %4272
    %v4276 = vadd.f32 %v4258, %v4271
    %v4277 = vadd.f32 %v4259, %v4273
    %v4278 = vxor.u32 %v4181, 2147483648
    %v4279 = vxor.u32 %v4182, 2147483648
    %v4280 = vmul.f32 %v4278, 1.442695
    %v4281 = vpow.pop %v4280
    %v4282 = vmul.f32 %v4279, 1.442695
    %v4283 = vpow.pop %v4282
    %v4284 = vadd.f32 %v4281, 1.0
    %v4285 = vadd.f32 %v4283, 1.0
    %v4286 = vrcp.pop %v4284
    %v4287 = vmul.f32 1.0, %v4286
    %v4288 = vrcp.pop %v4285
    %v4289 = vmul.f32 1.0, %v4288
    %v4290 = vtanh.pop %v4181
    %v4291 = vtanh.pop %v4182
    %v4294 = vrot.slane %v4076, 1
    %v4295 = vrot.slane %v4077, 1
    %v4298 = vmul.f32 %v4287, %v4294
    %v4299 = vmul.f32 %v4289, %v4295
    %4302 = vrot.lane.b32.xlu0 %v4290, 64
    %v4303 = vpop.permute.xlu0 %4302
    %4304 = vrot.lane.b32.xlu0 %v4291, 64
    %v4305 = vpop.permute.xlu0 %4304
    %v4308 = vmul.f32 %v4287, %v4303
    %v4309 = vmul.f32 %v4289, %v4305
    %4312 = vrot.lane.b32.xlu0 %v4308, 32
    %v4313 = vpop.permute.xlu0 %4312
    %4314 = vrot.lane.b32.xlu0 %v4309, 32
    %v4315 = vpop.permute.xlu0 %4314
    %v4318 = vadd.f32 %v4298, %v4313
    %v4319 = vadd.f32 %v4299, %v4315
    %v4320 = vtanh.pop %v4318
    %v4321 = vtanh.pop %v4319
    %4324 = vrot.lane.b32.xlu0 %v4320, 64
    %v4325 = vpop.permute.xlu0 %4324
    %4326 = vrot.lane.b32.xlu0 %v4321, 64
    %v4327 = vpop.permute.xlu0 %4326
    %v4330 = vmul.f32 %v4287, %v4325
    %v4331 = vmul.f32 %v4289, %v4327
    %v4332 = vmul.f32 %v328, %v4330
    %v4333 = vmul.f32 %v333, %v4331
    %v4334 = vrot.slane %v4056, 1
    %v4335 = vrot.slane %v4057, 1
    %4336 = vrot.lane.b32.xlu0 %v4334, 32
    %v4337 = vpop.permute.xlu0 %4336
    %4338 = vrot.lane.b32.xlu0 %v4335, 32
    %v4339 = vpop.permute.xlu0 %4338
    %v4342 = vmul.f32 %v342, %v4337
    %v4343 = vmul.f32 %v347, %v4339
    %4346 = vrot.lane.b32.xlu0 %v4342, 96
    %v4347 = vpop.permute.xlu0 %4346
    %4348 = vrot.lane.b32.xlu0 %v4343, 96
    %v4349 = vpop.permute.xlu0 %4348
    %v4352 = vadd.f32 %v4332, %v4347
    %v4353 = vadd.f32 %v4333, %v4349
    %v4354 = vmul.f32 %v328, %v4318
    %v4355 = vmul.f32 %v333, %v4319
    %4356 = vrot.lane.b32.xlu0 %v4294, 96
    %v4357 = vpop.permute.xlu0 %4356
    %4358 = vrot.lane.b32.xlu0 %v4295, 96
    %v4359 = vpop.permute.xlu0 %4358
    %v4362 = vmul.f32 %v342, %v4357
    %v4363 = vmul.f32 %v347, %v4359
    %4366 = vrot.lane.b32.xlu0 %v4362, 32
    %v4367 = vpop.permute.xlu0 %4366
    %4368 = vrot.lane.b32.xlu0 %v4363, 32
    %v4369 = vpop.permute.xlu0 %4368
    %v4372 = vadd.f32 %v4354, %v4367
    %v4373 = vadd.f32 %v4355, %v4369
    %v4376 = vrot.slane %v4257, 7
    %v4377 = vsel %vm1897, %v4376, %v4256
    %4378 = vrot.lane.b32.xlu0 %v4377, 32
    %v4379 = vpop.permute.xlu0 %4378
    %v4383 = vrot.slane %v4352, 5
    %v4384 = vrot.slane %v4353, 4
    %v4385 = vsel %vm1897, %v4384, %v4383
    %4386 = vrot.lane.b32.xlu0 %v4385, 64
    %v4387 = vpop.permute.xlu0 %4386
    %v4389 = vsel %vm105, %v4379, %v4387
    %v4391 = vrot.slane %v4389, 5
    %v4392 = vsel %vm189, %v4391, 0
    %4394 = vmatprep.subr.mxu0 %v2592
    %4395 = vmatpush1.msra.mxu0 %v2591
    %4396 = vmatprep.subr.mxu0 %v2594
    %4397 = vmatpush1.msra.mxu0 %v2593
    %4398 = vmatprep.subr.mxu0 %v2596
    %4399 = vmatpush1.msra.mxu0 %v2595
    %4400 = vmatprep.subr.mxu0 %v2598
    %4401 = vmatpush1.msra.mxu0 %v2597
    %4402 = vmatprep.subr.mxu0 %v2600
    %4403 = vmatpush1.msra.mxu0 %v2599
    %4404 = vmatprep.subr.mxu0 %v2602
    %4405 = vmatpush1.msra.mxu0 %v2601
    %4406 = vmatprep.subr.mxu0 %v2604
    %4407 = vmatpush1.msra.mxu0 %v2603
    %4408 = vmatprep.subr.mxu0 %v2606
    %4409 = vmatpush1.msra.mxu0 %v2605
    %4410 = vmatprep.subr.mxu0 0.0
    %4411 = vmatpush1.msra.mxu0 0.0
    %4412 = vmatprep.subr.mxu0 0.0
    %4413 = vmatpush1.msra.mxu0 0.0
    %4414 = vmatprep.subr.mxu0 0.0
    %4415 = vmatpush1.msra.mxu0 0.0
    %4416 = vmatprep.subr.mxu0 0.0
    %4417 = vmatpush1.msra.mxu0 0.0
    %4418 = vmatprep.subr.mxu0 0.0
    %4419 = vmatpush1.msra.mxu0 0.0
    %4420 = vmatprep.subr.mxu0 0.0
    %4421 = vmatpush1.msra.mxu0 0.0
    %4422 = vmatprep.subr.mxu0 0.0
    %4423 = vmatpush1.msra.mxu0 0.0
    %4424 = vmatprep.subr.mxu0 0.0
    %4425 = vmatpush1.msra.mxu0 0.0
    %4426 = vmatprep.subr.mxu0 0.0
    %4427 = vmatpush1.msra.mxu0 0.0
    %4428 = vmatprep.subr.mxu0 0.0
    %4429 = vmatpush1.msra.mxu0 0.0
    %4430 = vmatprep.subr.mxu0 0.0
    %4431 = vmatpush1.msra.mxu0 0.0
    %4432 = vmatprep.subr.mxu0 0.0
    %4433 = vmatpush1.msra.mxu0 0.0
    %4434 = vmatprep.subr.mxu0 0.0
    %4435 = vmatpush1.msra.mxu0 0.0
    %4436 = vmatprep.subr.mxu0 0.0
    %4437 = vmatpush1.msra.mxu0 0.0
    %4438 = vmatprep.subr.mxu0 0.0
    %4439 = vmatpush1.msra.mxu0 0.0
    %4440 = vmatprep.subr.mxu0 0.0
    %4441 = vmatpush1.msra.mxu0 0.0
    %4442 = vmatprep.subr.mxu0 0.0
    %4443 = vmatpush1.msra.mxu0 0.0
    %4444 = vmatprep.subr.mxu0 0.0
    %4445 = vmatpush1.msra.mxu0 0.0
    %4446 = vmatprep.subr.mxu0 0.0
    %4447 = vmatpush1.msra.mxu0 0.0
    %4448 = vmatprep.subr.mxu0 0.0
    %4449 = vmatpush1.msra.mxu0 0.0
    %4450 = vmatprep.subr.mxu0 0.0
    %4451 = vmatpush1.msra.mxu0 0.0
    %4452 = vmatprep.subr.mxu0 0.0
    %4453 = vmatpush1.msra.mxu0 0.0
    %4454 = vmatprep.subr.mxu0 0.0
    %4455 = vmatpush1.msra.mxu0 0.0
    %4456 = vmatprep.subr.mxu0 0.0
    %4457 = vmatpush1.msra.mxu0 0.0
    %4458 = vmatprep.mubr.f32.mxu0 0.0
    %4459 = vmatmul.mubr.f32.gmra.mrb[0].mxu0 %v4392
    %v4460 = vpop.f32.mrb[0].mxu0
    %v4461 = vadd.f32 0.0, %v4460
    %v4462 = vpop.f32.mrb[0].mxu0
    %v4463 = vadd.f32 0.0, %v4462
    %4464 = vdwg.mxu0
    %v4466 = vrot.slane %v4461, 2
    %v4467 = vrot.slane %v4461, 3
    %v4470 = vadd.f32 %v2692, %v4466
    %v4471 = vadd.f32 %v2698, %v4467
    %v4473 = vrot.slane %v4463, 7
    %v4476 = vadd.f32 %v2694, %v4473
    %v4477 = vadd.f32 %v2700, %v4463
    %v4478 = vxor.u32 %v4470, 2147483648
    %v4479 = vxor.u32 %v4471, 2147483648
    %v4480 = vmul.f32 %v4478, 1.442695
    %v4481 = vpow.pop %v4480
    %v4482 = vmul.f32 %v4479, 1.442695
    %v4483 = vpow.pop %v4482
    %v4484 = vadd.f32 %v4481, 1.0
    %v4485 = vadd.f32 %v4483, 1.0
    %v4486 = vrcp.pop %v4484
    %v4487 = vmul.f32 1.0, %v4486
    %v4488 = vrcp.pop %v4485
    %v4489 = vmul.f32 1.0, %v4488
    %v4490 = vtanh.pop %v4470
    %v4491 = vtanh.pop %v4471
    %v4494 = vrot.slane %v4276, 7
    %v4495 = vrot.slane %v4277, 7
    %v4498 = vmul.f32 %v4487, %v4494
    %v4499 = vmul.f32 %v4489, %v4495
    %4502 = vrot.lane.b32.xlu0 %v4490, 64
    %v4503 = vpop.permute.xlu0 %4502
    %4504 = vrot.lane.b32.xlu0 %v4491, 64
    %v4505 = vpop.permute.xlu0 %4504
    %v4508 = vmul.f32 %v4487, %v4503
    %v4509 = vmul.f32 %v4489, %v4505
    %4512 = vrot.lane.b32.xlu0 %v4508, 32
    %v4513 = vpop.permute.xlu0 %4512
    %4514 = vrot.lane.b32.xlu0 %v4509, 32
    %v4515 = vpop.permute.xlu0 %4514
    %v4518 = vadd.f32 %v4498, %v4513
    %v4519 = vadd.f32 %v4499, %v4515
    %v4520 = vtanh.pop %v4518
    %v4521 = vtanh.pop %v4519
    %4524 = vrot.lane.b32.xlu0 %v4520, 64
    %v4525 = vpop.permute.xlu0 %4524
    %4526 = vrot.lane.b32.xlu0 %v4521, 64
    %v4527 = vpop.permute.xlu0 %4526
    %v4530 = vmul.f32 %v4487, %v4525
    %v4531 = vmul.f32 %v4489, %v4527
    %v4532 = vmul.f32 %v328, %v4530
    %v4533 = vmul.f32 %v333, %v4531
    %v4534 = vrot.slane %v4256, 7
    %4535 = vrot.lane.b32.xlu0 %v4534, 32
    %v4536 = vpop.permute.xlu0 %4535
    %4537 = vrot.lane.b32.xlu0 %v4376, 32
    %v4538 = vpop.permute.xlu0 %4537
    %v4541 = vmul.f32 %v342, %v4536
    %v4542 = vmul.f32 %v347, %v4538
    %4545 = vrot.lane.b32.xlu0 %v4541, 96
    %v4546 = vpop.permute.xlu0 %4545
    %4547 = vrot.lane.b32.xlu0 %v4542, 96
    %v4548 = vpop.permute.xlu0 %4547
    %v4551 = vadd.f32 %v4532, %v4546
    %v4552 = vadd.f32 %v4533, %v4548
    %v4553 = vmul.f32 %v328, %v4518
    %v4554 = vmul.f32 %v333, %v4519
    %4555 = vrot.lane.b32.xlu0 %v4494, 96
    %v4556 = vpop.permute.xlu0 %4555
    %4557 = vrot.lane.b32.xlu0 %v4495, 96
    %v4558 = vpop.permute.xlu0 %4557
    %v4561 = vmul.f32 %v342, %v4556
    %v4562 = vmul.f32 %v347, %v4558
    %4565 = vrot.lane.b32.xlu0 %v4561, 32
    %v4566 = vpop.permute.xlu0 %4565
    %4567 = vrot.lane.b32.xlu0 %v4562, 32
    %v4568 = vpop.permute.xlu0 %4567
    %v4571 = vadd.f32 %v4553, %v4566
    %v4572 = vadd.f32 %v4554, %v4568
    %v4573 = vxor.u32 %v4476, 2147483648
    %v4574 = vxor.u32 %v4477, 2147483648
    %v4575 = vmul.f32 %v4573, 1.442695
    %v4576 = vpow.pop %v4575
    %v4577 = vmul.f32 %v4574, 1.442695
    %v4578 = vpow.pop %v4577
    %v4579 = vadd.f32 %v4576, 1.0
    %v4580 = vadd.f32 %v4578, 1.0
    %v4581 = vrcp.pop %v4579
    %v4582 = vmul.f32 1.0, %v4581
    %v4583 = vrcp.pop %v4580
    %v4584 = vmul.f32 1.0, %v4583
    %v4585 = vtanh.pop %v4476
    %v4586 = vtanh.pop %v4477
    %v4589 = vrot.slane %v4372, 1
    %v4590 = vrot.slane %v4373, 1
    %v4593 = vmul.f32 %v4582, %v4589
    %v4594 = vmul.f32 %v4584, %v4590
    %4597 = vrot.lane.b32.xlu0 %v4585, 64
    %v4598 = vpop.permute.xlu0 %4597
    %4599 = vrot.lane.b32.xlu0 %v4586, 64
    %v4600 = vpop.permute.xlu0 %4599
    %v4603 = vmul.f32 %v4582, %v4598
    %v4604 = vmul.f32 %v4584, %v4600
    %4607 = vrot.lane.b32.xlu0 %v4603, 32
    %v4608 = vpop.permute.xlu0 %4607
    %4609 = vrot.lane.b32.xlu0 %v4604, 32
    %v4610 = vpop.permute.xlu0 %4609
    %v4613 = vadd.f32 %v4593, %v4608
    %v4614 = vadd.f32 %v4594, %v4610
    %v4615 = vtanh.pop %v4613
    %v4616 = vtanh.pop %v4614
    %4619 = vrot.lane.b32.xlu0 %v4615, 64
    %v4620 = vpop.permute.xlu0 %4619
    %4621 = vrot.lane.b32.xlu0 %v4616, 64
    %v4622 = vpop.permute.xlu0 %4621
    %v4625 = vmul.f32 %v4582, %v4620
    %v4626 = vmul.f32 %v4584, %v4622
    %v4627 = vmul.f32 %v328, %v4625
    %v4628 = vmul.f32 %v333, %v4626
    %v4629 = vrot.slane %v4352, 1
    %v4630 = vrot.slane %v4353, 1
    %4631 = vrot.lane.b32.xlu0 %v4629, 32
    %v4632 = vpop.permute.xlu0 %4631
    %4633 = vrot.lane.b32.xlu0 %v4630, 32
    %v4634 = vpop.permute.xlu0 %4633
    %v4637 = vmul.f32 %v342, %v4632
    %v4638 = vmul.f32 %v347, %v4634
    %4641 = vrot.lane.b32.xlu0 %v4637, 96
    %v4642 = vpop.permute.xlu0 %4641
    %4643 = vrot.lane.b32.xlu0 %v4638, 96
    %v4644 = vpop.permute.xlu0 %4643
    %v4647 = vadd.f32 %v4627, %v4642
    %v4648 = vadd.f32 %v4628, %v4644
    %v4649 = vmul.f32 %v328, %v4613
    %v4650 = vmul.f32 %v333, %v4614
    %4651 = vrot.lane.b32.xlu0 %v4589, 96
    %v4652 = vpop.permute.xlu0 %4651
    %4653 = vrot.lane.b32.xlu0 %v4590, 96
    %v4654 = vpop.permute.xlu0 %4653
    %v4657 = vmul.f32 %v342, %v4652
    %v4658 = vmul.f32 %v347, %v4654
    %4661 = vrot.lane.b32.xlu0 %v4657, 32
    %v4662 = vpop.permute.xlu0 %4661
    %4663 = vrot.lane.b32.xlu0 %v4658, 32
    %v4664 = vpop.permute.xlu0 %4663
    %v4667 = vadd.f32 %v4649, %v4662
    %v4668 = vadd.f32 %v4650, %v4664
    %v4671 = vrot.slane %v4552, 7
    %v4672 = vsel %vm2193, %v4671, %v4551
    %4673 = vrot.lane.b32.xlu0 %v4672, 32
    %v4674 = vpop.permute.xlu0 %4673
    %v4678 = vrot.slane %v4647, 3
    %v4679 = vrot.slane %v4648, 2
    %v4680 = vsel %vm2193, %v4679, %v4678
    %4681 = vrot.lane.b32.xlu0 %v4680, 64
    %v4682 = vpop.permute.xlu0 %4681
    %v4684 = vsel %vm105, %v4674, %v4682
    %v4686 = vrot.slane %v4684, 6
    %v4687 = vsel %vm189, %v4686, 0
    %4689 = vmatprep.subr.mxu0 %v2592
    %4690 = vmatpush1.msra.mxu0 %v2591
    %4691 = vmatprep.subr.mxu0 %v2594
    %4692 = vmatpush1.msra.mxu0 %v2593
    %4693 = vmatprep.subr.mxu0 %v2596
    %4694 = vmatpush1.msra.mxu0 %v2595
    %4695 = vmatprep.subr.mxu0 %v2598
    %4696 = vmatpush1.msra.mxu0 %v2597
    %4697 = vmatprep.subr.mxu0 %v2600
    %4698 = vmatpush1.msra.mxu0 %v2599
    %4699 = vmatprep.subr.mxu0 %v2602
    %4700 = vmatpush1.msra.mxu0 %v2601
    %4701 = vmatprep.subr.mxu0 %v2604
    %4702 = vmatpush1.msra.mxu0 %v2603
    %4703 = vmatprep.subr.mxu0 %v2606
    %4704 = vmatpush1.msra.mxu0 %v2605
    %4705 = vmatprep.subr.mxu0 0.0
    %4706 = vmatpush1.msra.mxu0 0.0
    %4707 = vmatprep.subr.mxu0 0.0
    %4708 = vmatpush1.msra.mxu0 0.0
    %4709 = vmatprep.subr.mxu0 0.0
    %4710 = vmatpush1.msra.mxu0 0.0
    %4711 = vmatprep.subr.mxu0 0.0
    %4712 = vmatpush1.msra.mxu0 0.0
    %4713 = vmatprep.subr.mxu0 0.0
    %4714 = vmatpush1.msra.mxu0 0.0
    %4715 = vmatprep.subr.mxu0 0.0
    %4716 = vmatpush1.msra.mxu0 0.0
    %4717 = vmatprep.subr.mxu0 0.0
    %4718 = vmatpush1.msra.mxu0 0.0
    %4719 = vmatprep.subr.mxu0 0.0
    %4720 = vmatpush1.msra.mxu0 0.0
    %4721 = vmatprep.subr.mxu0 0.0
    %4722 = vmatpush1.msra.mxu0 0.0
    %4723 = vmatprep.subr.mxu0 0.0
    %4724 = vmatpush1.msra.mxu0 0.0
    %4725 = vmatprep.subr.mxu0 0.0
    %4726 = vmatpush1.msra.mxu0 0.0
    %4727 = vmatprep.subr.mxu0 0.0
    %4728 = vmatpush1.msra.mxu0 0.0
    %4729 = vmatprep.subr.mxu0 0.0
    %4730 = vmatpush1.msra.mxu0 0.0
    %4731 = vmatprep.subr.mxu0 0.0
    %4732 = vmatpush1.msra.mxu0 0.0
    %4733 = vmatprep.subr.mxu0 0.0
    %4734 = vmatpush1.msra.mxu0 0.0
    %4735 = vmatprep.subr.mxu0 0.0
    %4736 = vmatpush1.msra.mxu0 0.0
    %4737 = vmatprep.subr.mxu0 0.0
    %4738 = vmatpush1.msra.mxu0 0.0
    %4739 = vmatprep.subr.mxu0 0.0
    %4740 = vmatpush1.msra.mxu0 0.0
    %4741 = vmatprep.subr.mxu0 0.0
    %4742 = vmatpush1.msra.mxu0 0.0
    %4743 = vmatprep.subr.mxu0 0.0
    %4744 = vmatpush1.msra.mxu0 0.0
    %4745 = vmatprep.subr.mxu0 0.0
    %4746 = vmatpush1.msra.mxu0 0.0
    %4747 = vmatprep.subr.mxu0 0.0
    %4748 = vmatpush1.msra.mxu0 0.0
    %4749 = vmatprep.subr.mxu0 0.0
    %4750 = vmatpush1.msra.mxu0 0.0
    %4751 = vmatprep.subr.mxu0 0.0
    %4752 = vmatpush1.msra.mxu0 0.0
    %4753 = vmatprep.mubr.f32.mxu0 0.0
    %4754 = vmatmul.mubr.f32.gmra.mrb[0].mxu0 %v4687
    %v4755 = vpop.f32.mrb[0].mxu0
    %v4756 = vadd.f32 0.0, %v4755
    %v4757 = vpop.f32.mrb[0].mxu0
    %v4758 = vadd.f32 0.0, %v4757
    %4759 = vdwg.mxu0
    %v4761 = vrot.slane %v4756, 1
    %v4762 = vrot.slane %v4756, 2
    %v4765 = vadd.f32 %v2692, %v4761
    %v4766 = vadd.f32 %v2698, %v4762
    %v4768 = vrot.slane %v4758, 1
    %v4771 = vadd.f32 %v2694, %v4758
    %v4772 = vadd.f32 %v2700, %v4768
    %v4773 = vxor.u32 %v4765, 2147483648
    %v4774 = vxor.u32 %v4766, 2147483648
    %v4775 = vmul.f32 %v4773, 1.442695
    %v4776 = vpow.pop %v4775
    %v4777 = vmul.f32 %v4774, 1.442695
    %v4778 = vpow.pop %v4777
    %v4779 = vadd.f32 %v4776, 1.0
    %v4780 = vadd.f32 %v4778, 1.0
    %v4781 = vrcp.pop %v4779
    %v4782 = vmul.f32 1.0, %v4781
    %v4783 = vrcp.pop %v4780
    %v4784 = vmul.f32 1.0, %v4783
    %v4785 = vtanh.pop %v4765
    %v4786 = vtanh.pop %v4766
    %v4789 = vrot.slane %v4571, 7
    %v4790 = vrot.slane %v4572, 7
    %v4793 = vmul.f32 %v4782, %v4789
    %v4794 = vmul.f32 %v4784, %v4790
    %4797 = vrot.lane.b32.xlu0 %v4785, 64
    %v4798 = vpop.permute.xlu0 %4797
    %4799 = vrot.lane.b32.xlu0 %v4786, 64
    %v4800 = vpop.permute.xlu0 %4799
    %v4803 = vmul.f32 %v4782, %v4798
    %v4804 = vmul.f32 %v4784, %v4800
    %4807 = vrot.lane.b32.xlu0 %v4803, 32
    %v4808 = vpop.permute.xlu0 %4807
    %4809 = vrot.lane.b32.xlu0 %v4804, 32
    %v4810 = vpop.permute.xlu0 %4809
    %v4813 = vadd.f32 %v4793, %v4808
    %v4814 = vadd.f32 %v4794, %v4810
    %v4815 = vtanh.pop %v4813
    %v4816 = vtanh.pop %v4814
    %4819 = vrot.lane.b32.xlu0 %v4815, 64
    %v4820 = vpop.permute.xlu0 %4819
    %4821 = vrot.lane.b32.xlu0 %v4816, 64
    %v4822 = vpop.permute.xlu0 %4821
    %v4825 = vmul.f32 %v4782, %v4820
    %v4826 = vmul.f32 %v4784, %v4822
    %v4827 = vmul.f32 %v328, %v4825
    %v4828 = vmul.f32 %v333, %v4826
    %v4829 = vrot.slane %v4551, 7
    %4830 = vrot.lane.b32.xlu0 %v4829, 32
    %v4831 = vpop.permute.xlu0 %4830
    %4832 = vrot.lane.b32.xlu0 %v4671, 32
    %v4833 = vpop.permute.xlu0 %4832
    %v4836 = vmul.f32 %v342, %v4831
    %v4837 = vmul.f32 %v347, %v4833
    %4840 = vrot.lane.b32.xlu0 %v4836, 96
    %v4841 = vpop.permute.xlu0 %4840
    %4842 = vrot.lane.b32.xlu0 %v4837, 96
    %v4843 = vpop.permute.xlu0 %4842
    %v4846 = vadd.f32 %v4827, %v4841
    %v4847 = vadd.f32 %v4828, %v4843
    %v4848 = vmul.f32 %v328, %v4813
    %v4849 = vmul.f32 %v333, %v4814
    %4850 = vrot.lane.b32.xlu0 %v4789, 96
    %v4851 = vpop.permute.xlu0 %4850
    %4852 = vrot.lane.b32.xlu0 %v4790, 96
    %v4853 = vpop.permute.xlu0 %4852
    %v4856 = vmul.f32 %v342, %v4851
    %v4857 = vmul.f32 %v347, %v4853
    %4860 = vrot.lane.b32.xlu0 %v4856, 32
    %v4861 = vpop.permute.xlu0 %4860
    %4862 = vrot.lane.b32.xlu0 %v4857, 32
    %v4863 = vpop.permute.xlu0 %4862
    %v4866 = vadd.f32 %v4848, %v4861
    %v4867 = vadd.f32 %v4849, %v4863
    %v4868 = vxor.u32 %v4771, 2147483648
    %v4869 = vxor.u32 %v4772, 2147483648
    %v4870 = vmul.f32 %v4868, 1.442695
    %v4871 = vpow.pop %v4870
    %v4872 = vmul.f32 %v4869, 1.442695
    %v4873 = vpow.pop %v4872
    %v4874 = vadd.f32 %v4871, 1.0
    %v4875 = vadd.f32 %v4873, 1.0
    %v4876 = vrcp.pop %v4874
    %v4877 = vmul.f32 1.0, %v4876
    %v4878 = vrcp.pop %v4875
    %v4879 = vmul.f32 1.0, %v4878
    %v4880 = vtanh.pop %v4771
    %v4881 = vtanh.pop %v4772
    %v4884 = vrot.slane %v4667, 1
    %v4885 = vrot.slane %v4668, 1
    %v4888 = vmul.f32 %v4877, %v4884
    %v4889 = vmul.f32 %v4879, %v4885
    %4892 = vrot.lane.b32.xlu0 %v4880, 64
    %v4893 = vpop.permute.xlu0 %4892
    %4894 = vrot.lane.b32.xlu0 %v4881, 64
    %v4895 = vpop.permute.xlu0 %4894
    %v4898 = vmul.f32 %v4877, %v4893
    %v4899 = vmul.f32 %v4879, %v4895
    %4902 = vrot.lane.b32.xlu0 %v4898, 32
    %v4903 = vpop.permute.xlu0 %4902
    %4904 = vrot.lane.b32.xlu0 %v4899, 32
    %v4905 = vpop.permute.xlu0 %4904
    %v4908 = vadd.f32 %v4888, %v4903
    %v4909 = vadd.f32 %v4889, %v4905
    %v4910 = vtanh.pop %v4908
    %v4911 = vtanh.pop %v4909
    %4914 = vrot.lane.b32.xlu0 %v4910, 64
    %v4915 = vpop.permute.xlu0 %4914
    %4916 = vrot.lane.b32.xlu0 %v4911, 64
    %v4917 = vpop.permute.xlu0 %4916
    %v4920 = vmul.f32 %v4877, %v4915
    %v4921 = vmul.f32 %v4879, %v4917
    %v4922 = vmul.f32 %v328, %v4920
    %v4923 = vmul.f32 %v333, %v4921
    %v4924 = vrot.slane %v4647, 1
    %v4925 = vrot.slane %v4648, 1
    %4926 = vrot.lane.b32.xlu0 %v4924, 32
    %v4927 = vpop.permute.xlu0 %4926
    %4928 = vrot.lane.b32.xlu0 %v4925, 32
    %v4929 = vpop.permute.xlu0 %4928
    %v4932 = vmul.f32 %v342, %v4927
    %v4933 = vmul.f32 %v347, %v4929
    %4936 = vrot.lane.b32.xlu0 %v4932, 96
    %v4937 = vpop.permute.xlu0 %4936
    %4938 = vrot.lane.b32.xlu0 %v4933, 96
    %v4939 = vpop.permute.xlu0 %4938
    %v4942 = vadd.f32 %v4922, %v4937
    %v4943 = vadd.f32 %v4923, %v4939
    %v4944 = vmul.f32 %v328, %v4908
    %v4945 = vmul.f32 %v333, %v4909
    %4946 = vrot.lane.b32.xlu0 %v4884, 96
    %v4947 = vpop.permute.xlu0 %4946
    %4948 = vrot.lane.b32.xlu0 %v4885, 96
    %v4949 = vpop.permute.xlu0 %4948
    %v4952 = vmul.f32 %v342, %v4947
    %v4953 = vmul.f32 %v347, %v4949
    %4956 = vrot.lane.b32.xlu0 %v4952, 32
    %v4957 = vpop.permute.xlu0 %4956
    %4958 = vrot.lane.b32.xlu0 %v4953, 32
    %v4959 = vpop.permute.xlu0 %4958
    %v4962 = vadd.f32 %v4944, %v4957
    %v4963 = vadd.f32 %v4945, %v4959
    %v4964 = vsel %vm2486, %v2834, %v3055
    %v4965 = vsel %vm2486, %v2835, %v3056
    %v4966 = vsel %vm2489, %v4964, %v3351
    %v4967 = vsel %vm2489, %v4965, %v3352
    %v4968 = vsel %vm2492, %v4966, %v3647
    %v4969 = vsel %vm2492, %v4967, %v3648
    %v4970 = vsel %vm2495, %v4968, %v3942
    %v4971 = vsel %vm2495, %v4969, %v3943
    %v4972 = vsel %vm2498, %v4970, %v4237
    %v4973 = vsel %vm2498, %v4971, %v4238
    %v4974 = vsel %vm2501, %v4972, %v4532
    %v4975 = vsel %vm2501, %v4973, %v4533
    %v4976 = vsel %vm2504, %v4974, %v4827
    %v4977 = vsel %vm2504, %v4975, %v4828
    %v4978 = vsel %vm2486, %v4922, %v4627
    %v4979 = vsel %vm2486, %v4923, %v4628
    %v4980 = vsel %vm2489, %v4978, %v4332
    %v4981 = vsel %vm2489, %v4979, %v4333
    %v4982 = vsel %vm2492, %v4980, %v4037
    %v4983 = vsel %vm2492, %v4981, %v4038
    %v4984 = vsel %vm2495, %v4982, %v3742
    %v4985 = vsel %vm2495, %v4983, %v3743
    %v4986 = vsel %vm2498, %v4984, %v3446
    %v4987 = vsel %vm2498, %v4985, %v3447
    %v4988 = vsel %vm2501, %v4986, %v3150
    %v4989 = vsel %vm2501, %v4987, %v3151
    %v4990 = vsel %vm2504, %v4988, %v2890
    %v4991 = vsel %vm2504, %v4989, %v2891
    %4994 = vrot.lane.b32.xlu0 %v4976, 32
    %v4995 = vpop.permute.xlu0 %4994
    %4996 = vrot.lane.b32.xlu0 %v4977, 32
    %v4997 = vpop.permute.xlu0 %4996
    %5002 = vrot.lane.b32.xlu0 %v4990, 64
    %v5003 = vpop.permute.xlu0 %5002
    %5004 = vrot.lane.b32.xlu0 %v4991, 64
    %v5005 = vpop.permute.xlu0 %5004
    %v5008 = vsel %vm105, %v4995, %v5003
    %v5009 = vsel %vm105, %v4997, %v5005
    %v5012 = vrot.slane %v4847, 7
    %5013 = vrot.lane.b32.xlu0 %v4846, 32
    %v5014 = vpop.permute.xlu0 %5013
    %5015 = vrot.lane.b32.xlu0 %v5012, 32
    %v5016 = vpop.permute.xlu0 %5015
    %v5021 = vrot.slane %v4942, 1
    %5022 = vrot.lane.b32.xlu0 %v5021, 64
    %v5023 = vpop.permute.xlu0 %5022
    %5024 = vrot.lane.b32.xlu0 %v4943, 64
    %v5025 = vpop.permute.xlu0 %5024
    %v5028 = vsel %vm105, %v5014, %v5023
    %v5029 = vsel %vm105, %v5016, %v5025
    %v5032 = vrot.slane %v4867, 7
    %5033 = vrot.lane.b32.xlu0 %v4866, 96
    %v5034 = vpop.permute.xlu0 %5033
    %5035 = vrot.lane.b32.xlu0 %v5032, 96
    %v5036 = vpop.permute.xlu0 %5035
    %v5041 = vrot.slane %v4962, 1
    %v5044 = vsel %vm105, %v5034, %v5041
    %v5045 = vsel %vm105, %v5036, %v4963
    %5046 = vst.msk [vmem:[#allocation2] sm:$0xff] %vm189, %v5008
    %5047 = vst.msk [vmem:[#allocation2 + $0x8] sm:$0xff] %vm189, %v5009
    %v5052 = vcombine.high %v2557, %v2557
    %v5054 = vunpack.c.l.s4 1983009808
    %v5055 = vunpack.c.0.s8 %v5054
    %v5056 = vlaneseq
    %v5057 = vshrl.u32 %v5056, 7
    %v5058 = vsub.s32 %v5055, %v5057
    %v5059 = vrot.slane %v5052, %v5058
    %v5060 = vcombine.high %v5059, %v5059
    %v5062 = vunpack.c.l.s4 1983009808
    %v5063 = vunpack.c.0.s8 %v5062
    %v5064 = vlaneseq
    %v5065 = vshrl.u32 %v5064, 7
    %v5066 = vsub.s32 %v5063, %v5065
    %v5067 = vrot.slane %v2558, %v5066
    %v5068 = vcombine.high %v5028, %v5028
    %v5070 = vunpack.c.l.s4 1983009808
    %v5071 = vunpack.c.0.s8 %v5070
    %v5072 = vlaneseq
    %v5073 = vshrl.u32 %v5072, 7
    %v5074 = vsub.s32 %v5071, %v5073
    %v5075 = vrot.slane %v5068, %v5074
    %v5076 = vcombine.high %v5075, %v5075
    %v5078 = vunpack.c.l.s4 1983009808
    %v5079 = vunpack.c.0.s8 %v5078
    %v5080 = vlaneseq
    %v5081 = vshrl.u32 %v5080, 7
    %v5082 = vsub.s32 %v5079, %v5081
    %v5083 = vrot.slane %v5029, %v5082
    %vm5084 = vmor %vm2486, %vm711
    %vm5085 = vmor %vm5084, %vm1305
    %vm5086 = vmor %vm5085, %vm1897
    %v5087 = vrot.slane %v5060, 7
    %v5088 = vrot.slane %v5087, 2
    %v5089 = vrot.slane %v5067, 7
    %v5090 = vsel %vm5086, %v5088, %v5089
    %v5091 = vrot.slane %v5076, 7
    %v5092 = vrot.slane %v5091, 2
    %v5093 = vrot.slane %v5083, 7
    %v5094 = vsel %vm5086, %v5092, %v5093
    %v5099 = vcombine.high %v2573, %v2573
    %v5101 = vunpack.c.l.s4 1983009808
    %v5102 = vunpack.c.0.s8 %v5101
    %v5103 = vlaneseq
    %v5104 = vshrl.u32 %v5103, 7
    %v5105 = vsub.s32 %v5102, %v5104
    %v5106 = vrot.slane %v5099, %v5105
    %v5107 = vcombine.high %v5106, %v5106
    %v5109 = vunpack.c.l.s4 1983009808
    %v5110 = vunpack.c.0.s8 %v5109
    %v5111 = vlaneseq
    %v5112 = vshrl.u32 %v5111, 7
    %v5113 = vsub.s32 %v5110, %v5112
    %v5114 = vrot.slane %v2574, %v5113
    %v5115 = vcombine.high %v5044, %v5044
    %v5117 = vunpack.c.l.s4 1983009808
    %v5118 = vunpack.c.0.s8 %v5117
    %v5119 = vlaneseq
    %v5120 = vshrl.u32 %v5119, 7
    %v5121 = vsub.s32 %v5118, %v5120
    %v5122 = vrot.slane %v5115, %v5121
    %v5123 = vcombine.high %v5122, %v5122
    %v5125 = vunpack.c.l.s4 1983009808
    %v5126 = vunpack.c.0.s8 %v5125
    %v5127 = vlaneseq
    %v5128 = vshrl.u32 %v5127, 7
    %v5129 = vsub.s32 %v5126, %v5128
    %v5130 = vrot.slane %v5045, %v5129
    %v5131 = vrot.slane %v5107, 7
    %v5132 = vrot.slane %v5131, 2
    %v5133 = vrot.slane %v5114, 7
    %v5134 = vsel %vm5086, %v5132, %v5133
    %v5135 = vrot.slane %v5123, 7
    %v5136 = vrot.slane %v5135, 2
    %v5137 = vrot.slane %v5130, 7
    %v5138 = vsel %vm5086, %v5136, %v5137
    %v5139 = vld [vmem:[%s8] sm:$0xff]
    %v5140 = vld [vmem:[%s8 + $0x8] sm:$0xff]
    %v5141 = vld [vmem:[%s8 + $0x10] sm:$0xff]
    %v5142 = vld [vmem:[%s8 + $0x18] sm:$0xff]
    %v5143 = vld [vmem:[%s8 + $0x20] sm:$0xff]
    %v5144 = vld [vmem:[%s8 + $0x28] sm:$0xff]
    %v5145 = vld [vmem:[%s8 + $0x30] sm:$0xff]
    %v5146 = vld [vmem:[%s8 + $0x38] sm:$0xff]
    %v5147 = vld [vmem:[%s9] sm:$0x1]
    %v5149 = vlaneseq
    %v5150 = vshrl.u32 %v5149, 7
    %v5151 = vsub.s32 0, %v5150
    %v5152 = vrot.slane %v5147, %v5151
    %v5154 = vcombine.low %v5090, %v5094
    %v5156 = vunpack.c.l.s4 1983009808
    %v5157 = vunpack.c.0.s8 %v5156
    %v5158 = vlaneseq
    %v5159 = vshrl.u32 %v5158, 7
    %v5160 = vsub.s32 %v5157, %v5159
    %v5161 = vrot.slane %v5154, %v5160
    %v5162 = vsel %vm189, %v5161, 0
    %5164 = vmatprep.subr.mxu0 0.0
    %5165 = vmatpush1.msra.mxu0 %v5139
    %5166 = vmatprep.subr.mxu0 0.0
    %5167 = vmatpush1.msra.mxu0 %v5140
    %5168 = vmatprep.subr.mxu0 0.0
    %5169 = vmatpush1.msra.mxu0 %v5141
    %5170 = vmatprep.subr.mxu0 0.0
    %5171 = vmatpush1.msra.mxu0 %v5142
    %5172 = vmatprep.subr.mxu0 0.0
    %5173 = vmatpush1.msra.mxu0 %v5143
    %5174 = vmatprep.subr.mxu0 0.0
    %5175 = vmatpush1.msra.mxu0 %v5144
    %5176 = vmatprep.subr.mxu0 0.0
    %5177 = vmatpush1.msra.mxu0 %v5145
    %5178 = vmatprep.subr.mxu0 0.0
    %5179 = vmatpush1.msra.mxu0 %v5146
    %5180 = vmatprep.subr.mxu0 0.0
    %5181 = vmatpush1.msra.mxu0 0.0
    %5182 = vmatprep.subr.mxu0 0.0
    %5183 = vmatpush1.msra.mxu0 0.0
    %5184 = vmatprep.subr.mxu0 0.0
    %5185 = vmatpush1.msra.mxu0 0.0
    %5186 = vmatprep.subr.mxu0 0.0
    %5187 = vmatpush1.msra.mxu0 0.0
    %5188 = vmatprep.subr.mxu0 0.0
    %5189 = vmatpush1.msra.mxu0 0.0
    %5190 = vmatprep.subr.mxu0 0.0
    %5191 = vmatpush1.msra.mxu0 0.0
    %5192 = vmatprep.subr.mxu0 0.0
    %5193 = vmatpush1.msra.mxu0 0.0
    %5194 = vmatprep.subr.mxu0 0.0
    %5195 = vmatpush1.msra.mxu0 0.0
    %5196 = vmatprep.subr.mxu0 0.0
    %5197 = vmatpush1.msra.mxu0 0.0
    %5198 = vmatprep.subr.mxu0 0.0
    %5199 = vmatpush1.msra.mxu0 0.0
    %5200 = vmatprep.subr.mxu0 0.0
    %5201 = vmatpush1.msra.mxu0 0.0
    %5202 = vmatprep.subr.mxu0 0.0
    %5203 = vmatpush1.msra.mxu0 0.0
    %5204 = vmatprep.subr.mxu0 0.0
    %5205 = vmatpush1.msra.mxu0 0.0
    %5206 = vmatprep.subr.mxu0 0.0
    %5207 = vmatpush1.msra.mxu0 0.0
    %5208 = vmatprep.subr.mxu0 0.0
    %5209 = vmatpush1.msra.mxu0 0.0
    %5210 = vmatprep.subr.mxu0 0.0
    %5211 = vmatpush1.msra.mxu0 0.0
    %5212 = vmatprep.subr.mxu0 0.0
    %5213 = vmatpush1.msra.mxu0 0.0
    %5214 = vmatprep.subr.mxu0 0.0
    %5215 = vmatpush1.msra.mxu0 0.0
    %5216 = vmatprep.subr.mxu0 0.0
    %5217 = vmatpush1.msra.mxu0 0.0
    %5218 = vmatprep.subr.mxu0 0.0
    %5219 = vmatpush1.msra.mxu0 0.0
    %5220 = vmatprep.subr.mxu0 0.0
    %5221 = vmatpush1.msra.mxu0 0.0
    %5222 = vmatprep.subr.mxu0 0.0
    %5223 = vmatpush1.msra.mxu0 0.0
    %5224 = vmatprep.subr.mxu0 0.0
    %5225 = vmatpush1.msra.mxu0 0.0
    %5226 = vmatprep.subr.mxu0 0.0
    %5227 = vmatpush1.msra.mxu0 0.0
    %5228 = vmatprep.mubr.f32.mxu0 0.0
    %5229 = vmatmul.mubr.f32.gmra.mrb[0].mxu0 %v5162
    %v5230 = vpop.f32.mrb[0].mxu0
    %v5231 = vadd.f32 %v5152, %v5230
    %v5232 = vpop.f32.mrb[0].mxu0
    %5233 = vdwg.mxu0
    %v5234 = vtanh.pop %v5231
    %v5235 = vld [vmem:[%s10] sm:$0xff]
    %v5236 = vld [vmem:[%s10 + $0x8] sm:$0xff]
    %v5237 = vld [vmem:[%s10 + $0x10] sm:$0xff]
    %v5238 = vld [vmem:[%s10 + $0x18] sm:$0xff]
    %v5239 = vld [vmem:[%s10 + $0x20] sm:$0xff]
    %v5240 = vld [vmem:[%s10 + $0x28] sm:$0xff]
    %v5241 = vld [vmem:[%s10 + $0x30] sm:$0xff]
    %v5242 = vld [vmem:[%s10 + $0x38] sm:$0xff]
    %v5243 = vld [vmem:[%s11] sm:$0x1]
    %v5245 = vlaneseq
    %v5246 = vshrl.u32 %v5245, 7
    %v5247 = vsub.s32 0, %v5246
    %v5248 = vrot.slane %v5243, %v5247
    %v5250 = vcombine.low %v5134, %v5138
    %v5252 = vunpack.c.l.s4 1983009808
    %v5253 = vunpack.c.0.s8 %v5252
    %v5254 = vlaneseq
    %v5255 = vshrl.u32 %v5254, 7
    %v5256 = vsub.s32 %v5253, %v5255
    %v5257 = vrot.slane %v5250, %v5256
    %v5258 = vsel %vm189, %v5257, 0
    %5260 = vmatprep.subr.mxu0 0.0
    %5261 = vmatpush1.msra.mxu0 %v5235
    %5262 = vmatprep.subr.mxu0 0.0
    %5263 = vmatpush1.msra.mxu0 %v5236
    %5264 = vmatprep.subr.mxu0 0.0
    %5265 = vmatpush1.msra.mxu0 %v5237
    %5266 = vmatprep.subr.mxu0 0.0
    %5267 = vmatpush1.msra.mxu0 %v5238
    %5268 = vmatprep.subr.mxu0 0.0
    %5269 = vmatpush1.msra.mxu0 %v5239
    %5270 = vmatprep.subr.mxu0 0.0
    %5271 = vmatpush1.msra.mxu0 %v5240
    %5272 = vmatprep.subr.mxu0 0.0
    %5273 = vmatpush1.msra.mxu0 %v5241
    %5274 = vmatprep.subr.mxu0 0.0
    %5275 = vmatpush1.msra.mxu0 %v5242
    %5276 = vmatprep.subr.mxu0 0.0
    %5277 = vmatpush1.msra.mxu0 0.0
    %5278 = vmatprep.subr.mxu0 0.0
    %5279 = vmatpush1.msra.mxu0 0.0
    %5280 = vmatprep.subr.mxu0 0.0
    %5281 = vmatpush1.msra.mxu0 0.0
    %5282 = vmatprep.subr.mxu0 0.0
    %5283 = vmatpush1.msra.mxu0 0.0
    %5284 = vmatprep.subr.mxu0 0.0
    %5285 = vmatpush1.msra.mxu0 0.0
    %5286 = vmatprep.subr.mxu0 0.0
    %5287 = vmatpush1.msra.mxu0 0.0
    %5288 = vmatprep.subr.mxu0 0.0
    %5289 = vmatpush1.msra.mxu0 0.0
    %5290 = vmatprep.subr.mxu0 0.0
    %5291 = vmatpush1.msra.mxu0 0.0
    %5292 = vmatprep.subr.mxu0 0.0
    %5293 = vmatpush1.msra.mxu0 0.0
    %5294 = vmatprep.subr.mxu0 0.0
    %5295 = vmatpush1.msra.mxu0 0.0
    %5296 = vmatprep.subr.mxu0 0.0
    %5297 = vmatpush1.msra.mxu0 0.0
    %5298 = vmatprep.subr.mxu0 0.0
    %5299 = vmatpush1.msra.mxu0 0.0
    %5300 = vmatprep.subr.mxu0 0.0
    %5301 = vmatpush1.msra.mxu0 0.0
    %5302 = vmatprep.subr.mxu0 0.0
    %5303 = vmatpush1.msra.mxu0 0.0
    %5304 = vmatprep.subr.mxu0 0.0
    %5305 = vmatpush1.msra.mxu0 0.0
    %5306 = vmatprep.subr.mxu0 0.0
    %5307 = vmatpush1.msra.mxu0 0.0
    %5308 = vmatprep.subr.mxu0 0.0
    %5309 = vmatpush1.msra.mxu0 0.0
    %5310 = vmatprep.subr.mxu0 0.0
    %5311 = vmatpush1.msra.mxu0 0.0
    %5312 = vmatprep.subr.mxu0 0.0
    %5313 = vmatpush1.msra.mxu0 0.0
    %5314 = vmatprep.subr.mxu0 0.0
    %5315 = vmatpush1.msra.mxu0 0.0
    %5316 = vmatprep.subr.mxu0 0.0
    %5317 = vmatpush1.msra.mxu0 0.0
    %5318 = vmatprep.subr.mxu0 0.0
    %5319 = vmatpush1.msra.mxu0 0.0
    %5320 = vmatprep.subr.mxu0 0.0
    %5321 = vmatpush1.msra.mxu0 0.0
    %5322 = vmatprep.subr.mxu0 0.0
    %5323 = vmatpush1.msra.mxu0 0.0
    %5324 = vmatprep.mubr.f32.mxu0 0.0
    %5325 = vmatmul.mubr.f32.gmra.mrb[0].mxu0 %v5258
    %v5326 = vpop.f32.mrb[0].mxu0
    %v5327 = vadd.f32 %v5248, %v5326
    %v5328 = vpop.f32.mrb[0].mxu0
    %5329 = vdwg.mxu0
    %v5330 = vtanh.pop %v5327
    %v5333 = vunpack.c.l.s4 1983009808
    %v5334 = vunpack.c.0.s8 %v5333
    %v5335 = vlaneseq
    %v5336 = vshrl.u32 %v5335, 7
    %v5337 = vsub.s32 %v5334, %v5336
    %v5338 = vrot.slane %v5234, %v5337
    %v5339 = vcombine.high %v5338, %v5338
    %vm5342 = vcmask 254976
    %5343 = vst.msk [vmem:[#allocation4] sm:$0x3] %vm5342, %v5338
    %5344 = vst.msk [vmem:[#allocation4 + $0x2] sm:$0x3] %vm5342, %v5339
    %v5347 = vunpack.c.l.s4 1983009808
    %v5348 = vunpack.c.0.s8 %v5347
    %v5349 = vlaneseq
    %v5350 = vshrl.u32 %v5349, 7
    %v5351 = vsub.s32 %v5348, %v5350
    %v5352 = vrot.slane %v5330, %v5351
    %v5353 = vcombine.high %v5352, %v5352
    %5356 = vst.msk [vmem:[#allocation6] sm:$0x3] %vm5342, %v5352
    %5357 = vst.msk [vmem:[#allocation6 + $0x2] sm:$0x3] %vm5342, %v5353
    %v5358 = vld [vmem:[%s13] sm:$0xff]
    %v5359 = vld [vmem:[%s13 + $0x8] sm:$0xff]
    %v5360 = vld [vmem:[%s13 + $0x10] sm:$0xff]
    %v5361 = vld [vmem:[%s13 + $0x18] sm:$0xff]
    %v5362 = vsel %vm105, %v5234, 0
    %5364 = vmatprep.subr.mxu0 0.0
    %5365 = vmatpush1.msra.mxu0 %v5358
    %5366 = vmatprep.subr.mxu0 0.0
    %5367 = vmatpush1.msra.mxu0 %v5359
    %5368 = vmatprep.subr.mxu0 0.0
    %5369 = vmatpush1.msra.mxu0 %v5360
    %5370 = vmatprep.subr.mxu0 0.0
    %5371 = vmatpush1.msra.mxu0 %v5361
    %5372 = vmatprep.subr.mxu0 0.0
    %5373 = vmatpush1.msra.mxu0 0.0
    %5374 = vmatprep.subr.mxu0 0.0
    %5375 = vmatpush1.msra.mxu0 0.0
    %5376 = vmatprep.subr.mxu0 0.0
    %5377 = vmatpush1.msra.mxu0 0.0
    %5378 = vmatprep.subr.mxu0 0.0
    %5379 = vmatpush1.msra.mxu0 0.0
    %5380 = vmatprep.subr.mxu0 0.0
    %5381 = vmatpush1.msra.mxu0 0.0
    %5382 = vmatprep.subr.mxu0 0.0
    %5383 = vmatpush1.msra.mxu0 0.0
    %5384 = vmatprep.subr.mxu0 0.0
    %5385 = vmatpush1.msra.mxu0 0.0
    %5386 = vmatprep.subr.mxu0 0.0
    %5387 = vmatpush1.msra.mxu0 0.0
    %5388 = vmatprep.subr.mxu0 0.0
    %5389 = vmatpush1.msra.mxu0 0.0
    %5390 = vmatprep.subr.mxu0 0.0
    %5391 = vmatpush1.msra.mxu0 0.0
    %5392 = vmatprep.subr.mxu0 0.0
    %5393 = vmatpush1.msra.mxu0 0.0
    %5394 = vmatprep.subr.mxu0 0.0
    %5395 = vmatpush1.msra.mxu0 0.0
    %5396 = vmatprep.subr.mxu0 0.0
    %5397 = vmatpush1.msra.mxu0 0.0
    %5398 = vmatprep.subr.mxu0 0.0
    %5399 = vmatpush1.msra.mxu0 0.0
    %5400 = vmatprep.subr.mxu0 0.0
    %5401 = vmatpush1.msra.mxu0 0.0
    %5402 = vmatprep.subr.mxu0 0.0
    %5403 = vmatpush1.msra.mxu0 0.0
    %5404 = vmatprep.subr.mxu0 0.0
    %5405 = vmatpush1.msra.mxu0 0.0
    %5406 = vmatprep.subr.mxu0 0.0
    %5407 = vmatpush1.msra.mxu0 0.0
    %5408 = vmatprep.subr.mxu0 0.0
    %5409 = vmatpush1.msra.mxu0 0.0
    %5410 = vmatprep.subr.mxu0 0.0
    %5411 = vmatpush1.msra.mxu0 0.0
    %5412 = vmatprep.subr.mxu0 0.0
    %5413 = vmatpush1.msra.mxu0 0.0
    %5414 = vmatprep.subr.mxu0 0.0
    %5415 = vmatpush1.msra.mxu0 0.0
    %5416 = vmatprep.subr.mxu0 0.0
    %5417 = vmatpush1.msra.mxu0 0.0
    %5418 = vmatprep.subr.mxu0 0.0
    %5419 = vmatpush1.msra.mxu0 0.0
    %5420 = vmatprep.subr.mxu0 0.0
    %5421 = vmatpush1.msra.mxu0 0.0
    %5422 = vmatprep.subr.mxu0 0.0
    %5423 = vmatpush1.msra.mxu0 0.0
    %5424 = vmatprep.subr.mxu0 0.0
    %5425 = vmatpush1.msra.mxu0 0.0
    %5426 = vmatprep.subr.mxu0 0.0
    %5427 = vmatpush1.msra.mxu0 0.0
    %5428 = vmatprep.mubr.f32.mxu0 0.0
    %5429 = vmatmul.mubr.f32.gmra.mrb[0].mxu0 %v5362
    %v5430 = vpop.f32.mrb[0].mxu0
    %v5431 = vadd.f32 0.0, %v5430
    %v5432 = vpop.f32.mrb[0].mxu0
    %5433 = vdwg.mxu0
    %v5434 = vmax.f32 %v5431, 0.0
    %v5435 = vld [vmem:[%s12] sm:$0xff]
    %v5436 = vld [vmem:[%s12 + $0x8] sm:$0xff]
    %v5437 = vld [vmem:[%s14] sm:$0xf]
    %v5438 = vld [vmem:[%s14 + $0x4] sm:$0xf]
    %v5439 = vld [vmem:[%s14 + $0x8] sm:$0xf]
    %v5440 = vld [vmem:[%s14 + $0xc] sm:$0xf]
    %v5441 = vld [vmem:[%s14 + $0x10] sm:$0xf]
    %v5442 = vld [vmem:[%s14 + $0x14] sm:$0xf]
    %v5443 = vld [vmem:[%s14 + $0x18] sm:$0xf]
    %v5444 = vld [vmem:[%s14 + $0x1c] sm:$0xf]
    %v5445 = vld [vmem:[%s14 + $0x20] sm:$0xf]
    %v5446 = vld [vmem:[%s14 + $0x24] sm:$0xf]
    %v5447 = vld [vmem:[%s14 + $0x28] sm:$0xf]
    %v5448 = vld [vmem:[%s14 + $0x2c] sm:$0xf]
    %v5449 = vld [vmem:[%s14 + $0x30] sm:$0xf]
    %v5450 = vld [vmem:[%s14 + $0x34] sm:$0xf]
    %v5451 = vld [vmem:[%s14 + $0x38] sm:$0xf]
    %v5452 = vld [vmem:[%s14 + $0x3c] sm:$0xf]
    %v5453 = vld [vmem:[%s14 + $0x40] sm:$0xf]
    %v5454 = vld [vmem:[%s14 + $0x44] sm:$0xf]
    %v5455 = vld [vmem:[%s14 + $0x48] sm:$0xf]
    %v5456 = vld [vmem:[%s14 + $0x4c] sm:$0xf]
    %v5457 = vld [vmem:[%s14 + $0x50] sm:$0xf]
    %v5458 = vld [vmem:[%s14 + $0x54] sm:$0xf]
    %v5459 = vld [vmem:[%s14 + $0x58] sm:$0xf]
    %v5460 = vld [vmem:[%s14 + $0x5c] sm:$0xf]
    %v5461 = vld [vmem:[%s14 + $0x60] sm:$0xf]
    %v5462 = vld [vmem:[%s14 + $0x64] sm:$0xf]
    %v5463 = vld [vmem:[%s14 + $0x68] sm:$0xf]
    %v5464 = vld [vmem:[%s14 + $0x6c] sm:$0xf]
    %v5465 = vld [vmem:[%s14 + $0x70] sm:$0xf]
    %v5466 = vld [vmem:[%s14 + $0x74] sm:$0xf]
    %v5467 = vld [vmem:[%s14 + $0x78] sm:$0xf]
    %v5468 = vld [vmem:[%s14 + $0x7c] sm:$0xf]
    %v5469 = vld [vmem:[%s14 + $0x80] sm:$0xf]
    %v5470 = vld [vmem:[%s14 + $0x84] sm:$0xf]
    %v5471 = vld [vmem:[%s14 + $0x88] sm:$0xf]
    %v5472 = vld [vmem:[%s14 + $0x8c] sm:$0xf]
    %v5473 = vld [vmem:[%s14 + $0x90] sm:$0xf]
    %v5474 = vld [vmem:[%s14 + $0x94] sm:$0xf]
    %v5475 = vld [vmem:[%s14 + $0x98] sm:$0xf]
    %v5476 = vld [vmem:[%s14 + $0x9c] sm:$0xf]
    %v5477 = vld [vmem:[%s14 + $0xa0] sm:$0xf]
    %v5478 = vld [vmem:[%s14 + $0xa4] sm:$0xf]
    %v5479 = vld [vmem:[%s14 + $0xa8] sm:$0xf]
    %v5480 = vld [vmem:[%s14 + $0xac] sm:$0xf]
    %v5481 = vld [vmem:[%s14 + $0xb0] sm:$0xf]
    %v5482 = vld [vmem:[%s14 + $0xb4] sm:$0xf]
    %v5483 = vld [vmem:[%s14 + $0xb8] sm:$0xf]
    %v5484 = vld [vmem:[%s14 + $0xbc] sm:$0xf]
    %v5485 = vld [vmem:[%s14 + $0xc0] sm:$0xf]
    %v5486 = vld [vmem:[%s14 + $0xc4] sm:$0xf]
    %v5487 = vld [vmem:[%s14 + $0xc8] sm:$0xf]
    %v5488 = vld [vmem:[%s14 + $0xcc] sm:$0xf]
    %v5489 = vld [vmem:[%s14 + $0xd0] sm:$0xf]
    %v5490 = vld [vmem:[%s14 + $0xd4] sm:$0xf]
    %v5491 = vld [vmem:[%s14 + $0xd8] sm:$0xf]
    %v5492 = vld [vmem:[%s14 + $0xdc] sm:$0xf]
    %v5493 = vld [vmem:[%s14 + $0xe0] sm:$0xf]
    %v5494 = vld [vmem:[%s14 + $0xe4] sm:$0xf]
    %v5495 = vld [vmem:[%s14 + $0xe8] sm:$0xf]
    %v5496 = vld [vmem:[%s14 + $0xec] sm:$0xf]
    %v5497 = vld [vmem:[%s14 + $0xf0] sm:$0xf]
    %v5498 = vld [vmem:[%s14 + $0xf4] sm:$0xf]
    %v5499 = vld [vmem:[%s14 + $0xf8] sm:$0xf]
    %v5500 = vld [vmem:[%s14 + $0xfc] sm:$0xf]
    %v5501 = vld [vmem:[%s14 + $0x100] sm:$0xf]
    %v5502 = vld [vmem:[%s14 + $0x104] sm:$0xf]
    %v5503 = vld [vmem:[%s14 + $0x108] sm:$0xf]
    %v5504 = vld [vmem:[%s14 + $0x10c] sm:$0xf]
    %v5505 = vld [vmem:[%s14 + $0x110] sm:$0xf]
    %v5506 = vld [vmem:[%s14 + $0x114] sm:$0xf]
    %v5507 = vld [vmem:[%s14 + $0x118] sm:$0xf]
    %v5508 = vld [vmem:[%s14 + $0x11c] sm:$0xf]
    %v5509 = vld [vmem:[%s14 + $0x120] sm:$0xf]
    %v5510 = vld [vmem:[%s14 + $0x124] sm:$0xf]
    %v5511 = vld [vmem:[%s14 + $0x128] sm:$0xf]
    %v5512 = vld [vmem:[%s14 + $0x12c] sm:$0xf]
    %v5513 = vld [vmem:[%s14 + $0x130] sm:$0xf]
    %v5514 = vld [vmem:[%s14 + $0x134] sm:$0xf]
    %v5515 = vld [vmem:[%s14 + $0x138] sm:$0xf]
    %v5516 = vld [vmem:[%s14 + $0x13c] sm:$0xf]
    %v5517 = vld [vmem:[%s14 + $0x140] sm:$0xf]
    %v5518 = vld [vmem:[%s14 + $0x144] sm:$0xf]
    %v5519 = vld [vmem:[%s14 + $0x148] sm:$0xf]
    %v5520 = vld [vmem:[%s14 + $0x14c] sm:$0xf]
    %v5521 = vld [vmem:[%s14 + $0x150] sm:$0xf]
    %v5522 = vld [vmem:[%s14 + $0x154] sm:$0xf]
    %v5523 = vld [vmem:[%s14 + $0x158] sm:$0xf]
    %v5524 = vld [vmem:[%s14 + $0x15c] sm:$0xf]
    %v5525 = vld [vmem:[%s14 + $0x160] sm:$0xf]
    %v5526 = vld [vmem:[%s14 + $0x164] sm:$0xf]
    %v5527 = vld [vmem:[%s14 + $0x168] sm:$0xf]
    %v5528 = vld [vmem:[%s14 + $0x16c] sm:$0xf]
    %v5529 = vld [vmem:[%s14 + $0x170] sm:$0xf]
    %v5530 = vld [vmem:[%s14 + $0x174] sm:$0xf]
    %v5531 = vld [vmem:[%s14 + $0x178] sm:$0xf]
    %v5532 = vld [vmem:[%s14 + $0x17c] sm:$0xf]
    %v5533 = vld [vmem:[%s14 + $0x180] sm:$0xf]
    %v5534 = vld [vmem:[%s14 + $0x184] sm:$0xf]
    %v5535 = vld [vmem:[%s14 + $0x188] sm:$0xf]
    %v5536 = vld [vmem:[%s14 + $0x18c] sm:$0xf]
    %v5537 = vld [vmem:[%s14 + $0x190] sm:$0xf]
    %v5538 = vld [vmem:[%s14 + $0x194] sm:$0xf]
    %v5539 = vld [vmem:[%s14 + $0x198] sm:$0xf]
    %v5540 = vld [vmem:[%s14 + $0x19c] sm:$0xf]
    %v5541 = vld [vmem:[%s14 + $0x1a0] sm:$0xf]
    %v5542 = vld [vmem:[%s14 + $0x1a4] sm:$0xf]
    %v5543 = vld [vmem:[%s14 + $0x1a8] sm:$0xf]
    %v5544 = vld [vmem:[%s14 + $0x1ac] sm:$0xf]
    %v5545 = vld [vmem:[%s14 + $0x1b0] sm:$0xf]
    %v5546 = vld [vmem:[%s14 + $0x1b4] sm:$0xf]
    %v5547 = vld [vmem:[%s14 + $0x1b8] sm:$0xf]
    %v5548 = vld [vmem:[%s14 + $0x1bc] sm:$0xf]
    %v5549 = vld [vmem:[%s14 + $0x1c0] sm:$0xf]
    %v5550 = vld [vmem:[%s14 + $0x1c4] sm:$0xf]
    %v5551 = vld [vmem:[%s14 + $0x1c8] sm:$0xf]
    %v5552 = vld [vmem:[%s14 + $0x1cc] sm:$0xf]
    %v5553 = vld [vmem:[%s14 + $0x1d0] sm:$0xf]
    %v5554 = vld [vmem:[%s14 + $0x1d4] sm:$0xf]
    %v5555 = vld [vmem:[%s14 + $0x1d8] sm:$0xf]
    %v5556 = vld [vmem:[%s14 + $0x1dc] sm:$0xf]
    %v5557 = vld [vmem:[%s14 + $0x1e0] sm:$0xf]
    %v5558 = vld [vmem:[%s14 + $0x1e4] sm:$0xf]
    %v5559 = vld [vmem:[%s14 + $0x1e8] sm:$0xf]
    %v5560 = vld [vmem:[%s14 + $0x1ec] sm:$0xf]
    %v5561 = vld [vmem:[%s14 + $0x1f0] sm:$0xf]
    %v5562 = vld [vmem:[%s14 + $0x1f4] sm:$0xf]
    %v5563 = vld [vmem:[%s14 + $0x1f8] sm:$0xf]
    %v5564 = vld [vmem:[%s14 + $0x1fc] sm:$0xf]
    %v5565 = vld [vmem:[%s14 + $0x200] sm:$0xf]
    %v5566 = vld [vmem:[%s14 + $0x204] sm:$0xf]
    %v5567 = vld [vmem:[%s14 + $0x208] sm:$0xf]
    %v5568 = vld [vmem:[%s14 + $0x20c] sm:$0xf]
    %v5569 = vld [vmem:[%s14 + $0x210] sm:$0xf]
    %v5570 = vld [vmem:[%s14 + $0x214] sm:$0xf]
    %v5571 = vld [vmem:[%s14 + $0x218] sm:$0xf]
    %v5572 = vld [vmem:[%s14 + $0x21c] sm:$0xf]
    %v5573 = vld [vmem:[%s14 + $0x220] sm:$0xf]
    %v5574 = vld [vmem:[%s14 + $0x224] sm:$0xf]
    %v5575 = vld [vmem:[%s14 + $0x228] sm:$0xf]
    %v5576 = vld [vmem:[%s14 + $0x22c] sm:$0xf]
    %v5577 = vld [vmem:[%s14 + $0x230] sm:$0xf]
    %v5578 = vld [vmem:[%s14 + $0x234] sm:$0xf]
    %v5579 = vld [vmem:[%s14 + $0x238] sm:$0xf]
    %v5580 = vld [vmem:[%s14 + $0x23c] sm:$0xf]
    %v5581 = vld [vmem:[%s14 + $0x240] sm:$0xf]
    %v5582 = vld [vmem:[%s14 + $0x244] sm:$0xf]
    %v5583 = vld [vmem:[%s14 + $0x248] sm:$0xf]
    %v5584 = vld [vmem:[%s14 + $0x24c] sm:$0xf]
    %v5585 = vld [vmem:[%s14 + $0x250] sm:$0xf]
    %v5586 = vld [vmem:[%s14 + $0x254] sm:$0xf]
    %v5587 = vld [vmem:[%s14 + $0x258] sm:$0xf]
    %v5588 = vld [vmem:[%s14 + $0x25c] sm:$0xf]
    %v5589 = vld [vmem:[%s14 + $0x260] sm:$0xf]
    %v5590 = vld [vmem:[%s14 + $0x264] sm:$0xf]
    %v5591 = vld [vmem:[%s14 + $0x268] sm:$0xf]
    %v5592 = vld [vmem:[%s14 + $0x26c] sm:$0xf]
    %v5593 = vld [vmem:[%s14 + $0x270] sm:$0xf]
    %v5594 = vld [vmem:[%s14 + $0x274] sm:$0xf]
    %v5595 = vld [vmem:[%s14 + $0x278] sm:$0xf]
    %v5596 = vld [vmem:[%s14 + $0x27c] sm:$0xf]
    %v5597 = vld [vmem:[%s14 + $0x280] sm:$0xf]
    %v5598 = vld [vmem:[%s14 + $0x284] sm:$0xf]
    %v5599 = vld [vmem:[%s14 + $0x288] sm:$0xf]
    %v5600 = vld [vmem:[%s14 + $0x28c] sm:$0xf]
    %v5601 = vld [vmem:[%s14 + $0x290] sm:$0xf]
    %v5602 = vld [vmem:[%s14 + $0x294] sm:$0xf]
    %v5603 = vld [vmem:[%s14 + $0x298] sm:$0xf]
    %v5604 = vld [vmem:[%s14 + $0x29c] sm:$0xf]
    %v5605 = vld [vmem:[%s14 + $0x2a0] sm:$0xf]
    %v5606 = vld [vmem:[%s14 + $0x2a4] sm:$0xf]
    %v5607 = vld [vmem:[%s14 + $0x2a8] sm:$0xf]
    %v5608 = vld [vmem:[%s14 + $0x2ac] sm:$0xf]
    %v5609 = vld [vmem:[%s14 + $0x2b0] sm:$0xf]
    %v5610 = vld [vmem:[%s14 + $0x2b4] sm:$0xf]
    %v5611 = vld [vmem:[%s14 + $0x2b8] sm:$0xf]
    %v5612 = vld [vmem:[%s14 + $0x2bc] sm:$0xf]
    %v5613 = vld [vmem:[%s14 + $0x2c0] sm:$0xf]
    %v5614 = vld [vmem:[%s14 + $0x2c4] sm:$0xf]
    %v5615 = vld [vmem:[%s14 + $0x2c8] sm:$0xf]
    %v5616 = vld [vmem:[%s14 + $0x2cc] sm:$0xf]
    %v5617 = vld [vmem:[%s14 + $0x2d0] sm:$0xf]
    %v5618 = vld [vmem:[%s14 + $0x2d4] sm:$0xf]
    %v5619 = vld [vmem:[%s14 + $0x2d8] sm:$0xf]
    %v5620 = vld [vmem:[%s14 + $0x2dc] sm:$0xf]
    %v5621 = vld [vmem:[%s14 + $0x2e0] sm:$0xf]
    %v5622 = vld [vmem:[%s14 + $0x2e4] sm:$0xf]
    %v5623 = vld [vmem:[%s14 + $0x2e8] sm:$0xf]
    %v5624 = vld [vmem:[%s14 + $0x2ec] sm:$0xf]
    %v5625 = vld [vmem:[%s14 + $0x2f0] sm:$0xf]
    %v5626 = vld [vmem:[%s14 + $0x2f4] sm:$0xf]
    %v5627 = vld [vmem:[%s14 + $0x2f8] sm:$0xf]
    %v5628 = vld [vmem:[%s14 + $0x2fc] sm:$0xf]
    %v5629 = vld [vmem:[%s14 + $0x300] sm:$0xf]
    %v5630 = vld [vmem:[%s14 + $0x304] sm:$0xf]
    %v5631 = vld [vmem:[%s14 + $0x308] sm:$0xf]
    %v5632 = vld [vmem:[%s14 + $0x30c] sm:$0xf]
    %v5633 = vld [vmem:[%s14 + $0x310] sm:$0xf]
    %v5634 = vld [vmem:[%s14 + $0x314] sm:$0xf]
    %v5635 = vld [vmem:[%s14 + $0x318] sm:$0xf]
    %v5636 = vld [vmem:[%s14 + $0x31c] sm:$0xf]
    %v5637 = vld [vmem:[%s14 + $0x320] sm:$0xf]
    %v5638 = vld [vmem:[%s14 + $0x324] sm:$0xf]
    %v5639 = vld [vmem:[%s14 + $0x328] sm:$0xf]
    %v5640 = vld [vmem:[%s14 + $0x32c] sm:$0xf]
    %v5641 = vld [vmem:[%s14 + $0x330] sm:$0xf]
    %v5642 = vld [vmem:[%s14 + $0x334] sm:$0xf]
    %v5643 = vld [vmem:[%s14 + $0x338] sm:$0xf]
    %v5644 = vld [vmem:[%s14 + $0x33c] sm:$0xf]
    %v5645 = vld [vmem:[%s14 + $0x340] sm:$0xf]
    %v5646 = vld [vmem:[%s14 + $0x344] sm:$0xf]
    %v5647 = vld [vmem:[%s14 + $0x348] sm:$0xf]
    %v5648 = vld [vmem:[%s14 + $0x34c] sm:$0xf]
    %v5649 = vld [vmem:[%s14 + $0x350] sm:$0xf]
    %v5650 = vld [vmem:[%s14 + $0x354] sm:$0xf]
    %v5651 = vld [vmem:[%s14 + $0x358] sm:$0xf]
    %v5652 = vld [vmem:[%s14 + $0x35c] sm:$0xf]
    %v5653 = vld [vmem:[%s14 + $0x360] sm:$0xf]
    %v5654 = vld [vmem:[%s14 + $0x364] sm:$0xf]
    %v5655 = vld [vmem:[%s14 + $0x368] sm:$0xf]
    %v5656 = vld [vmem:[%s14 + $0x36c] sm:$0xf]
    %v5657 = vld [vmem:[%s14 + $0x370] sm:$0xf]
    %v5658 = vld [vmem:[%s14 + $0x374] sm:$0xf]
    %v5659 = vld [vmem:[%s14 + $0x378] sm:$0xf]
    %v5660 = vld [vmem:[%s14 + $0x37c] sm:$0xf]
    %v5661 = vld [vmem:[%s14 + $0x380] sm:$0xf]
    %v5662 = vld [vmem:[%s14 + $0x384] sm:$0xf]
    %v5663 = vld [vmem:[%s14 + $0x388] sm:$0xf]
    %v5664 = vld [vmem:[%s14 + $0x38c] sm:$0xf]
    %v5665 = vld [vmem:[%s14 + $0x390] sm:$0xf]
    %v5666 = vld [vmem:[%s14 + $0x394] sm:$0xf]
    %v5667 = vld [vmem:[%s14 + $0x398] sm:$0xf]
    %v5668 = vld [vmem:[%s14 + $0x39c] sm:$0xf]
    %v5669 = vld [vmem:[%s14 + $0x3a0] sm:$0xf]
    %v5670 = vld [vmem:[%s14 + $0x3a4] sm:$0xf]
    %v5671 = vld [vmem:[%s14 + $0x3a8] sm:$0xf]
    %v5672 = vld [vmem:[%s14 + $0x3ac] sm:$0xf]
    %v5673 = vld [vmem:[%s14 + $0x3b0] sm:$0xf]
    %v5674 = vld [vmem:[%s14 + $0x3b4] sm:$0xf]
    %v5675 = vld [vmem:[%s14 + $0x3b8] sm:$0xf]
    %v5676 = vld [vmem:[%s14 + $0x3bc] sm:$0xf]
    %v5677 = vld [vmem:[%s14 + $0x3c0] sm:$0xf]
    %v5678 = vld [vmem:[%s14 + $0x3c4] sm:$0xf]
    %v5679 = vld [vmem:[%s14 + $0x3c8] sm:$0xf]
    %v5680 = vld [vmem:[%s14 + $0x3cc] sm:$0xf]
    %v5681 = vld [vmem:[%s14 + $0x3d0] sm:$0xf]
    %v5682 = vld [vmem:[%s14 + $0x3d4] sm:$0xf]
    %v5683 = vld [vmem:[%s14 + $0x3d8] sm:$0xf]
    %v5684 = vld [vmem:[%s14 + $0x3dc] sm:$0xf]
    %v5685 = vld [vmem:[%s14 + $0x3e0] sm:$0xf]
    %v5686 = vld [vmem:[%s14 + $0x3e4] sm:$0xf]
    %v5687 = vld [vmem:[%s14 + $0x3e8] sm:$0xf]
    %v5688 = vld [vmem:[%s14 + $0x3ec] sm:$0xf]
    %v5689 = vld [vmem:[%s14 + $0x3f0] sm:$0xf]
    %v5690 = vld [vmem:[%s14 + $0x3f4] sm:$0xf]
    %v5691 = vld [vmem:[%s14 + $0x3f8] sm:$0xf]
    %v5692 = vld [vmem:[%s14 + $0x3fc] sm:$0xf]
    %v5695 = vcombine.high %v5435, %v5435
    %v5697 = vunpack.c.l.s4 1966171168
    %v5698 = vunpack.c.0.s8 %v5697
    %v5699 = vlaneseq
    %v5700 = vshrl.u32 %v5699, 7
    %v5701 = vsub.s32 %v5698, %v5700
    %v5702 = vrot.slane %v5435, %v5701
    %v5704 = vunpack.c.l.s4 1966171168
    %v5705 = vunpack.c.0.s8 %v5704
    %v5706 = vlaneseq
    %v5707 = vshrl.u32 %v5706, 7
    %v5708 = vsub.s32 %v5705, %v5707
    %v5709 = vrot.slane %v5695, %v5708
    %v5710 = vcombine.high %v5702, %v5702
    %v5711 = vcombine.high %v5709, %v5709
    %v5713 = vunpack.c.l.s4 1966171168
    %v5714 = vunpack.c.0.s8 %v5713
    %v5715 = vlaneseq
    %v5716 = vshrl.u32 %v5715, 7
    %v5717 = vsub.s32 %v5714, %v5716
    %v5718 = vrot.slane %v5702, %v5717
    %v5720 = vunpack.c.l.s4 1966171168
    %v5721 = vunpack.c.0.s8 %v5720
    %v5722 = vlaneseq
    %v5723 = vshrl.u32 %v5722, 7
    %v5724 = vsub.s32 %v5721, %v5723
    %v5725 = vrot.slane %v5709, %v5724
    %v5727 = vunpack.c.l.s4 1966171168
    %v5728 = vunpack.c.0.s8 %v5727
    %v5729 = vlaneseq
    %v5730 = vshrl.u32 %v5729, 7
    %v5731 = vsub.s32 %v5728, %v5730
    %v5732 = vrot.slane %v5710, %v5731
    %v5734 = vunpack.c.l.s4 1966171168
    %v5735 = vunpack.c.0.s8 %v5734
    %v5736 = vlaneseq
    %v5737 = vshrl.u32 %v5736, 7
    %v5738 = vsub.s32 %v5735, %v5737
    %v5739 = vrot.slane %v5711, %v5738
    %v5740 = vcombine.high %v5718, %v5718
    %v5741 = vcombine.high %v5725, %v5725
    %v5742 = vcombine.high %v5732, %v5732
    %v5743 = vcombine.high %v5739, %v5739
    %v5744 = vcombine.high %v5436, %v5436
    %v5746 = vunpack.c.l.s4 1966171168
    %v5747 = vunpack.c.0.s8 %v5746
    %v5748 = vlaneseq
    %v5749 = vshrl.u32 %v5748, 7
    %v5750 = vsub.s32 %v5747, %v5749
    %v5751 = vrot.slane %v5436, %v5750
    %v5753 = vunpack.c.l.s4 1966171168
    %v5754 = vunpack.c.0.s8 %v5753
    %v5755 = vlaneseq
    %v5756 = vshrl.u32 %v5755, 7
    %v5757 = vsub.s32 %v5754, %v5756
    %v5758 = vrot.slane %v5744, %v5757
    %v5759 = vcombine.high %v5751, %v5751
    %v5760 = vcombine.high %v5758, %v5758
    %v5762 = vunpack.c.l.s4 1966171168
    %v5763 = vunpack.c.0.s8 %v5762
    %v5764 = vlaneseq
    %v5765 = vshrl.u32 %v5764, 7
    %v5766 = vsub.s32 %v5763, %v5765
    %v5767 = vrot.slane %v5751, %v5766
    %v5769 = vunpack.c.l.s4 1966171168
    %v5770 = vunpack.c.0.s8 %v5769
    %v5771 = vlaneseq
    %v5772 = vshrl.u32 %v5771, 7
    %v5773 = vsub.s32 %v5770, %v5772
    %v5774 = vrot.slane %v5758, %v5773
    %v5776 = vunpack.c.l.s4 1966171168
    %v5777 = vunpack.c.0.s8 %v5776
    %v5778 = vlaneseq
    %v5779 = vshrl.u32 %v5778, 7
    %v5780 = vsub.s32 %v5777, %v5779
    %v5781 = vrot.slane %v5759, %v5780
    %v5783 = vunpack.c.l.s4 1966171168
    %v5784 = vunpack.c.0.s8 %v5783
    %v5785 = vlaneseq
    %v5786 = vshrl.u32 %v5785, 7
    %v5787 = vsub.s32 %v5784, %v5786
    %v5788 = vrot.slane %v5760, %v5787
    %v5789 = vcombine.high %v5767, %v5767
    %v5790 = vcombine.high %v5774, %v5774
    %v5791 = vcombine.high %v5781, %v5781
    %v5792 = vcombine.high %v5788, %v5788
    %v6065 = vunpack.c.l.b16 %v5437
    %v6066 = vunpack.c.l.b16 %v5438
    %v6067 = vunpack.c.l.b16 %v5439
    %v6068 = vunpack.c.l.b16 %v5440
    %v6069 = vunpack.c.l.b16 %v5441
    %v6070 = vunpack.c.l.b16 %v5442
    %v6071 = vunpack.c.l.b16 %v5443
    %v6072 = vunpack.c.l.b16 %v5444
    %v6073 = vunpack.c.l.b16 %v5445
    %v6074 = vunpack.c.l.b16 %v5446
    %v6075 = vunpack.c.l.b16 %v5447
    %v6076 = vunpack.c.l.b16 %v5448
    %v6077 = vunpack.c.l.b16 %v5449
    %v6078 = vunpack.c.l.b16 %v5450
    %v6079 = vunpack.c.l.b16 %v5451
    %v6080 = vunpack.c.l.b16 %v5452
    %v6081 = vunpack.c.l.b16 %v5453
    %v6082 = vunpack.c.l.b16 %v5454
    %v6083 = vunpack.c.l.b16 %v5455
    %v6084 = vunpack.c.l.b16 %v5456
    %v6085 = vunpack.c.l.b16 %v5457
    %v6086 = vunpack.c.l.b16 %v5458
    %v6087 = vunpack.c.l.b16 %v5459
    %v6088 = vunpack.c.l.b16 %v5460
    %v6089 = vunpack.c.l.b16 %v5461
    %v6090 = vunpack.c.l.b16 %v5462
    %v6091 = vunpack.c.l.b16 %v5463
    %v6092 = vunpack.c.l.b16 %v5464
    %v6093 = vunpack.c.l.b16 %v5465
    %v6094 = vunpack.c.l.b16 %v5466
    %v6095 = vunpack.c.l.b16 %v5467
    %v6096 = vunpack.c.l.b16 %v5468
    %v6097 = vunpack.c.l.b16 %v5469
    %v6098 = vunpack.c.l.b16 %v5470
    %v6099 = vunpack.c.l.b16 %v5471
    %v6100 = vunpack.c.l.b16 %v5472
    %v6101 = vunpack.c.l.b16 %v5473
    %v6102 = vunpack.c.l.b16 %v5474
    %v6103 = vunpack.c.l.b16 %v5475
    %v6104 = vunpack.c.l.b16 %v5476
    %v6105 = vunpack.c.l.b16 %v5477
    %v6106 = vunpack.c.l.b16 %v5478
    %v6107 = vunpack.c.l.b16 %v5479
    %v6108 = vunpack.c.l.b16 %v5480
    %v6109 = vunpack.c.l.b16 %v5481
    %v6110 = vunpack.c.l.b16 %v5482
    %v6111 = vunpack.c.l.b16 %v5483
    %v6112 = vunpack.c.l.b16 %v5484
    %v6113 = vunpack.c.l.b16 %v5485
    %v6114 = vunpack.c.l.b16 %v5486
    %v6115 = vunpack.c.l.b16 %v5487
    %v6116 = vunpack.c.l.b16 %v5488
    %v6117 = vunpack.c.l.b16 %v5489
    %v6118 = vunpack.c.l.b16 %v5490
    %v6119 = vunpack.c.l.b16 %v5491
    %v6120 = vunpack.c.l.b16 %v5492
    %v6121 = vunpack.c.l.b16 %v5493
    %v6122 = vunpack.c.l.b16 %v5494
    %v6123 = vunpack.c.l.b16 %v5495
    %v6124 = vunpack.c.l.b16 %v5496
    %v6125 = vunpack.c.l.b16 %v5497
    %v6126 = vunpack.c.l.b16 %v5498
    %v6127 = vunpack.c.l.b16 %v5499
    %v6128 = vunpack.c.l.b16 %v5500
    %v6129 = vunpack.c.l.b16 %v5501
    %v6130 = vunpack.c.l.b16 %v5502
    %v6131 = vunpack.c.l.b16 %v5503
    %v6132 = vunpack.c.l.b16 %v5504
    %v6133 = vunpack.c.l.b16 %v5505
    %v6134 = vunpack.c.l.b16 %v5506
    %v6135 = vunpack.c.l.b16 %v5507
    %v6136 = vunpack.c.l.b16 %v5508
    %v6137 = vunpack.c.l.b16 %v5509
    %v6138 = vunpack.c.l.b16 %v5510
    %v6139 = vunpack.c.l.b16 %v5511
    %v6140 = vunpack.c.l.b16 %v5512
    %v6141 = vunpack.c.l.b16 %v5513
    %v6142 = vunpack.c.l.b16 %v5514
    %v6143 = vunpack.c.l.b16 %v5515
    %v6144 = vunpack.c.l.b16 %v5516
    %v6145 = vunpack.c.l.b16 %v5517
    %v6146 = vunpack.c.l.b16 %v5518
    %v6147 = vunpack.c.l.b16 %v5519
    %v6148 = vunpack.c.l.b16 %v5520
    %v6149 = vunpack.c.l.b16 %v5521
    %v6150 = vunpack.c.l.b16 %v5522
    %v6151 = vunpack.c.l.b16 %v5523
    %v6152 = vunpack.c.l.b16 %v5524
    %v6153 = vunpack.c.l.b16 %v5525
    %v6154 = vunpack.c.l.b16 %v5526
    %v6155 = vunpack.c.l.b16 %v5527
    %v6156 = vunpack.c.l.b16 %v5528
    %v6157 = vunpack.c.l.b16 %v5529
    %v6158 = vunpack.c.l.b16 %v5530
    %v6159 = vunpack.c.l.b16 %v5531
    %v6160 = vunpack.c.l.b16 %v5532
    %v6161 = vunpack.c.l.b16 %v5533
    %v6162 = vunpack.c.l.b16 %v5534
    %v6163 = vunpack.c.l.b16 %v5535
    %v6164 = vunpack.c.l.b16 %v5536
    %v6165 = vunpack.c.l.b16 %v5537
    %v6166 = vunpack.c.l.b16 %v5538
    %v6167 = vunpack.c.l.b16 %v5539
    %v6168 = vunpack.c.l.b16 %v5540
    %v6169 = vunpack.c.l.b16 %v5541
    %v6170 = vunpack.c.l.b16 %v5542
    %v6171 = vunpack.c.l.b16 %v5543
    %v6172 = vunpack.c.l.b16 %v5544
    %v6173 = vunpack.c.l.b16 %v5545
    %v6174 = vunpack.c.l.b16 %v5546
    %v6175 = vunpack.c.l.b16 %v5547
    %v6176 = vunpack.c.l.b16 %v5548
    %v6177 = vunpack.c.l.b16 %v5549
    %v6178 = vunpack.c.l.b16 %v5550
    %v6179 = vunpack.c.l.b16 %v5551
    %v6180 = vunpack.c.l.b16 %v5552
    %v6181 = vunpack.c.l.b16 %v5553
    %v6182 = vunpack.c.l.b16 %v5554
    %v6183 = vunpack.c.l.b16 %v5555
    %v6184 = vunpack.c.l.b16 %v5556
    %v6185 = vunpack.c.l.b16 %v5557
    %v6186 = vunpack.c.l.b16 %v5558
    %v6187 = vunpack.c.l.b16 %v5559
    %v6188 = vunpack.c.l.b16 %v5560
    %v6189 = vunpack.c.l.b16 %v5561
    %v6190 = vunpack.c.l.b16 %v5562
    %v6191 = vunpack.c.l.b16 %v5563
    %v6192 = vunpack.c.l.b16 %v5564
    %v6193 = vunpack.c.l.b16 %v5565
    %v6194 = vunpack.c.l.b16 %v5566
    %v6195 = vunpack.c.l.b16 %v5567
    %v6196 = vunpack.c.l.b16 %v5568
    %v6197 = vunpack.c.l.b16 %v5569
    %v6198 = vunpack.c.l.b16 %v5570
    %v6199 = vunpack.c.l.b16 %v5571
    %v6200 = vunpack.c.l.b16 %v5572
    %v6201 = vunpack.c.l.b16 %v5573
    %v6202 = vunpack.c.l.b16 %v5574
    %v6203 = vunpack.c.l.b16 %v5575
    %v6204 = vunpack.c.l.b16 %v5576
    %v6205 = vunpack.c.l.b16 %v5577
    %v6206 = vunpack.c.l.b16 %v5578
    %v6207 = vunpack.c.l.b16 %v5579
    %v6208 = vunpack.c.l.b16 %v5580
    %v6209 = vunpack.c.l.b16 %v5581
    %v6210 = vunpack.c.l.b16 %v5582
    %v6211 = vunpack.c.l.b16 %v5583
    %v6212 = vunpack.c.l.b16 %v5584
    %v6213 = vunpack.c.l.b16 %v5585
    %v6214 = vunpack.c.l.b16 %v5586
    %v6215 = vunpack.c.l.b16 %v5587
    %v6216 = vunpack.c.l.b16 %v5588
    %v6217 = vunpack.c.l.b16 %v5589
    %v6218 = vunpack.c.l.b16 %v5590
    %v6219 = vunpack.c.l.b16 %v5591
    %v6220 = vunpack.c.l.b16 %v5592
    %v6221 = vunpack.c.l.b16 %v5593
    %v6222 = vunpack.c.l.b16 %v5594
    %v6223 = vunpack.c.l.b16 %v5595
    %v6224 = vunpack.c.l.b16 %v5596
    %v6225 = vunpack.c.l.b16 %v5597
    %v6226 = vunpack.c.l.b16 %v5598
    %v6227 = vunpack.c.l.b16 %v5599
    %v6228 = vunpack.c.l.b16 %v5600
    %v6229 = vunpack.c.l.b16 %v5601
    %v6230 = vunpack.c.l.b16 %v5602
    %v6231 = vunpack.c.l.b16 %v5603
    %v6232 = vunpack.c.l.b16 %v5604
    %v6233 = vunpack.c.l.b16 %v5605
    %v6234 = vunpack.c.l.b16 %v5606
    %v6235 = vunpack.c.l.b16 %v5607
    %v6236 = vunpack.c.l.b16 %v5608
    %v6237 = vunpack.c.l.b16 %v5609
    %v6238 = vunpack.c.l.b16 %v5610
    %v6239 = vunpack.c.l.b16 %v5611
    %v6240 = vunpack.c.l.b16 %v5612
    %v6241 = vunpack.c.l.b16 %v5613
    %v6242 = vunpack.c.l.b16 %v5614
    %v6243 = vunpack.c.l.b16 %v5615
    %v6244 = vunpack.c.l.b16 %v5616
    %v6245 = vunpack.c.l.b16 %v5617
    %v6246 = vunpack.c.l.b16 %v5618
    %v6247 = vunpack.c.l.b16 %v5619
    %v6248 = vunpack.c.l.b16 %v5620
    %v6249 = vunpack.c.l.b16 %v5621
    %v6250 = vunpack.c.l.b16 %v5622
    %v6251 = vunpack.c.l.b16 %v5623
    %v6252 = vunpack.c.l.b16 %v5624
    %v6253 = vunpack.c.l.b16 %v5625
    %v6254 = vunpack.c.l.b16 %v5626
    %v6255 = vunpack.c.l.b16 %v5627
    %v6256 = vunpack.c.l.b16 %v5628
    %v6257 = vunpack.c.l.b16 %v5629
    %v6258 = vunpack.c.l.b16 %v5630
    %v6259 = vunpack.c.l.b16 %v5631
    %v6260 = vunpack.c.l.b16 %v5632
    %v6261 = vunpack.c.l.b16 %v5633
    %v6262 = vunpack.c.l.b16 %v5634
    %v6263 = vunpack.c.l.b16 %v5635
    %v6264 = vunpack.c.l.b16 %v5636
    %v6265 = vunpack.c.l.b16 %v5637
    %v6266 = vunpack.c.l.b16 %v5638
    %v6267 = vunpack.c.l.b16 %v5639
    %v6268 = vunpack.c.l.b16 %v5640
    %v6269 = vunpack.c.l.b16 %v5641
    %v6270 = vunpack.c.l.b16 %v5642
    %v6271 = vunpack.c.l.b16 %v5643
    %v6272 = vunpack.c.l.b16 %v5644
    %v6273 = vunpack.c.l.b16 %v5645
    %v6274 = vunpack.c.l.b16 %v5646
    %v6275 = vunpack.c.l.b16 %v5647
    %v6276 = vunpack.c.l.b16 %v5648
    %v6277 = vunpack.c.l.b16 %v5649
    %v6278 = vunpack.c.l.b16 %v5650
    %v6279 = vunpack.c.l.b16 %v5651
    %v6280 = vunpack.c.l.b16 %v5652
    %v6281 = vunpack.c.l.b16 %v5653
    %v6282 = vunpack.c.l.b16 %v5654
    %v6283 = vunpack.c.l.b16 %v5655
    %v6284 = vunpack.c.l.b16 %v5656
    %v6285 = vunpack.c.l.b16 %v5657
    %v6286 = vunpack.c.l.b16 %v5658
    %v6287 = vunpack.c.l.b16 %v5659
    %v6288 = vunpack.c.l.b16 %v5660
    %v6289 = vunpack.c.l.b16 %v5661
    %v6290 = vunpack.c.l.b16 %v5662
    %v6291 = vunpack.c.l.b16 %v5663
    %v6292 = vunpack.c.l.b16 %v5664
    %v6293 = vunpack.c.l.b16 %v5665
    %v6294 = vunpack.c.l.b16 %v5666
    %v6295 = vunpack.c.l.b16 %v5667
    %v6296 = vunpack.c.l.b16 %v5668
    %v6297 = vunpack.c.l.b16 %v5669
    %v6298 = vunpack.c.l.b16 %v5670
    %v6299 = vunpack.c.l.b16 %v5671
    %v6300 = vunpack.c.l.b16 %v5672
    %v6301 = vunpack.c.l.b16 %v5673
    %v6302 = vunpack.c.l.b16 %v5674
    %v6303 = vunpack.c.l.b16 %v5675
    %v6304 = vunpack.c.l.b16 %v5676
    %v6305 = vunpack.c.l.b16 %v5677
    %v6306 = vunpack.c.l.b16 %v5678
    %v6307 = vunpack.c.l.b16 %v5679
    %v6308 = vunpack.c.l.b16 %v5680
    %v6309 = vunpack.c.l.b16 %v5681
    %v6310 = vunpack.c.l.b16 %v5682
    %v6311 = vunpack.c.l.b16 %v5683
    %v6312 = vunpack.c.l.b16 %v5684
    %v6313 = vunpack.c.l.b16 %v5685
    %v6314 = vunpack.c.l.b16 %v5686
    %v6315 = vunpack.c.l.b16 %v5687
    %v6316 = vunpack.c.l.b16 %v5688
    %v6317 = vunpack.c.l.b16 %v5689
    %v6318 = vunpack.c.l.b16 %v5690
    %v6319 = vunpack.c.l.b16 %v5691
    %v6320 = vunpack.c.l.b16 %v5692
    %v6321 = vpack.c.b16 %v6066, %v6065
    %v6322 = vpack.c.b16 %v6068, %v6067
    %v6323 = vpack.c.b16 %v6070, %v6069
    %v6324 = vpack.c.b16 %v6072, %v6071
    %v6325 = vpack.c.b16 %v6074, %v6073
    %v6326 = vpack.c.b16 %v6076, %v6075
    %v6327 = vpack.c.b16 %v6078, %v6077
    %v6328 = vpack.c.b16 %v6080, %v6079
    %v6329 = vpack.c.b16 %v6082, %v6081
    %v6330 = vpack.c.b16 %v6084, %v6083
    %v6331 = vpack.c.b16 %v6086, %v6085
    %v6332 = vpack.c.b16 %v6088, %v6087
    %v6333 = vpack.c.b16 %v6090, %v6089
    %v6334 = vpack.c.b16 %v6092, %v6091
    %v6335 = vpack.c.b16 %v6094, %v6093
    %v6336 = vpack.c.b16 %v6096, %v6095
    %v6337 = vpack.c.b16 %v6098, %v6097
    %v6338 = vpack.c.b16 %v6100, %v6099
    %v6339 = vpack.c.b16 %v6102, %v6101
    %v6340 = vpack.c.b16 %v6104, %v6103
    %v6341 = vpack.c.b16 %v6106, %v6105
    %v6342 = vpack.c.b16 %v6108, %v6107
    %v6343 = vpack.c.b16 %v6110, %v6109
    %v6344 = vpack.c.b16 %v6112, %v6111
    %v6345 = vpack.c.b16 %v6114, %v6113
    %v6346 = vpack.c.b16 %v6116, %v6115
    %v6347 = vpack.c.b16 %v6118, %v6117
    %v6348 = vpack.c.b16 %v6120, %v6119
    %v6349 = vpack.c.b16 %v6122, %v6121
    %v6350 = vpack.c.b16 %v6124, %v6123
    %v6351 = vpack.c.b16 %v6126, %v6125
    %v6352 = vpack.c.b16 %v6128, %v6127
    %v6353 = vpack.c.b16 %v6130, %v6129
    %v6354 = vpack.c.b16 %v6132, %v6131
    %v6355 = vpack.c.b16 %v6134, %v6133
    %v6356 = vpack.c.b16 %v6136, %v6135
    %v6357 = vpack.c.b16 %v6138, %v6137
    %v6358 = vpack.c.b16 %v6140, %v6139
    %v6359 = vpack.c.b16 %v6142, %v6141
    %v6360 = vpack.c.b16 %v6144, %v6143
    %v6361 = vpack.c.b16 %v6146, %v6145
    %v6362 = vpack.c.b16 %v6148, %v6147
    %v6363 = vpack.c.b16 %v6150, %v6149
    %v6364 = vpack.c.b16 %v6152, %v6151
    %v6365 = vpack.c.b16 %v6154, %v6153
    %v6366 = vpack.c.b16 %v6156, %v6155
    %v6367 = vpack.c.b16 %v6158, %v6157
    %v6368 = vpack.c.b16 %v6160, %v6159
    %v6369 = vpack.c.b16 %v6162, %v6161
    %v6370 = vpack.c.b16 %v6164, %v6163
    %v6371 = vpack.c.b16 %v6166, %v6165
    %v6372 = vpack.c.b16 %v6168, %v6167
    %v6373 = vpack.c.b16 %v6170, %v6169
    %v6374 = vpack.c.b16 %v6172, %v6171
    %v6375 = vpack.c.b16 %v6174, %v6173
    %v6376 = vpack.c.b16 %v6176, %v6175
    %v6377 = vpack.c.b16 %v6178, %v6177
    %v6378 = vpack.c.b16 %v6180, %v6179
    %v6379 = vpack.c.b16 %v6182, %v6181
    %v6380 = vpack.c.b16 %v6184, %v6183
    %v6381 = vpack.c.b16 %v6186, %v6185
    %v6382 = vpack.c.b16 %v6188, %v6187
    %v6383 = vpack.c.b16 %v6190, %v6189
    %v6384 = vpack.c.b16 %v6192, %v6191
    %v6385 = vpack.c.b16 %v6194, %v6193
    %v6386 = vpack.c.b16 %v6196, %v6195
    %v6387 = vpack.c.b16 %v6198, %v6197
    %v6388 = vpack.c.b16 %v6200, %v6199
    %v6389 = vpack.c.b16 %v6202, %v6201
    %v6390 = vpack.c.b16 %v6204, %v6203
    %v6391 = vpack.c.b16 %v6206, %v6205
    %v6392 = vpack.c.b16 %v6208, %v6207
    %v6393 = vpack.c.b16 %v6210, %v6209
    %v6394 = vpack.c.b16 %v6212, %v6211
    %v6395 = vpack.c.b16 %v6214, %v6213
    %v6396 = vpack.c.b16 %v6216, %v6215
    %v6397 = vpack.c.b16 %v6218, %v6217
    %v6398 = vpack.c.b16 %v6220, %v6219
    %v6399 = vpack.c.b16 %v6222, %v6221
    %v6400 = vpack.c.b16 %v6224, %v6223
    %v6401 = vpack.c.b16 %v6226, %v6225
    %v6402 = vpack.c.b16 %v6228, %v6227
    %v6403 = vpack.c.b16 %v6230, %v6229
    %v6404 = vpack.c.b16 %v6232, %v6231
    %v6405 = vpack.c.b16 %v6234, %v6233
    %v6406 = vpack.c.b16 %v6236, %v6235
    %v6407 = vpack.c.b16 %v6238, %v6237
    %v6408 = vpack.c.b16 %v6240, %v6239
    %v6409 = vpack.c.b16 %v6242, %v6241
    %v6410 = vpack.c.b16 %v6244, %v6243
    %v6411 = vpack.c.b16 %v6246, %v6245
    %v6412 = vpack.c.b16 %v6248, %v6247
    %v6413 = vpack.c.b16 %v6250, %v6249
    %v6414 = vpack.c.b16 %v6252, %v6251
    %v6415 = vpack.c.b16 %v6254, %v6253
    %v6416 = vpack.c.b16 %v6256, %v6255
    %v6417 = vpack.c.b16 %v6258, %v6257
    %v6418 = vpack.c.b16 %v6260, %v6259
    %v6419 = vpack.c.b16 %v6262, %v6261
    %v6420 = vpack.c.b16 %v6264, %v6263
    %v6421 = vpack.c.b16 %v6266, %v6265
    %v6422 = vpack.c.b16 %v6268, %v6267
    %v6423 = vpack.c.b16 %v6270, %v6269
    %v6424 = vpack.c.b16 %v6272, %v6271
    %v6425 = vpack.c.b16 %v6274, %v6273
    %v6426 = vpack.c.b16 %v6276, %v6275
    %v6427 = vpack.c.b16 %v6278, %v6277
    %v6428 = vpack.c.b16 %v6280, %v6279
    %v6429 = vpack.c.b16 %v6282, %v6281
    %v6430 = vpack.c.b16 %v6284, %v6283
    %v6431 = vpack.c.b16 %v6286, %v6285
    %v6432 = vpack.c.b16 %v6288, %v6287
    %v6433 = vpack.c.b16 %v6290, %v6289
    %v6434 = vpack.c.b16 %v6292, %v6291
    %v6435 = vpack.c.b16 %v6294, %v6293
    %v6436 = vpack.c.b16 %v6296, %v6295
    %v6437 = vpack.c.b16 %v6298, %v6297
    %v6438 = vpack.c.b16 %v6300, %v6299
    %v6439 = vpack.c.b16 %v6302, %v6301
    %v6440 = vpack.c.b16 %v6304, %v6303
    %v6441 = vpack.c.b16 %v6306, %v6305
    %v6442 = vpack.c.b16 %v6308, %v6307
    %v6443 = vpack.c.b16 %v6310, %v6309
    %v6444 = vpack.c.b16 %v6312, %v6311
    %v6445 = vpack.c.b16 %v6314, %v6313
    %v6446 = vpack.c.b16 %v6316, %v6315
    %v6447 = vpack.c.b16 %v6318, %v6317
    %v6448 = vpack.c.b16 %v6320, %v6319
    %6577 = vmatprep.subr.bf16.mxu0 0
    %6578 = vmatpush1.bf16.msra.mxu0 %v6321
    %6579 = vmatprep.subr.bf16.mxu0 0
    %6580 = vmatpush1.bf16.msra.mxu0 %v6322
    %6581 = vmatprep.subr.bf16.mxu0 0
    %6582 = vmatpush1.bf16.msra.mxu0 %v6323
    %6583 = vmatprep.subr.bf16.mxu0 0
    %6584 = vmatpush1.bf16.msra.mxu0 %v6324
    %6585 = vmatprep.subr.bf16.mxu0 0
    %6586 = vmatpush1.bf16.msra.mxu0 %v6325
    %6587 = vmatprep.subr.bf16.mxu0 0
    %6588 = vmatpush1.bf16.msra.mxu0 %v6326
    %6589 = vmatprep.subr.bf16.mxu0 0
    %6590 = vmatpush1.bf16.msra.mxu0 %v6327
    %6591 = vmatprep.subr.bf16.mxu0 0
    %6592 = vmatpush1.bf16.msra.mxu0 %v6328
    %6593 = vmatprep.subr.bf16.mxu0 0
    %6594 = vmatpush1.bf16.msra.mxu0 %v6329
    %6595 = vmatprep.subr.bf16.mxu0 0
    %6596 = vmatpush1.bf16.msra.mxu0 %v6330
    %6597 = vmatprep.subr.bf16.mxu0 0
    %6598 = vmatpush1.bf16.msra.mxu0 %v6331
    %6599 = vmatprep.subr.bf16.mxu0 0
    %6600 = vmatpush1.bf16.msra.mxu0 %v6332
    %6601 = vmatprep.subr.bf16.mxu0 0
    %6602 = vmatpush1.bf16.msra.mxu0 %v6333
    %6603 = vmatprep.subr.bf16.mxu0 0
    %6604 = vmatpush1.bf16.msra.mxu0 %v6334
    %6605 = vmatprep.subr.bf16.mxu0 0
    %6606 = vmatpush1.bf16.msra.mxu0 %v6335
    %6607 = vmatprep.subr.bf16.mxu0 0
    %6608 = vmatpush1.bf16.msra.mxu0 %v6336
    %6609 = vmatprep.mubr.bf16.mxu0 %v5732
    %6610 = vmatmul.mubr.bf16.gmra.mrb[0].mxu0 %v5718
    %v6611 = vpop.f32.mrb[0].mxu0
    %v6612 = vadd.f32 0.0, %v6611
    %v6613 = vpop.f32.mrb[0].mxu0
    %v6614 = vpop.f32.mrb[0].mxu0
    %v6615 = vpop.f32.mrb[0].mxu0
    %6616 = vdwg.mxu0
    %6617 = vmatprep.subr.bf16.mxu0 0
    %6618 = vmatpush1.bf16.msra.mxu0 %v6337
    %6619 = vmatprep.subr.bf16.mxu0 0
    %6620 = vmatpush1.bf16.msra.mxu0 %v6338
    %6621 = vmatprep.subr.bf16.mxu0 0
    %6622 = vmatpush1.bf16.msra.mxu0 %v6339
    %6623 = vmatprep.subr.bf16.mxu0 0
    %6624 = vmatpush1.bf16.msra.mxu0 %v6340
    %6625 = vmatprep.subr.bf16.mxu0 0
    %6626 = vmatpush1.bf16.msra.mxu0 %v6341
    %6627 = vmatprep.subr.bf16.mxu0 0
    %6628 = vmatpush1.bf16.msra.mxu0 %v6342
    %6629 = vmatprep.subr.bf16.mxu0 0
    %6630 = vmatpush1.bf16.msra.mxu0 %v6343
    %6631 = vmatprep.subr.bf16.mxu0 0
    %6632 = vmatpush1.bf16.msra.mxu0 %v6344
    %6633 = vmatprep.subr.bf16.mxu0 0
    %6634 = vmatpush1.bf16.msra.mxu0 %v6345
    %6635 = vmatprep.subr.bf16.mxu0 0
    %6636 = vmatpush1.bf16.msra.mxu0 %v6346
    %6637 = vmatprep.subr.bf16.mxu0 0
    %6638 = vmatpush1.bf16.msra.mxu0 %v6347
    %6639 = vmatprep.subr.bf16.mxu0 0
    %6640 = vmatpush1.bf16.msra.mxu0 %v6348
    %6641 = vmatprep.subr.bf16.mxu0 0
    %6642 = vmatpush1.bf16.msra.mxu0 %v6349
    %6643 = vmatprep.subr.bf16.mxu0 0
    %6644 = vmatpush1.bf16.msra.mxu0 %v6350
    %6645 = vmatprep.subr.bf16.mxu0 0
    %6646 = vmatpush1.bf16.msra.mxu0 %v6351
    %6647 = vmatprep.subr.bf16.mxu0 0
    %6648 = vmatpush1.bf16.msra.mxu0 %v6352
    %6649 = vmatprep.mubr.bf16.mxu0 %v5742
    %6650 = vmatmul.mubr.bf16.gmra.mrb[0].mxu0 %v5740
    %v6651 = vpop.f32.mrb[0].mxu0
    %v6652 = vadd.f32 %v6612, %v6651
    %v6653 = vpop.f32.mrb[0].mxu0
    %v6654 = vpop.f32.mrb[0].mxu0
    %v6655 = vpop.f32.mrb[0].mxu0
    %6656 = vdwg.mxu0
    %6657 = vmatprep.subr.bf16.mxu0 0
    %6658 = vmatpush1.bf16.msra.mxu0 %v6353
    %6659 = vmatprep.subr.bf16.mxu0 0
    %6660 = vmatpush1.bf16.msra.mxu0 %v6354
    %6661 = vmatprep.subr.bf16.mxu0 0
    %6662 = vmatpush1.bf16.msra.mxu0 %v6355
    %6663 = vmatprep.subr.bf16.mxu0 0
    %6664 = vmatpush1.bf16.msra.mxu0 %v6356
    %6665 = vmatprep.subr.bf16.mxu0 0
    %6666 = vmatpush1.bf16.msra.mxu0 %v6357
    %6667 = vmatprep.subr.bf16.mxu0 0
    %6668 = vmatpush1.bf16.msra.mxu0 %v6358
    %6669 = vmatprep.subr.bf16.mxu0 0
    %6670 = vmatpush1.bf16.msra.mxu0 %v6359
    %6671 = vmatprep.subr.bf16.mxu0 0
    %6672 = vmatpush1.bf16.msra.mxu0 %v6360
    %6673 = vmatprep.subr.bf16.mxu0 0
    %6674 = vmatpush1.bf16.msra.mxu0 %v6361
    %6675 = vmatprep.subr.bf16.mxu0 0
    %6676 = vmatpush1.bf16.msra.mxu0 %v6362
    %6677 = vmatprep.subr.bf16.mxu0 0
    %6678 = vmatpush1.bf16.msra.mxu0 %v6363
    %6679 = vmatprep.subr.bf16.mxu0 0
    %6680 = vmatpush1.bf16.msra.mxu0 %v6364
    %6681 = vmatprep.subr.bf16.mxu0 0
    %6682 = vmatpush1.bf16.msra.mxu0 %v6365
    %6683 = vmatprep.subr.bf16.mxu0 0
    %6684 = vmatpush1.bf16.msra.mxu0 %v6366
    %6685 = vmatprep.subr.bf16.mxu0 0
    %6686 = vmatpush1.bf16.msra.mxu0 %v6367
    %6687 = vmatprep.subr.bf16.mxu0 0
    %6688 = vmatpush1.bf16.msra.mxu0 %v6368
    %6689 = vmatprep.mubr.bf16.mxu0 %v5739
    %6690 = vmatmul.mubr.bf16.gmra.mrb[0].mxu0 %v5725
    %v6691 = vpop.f32.mrb[0].mxu0
    %v6692 = vadd.f32 %v6652, %v6691
    %v6693 = vpop.f32.mrb[0].mxu0
    %v6694 = vpop.f32.mrb[0].mxu0
    %v6695 = vpop.f32.mrb[0].mxu0
    %6696 = vdwg.mxu0
    %6697 = vmatprep.subr.bf16.mxu0 0
    %6698 = vmatpush1.bf16.msra.mxu0 %v6369
    %6699 = vmatprep.subr.bf16.mxu0 0
    %6700 = vmatpush1.bf16.msra.mxu0 %v6370
    %6701 = vmatprep.subr.bf16.mxu0 0
    %6702 = vmatpush1.bf16.msra.mxu0 %v6371
    %6703 = vmatprep.subr.bf16.mxu0 0
    %6704 = vmatpush1.bf16.msra.mxu0 %v6372
    %6705 = vmatprep.subr.bf16.mxu0 0
    %6706 = vmatpush1.bf16.msra.mxu0 %v6373
    %6707 = vmatprep.subr.bf16.mxu0 0
    %6708 = vmatpush1.bf16.msra.mxu0 %v6374
    %6709 = vmatprep.subr.bf16.mxu0 0
    %6710 = vmatpush1.bf16.msra.mxu0 %v6375
    %6711 = vmatprep.subr.bf16.mxu0 0
    %6712 = vmatpush1.bf16.msra.mxu0 %v6376
    %6713 = vmatprep.subr.bf16.mxu0 0
    %6714 = vmatpush1.bf16.msra.mxu0 %v6377
    %6715 = vmatprep.subr.bf16.mxu0 0
    %6716 = vmatpush1.bf16.msra.mxu0 %v6378
    %6717 = vmatprep.subr.bf16.mxu0 0
    %6718 = vmatpush1.bf16.msra.mxu0 %v6379
    %6719 = vmatprep.subr.bf16.mxu0 0
    %6720 = vmatpush1.bf16.msra.mxu0 %v6380
    %6721 = vmatprep.subr.bf16.mxu0 0
    %6722 = vmatpush1.bf16.msra.mxu0 %v6381
    %6723 = vmatprep.subr.bf16.mxu0 0
    %6724 = vmatpush1.bf16.msra.mxu0 %v6382
    %6725 = vmatprep.subr.bf16.mxu0 0
    %6726 = vmatpush1.bf16.msra.mxu0 %v6383
    %6727 = vmatprep.subr.bf16.mxu0 0
    %6728 = vmatpush1.bf16.msra.mxu0 %v6384
    %6729 = vmatprep.mubr.bf16.mxu0 %v5743
    %6730 = vmatmul.mubr.bf16.gmra.mrb[0].mxu0 %v5741
    %v6731 = vpop.f32.mrb[0].mxu0
    %v6732 = vadd.f32 %v6692, %v6731
    %v6733 = vpop.f32.mrb[0].mxu0
    %v6734 = vpop.f32.mrb[0].mxu0
    %v6735 = vpop.f32.mrb[0].mxu0
    %6736 = vdwg.mxu0
    %6737 = vmatprep.subr.bf16.mxu0 0
    %6738 = vmatpush1.bf16.msra.mxu0 %v6385
    %6739 = vmatprep.subr.bf16.mxu0 0
    %6740 = vmatpush1.bf16.msra.mxu0 %v6386
    %6741 = vmatprep.subr.bf16.mxu0 0
    %6742 = vmatpush1.bf16.msra.mxu0 %v6387
    %6743 = vmatprep.subr.bf16.mxu0 0
    %6744 = vmatpush1.bf16.msra.mxu0 %v6388
    %6745 = vmatprep.subr.bf16.mxu0 0
    %6746 = vmatpush1.bf16.msra.mxu0 %v6389
    %6747 = vmatprep.subr.bf16.mxu0 0
    %6748 = vmatpush1.bf16.msra.mxu0 %v6390
    %6749 = vmatprep.subr.bf16.mxu0 0
    %6750 = vmatpush1.bf16.msra.mxu0 %v6391
    %6751 = vmatprep.subr.bf16.mxu0 0
    %6752 = vmatpush1.bf16.msra.mxu0 %v6392
    %6753 = vmatprep.subr.bf16.mxu0 0
    %6754 = vmatpush1.bf16.msra.mxu0 %v6393
    %6755 = vmatprep.subr.bf16.mxu0 0
    %6756 = vmatpush1.bf16.msra.mxu0 %v6394
    %6757 = vmatprep.subr.bf16.mxu0 0
    %6758 = vmatpush1.bf16.msra.mxu0 %v6395
    %6759 = vmatprep.subr.bf16.mxu0 0
    %6760 = vmatpush1.bf16.msra.mxu0 %v6396
    %6761 = vmatprep.subr.bf16.mxu0 0
    %6762 = vmatpush1.bf16.msra.mxu0 %v6397
    %6763 = vmatprep.subr.bf16.mxu0 0
    %6764 = vmatpush1.bf16.msra.mxu0 %v6398
    %6765 = vmatprep.subr.bf16.mxu0 0
    %6766 = vmatpush1.bf16.msra.mxu0 %v6399
    %6767 = vmatprep.subr.bf16.mxu0 0
    %6768 = vmatpush1.bf16.msra.mxu0 %v6400
    %6769 = vmatprep.mubr.bf16.mxu0 %v5781
    %6770 = vmatmul.mubr.bf16.gmra.mrb[0].mxu0 %v5767
    %v6771 = vpop.f32.mrb[0].mxu0
    %v6772 = vadd.f32 %v6732, %v6771
    %v6773 = vpop.f32.mrb[0].mxu0
    %v6774 = vpop.f32.mrb[0].mxu0
    %v6775 = vpop.f32.mrb[0].mxu0
    %6776 = vdwg.mxu0
    %6777 = vmatprep.subr.bf16.mxu0 0
    %6778 = vmatpush1.bf16.msra.mxu0 %v6401
    %6779 = vmatprep.subr.bf16.mxu0 0
    %6780 = vmatpush1.bf16.msra.mxu0 %v6402
    %6781 = vmatprep.subr.bf16.mxu0 0
    %6782 = vmatpush1.bf16.msra.mxu0 %v6403
    %6783 = vmatprep.subr.bf16.mxu0 0
    %6784 = vmatpush1.bf16.msra.mxu0 %v6404
    %6785 = vmatprep.subr.bf16.mxu0 0
    %6786 = vmatpush1.bf16.msra.mxu0 %v6405
    %6787 = vmatprep.subr.bf16.mxu0 0
    %6788 = vmatpush1.bf16.msra.mxu0 %v6406
    %6789 = vmatprep.subr.bf16.mxu0 0
    %6790 = vmatpush1.bf16.msra.mxu0 %v6407
    %6791 = vmatprep.subr.bf16.mxu0 0
    %6792 = vmatpush1.bf16.msra.mxu0 %v6408
    %6793 = vmatprep.subr.bf16.mxu0 0
    %6794 = vmatpush1.bf16.msra.mxu0 %v6409
    %6795 = vmatprep.subr.bf16.mxu0 0
    %6796 = vmatpush1.bf16.msra.mxu0 %v6410
    %6797 = vmatprep.subr.bf16.mxu0 0
    %6798 = vmatpush1.bf16.msra.mxu0 %v6411
    %6799 = vmatprep.subr.bf16.mxu0 0
    %6800 = vmatpush1.bf16.msra.mxu0 %v6412
    %6801 = vmatprep.subr.bf16.mxu0 0
    %6802 = vmatpush1.bf16.msra.mxu0 %v6413
    %6803 = vmatprep.subr.bf16.mxu0 0
    %6804 = vmatpush1.bf16.msra.mxu0 %v6414
    %6805 = vmatprep.subr.bf16.mxu0 0
    %6806 = vmatpush1.bf16.msra.mxu0 %v6415
    %6807 = vmatprep.subr.bf16.mxu0 0
    %6808 = vmatpush1.bf16.msra.mxu0 %v6416
    %6809 = vmatprep.mubr.bf16.mxu0 %v5791
    %6810 = vmatmul.mubr.bf16.gmra.mrb[0].mxu0 %v5789
    %v6811 = vpop.f32.mrb[0].mxu0
    %v6812 = vadd.f32 %v6772, %v6811
    %v6813 = vpop.f32.mrb[0].mxu0
    %v6814 = vpop.f32.mrb[0].mxu0
    %v6815 = vpop.f32.mrb[0].mxu0
    %6816 = vdwg.mxu0
    %6817 = vmatprep.subr.bf16.mxu0 0
    %6818 = vmatpush1.bf16.msra.mxu0 %v6417
    %6819 = vmatprep.subr.bf16.mxu0 0
    %6820 = vmatpush1.bf16.msra.mxu0 %v6418
    %6821 = vmatprep.subr.bf16.mxu0 0
    %6822 = vmatpush1.bf16.msra.mxu0 %v6419
    %6823 = vmatprep.subr.bf16.mxu0 0
    %6824 = vmatpush1.bf16.msra.mxu0 %v6420
    %6825 = vmatprep.subr.bf16.mxu0 0
    %6826 = vmatpush1.bf16.msra.mxu0 %v6421
    %6827 = vmatprep.subr.bf16.mxu0 0
    %6828 = vmatpush1.bf16.msra.mxu0 %v6422
    %6829 = vmatprep.subr.bf16.mxu0 0
    %6830 = vmatpush1.bf16.msra.mxu0 %v6423
    %6831 = vmatprep.subr.bf16.mxu0 0
    %6832 = vmatpush1.bf16.msra.mxu0 %v6424
    %6833 = vmatprep.subr.bf16.mxu0 0
    %6834 = vmatpush1.bf16.msra.mxu0 %v6425
    %6835 = vmatprep.subr.bf16.mxu0 0
    %6836 = vmatpush1.bf16.msra.mxu0 %v6426
    %6837 = vmatprep.subr.bf16.mxu0 0
    %6838 = vmatpush1.bf16.msra.mxu0 %v6427
    %6839 = vmatprep.subr.bf16.mxu0 0
    %6840 = vmatpush1.bf16.msra.mxu0 %v6428
    %6841 = vmatprep.subr.bf16.mxu0 0
    %6842 = vmatpush1.bf16.msra.mxu0 %v6429
    %6843 = vmatprep.subr.bf16.mxu0 0
    %6844 = vmatpush1.bf16.msra.mxu0 %v6430
    %6845 = vmatprep.subr.bf16.mxu0 0
    %6846 = vmatpush1.bf16.msra.mxu0 %v6431
    %6847 = vmatprep.subr.bf16.mxu0 0
    %6848 = vmatpush1.bf16.msra.mxu0 %v6432
    %6849 = vmatprep.mubr.bf16.mxu0 %v5788
    %6850 = vmatmul.mubr.bf16.gmra.mrb[0].mxu0 %v5774
    %v6851 = vpop.f32.mrb[0].mxu0
    %v6852 = vadd.f32 %v6812, %v6851
    %v6853 = vpop.f32.mrb[0].mxu0
    %v6854 = vpop.f32.mrb[0].mxu0
    %v6855 = vpop.f32.mrb[0].mxu0
    %6856 = vdwg.mxu0
    %6857 = vmatprep.subr.bf16.mxu0 0
    %6858 = vmatpush1.bf16.msra.mxu0 %v6433
    %6859 = vmatprep.subr.bf16.mxu0 0
    %6860 = vmatpush1.bf16.msra.mxu0 %v6434
    %6861 = vmatprep.subr.bf16.mxu0 0
    %6862 = vmatpush1.bf16.msra.mxu0 %v6435
    %6863 = vmatprep.subr.bf16.mxu0 0
    %6864 = vmatpush1.bf16.msra.mxu0 %v6436
    %6865 = vmatprep.subr.bf16.mxu0 0
    %6866 = vmatpush1.bf16.msra.mxu0 %v6437
    %6867 = vmatprep.subr.bf16.mxu0 0
    %6868 = vmatpush1.bf16.msra.mxu0 %v6438
    %6869 = vmatprep.subr.bf16.mxu0 0
    %6870 = vmatpush1.bf16.msra.mxu0 %v6439
    %6871 = vmatprep.subr.bf16.mxu0 0
    %6872 = vmatpush1.bf16.msra.mxu0 %v6440
    %6873 = vmatprep.subr.bf16.mxu0 0
    %6874 = vmatpush1.bf16.msra.mxu0 %v6441
    %6875 = vmatprep.subr.bf16.mxu0 0
    %6876 = vmatpush1.bf16.msra.mxu0 %v6442
    %6877 = vmatprep.subr.bf16.mxu0 0
    %6878 = vmatpush1.bf16.msra.mxu0 %v6443
    %6879 = vmatprep.subr.bf16.mxu0 0
    %6880 = vmatpush1.bf16.msra.mxu0 %v6444
    %6881 = vmatprep.subr.bf16.mxu0 0
    %6882 = vmatpush1.bf16.msra.mxu0 %v6445
    %6883 = vmatprep.subr.bf16.mxu0 0
    %6884 = vmatpush1.bf16.msra.mxu0 %v6446
    %6885 = vmatprep.subr.bf16.mxu0 0
    %6886 = vmatpush1.bf16.msra.mxu0 %v6447
    %6887 = vmatprep.subr.bf16.mxu0 0
    %6888 = vmatpush1.bf16.msra.mxu0 %v6448
    %6889 = vmatprep.mubr.bf16.mxu0 %v5792
    %6890 = vmatmul.mubr.bf16.gmra.mrb[0].mxu0 %v5790
    %v6891 = vpop.f32.mrb[0].mxu0
    %v6892 = vadd.f32 %v6852, %v6891
    %v6893 = vpop.f32.mrb[0].mxu0
    %v6894 = vpop.f32.mrb[0].mxu0
    %v6895 = vpop.f32.mrb[0].mxu0
    %6896 = vdwg.mxu0
    %v6897 = vmax.f32 %v6892, 0.0
    %v6898 = vmul.f32 %v5434, %v6897
    %6899 = vst.msk [vmem:[#allocation9] sm:$0x3] %vm5342, %v6898
    %v6900 = vld [vmem:[%s15] sm:$0xff]
    %v6901 = vld [vmem:[%s15 + $0x8] sm:$0xff]
    %v6902 = vld [vmem:[%s15 + $0x10] sm:$0xff]
    %v6903 = vld [vmem:[%s15 + $0x18] sm:$0xff]
    %v6904 = vld [vmem:[%s16] sm:$0x1]
    %v6906 = vlaneseq
    %v6907 = vshrl.u32 %v6906, 7
    %v6908 = vsub.s32 0, %v6907
    %v6909 = vrot.slane %v6904, %v6908
    %v6912 = vsel %vm105, %v6898, 0
    %6914 = vmatprep.subr.mxu0 0.0
    %6915 = vmatpush1.msra.mxu0 %v6900
    %6916 = vmatprep.subr.mxu0 0.0
    %6917 = vmatpush1.msra.mxu0 %v6901
    %6918 = vmatprep.subr.mxu0 0.0
    %6919 = vmatpush1.msra.mxu0 %v6902
    %6920 = vmatprep.subr.mxu0 0.0
    %6921 = vmatpush1.msra.mxu0 %v6903
    %6922 = vmatprep.subr.mxu0 0.0
    %6923 = vmatpush1.msra.mxu0 0.0
    %6924 = vmatprep.subr.mxu0 0.0
    %6925 = vmatpush1.msra.mxu0 0.0
    %6926 = vmatprep.subr.mxu0 0.0
    %6927 = vmatpush1.msra.mxu0 0.0
    %6928 = vmatprep.subr.mxu0 0.0
    %6929 = vmatpush1.msra.mxu0 0.0
    %6930 = vmatprep.subr.mxu0 0.0
    %6931 = vmatpush1.msra.mxu0 0.0
    %6932 = vmatprep.subr.mxu0 0.0
    %6933 = vmatpush1.msra.mxu0 0.0
    %6934 = vmatprep.subr.mxu0 0.0
    %6935 = vmatpush1.msra.mxu0 0.0
    %6936 = vmatprep.subr.mxu0 0.0
    %6937 = vmatpush1.msra.mxu0 0.0
    %6938 = vmatprep.subr.mxu0 0.0
    %6939 = vmatpush1.msra.mxu0 0.0
    %6940 = vmatprep.subr.mxu0 0.0
    %6941 = vmatpush1.msra.mxu0 0.0
    %6942 = vmatprep.subr.mxu0 0.0
    %6943 = vmatpush1.msra.mxu0 0.0
    %6944 = vmatprep.subr.mxu0 0.0
    %6945 = vmatpush1.msra.mxu0 0.0
    %6946 = vmatprep.subr.mxu0 0.0
    %6947 = vmatpush1.msra.mxu0 0.0
    %6948 = vmatprep.subr.mxu0 0.0
    %6949 = vmatpush1.msra.mxu0 0.0
    %6950 = vmatprep.subr.mxu0 0.0
    %6951 = vmatpush1.msra.mxu0 0.0
    %6952 = vmatprep.subr.mxu0 0.0
    %6953 = vmatpush1.msra.mxu0 0.0
    %6954 = vmatprep.subr.mxu0 0.0
    %6955 = vmatpush1.msra.mxu0 0.0
    %6956 = vmatprep.subr.mxu0 0.0
    %6957 = vmatpush1.msra.mxu0 0.0
    %6958 = vmatprep.subr.mxu0 0.0
    %6959 = vmatpush1.msra.mxu0 0.0
    %6960 = vmatprep.subr.mxu0 0.0
    %6961 = vmatpush1.msra.mxu0 0.0
    %6962 = vmatprep.subr.mxu0 0.0
    %6963 = vmatpush1.msra.mxu0 0.0
    %6964 = vmatprep.subr.mxu0 0.0
    %6965 = vmatpush1.msra.mxu0 0.0
    %6966 = vmatprep.subr.mxu0 0.0
    %6967 = vmatpush1.msra.mxu0 0.0
    %6968 = vmatprep.subr.mxu0 0.0
    %6969 = vmatpush1.msra.mxu0 0.0
    %6970 = vmatprep.subr.mxu0 0.0
    %6971 = vmatpush1.msra.mxu0 0.0
    %6972 = vmatprep.subr.mxu0 0.0
    %6973 = vmatpush1.msra.mxu0 0.0
    %6974 = vmatprep.subr.mxu0 0.0
    %6975 = vmatpush1.msra.mxu0 0.0
    %6976 = vmatprep.subr.mxu0 0.0
    %6977 = vmatpush1.msra.mxu0 0.0
    %6978 = vmatprep.mubr.f32.mxu0 0.0
    %6979 = vmatmul.mubr.f32.gmra.mrb[0].mxu0 %v6912
    %v6980 = vpop.f32.mrb[0].mxu0
    %v6981 = vadd.f32 %v6909, %v6980
    %v6982 = vpop.f32.mrb[0].mxu0
    %6983 = vdwg.mxu0
    %v6984 = vtanh.pop %v6981
    %vm6985 = vcmask 123904
    %v6986 = vsel %vm6985, %v6984, -inf
    %6987 = vmax.xlane.f32.xlu0 %v6986
    %v6988 = vpop.xlane.xlu0 %6987
    %v6989 = vsub.f32 %v6984, %v6988
    %v6990 = vmul.f32 %v6989, 1.442695
    %v6991 = vpow.pop %v6990
    %v6992 = vsel %vm6985, %v6991, 0.0
    %6993 = vadd.xlane.f32.xlu0 %v6992
    %v6994 = vpop.xlane.xlu0 %6993
    %v6995 = vlog2.pop %v6994
    %v6996 = vmul.f32 %v6995, 0.6931472
    %v6997 = vadd.f32 %v6988, %v6996
    %v6998 = vsub.f32 %v6984, %v6997
    %6999 = vst.msk [vmem:[#allocation7] sm:$0x3] %vm6985, %v6998
    // Predicated region
    $region70: #{vqa_forward.1} parent=1 // pred_check
      _
    $region71: #{vqa_forward.1} parent=1 // pred_check_branch
      %7001 = sbr.rel (0) target = $region73
    $region72: #{vqa_forward.1} parent=1 // pred_region
      %s7003 = ssub.s32 256, 256
      %7004 = vsyncadd [#allocation3], %s7003
      %s7005 = sshll.u32 [#allocation2], 4
      %s7006 = int_to_ptr.vmem [resolvable:$true] %s7005
      %7011 = dma.vmem_to_hbm [thread:$0]  %s7006, 256, %s17, [#allocation3], 128, 128, 8
    $region73: #{vqa_forward.1} parent=1 // pred_fallthru
      _
    // Predicated region
    $region74: #{vqa_forward.1} parent=1 // pred_check
      _
    $region75: #{vqa_forward.1} parent=1 // pred_check_branch
      %7013 = sbr.rel (0) target = $region77
    $region76: #{vqa_forward.1} parent=1 // pred_region
      %s7015 = ssub.s32 64, 64
      %7016 = vsyncadd [#allocation5], %s7015
      %s7017 = sshll.u32 [#allocation4], 4
      %s7018 = int_to_ptr.vmem [resolvable:$true] %s7017
      %7023 = dma.vmem_to_hbm [thread:$0]  %s7018, 64, %s18, [#allocation5], 32, 32, 2
    $region77: #{vqa_forward.1} parent=1 // pred_fallthru
      _
    // Predicated region
    $region78: #{vqa_forward.1} parent=1 // pred_check
      _
    $region79: #{vqa_forward.1} parent=1 // pred_check_branch
      %7025 = sbr.rel (0) target = $region81
    $region80: #{vqa_forward.1} parent=1 // pred_region
      %s7027 = ssub.s32 64, 64
      %7028 = vsyncadd [#allocation5], %s7027
      %s7029 = sshll.u32 [#allocation6], 4
      %s7030 = int_to_ptr.vmem [resolvable:$true] %s7029
      %7035 = dma.vmem_to_hbm [thread:$0]  %s7030, 64, %s19, [#allocation5], 32, 32, 2
    $region81: #{vqa_forward.1} parent=1 // pred_fallthru
      _
    // Predicated region
    $region82: #{vqa_forward.1} parent=1 // pred_check
      _
    $region83: #{vqa_forward.1} parent=1 // pred_check_branch
      %7037 = sbr.rel (0) target = $region85
    $region84: #{vqa_forward.1} parent=1 // pred_region
      %s7039 = ssub.s32 32, 32
      %7040 = vsyncadd [#allocation8], %s7039
      %s7042 = sshll.u32 [#allocation7], 4
      %s7043 = int_to_ptr.vmem [resolvable:$true] %s7042
      %7045 = dma.vmem_to_hbm [thread:$0]  %s7043, 32, %s20, [#allocation8]
    $region85: #{vqa_forward.1} parent=1 // pred_fallthru
      _
    // Predicated region
    $region86: #{vqa_forward.1} parent=1 // pred_check
      _
    $region87: #{vqa_forward.1} parent=1 // pred_check_branch
      %7047 = sbr.rel (0) target = $region89
    $region88: #{vqa_forward.1} parent=1 // pred_region
      %s7049 = ssub.s32 32, 32
      %7050 = vsyncadd [#allocation8], %s7049
      %s7052 = sshll.u32 [#allocation9], 4
      %s7053 = int_to_ptr.vmem [resolvable:$true] %s7052
      %7055 = dma.vmem_to_hbm [thread:$0]  %s7053, 32, %s21, [#allocation8]
    $region89: #{vqa_forward.1} parent=1 // pred_fallthru
      _
    // Predicated region
    $region90: #{vqa_forward.1} parent=1 // pred_check
      _
    $region91: #{vqa_forward.1} parent=1 // pred_check_branch
      %7057 = sbr.rel (0) target = $region93
    $region92: #{vqa_forward.1} parent=1 // pred_region
      %7058 = dma.done [#allocation3], 256
    $region93: #{vqa_forward.1} parent=1 // pred_fallthru
      _
    // Predicated region
    $region94: #{vqa_forward.1} parent=1 // pred_check
      _
    $region95: #{vqa_forward.1} parent=1 // pred_check_branch
      %7060 = sbr.rel (0) target = $region97
    $region96: #{vqa_forward.1} parent=1 // pred_region
      %7061 = dma.done [#allocation5], 64
    $region97: #{vqa_forward.1} parent=1 // pred_fallthru
      _
    // Predicated region
    $region98: #{vqa_forward.1} parent=1 // pred_check
      _
    $region99: #{vqa_forward.1} parent=1 // pred_check_branch
      %7063 = sbr.rel (0) target = $region101
    $region100: #{vqa_forward.1} parent=1 // pred_region
      %7064 = dma.done [#allocation5], 64
    $region101: #{vqa_forward.1} parent=1 // pred_fallthru
      _
    // Predicated region
    $region102: #{vqa_forward.1} parent=1 // pred_check
      _
    $region103: #{vqa_forward.1} parent=1 // pred_check_branch
      %7066 = sbr.rel (0) target = $region105
    $region104: #{vqa_forward.1} parent=1 // pred_region
      %7067 = dma.done [#allocation8], 32
    $region105: #{vqa_forward.1} parent=1 // pred_fallthru
      _
    // Predicated region
    $region106: #{vqa_forward.1} parent=1 // pred_check
      _
    $region107: #{vqa_forward.1} parent=1 // pred_check_branch
      %7069 = sbr.rel (0) target = $region109
    $region108: #{vqa_forward.1} parent=1 // pred_region
      %7070 = dma.done [#allocation8], 32
    $region109: #{vqa_forward.1} parent=1 // pred_fallthru
      _
    %7071 = vsyncpa [#allocation3], 1
    %7072 = vsyncpa [#allocation5], 1
    %7073 = vsyncpa [#allocation8], 1

</llo_original>
